<compile_context>
chip_gen: v7x
topology: tpu7x:2x2x1
jax: 0.10.0
libtpu: 0.0.40
codegen_flags: <defaults>
</compile_context>

<pallas_src>
import math
from functools import partial

import jax
import jax.numpy as jnp
from jax import lax
from jax.experimental import pallas as pl
from jax.experimental.pallas import tpu as pltpu

EXPANSION = 4  # Bottleneck expansion


# ---------------------------------------------------------------------------
# small helpers
# ---------------------------------------------------------------------------
def _round_up(v, m):
    return ((v + m - 1) // m) * m


def _pick_div(n, candidates):
    for c in candidates:
        if n % c == 0:
            return c
    return n


def _vmem_limit(block_bytes):
    est = 3 * block_bytes + 8 * 1024 * 1024
    return int(min(max(est, 16 * 1024 * 1024), 48 * 1024 * 1024))


# ---------------------------------------------------------------------------
# Tiled MXU matmul kernels (1x1 convs + FC)
# ---------------------------------------------------------------------------
def _mm_bn_kernel(a_ref, b_ref, o_ref, stats_ref, acc_ref):
    """O = A @ B (bf16 out) + per-(M-tile) BN sum/sumsq partials in the epilogue."""
    k = pl.program_id(2)

    @pl.when(k == 0)
    def _():
        acc_ref[...] = jnp.zeros_like(acc_ref)

    acc_ref[...] += jnp.dot(a_ref[...], b_ref[...],
                            preferred_element_type=jnp.float32)

    @pl.when(k == pl.num_programs(2) - 1)
    def _():
        y = acc_ref[...]
        o_ref[...] = y.astype(o_ref.dtype)
        s = jnp.sum(y, axis=0, keepdims=True)
        ss = jnp.sum(y * y, axis=0, keepdims=True)
        stats_ref[0] = jnp.concatenate([s, ss], axis=0)


def matmul_bn(a, b):
    """A:(M,K) @ B:(K,N) -> (bf16 out, (gm,2,N) f32 BN partial stats). No bias."""
    if a.dtype != jnp.bfloat16:
        a = a.astype(jnp.bfloat16)
    M, K = a.shape
    _, N = b.shape
    tm = _pick_div(M, (1024, 512, 256, 128, 64, 32, 16, 8))
    tn = _pick_div(N, (512, 256, 128))
    tk = _pick_div(K, (512, 256, 128))
    gm, gn, gk = M // tm, N // tn, K // tk
    blk = (tm * tk + tk * tn + tm * tn) * 2 + tm * tn * 4 + 2 * tn * 4
    out, stats = pl.pallas_call(
        _mm_bn_kernel,
        out_shape=(jax.ShapeDtypeStruct((M, N), jnp.bfloat16),
                   jax.ShapeDtypeStruct((gm, 2, N), jnp.float32)),
        grid_spec=pltpu.PrefetchScalarGridSpec(
            num_scalar_prefetch=0, grid=(gm, gn, gk),
            in_specs=[pl.BlockSpec((tm, tk), lambda i, j, k: (i, k)),
                      pl.BlockSpec((tk, tn), lambda i, j, k: (k, j))],
            out_specs=(pl.BlockSpec((tm, tn), lambda i, j, k: (i, j)),
                       pl.BlockSpec((1, 2, tn), lambda i, j, k: (i, 0, j))),
            scratch_shapes=[pltpu.VMEM((tm, tn), jnp.float32)]),
        compiler_params=pltpu.CompilerParams(
            dimension_semantics=("parallel", "parallel", "arbitrary"),
            vmem_limit_bytes=_vmem_limit(blk)),
    )(a, b)
    return out, stats


def _mm_bias_kernel(a_ref, b_ref, bias_ref, o_ref, acc_ref):
    k = pl.program_id(2)

    @pl.when(k == 0)
    def _():
        acc_ref[...] = jnp.zeros_like(acc_ref)

    acc_ref[...] += jnp.dot(a_ref[...], b_ref[...],
                            preferred_element_type=jnp.float32)

    @pl.when(k == pl.num_programs(2) - 1)
    def _():
        o_ref[...] = (acc_ref[...] + bias_ref[...]).astype(o_ref.dtype)


def matmul_bias(a, b, bias):
    """A @ B + bias (f32 out). Used only for the final FC layer."""
    if a.dtype != jnp.bfloat16:
        a = a.astype(jnp.bfloat16)
    M, K = a.shape
    _, N = b.shape
    bias = bias.reshape(1, N).astype(jnp.float32)
    tm = _pick_div(M, (1024, 512, 256, 128, 64, 32, 16, 8))
    tn = _pick_div(N, (512, 256, 128))
    tk = _pick_div(K, (512, 256, 128))
    gm, gn, gk = M // tm, N // tn, K // tk
    blk = (tm * tk + tk * tn) * 2 + tm * tn * 8 + tn * 4
    return pl.pallas_call(
        _mm_bias_kernel,
        out_shape=jax.ShapeDtypeStruct((M, N), jnp.float32),
        grid_spec=pltpu.PrefetchScalarGridSpec(
            num_scalar_prefetch=0, grid=(gm, gn, gk),
            in_specs=[pl.BlockSpec((tm, tk), lambda i, j, k: (i, k)),
                      pl.BlockSpec((tk, tn), lambda i, j, k: (k, j)),
                      pl.BlockSpec((1, tn), lambda i, j, k: (0, j))],
            out_specs=pl.BlockSpec((tm, tn), lambda i, j, k: (i, j)),
            scratch_shapes=[pltpu.VMEM((tm, tn), jnp.float32)]),
        compiler_params=pltpu.CompilerParams(
            dimension_semantics=("parallel", "parallel", "arbitrary"),
            vmem_limit_bytes=_vmem_limit(blk)),
    )(a, b, bias)


# ---------------------------------------------------------------------------
# k x k conv (k > 1): per-image tap-matmul kernel, no HBM im2col
# ---------------------------------------------------------------------------
def _conv_tap_kernel(x_ref, w_ref, o_ref, stats_ref, *, k2, cin, Ho, Wo, Wf):
    """Stride-1 k2 x k2 conv on a flattened padded image.

    x_ref: (1, Hf*Wf, cin) bf16  (rows = h*Wf + w of the padded image)
    w_ref: (k2*k2*cin, tn) bf16
    Each tap (a, b) is a static row-offset slab of x; all taps accumulate in f32.
    Valid output columns (w < Wo) are extracted in VMEM; BN partials emitted.
    """
    R = Ho * Wf
    acc = None
    for a in range(k2):
        for b in range(k2):
            t = a * k2 + b
            lhs = x_ref[0, a * Wf + b:a * Wf + b + R, :]
            rhs = w_ref[t * cin:(t + 1) * cin, :]
            d = jnp.dot(lhs, rhs, preferred_element_type=jnp.float32)
            acc = d if acc is None else acc + d
    y = acc.reshape(Ho, Wf, acc.shape[-1])[:, :Wo, :]   # drop padded-W garbage cols
    o_ref[0] = y.astype(o_ref.dtype)
    s = jnp.sum(jnp.sum(y, axis=0), axis=0, keepdims=True)
    ss = jnp.sum(jnp.sum(y * y, axis=0), axis=0, keepdims=True)
    stats_ref[0] = jnp.concatenate([s, ss], axis=0)


def _pick_conv_tn(cout, k_all):
    for t in (512, 256, 128):
        if cout % t == 0 and k_all * t * 2 <= 4 * 1024 * 1024:
            return t
    return cout if cout <= 128 else 128


def conv_kxk(x, p, stride, padding):
    """k>1 conv.  Stride-2 is converted to stride-1 via space-to-depth (cheap XLA
    reshuffle, weight re-laid out at param time); then one Pallas kernel per
    (image, cout-tile) does the tap matmuls straight from VMEM."""
    N, H, W, C = x.shape
    kh, cout = p["kh"], p["cout"]
    Ho = (H + 2 * padding - kh) // stride + 1
    Wo = (W + 2 * padding - kh) // stride + 1
    if stride == 1:
        k2, cin2 = kh, C
        y = jnp.pad(x, ((0, 0), (padding, padding), (padding, padding), (0, 0)))
    else:  # stride == 2 -> space-to-depth
        k2, cin2 = (kh + 1) // 2, 4 * C
        Hp = _round_up(H + 2 * padding, 2)
        Wp = _round_up(W + 2 * padding, 2)
        xp = jnp.pad(x, ((0, 0), (padding, Hp - H - padding),
                         (padding, Wp - W - padding), (0, 0)))
        y = (xp.reshape(N, Hp // 2, 2, Wp // 2, 2, C)
               .transpose(0, 1, 3, 2, 4, 5)
               .reshape(N, Hp // 2, Wp // 2, cin2))
    Hy, Wy = y.shape[1], y.shape[2]
    Wf = _round_up(max(Wy, Wo + k2 - 1), 8)      # lane/sublane-friendly padded width
    Hf = max(Hy, Ho + k2)                        # slack row for the flat-offset taps
    y = jnp.pad(y, ((0, 0), (0, Hf - Hy), (0, Wf - Wy), (0, 0)))
    y_flat = y.reshape(N, Hf * Wf, cin2)

    k_all = k2 * k2 * cin2
    tn = _pick_conv_tn(cout, k_all)
    gj = cout // tn
    blk = (Hf * Wf * max(cin2, 128) + k_all * tn) * 2 \
        + Ho * Wf * tn * 4 + Ho * Wo * tn * 2 + 2 * tn * 4
    out, stats = pl.pallas_call(
        partial(_conv_tap_kernel, k2=k2, cin=cin2, Ho=Ho, Wo=Wo, Wf=Wf),
        out_shape=(jax.ShapeDtypeStruct((N, Ho, Wo, cout), jnp.bfloat16),
                   jax.ShapeDtypeStruct((N, 2, cout), jnp.float32)),
        grid_spec=pltpu.PrefetchScalarGridSpec(
            num_scalar_prefetch=0, grid=(N, gj),
            in_specs=[pl.BlockSpec((1, Hf * Wf, cin2), lambda n, j: (n, 0, 0)),
                      pl.BlockSpec((k_all, tn), lambda n, j: (0, j))],
            out_specs=(pl.BlockSpec((1, Ho, Wo, tn), lambda n, j: (n, 0, 0, j)),
                       pl.BlockSpec((1, 2, tn), lambda n, j: (n, 0, j)))),
        compiler_params=pltpu.CompilerParams(
            dimension_semantics=("parallel", "parallel"),
            vmem_limit_bytes=_vmem_limit(blk)),
    )(y_flat, p["w"])
    return out, stats


def conv1x1(x, p, stride):
    N, H, W, C = x.shape
    if stride > 1:
        x = x[:, ::stride, ::stride, :]
    _, Ho, Wo, _ = x.shape
    out2, stats = matmul_bn(x.reshape(N * Ho * Wo, C), p["w"])
    return out2.reshape(N, Ho, Wo, p["cout"]), stats


def conv2d(x, p, stride, padding):
    if p["kh"] == 1:
        return conv1x1(x, p, stride)
    return conv_kxk(x, p, stride, padding)


# ---------------------------------------------------------------------------
# BatchNorm apply (stats come from the conv kernels' epilogues)
# ---------------------------------------------------------------------------
def _bn_scale_shift(pstats, g, b, eps, inv_count):
    stats = jnp.sum(pstats, axis=0)                       # (2, C)
    mean = stats[0:1, :] * inv_count
    var = jnp.maximum(stats[1:2, :] * inv_count - mean * mean, 0.0)
    scale = g * lax.rsqrt(var + eps)
    shift = b - mean * scale
    return scale, shift


def _bn_apply_kernel(x_ref, ps_ref, g_ref, b_ref, o_ref, *, eps, inv_count, relu):
    scale, shift = _bn_scale_shift(ps_ref[...], g_ref[...], b_ref[...],
                                   eps, inv_count)
    y = x_ref[...].astype(jnp.float32) * scale + shift
    if relu:
        y = jnp.maximum(y, 0.0)
    o_ref[...] = y.astype(o_ref.dtype)


def _bn_apply_add_relu_kernel(x_ref, r_ref, ps_ref, g_ref, b_ref, o_ref, *,
                              eps, inv_count):
    scale, shift = _bn_scale_shift(ps_ref[...], g_ref[...], b_ref[...],
                                   eps, inv_count)
    y = (x_ref[...].astype(jnp.float32) * scale + shift
         + r_ref[...].astype(jnp.float32))
    o_ref[...] = jnp.maximum(y, 0.0).astype(o_ref.dtype)


def _row_tile(M, pref=512):
    return M if M <= pref else pref


def batchnorm_apply(x, pstats, bn, relu, eps=1e-5):
    # TODO(synk): running_mean/running_var buffers (training side effect) are not
    # materialized; only train-mode batch-stat forward is reproduced.
    N, H, W, C = x.shape
    M = N * H * W
    TR = _row_tile(M)
    y = pl.pallas_call(
        partial(_bn_apply_kernel, eps=eps, inv_count=1.0 / M, relu=relu),
        out_shape=jax.ShapeDtypeStruct((M, C), jnp.bfloat16),
        grid_spec=pltpu.PrefetchScalarGridSpec(
            num_scalar_prefetch=0, grid=(pl.cdiv(M, TR),),
            in_specs=[pl.BlockSpec((TR, C), lambda i: (i, 0)),
                      pl.BlockSpec(pstats.shape, lambda i: (0, 0, 0)),
                      pl.BlockSpec((1, C), lambda i: (0, 0)),
                      pl.BlockSpec((1, C), lambda i: (0, 0))],
            out_specs=pl.BlockSpec((TR, C), lambda i: (i, 0))),
        compiler_params=pltpu.CompilerParams(dimension_semantics=("parallel",)),
    )(x.reshape(M, C), pstats, bn["gamma"], bn["beta"])
    return y.reshape(N, H, W, C)


def batchnorm_apply_add_relu(x, res, pstats, bn, eps=1e-5):
    """Fused bn3 + residual add + ReLU (single HBM pass for the epilogue)."""
    N, H, W, C = x.shape
    M = N * H * W
    TR = _row_tile(M)
    y = pl.pallas_call(
        partial(_bn_apply_add_relu_kernel, eps=eps, inv_count=1.0 / M),
        out_shape=jax.ShapeDtypeStruct((M, C), jnp.bfloat16),
        grid_spec=pltpu.PrefetchScalarGridSpec(
            num_scalar_prefetch=0, grid=(pl.cdiv(M, TR),),
            in_specs=[pl.BlockSpec((TR, C), lambda i: (i, 0)),
                      pl.BlockSpec((TR, C), lambda i: (i, 0)),
                      pl.BlockSpec(pstats.shape, lambda i: (0, 0, 0)),
                      pl.BlockSpec((1, C), lambda i: (0, 0)),
                      pl.BlockSpec((1, C), lambda i: (0, 0))],
            out_specs=pl.BlockSpec((TR, C), lambda i: (i, 0))),
        compiler_params=pltpu.CompilerParams(dimension_semantics=("parallel",)),
    )(x.reshape(M, C), res.reshape(M, C), pstats, bn["gamma"], bn["beta"])
    return y.reshape(N, H, W, C)


# ---------------------------------------------------------------------------
# CBAM
# ---------------------------------------------------------------------------
def _ca_pool_kernel(x_ref, avg_ref, max_ref, *, hw, tile, needs_mask):
    t = pl.program_id(1)

    @pl.when(t == 0)
    def _():
        avg_ref[...] = jnp.zeros_like(avg_ref)
        max_ref[...] = jnp.full(max_ref.shape, -jnp.inf, max_ref.dtype)

    x = x_ref[...].astype(jnp.float32)
    if needs_mask:
        idx = t * tile + lax.broadcasted_iota(jnp.int32, x.shape, 1)
        valid = idx < hw
        xs = jnp.where(valid, x, 0.0)
        xm = jnp.where(valid, x, -jnp.inf)
    else:
        xs, xm = x, x
    avg_ref[...] += jnp.sum(xs, axis=1)
    max_ref[...] = jnp.maximum(max_ref[...], jnp.max(xm, axis=1))

    @pl.when(t == pl.num_programs(1) - 1)
    def _():
        avg_ref[...] *= (1.0 / hw)


def spatial_pool(x3):
    """Per-(n, c) spatial mean/max: (N, HW, C) -> two (N, C) f32."""
    N, HW, C = x3.shape
    TS = min(HW, 256)
    return pl.pallas_call(
        partial(_ca_pool_kernel, hw=HW, tile=TS, needs_mask=(HW % TS != 0)),
        out_shape=(jax.ShapeDtypeStruct((N, C), jnp.float32),
                   jax.ShapeDtypeStruct((N, C), jnp.float32)),
        grid_spec=pltpu.PrefetchScalarGridSpec(
            num_scalar_prefetch=0, grid=(N, pl.cdiv(HW, TS)),
            in_specs=[pl.BlockSpec((1, TS, C), lambda n, t: (n, t, 0))],
            out_specs=(pl.BlockSpec((1, C), lambda n, t: (n, 0)),
                       pl.BlockSpec((1, C), lambda n, t: (n, 0)))),
        compiler_params=pltpu.CompilerParams(
            dimension_semantics=("parallel", "arbitrary")),
    )(x3)


def _ca_mlp_kernel(avg_ref, max_ref, w1_ref, w2_ref, o_ref):
    w1 = w1_ref[...]
    w2 = w2_ref[...]
    a = jnp.maximum(jnp.dot(avg_ref[...], w1, preferred_element_type=jnp.float32), 0.0)
    m = jnp.maximum(jnp.dot(max_ref[...], w1, preferred_element_type=jnp.float32), 0.0)
    s = (jnp.dot(a, w2, preferred_element_type=jnp.float32)
         + jnp.dot(m, w2, preferred_element_type=jnp.float32))
    o_ref[...] = jax.nn.sigmoid(s).astype(o_ref.dtype)


def _ca_scale_sa_pool_kernel(x_ref, s_ref, o_ref, avg_ref, max_ref):
    # fused: x * channel-attention scale  AND  spatial-attention channel mean/max
    y = x_ref[...].astype(jnp.float32) * s_ref[...][:, None, :]
    o_ref[...] = y.astype(o_ref.dtype)
    avg_ref[...] = jnp.mean(y, axis=2)
    max_ref[...] = jnp.max(y, axis=2)


def _sa_conv_kernel(w_ref, a_ref, m_ref, o_ref, *, H, W):
    """7x7, 2-channel -> 1 conv on the pooled maps: 49 weighted shifted adds (VPU)."""
    a = a_ref[0]
    m = m_ref[0]
    acc = jnp.zeros((H, W), jnp.float32)
    for di in range(7):
        for dj in range(7):
            acc = (acc
                   + w_ref[di * 7 + dj] * lax.slice(a, (di, dj), (di + H, dj + W))
                   + w_ref[49 + di * 7 + dj] * lax.slice(m, (di, dj), (di + H, dj + W)))
    o_ref[0] = acc


def _sa_scale_kernel(x_ref, att_ref, o_ref):
    o_ref[...] = (x_ref[...].astype(jnp.float32)
                  * jax.nn.sigmoid(att_ref[...])[:, :, None]).astype(o_ref.dtype)


def cbam_block(x, ca, sa):
    N, H, W, C = x.shape
    HW = H * W
    x3 = x.reshape(N, HW, C)
    avg, mx = spatial_pool(x3)
    ca_scale = pl.pallas_call(              # tiny shared-MLP + sigmoid
        _ca_mlp_kernel,
        out_shape=jax.ShapeDtypeStruct((N, C), jnp.float32),
    )(avg, mx, ca["w1"], ca["w2"])
    TS = min(HW, 256)
    nt = pl.cdiv(HW, TS)
    x3s, samean, samax = pl.pallas_call(
        _ca_scale_sa_pool_kernel,
        out_shape=(jax.ShapeDtypeStruct((N, HW, C), jnp.bfloat16),
                   jax.ShapeDtypeStruct((N, HW), jnp.float32),
                   jax.ShapeDtypeStruct((N, HW), jnp.float32)),
        grid_spec=pltpu.PrefetchScalarGridSpec(
            num_scalar_prefetch=0, grid=(N, nt),
            in_specs=[pl.BlockSpec((1, TS, C), lambda n, t: (n, t, 0)),
                      pl.BlockSpec((1, C), lambda n, t: (n, 0))],
            out_specs=(pl.BlockSpec((1, TS, C), lambda n, t: (n, t, 0)),
                       pl.BlockSpec((1, TS), lambda n, t: (n, t)),
                       pl.BlockSpec((1, TS), lambda n, t: (n, t)))),
        compiler_params=pltpu.CompilerParams(
            dimension_semantics=("parallel", "parallel")),
    )(x3, ca_scale)
    # TODO(synk): the (3,3) zero-pad of the tiny pooled maps is still an XLA pad.
    ap = jnp.pad(samean.reshape(N, H, W), ((0, 0), (3, 3), (3, 3)))
    mp = jnp.pad(samax.reshape(N, H, W), ((0, 0), (3, 3), (3, 3)))
    att = pl.pallas_call(
        partial(_sa_conv_kernel, H=H, W=W),
        out_shape=jax.ShapeDtypeStruct((N, H, W), jnp.float32),
        grid_spec=pltpu.PrefetchScalarGridSpec(
            num_scalar_prefetch=0, grid=(N,),
            in_specs=[pl.BlockSpec(memory_space=pltpu.MemorySpace.SMEM),
                      pl.BlockSpec((1, H + 6, W + 6), lambda n: (n, 0, 0)),
                      pl.BlockSpec((1, H + 6, W + 6), lambda n: (n, 0, 0))],
            out_specs=pl.BlockSpec((1, H, W), lambda n: (n, 0, 0))),
        compiler_params=pltpu.CompilerParams(dimension_semantics=("parallel",)),
    )(sa["w"], ap, mp)
    y = pl.pallas_call(
        _sa_scale_kernel,
        out_shape=jax.ShapeDtypeStruct((N, HW, C), jnp.bfloat16),
        grid_spec=pltpu.PrefetchScalarGridSpec(
            num_scalar_prefetch=0, grid=(N, nt),
            in_specs=[pl.BlockSpec((1, TS, C), lambda n, t: (n, t, 0)),
                      pl.BlockSpec((1, TS), lambda n, t: (n, t))],
            out_specs=pl.BlockSpec((1, TS, C), lambda n, t: (n, t, 0))),
        compiler_params=pltpu.CompilerParams(
            dimension_semantics=("parallel", "parallel")),
    )(x3s, att.reshape(N, HW))
    return y.reshape(N, H, W, C)


# ---------------------------------------------------------------------------
# MaxPool 3x3 / stride 2 / pad 1
# ---------------------------------------------------------------------------
def _maxpool_kernel(xp_ref, o_ref, *, Ho, Wo):
    xp = xp_ref[0].astype(jnp.float32)               # (2*Ho+2, Wp, C)
    Wp, C = xp.shape[1], xp.shape[2]
    a = xp[0:2 * Ho].reshape(Ho, 2, Wp, C)
    b = xp[2:2 * Ho + 2].reshape(Ho, 2, Wp, C)
    rowmax = jnp.maximum(jnp.maximum(a[:, 0], a[:, 1]), b[:, 0])
    c1 = rowmax[:, 0:2 * Wo].reshape(Ho, Wo, 2, C)
    c2 = rowmax[:, 2:2 * Wo + 2].reshape(Ho, Wo, 2, C)
    o_ref[0] = jnp.maximum(jnp.maximum(c1[:, :, 0], c1[:, :, 1]),
                           c2[:, :, 0]).astype(o_ref.dtype)


def maxpool_3x3_s2_p1(x):
    N, H, W, C = x.shape
    Ho = (H - 1) // 2 + 1
    Wo = (W - 1) // 2 + 1
    Hp, Wp = 2 * Ho + 2, 2 * Wo + 2
    # TODO(synk): the -inf edge pad is still a small XLA pass outside the kernel.
    xp = jnp.pad(x, ((0, 0), (1, Hp - H - 1), (1, Wp - W - 1), (0, 0)),
                 constant_values=-jnp.inf)
    return pl.pallas_call(
        partial(_maxpool_kernel, Ho=Ho, Wo=Wo),
        out_shape=jax.ShapeDtypeStruct((N, Ho, Wo, C), jnp.bfloat16),
        grid_spec=pltpu.PrefetchScalarGridSpec(
            num_scalar_prefetch=0, grid=(N,),
            in_specs=[pl.BlockSpec((1, Hp, Wp, C), lambda n: (n, 0, 0, 0))],
            out_specs=pl.BlockSpec((1, Ho, Wo, C), lambda n: (n, 0, 0, 0))),
        compiler_params=pltpu.CompilerParams(dimension_semantics=("parallel",)),
    )(xp)


def global_avgpool(x):
    N, H, W, C = x.shape
    avg, _ = spatial_pool(x.reshape(N, H * W, C))
    return avg


# ---------------------------------------------------------------------------
# Parameter construction (mirrors PyTorch __init__ shapes / init)
# ---------------------------------------------------------------------------
class KeyGen:
    def __init__(self, seed=0):
        self.key = jax.random.PRNGKey(seed)

    def __call__(self):
        self.key, sub = jax.random.split(self.key)
        return sub


def _conv_weight(kg, cout, cin, kh, kw):
    n = kh * kw * cout
    return (jax.random.normal(kg(), (cout, cin, kh, kw), jnp.float32)
            * math.sqrt(2.0 / n))


def conv_params(kg, cout, cin, kh, kw, stride=1):
    """Conv weight pre-laid-out for its kernel (bf16, matmul-ready).
    For k>1 stride-2 convs the weight is re-arranged for the space-to-depth
    formulation at parameter time."""
    w = _conv_weight(kg, cout, cin, kh, kw)
    if kh == 1 and kw == 1:
        w_mat = jnp.transpose(w.reshape(cout, cin))
    elif stride == 1:
        w_mat = jnp.transpose(w, (2, 3, 1, 0)).reshape(kh * kw * cin, cout)
    else:  # stride 2: (k2,k2) taps over 4*cin space-to-depth channels
        k2 = (kh + 1) // 2
        wt = jnp.transpose(w, (2, 3, 1, 0))          # (kh, kw, cin, cout)
        w2 = jnp.zeros((k2, k2, 2, 2, cin, cout), jnp.float32)
        for a in range(k2):
            for alpha in range(2):
                di = 2 * a + alpha
                if di >= kh:
                    continue
                for b in range(k2):
                    for beta in range(2):
                        dj = 2 * b + beta
                        if dj >= kw:
                            continue
                        w2 = w2.at[a, b, alpha, beta].set(wt[di, dj])
        w_mat = w2.reshape(k2 * k2 * 4 * cin, cout)
    return {"w": w_mat.astype(jnp.bfloat16), "kh": kh, "kw": kw,
            "cin": cin, "cout": cout}


def bn_params(c):
    return {"gamma": jnp.ones((1, c), jnp.float32),
            "beta": jnp.zeros((1, c), jnp.float32)}


def ca_params(kg, c, ratio=16):
    hid = max(c // ratio, 1)
    w1 = _conv_weight(kg, hid, c, 1, 1).reshape(hid, c)
    w2 = _conv_weight(kg, c, hid, 1, 1).reshape(c, hid)
    hid_p = max(_round_up(hid, 128), 128)      # pad hidden dim to lane multiple
    w1_m = jnp.pad(jnp.transpose(w1), ((0, 0), (0, hid_p - hid)))
    w2_m = jnp.pad(jnp.transpose(w2), ((0, hid_p - hid), (0, 0)))
    return {"w1": w1_m, "w2": w2_m}


def sa_params(kg):
    w = _conv_weight(kg, 1, 2, 7, 7)
    return {"w": w.reshape(2 * 7 * 7)}


def bottleneck_params(kg, in_c, width, stride):
    p = {
        "conv1": conv_params(kg, width, in_c, 1, 1),
        "bn1": bn_params(width),
        "conv2": conv_params(kg, width, width, 3, 3, stride=stride),
        "bn2": bn_params(width),
        "conv3": conv_params(kg, width * EXPANSION, width, 1, 1),
        "bn3": bn_params(width * EXPANSION),
        "stride": stride,
    }
    if stride != 1 or in_c != width * EXPANSION:
        p["ds_conv"] = conv_params(kg, width * EXPANSION, in_c, 1, 1)
        p["ds_bn"] = bn_params(width * EXPANSION)
    return p


def make_resnet_cbam_params(kg, block_layers=(1, 1, 1, 1), num_classes=10):
    params = {"num_classes": num_classes}
    in_c = 64
    params["conv1"] = conv_params(kg, 64, 3, 7, 7, stride=2)
    params["bn1"] = bn_params(64)
    params["ca"] = ca_params(kg, 64)
    params["sa"] = sa_params(kg)
    layers = []
    for width, blocks, stride in zip((64, 128, 256, 512), block_layers, (1, 2, 2, 2)):
        blks = []
        for i in range(blocks):
            blks.append(bottleneck_params(kg, in_c, width, stride if i == 0 else 1))
            in_c = width * EXPANSION
        layers.append(blks)
    params["layers"] = layers
    params["ca1"] = ca_params(kg, in_c)
    params["sa1"] = sa_params(kg)
    nc_pad = max(_round_up(num_classes, 128), 128)   # lane-dense FC output
    fc_w = jax.random.normal(kg(), (in_c, num_classes), jnp.float32) * 0.01
    params["fc_w"] = jnp.pad(fc_w, ((0, 0), (0, nc_pad - num_classes))).astype(jnp.bfloat16)
    params["fc_b"] = jnp.zeros((nc_pad,), jnp.float32)
    return params


# ---------------------------------------------------------------------------
# Forward pass
# ---------------------------------------------------------------------------
def bottleneck_forward(x, p):
    identity = x
    out, st = conv2d(x, p["conv1"], 1, 0)
    out = batchnorm_apply(out, st, p["bn1"], relu=True)
    out, st = conv2d(out, p["conv2"], p["stride"], 1)
    out = batchnorm_apply(out, st, p["bn2"], relu=True)
    out, st3 = conv2d(out, p["conv3"], 1, 0)
    if "ds_conv" in p:
        identity, st_d = conv2d(x, p["ds_conv"], p["stride"], 0)
        identity = batchnorm_apply(identity, st_d, p["ds_bn"], relu=False)
    return batchnorm_apply_add_relu(out, identity, st3, p["bn3"])


def resnet_cbam_forward(x_nchw, params):
    x = jnp.transpose(x_nchw, (0, 2, 3, 1)).astype(jnp.bfloat16)  # NCHW -> NHWC once
    x, st = conv2d(x, params["conv1"], 2, 3)
    x = batchnorm_apply(x, st, params["bn1"], relu=True)
    x = cbam_block(x, params["ca"], params["sa"])
    x = maxpool_3x3_s2_p1(x)
    for layer in params["layers"]:
        for blk in layer:
            x = bottleneck_forward(x, blk)
    x = cbam_block(x, params["ca1"], params["sa1"])
    feat = global_avgpool(x)
    logits = matmul_bias(feat.astype(jnp.bfloat16), params["fc_w"], params["fc_b"])
    return logits[:, :params["num_classes"]]


if __name__ == "__main__":
    kg = KeyGen(0)
    params = make_resnet_cbam_params(kg, block_layers=(1, 1, 1, 1), num_classes=10)
    x = jax.random.normal(jax.random.PRNGKey(0), (2, 3, 32, 32), jnp.float32)
    out = resnet_cbam_forward(x, params)
    out = jax.block_until_ready(out)
    assert out.shape == (2, 10), out.shape
    assert bool(jnp.all(jnp.isfinite(out)))
    print("KERNEL_OK")
</pallas_src>

<mosaic_0001>
module attributes {stable_mosaic.version = 11 : i64} {
  func.func @_conv_tap_kernel(%arg0: i32, %arg1: i32, %arg2: memref<1x480x12xbf16, #tpu.memory_space<vmem>>, %arg3: memref<192x64xbf16, #tpu.memory_space<vmem>>, %arg4: memref<1x16x16x64xbf16, #tpu.memory_space<vmem>>, %arg5: memref<1x2x64xf32, #tpu.memory_space<vmem>>) attributes {dimension_semantics = [#tpu.dimension_semantics<parallel>, #tpu.dimension_semantics<parallel>], iteration_bounds = array<i64: 2, 1>, scalar_prefetch = 0 : i64, scratch_operands = 0 : i64, tpu.core_type = #tpu.core_type<tc>, window_params = [{transform_indices = @transform_0, window_bounds = array<i64: 1, 480, 12>}, {transform_indices = @transform_1, window_bounds = array<i64: 192, 64>}, {transform_indices = @transform_2, window_bounds = array<i64: 1, 16, 16, 64>}, {transform_indices = @transform_3, window_bounds = array<i64: 1, 2, 64>}]} {
    %c0 = arith.constant 0 : index
    %c0_0 = arith.constant 0 : index
    %c0_1 = arith.constant 0 : index
    %0 = vector.load %arg2[%c0, %c0_0, %c0_1] : memref<1x480x12xbf16, #tpu.memory_space<vmem>>, vector<1x384x12xbf16>
    %1 = vector.shape_cast %0 : vector<1x384x12xbf16> to vector<384x12xbf16>
    %c0_2 = arith.constant 0 : index
    %c0_3 = arith.constant 0 : index
    %2 = vector.load %arg3[%c0_2, %c0_3] : memref<192x64xbf16, #tpu.memory_space<vmem>>, vector<12x64xbf16>
    %cst = arith.constant dense<0.000000e+00> : vector<384x64xf32>
    %3 = tpu.matmul %1, %2, %cst {dimension_numbers = #tpu.dot_dimension_numbers<[1], [0], [0], [1], [0, 0, 1, 1], [], []>} : vector<384x12xbf16>, vector<12x64xbf16>, vector<384x64xf32> -> vector<384x64xf32>
    %c0_4 = arith.constant 0 : index
    %c1 = arith.constant 1 : index
    %c0_5 = arith.constant 0 : index
    %4 = vector.load %arg2[%c0_4, %c1, %c0_5] : memref<1x480x12xbf16, #tpu.memory_space<vmem>>, vector<1x384x12xbf16>
    %5 = vector.shape_cast %4 : vector<1x384x12xbf16> to vector<384x12xbf16>
    %c12 = arith.constant 12 : index
    %c0_6 = arith.constant 0 : index
    %6 = vector.load %arg3[%c12, %c0_6] : memref<192x64xbf16, #tpu.memory_space<vmem>>, vector<12x64xbf16>
    %cst_7 = arith.constant dense<0.000000e+00> : vector<384x64xf32>
    %7 = tpu.matmul %5, %6, %cst_7 {dimension_numbers = #tpu.dot_dimension_numbers<[1], [0], [0], [1], [0, 0, 1, 1], [], []>} : vector<384x12xbf16>, vector<12x64xbf16>, vector<384x64xf32> -> vector<384x64xf32>
    %8 = arith.addf %3, %7 : vector<384x64xf32>
    %c0_8 = arith.constant 0 : index
    %c2 = arith.constant 2 : index
    %c0_9 = arith.constant 0 : index
    %9 = vector.load %arg2[%c0_8, %c2, %c0_9] : memref<1x480x12xbf16, #tpu.memory_space<vmem>>, vector<1x384x12xbf16>
    %10 = vector.shape_cast %9 : vector<1x384x12xbf16> to vector<384x12xbf16>
    %c24 = arith.constant 24 : index
    %c0_10 = arith.constant 0 : index
    %11 = vector.load %arg3[%c24, %c0_10] : memref<192x64xbf16, #tpu.memory_space<vmem>>, vector<12x64xbf16>
    %cst_11 = arith.constant dense<0.000000e+00> : vector<384x64xf32>
    %12 = tpu.matmul %10, %11, %cst_11 {dimension_numbers = #tpu.dot_dimension_numbers<[1], [0], [0], [1], [0, 0, 1, 1], [], []>} : vector<384x12xbf16>, vector<12x64xbf16>, vector<384x64xf32> -> vector<384x64xf32>
    %13 = arith.addf %8, %12 : vector<384x64xf32>
    %c0_12 = arith.constant 0 : index
    %c3 = arith.constant 3 : index
    %c0_13 = arith.constant 0 : index
    %14 = vector.load %arg2[%c0_12, %c3, %c0_13] : memref<1x480x12xbf16, #tpu.memory_space<vmem>>, vector<1x384x12xbf16>
    %15 = vector.shape_cast %14 : vector<1x384x12xbf16> to vector<384x12xbf16>
    %c36 = arith.constant 36 : index
    %c0_14 = arith.constant 0 : index
    %16 = vector.load %arg3[%c36, %c0_14] : memref<192x64xbf16, #tpu.memory_space<vmem>>, vector<12x64xbf16>
    %cst_15 = arith.constant dense<0.000000e+00> : vector<384x64xf32>
    %17 = tpu.matmul %15, %16, %cst_15 {dimension_numbers = #tpu.dot_dimension_numbers<[1], [0], [0], [1], [0, 0, 1, 1], [], []>} : vector<384x12xbf16>, vector<12x64xbf16>, vector<384x64xf32> -> vector<384x64xf32>
    %18 = arith.addf %13, %17 : vector<384x64xf32>
    %c0_16 = arith.constant 0 : index
    %c24_17 = arith.constant 24 : index
    %c0_18 = arith.constant 0 : index
    %19 = vector.load %arg2[%c0_16, %c24_17, %c0_18] : memref<1x480x12xbf16, #tpu.memory_space<vmem>>, vector<1x384x12xbf16>
    %20 = vector.shape_cast %19 : vector<1x384x12xbf16> to vector<384x12xbf16>
    %c48 = arith.constant 48 : index
    %c0_19 = arith.constant 0 : index
    %21 = vector.load %arg3[%c48, %c0_19] : memref<192x64xbf16, #tpu.memory_space<vmem>>, vector<12x64xbf16>
    %cst_20 = arith.constant dense<0.000000e+00> : vector<384x64xf32>
    %22 = tpu.matmul %20, %21, %cst_20 {dimension_numbers = #tpu.dot_dimension_numbers<[1], [0], [0], [1], [0, 0, 1, 1], [], []>} : vector<384x12xbf16>, vector<12x64xbf16>, vector<384x64xf32> -> vector<384x64xf32>
    %23 = arith.addf %18, %22 : vector<384x64xf32>
    %c0_21 = arith.constant 0 : index
    %c25 = arith.constant 25 : index
    %c0_22 = arith.constant 0 : index
    %24 = vector.load %arg2[%c0_21, %c25, %c0_22] : memref<1x480x12xbf16, #tpu.memory_space<vmem>>, vector<1x384x12xbf16>
    %25 = vector.shape_cast %24 : vector<1x384x12xbf16> to vector<384x12xbf16>
    %c60 = arith.constant 60 : index
    %c0_23 = arith.constant 0 : index
    %26 = vector.load %arg3[%c60, %c0_23] : memref<192x64xbf16, #tpu.memory_space<vmem>>, vector<12x64xbf16>
    %cst_24 = arith.constant dense<0.000000e+00> : vector<384x64xf32>
    %27 = tpu.matmul %25, %26, %cst_24 {dimension_numbers = #tpu.dot_dimension_numbers<[1], [0], [0], [1], [0, 0, 1, 1], [], []>} : vector<384x12xbf16>, vector<12x64xbf16>, vector<384x64xf32> -> vector<384x64xf32>
    %28 = arith.addf %23, %27 : vector<384x64xf32>
    %c0_25 = arith.constant 0 : index
    %c26 = arith.constant 26 : index
    %c0_26 = arith.constant 0 : index
    %29 = vector.load %arg2[%c0_25, %c26, %c0_26] : memref<1x480x12xbf16, #tpu.memory_space<vmem>>, vector<1x384x12xbf16>
    %30 = vector.shape_cast %29 : vector<1x384x12xbf16> to vector<384x12xbf16>
    %c72 = arith.constant 72 : index
    %c0_27 = arith.constant 0 : index
    %31 = vector.load %arg3[%c72, %c0_27] : memref<192x64xbf16, #tpu.memory_space<vmem>>, vector<12x64xbf16>
    %cst_28 = arith.constant dense<0.000000e+00> : vector<384x64xf32>
    %32 = tpu.matmul %30, %31, %cst_28 {dimension_numbers = #tpu.dot_dimension_numbers<[1], [0], [0], [1], [0, 0, 1, 1], [], []>} : vector<384x12xbf16>, vector<12x64xbf16>, vector<384x64xf32> -> vector<384x64xf32>
    %33 = arith.addf %28, %32 : vector<384x64xf32>
    %c0_29 = arith.constant 0 : index
    %c27 = arith.constant 27 : index
    %c0_30 = arith.constant 0 : index
    %34 = vector.load %arg2[%c0_29, %c27, %c0_30] : memref<1x480x12xbf16, #tpu.memory_space<vmem>>, vector<1x384x12xbf16>
    %35 = vector.shape_cast %34 : vector<1x384x12xbf16> to vector<384x12xbf16>
    %c84 = arith.constant 84 : index
    %c0_31 = arith.constant 0 : index
    %36 = vector.load %arg3[%c84, %c0_31] : memref<192x64xbf16, #tpu.memory_space<vmem>>, vector<12x64xbf16>
    %cst_32 = arith.constant dense<0.000000e+00> : vector<384x64xf32>
    %37 = tpu.matmul %35, %36, %cst_32 {dimension_numbers = #tpu.dot_dimension_numbers<[1], [0], [0], [1], [0, 0, 1, 1], [], []>} : vector<384x12xbf16>, vector<12x64xbf16>, vector<384x64xf32> -> vector<384x64xf32>
    %38 = arith.addf %33, %37 : vector<384x64xf32>
    %c0_33 = arith.constant 0 : index
    %c48_34 = arith.constant 48 : index
    %c0_35 = arith.constant 0 : index
    %39 = vector.load %arg2[%c0_33, %c48_34, %c0_35] : memref<1x480x12xbf16, #tpu.memory_space<vmem>>, vector<1x384x12xbf16>
    %40 = vector.shape_cast %39 : vector<1x384x12xbf16> to vector<384x12xbf16>
    %c96 = arith.constant 96 : index
    %c0_36 = arith.constant 0 : index
    %41 = vector.load %arg3[%c96, %c0_36] : memref<192x64xbf16, #tpu.memory_space<vmem>>, vector<12x64xbf16>
    %cst_37 = arith.constant dense<0.000000e+00> : vector<384x64xf32>
    %42 = tpu.matmul %40, %41, %cst_37 {dimension_numbers = #tpu.dot_dimension_numbers<[1], [0], [0], [1], [0, 0, 1, 1], [], []>} : vector<384x12xbf16>, vector<12x64xbf16>, vector<384x64xf32> -> vector<384x64xf32>
    %43 = arith.addf %38, %42 : vector<384x64xf32>
    %c0_38 = arith.constant 0 : index
    %c49 = arith.constant 49 : index
    %c0_39 = arith.constant 0 : index
    %44 = vector.load %arg2[%c0_38, %c49, %c0_39] : memref<1x480x12xbf16, #tpu.memory_space<vmem>>, vector<1x384x12xbf16>
    %45 = vector.shape_cast %44 : vector<1x384x12xbf16> to vector<384x12xbf16>
    %c108 = arith.constant 108 : index
    %c0_40 = arith.constant 0 : index
    %46 = vector.load %arg3[%c108, %c0_40] : memref<192x64xbf16, #tpu.memory_space<vmem>>, vector<12x64xbf16>
    %cst_41 = arith.constant dense<0.000000e+00> : vector<384x64xf32>
    %47 = tpu.matmul %45, %46, %cst_41 {dimension_numbers = #tpu.dot_dimension_numbers<[1], [0], [0], [1], [0, 0, 1, 1], [], []>} : vector<384x12xbf16>, vector<12x64xbf16>, vector<384x64xf32> -> vector<384x64xf32>
    %48 = arith.addf %43, %47 : vector<384x64xf32>
    %c0_42 = arith.constant 0 : index
    %c50 = arith.constant 50 : index
    %c0_43 = arith.constant 0 : index
    %49 = vector.load %arg2[%c0_42, %c50, %c0_43] : memref<1x480x12xbf16, #tpu.memory_space<vmem>>, vector<1x384x12xbf16>
    %50 = vector.shape_cast %49 : vector<1x384x12xbf16> to vector<384x12xbf16>
    %c120 = arith.constant 120 : index
    %c0_44 = arith.constant 0 : index
    %51 = vector.load %arg3[%c120, %c0_44] : memref<192x64xbf16, #tpu.memory_space<vmem>>, vector<12x64xbf16>
    %cst_45 = arith.constant dense<0.000000e+00> : vector<384x64xf32>
    %52 = tpu.matmul %50, %51, %cst_45 {dimension_numbers = #tpu.dot_dimension_numbers<[1], [0], [0], [1], [0, 0, 1, 1], [], []>} : vector<384x12xbf16>, vector<12x64xbf16>, vector<384x64xf32> -> vector<384x64xf32>
    %53 = arith.addf %48, %52 : vector<384x64xf32>
    %c0_46 = arith.constant 0 : index
    %c51 = arith.constant 51 : index
    %c0_47 = arith.constant 0 : index
    %54 = vector.load %arg2[%c0_46, %c51, %c0_47] : memref<1x480x12xbf16, #tpu.memory_space<vmem>>, vector<1x384x12xbf16>
    %55 = vector.shape_cast %54 : vector<1x384x12xbf16> to vector<384x12xbf16>
    %c132 = arith.constant 132 : index
    %c0_48 = arith.constant 0 : index
    %56 = vector.load %arg3[%c132, %c0_48] : memref<192x64xbf16, #tpu.memory_space<vmem>>, vector<12x64xbf16>
    %cst_49 = arith.constant dense<0.000000e+00> : vector<384x64xf32>
    %57 = tpu.matmul %55, %56, %cst_49 {dimension_numbers = #tpu.dot_dimension_numbers<[1], [0], [0], [1], [0, 0, 1, 1], [], []>} : vector<384x12xbf16>, vector<12x64xbf16>, vector<384x64xf32> -> vector<384x64xf32>
    %58 = arith.addf %53, %57 : vector<384x64xf32>
    %c0_50 = arith.constant 0 : index
    %c72_51 = arith.constant 72 : index
    %c0_52 = arith.constant 0 : index
    %59 = vector.load %arg2[%c0_50, %c72_51, %c0_52] : memref<1x480x12xbf16, #tpu.memory_space<vmem>>, vector<1x384x12xbf16>
    %60 = vector.shape_cast %59 : vector<1x384x12xbf16> to vector<384x12xbf16>
    %c144 = arith.constant 144 : index
    %c0_53 = arith.constant 0 : index
    %61 = vector.load %arg3[%c144, %c0_53] : memref<192x64xbf16, #tpu.memory_space<vmem>>, vector<12x64xbf16>
    %cst_54 = arith.constant dense<0.000000e+00> : vector<384x64xf32>
    %62 = tpu.matmul %60, %61, %cst_54 {dimension_numbers = #tpu.dot_dimension_numbers<[1], [0], [0], [1], [0, 0, 1, 1], [], []>} : vector<384x12xbf16>, vector<12x64xbf16>, vector<384x64xf32> -> vector<384x64xf32>
    %63 = arith.addf %58, %62 : vector<384x64xf32>
    %c0_55 = arith.constant 0 : index
    %c73 = arith.constant 73 : index
    %c0_56 = arith.constant 0 : index
    %64 = vector.load %arg2[%c0_55, %c73, %c0_56] : memref<1x480x12xbf16, #tpu.memory_space<vmem>>, vector<1x384x12xbf16>
    %65 = vector.shape_cast %64 : vector<1x384x12xbf16> to vector<384x12xbf16>
    %c156 = arith.constant 156 : index
    %c0_57 = arith.constant 0 : index
    %66 = vector.load %arg3[%c156, %c0_57] : memref<192x64xbf16, #tpu.memory_space<vmem>>, vector<12x64xbf16>
    %cst_58 = arith.constant dense<0.000000e+00> : vector<384x64xf32>
    %67 = tpu.matmul %65, %66, %cst_58 {dimension_numbers = #tpu.dot_dimension_numbers<[1], [0], [0], [1], [0, 0, 1, 1], [], []>} : vector<384x12xbf16>, vector<12x64xbf16>, vector<384x64xf32> -> vector<384x64xf32>
    %68 = arith.addf %63, %67 : vector<384x64xf32>
    %c0_59 = arith.constant 0 : index
    %c74 = arith.constant 74 : index
    %c0_60 = arith.constant 0 : index
    %69 = vector.load %arg2[%c0_59, %c74, %c0_60] : memref<1x480x12xbf16, #tpu.memory_space<vmem>>, vector<1x384x12xbf16>
    %70 = vector.shape_cast %69 : vector<1x384x12xbf16> to vector<384x12xbf16>
    %c168 = arith.constant 168 : index
    %c0_61 = arith.constant 0 : index
    %71 = vector.load %arg3[%c168, %c0_61] : memref<192x64xbf16, #tpu.memory_space<vmem>>, vector<12x64xbf16>
    %cst_62 = arith.constant dense<0.000000e+00> : vector<384x64xf32>
    %72 = tpu.matmul %70, %71, %cst_62 {dimension_numbers = #tpu.dot_dimension_numbers<[1], [0], [0], [1], [0, 0, 1, 1], [], []>} : vector<384x12xbf16>, vector<12x64xbf16>, vector<384x64xf32> -> vector<384x64xf32>
    %73 = arith.addf %68, %72 : vector<384x64xf32>
    %c0_63 = arith.constant 0 : index
    %c75 = arith.constant 75 : index
    %c0_64 = arith.constant 0 : index
    %74 = vector.load %arg2[%c0_63, %c75, %c0_64] : memref<1x480x12xbf16, #tpu.memory_space<vmem>>, vector<1x384x12xbf16>
    %75 = vector.shape_cast %74 : vector<1x384x12xbf16> to vector<384x12xbf16>
    %c180 = arith.constant 180 : index
    %c0_65 = arith.constant 0 : index
    %76 = vector.load %arg3[%c180, %c0_65] : memref<192x64xbf16, #tpu.memory_space<vmem>>, vector<12x64xbf16>
    %cst_66 = arith.constant dense<0.000000e+00> : vector<384x64xf32>
    %77 = tpu.matmul %75, %76, %cst_66 {dimension_numbers = #tpu.dot_dimension_numbers<[1], [0], [0], [1], [0, 0, 1, 1], [], []>} : vector<384x12xbf16>, vector<12x64xbf16>, vector<384x64xf32> -> vector<384x64xf32>
    %78 = arith.addf %73, %77 : vector<384x64xf32>
    %79 = vector.shape_cast %78 : vector<384x64xf32> to vector<16x24x64xf32>
    %80 = vector.extract_strided_slice %79 {offsets = [0, 0, 0], sizes = [16, 16, 64], strides = [1, 1, 1]} : vector<16x24x64xf32> to vector<16x16x64xf32>
    %81 = arith.truncf %80 : vector<16x16x64xf32> to vector<16x16x64xbf16>
    %c0_67 = arith.constant 0 : index
    %c0_68 = arith.constant 0 : index
    %c0_69 = arith.constant 0 : index
    %c0_70 = arith.constant 0 : index
    %82 = vector.load %arg4[%c0_67, %c0_68, %c0_69, %c0_70] : memref<1x16x16x64xbf16, #tpu.memory_space<vmem>>, vector<1x16x16x64xbf16>
    %83 = vector.shape_cast %82 : vector<1x16x16x64xbf16> to vector<16x16x64xbf16>
    %84 = vector.shape_cast %81 : vector<16x16x64xbf16> to vector<1x16x16x64xbf16>
    tpu.vector_store %arg4[%c0_67, %c0_68, %c0_69, %c0_70], %84 {strides = array<i32>} : memref<1x16x16x64xbf16, #tpu.memory_space<vmem>>, vector<1x16x16x64xbf16>,
    %cst_71 = arith.constant dense<0.000000e+00> : vector<16x64xf32>
    %85 = vector.multi_reduction <add>, %80, %cst_71 [0] : vector<16x16x64xf32> to vector<16x64xf32>
    %cst_72 = arith.constant dense<0.000000e+00> : vector<64xf32>
    %86 = vector.multi_reduction <add>, %85, %cst_72 [0] : vector<16x64xf32> to vector<64xf32>
    %87 = vector.shape_cast %86 : vector<64xf32> to vector<1x64xf32>
    %88 = arith.mulf %80, %80 : vector<16x16x64xf32>
    %cst_73 = arith.constant dense<0.000000e+00> : vector<16x64xf32>
    %89 = vector.multi_reduction <add>, %88, %cst_73 [0] : vector<16x16x64xf32> to vector<16x64xf32>
    %cst_74 = arith.constant dense<0.000000e+00> : vector<64xf32>
    %90 = vector.multi_reduction <add>, %89, %cst_74 [0] : vector<16x64xf32> to vector<64xf32>
    %91 = vector.shape_cast %90 : vector<64xf32> to vector<1x64xf32>
    %92 = tpu.concatenate %87, %91 in 0 : vector<1x64xf32>, vector<1x64xf32> -> vector<2x64xf32>
    %c0_75 = arith.constant 0 : index
    %c0_76 = arith.constant 0 : index
    %c0_77 = arith.constant 0 : index
    %93 = vector.load %arg5[%c0_75, %c0_76, %c0_77] : memref<1x2x64xf32, #tpu.memory_space<vmem>>, vector<1x2x64xf32>
    %94 = vector.shape_cast %93 : vector<1x2x64xf32> to vector<2x64xf32>
    %95 = vector.shape_cast %92 : vector<2x64xf32> to vector<1x2x64xf32>
    tpu.vector_store %arg5[%c0_75, %c0_76, %c0_77], %95 {strides = array<i32>} : memref<1x2x64xf32, #tpu.memory_space<vmem>>, vector<1x2x64xf32>,
    return
  }
  func.func @transform_0(%arg0: i32, %arg1: i32) -> (i32, i32, i32) {
    %c0_i32 = arith.constant 0 : i32
    %c0_i32_0 = arith.constant 0 : i32
    %c0_i32_1 = arith.constant 0 : i32
    return %arg0, %c0_i32, %c0_i32_0 : i32, i32, i32
  }
  func.func @transform_1(%arg0: i32, %arg1: i32) -> (i32, i32) {
    %c0_i32 = arith.constant 0 : i32
    %c0_i32_0 = arith.constant 0 : i32
    return %c0_i32, %arg1 : i32, i32
  }
  func.func @transform_2(%arg0: i32, %arg1: i32) -> (i32, i32, i32, i32) {
    %c0_i32 = arith.constant 0 : i32
    %c0_i32_0 = arith.constant 0 : i32
    %c0_i32_1 = arith.constant 0 : i32
    return %arg0, %c0_i32, %c0_i32_0, %arg1 : i32, i32, i32, i32
  }
  func.func @transform_3(%arg0: i32, %arg1: i32) -> (i32, i32, i32) {
    %c0_i32 = arith.constant 0 : i32
    %c0_i32_0 = arith.constant 0 : i32
    return %arg0, %c0_i32, %arg1 : i32, i32, i32
  }
}

</mosaic_0001>

<llo_original>
// kernel: tpu_custom_call.1
$region0: #{tpu_custom_call.1}
  #allocation0 [shape = 'u32[]', space=smem, size = 0x4, offset = 0x4, fixed_abs, tag = 'smem constant byte address 0x4 - core index']
  #allocation1 [shape = 'u32[144,128]{1,0:T(1,128)}', space=vmem, size = 0x12000, scoped, tag = 'internal scratch']
  %s0 = inlined_call_operand.vmem [shape: bf16[2,480,12], index: 0, kind: input, shape index: {}]
  %s1 = inlined_call_operand.vmem [shape: bf16[192,64], index: 1, kind: input, shape index: {}]
  %s2 = inlined_call_operand.hbm [shape: bf16[2,16,16,64], index: 2, kind: output, shape index: {0}]
  %s3 = inlined_call_operand.hbm [shape: f32[2,2,64], index: 3, kind: output, shape index: {1}]
  %4 = xla_tuple %s2, %s3
  %s5 = sld [smem:[#allocation0]]
  $region49: #{tpu_custom_call.1} parent=0
    _
  %s7 = ssub.s32 1, %s5
  %s8 = scalar_select 0, %s7, %s5
  $region1: #{tpu_custom_call.1} parent=0
    #allocation2 [shape = 'u8[131072]{0}', space=vmem, size = 0x20000, scoped, tag = 'output window, operand 0']
    #allocation3 [shape = 's32[2]{0}', space=sflag, size = 0x8, scoped, tag = 'scoped memory for tpu_custom_call.1']
    #allocation4 [shape = 'u8[2048]{0}', space=vmem, size = 0x800, scoped, tag = 'output window, operand 1']
    #allocation5 [shape = 's32[2]{0}', space=sflag, size = 0x8, scoped, tag = 'scoped memory for tpu_custom_call.1']
    %9 = vsyncpa [#allocation3], 0
    %s10 = scalar_lea.sflag [#allocation3], 1
    %11 = vsyncpa %s10, 0
    %12 = vsyncpa [#allocation5], 0
    %s13 = scalar_lea.sflag [#allocation5], 1
    %14 = vsyncpa %s13, 0
    loop: start=0, step=1, limit=4
    $region2: #{tpu_custom_call.1} parent=1 // loop_pre_header
      _
    $region3: #{tpu_custom_call.1} parent=1 // loop_header
      %s16 = sphi 0, %s20
      %p17 = scmp.ge.s32.totalorder %s16, 4
      %s23 = sphi 0, %s35
      %s24 = sphi 0, %s31
      %s25 = sphi 0, %s23
      %s26 = sphi 0, %s24
      %s27 = sphi 0, %s25
      %s28 = sphi 0, %s26
      %s38 = sphi 0, %s40
      %s41 = sphi 0, %s38
      %s42 = sphi 0, %s41
      %s58 = sphi 0, %s42
      %s64 = sphi 0, %s66
      %s67 = sphi 0, %s64
      %s68 = sphi 0, %s67
      %s84 = sphi 0, %s68
      %s92 = sphi 0, %s94
      %s95 = sphi 0, %s92
      %s96 = sphi 0, %s95
      %s112 = sphi 0, %s96
      %s120 = sphi 0, %s122
      %s123 = sphi 0, %s120
      %s124 = sphi 0, %s123
      %s140 = sphi 0, %s124
    $region4: #{tpu_custom_call.1} parent=1 // loop_header_branch
      %19 = sbr.rel (%p17) target = $region8
    $region5: #{tpu_custom_call.1} parent=1 // loop_body
      %s21 = ssub.s32 %s16, 1
      %s22 = ssub.s32 %s16, 2
      %s29 = sadd.s32 1, %s24
      %p30 = scmp.ge.s32.totalorder %s29, 1
      %s31 = scalar_select %p30, 0, %s29
      %s32 = sadd.s32 1, %s23
      %s33 = scalar_select %p30, %s32, %s23
      %p34 = scmp.ge.s32.totalorder %s33, 2
      %s35 = scalar_select %p34, 0, %s33
      %s36 = ssub.s32 %s23, %s35
      %p37 = scmp.eq.s32.totalorder %s36, 0
      %s39 = sadd.s32 %s38, 1
      %s40 = scalar_select %p37, %s38, %s39
      %p43 = pneg %p37
      %p44 = scmp.eq.s32.totalorder %s16, 1
      %p45 = por %p43, %p44
      %p46 = scmp.ne.s32.totalorder %s38, %s41
      %p47 = scmp.eq.s32.totalorder %s16, 0
      %p48 = por %p46, %p47
      %p49 = scmp.ne.s32.totalorder %s38, %s41
      %p50 = scmp.eq.s32.totalorder %s21, 1
      %p51 = por %p49, %p50
      %p52 = scmp.ne.s32.totalorder %s41, %s42
      %p53 = scmp.eq.s32.totalorder %s21, 0
      %p54 = por %p52, %p53
      %p55 = scmp.ne.s32.totalorder %s41, %s42
      %p56 = scmp.eq.s32.totalorder %s22, 1
      %p57 = por %p55, %p56
      %p59 = scmp.ne.s32.totalorder %s42, %s58
      %p60 = scmp.eq.s32.totalorder %s22, 0
      %p61 = por %p59, %p60
      %s62 = ssub.s32 %s24, %s31
      %p63 = scmp.eq.s32.totalorder %s62, 0
      %s65 = sadd.s32 %s64, 1
      %s66 = scalar_select %p63, %s64, %s65
      %p69 = pneg %p63
      %p70 = scmp.eq.s32.totalorder %s16, 1
      %p71 = por %p69, %p70
      %p72 = scmp.ne.s32.totalorder %s64, %s67
      %p73 = scmp.eq.s32.totalorder %s16, 0
      %p74 = por %p72, %p73
      %p75 = scmp.ne.s32.totalorder %s64, %s67
      %p76 = scmp.eq.s32.totalorder %s21, 1
      %p77 = por %p75, %p76
      %p78 = scmp.ne.s32.totalorder %s67, %s68
      %p79 = scmp.eq.s32.totalorder %s21, 0
      %p80 = por %p78, %p79
      %p81 = scmp.ne.s32.totalorder %s67, %s68
      %p82 = scmp.eq.s32.totalorder %s22, 1
      %p83 = por %p81, %p82
      %p85 = scmp.ne.s32.totalorder %s68, %s84
      %p86 = scmp.eq.s32.totalorder %s22, 0
      %p87 = por %p85, %p86
      %s88 = ssub.s32 %s23, %s35
      %s89 = ssub.s32 %s24, %s31
      %s90 = sor.u32 %s88, %s89
      %p91 = scmp.eq.s32.totalorder %s90, 0
      %s93 = sadd.s32 %s92, 1
      %s94 = scalar_select %p91, %s92, %s93
      %p97 = pneg %p91
      %p98 = scmp.eq.s32.totalorder %s16, 1
      %p99 = por %p97, %p98
      %p100 = scmp.ne.s32.totalorder %s92, %s95
      %p101 = scmp.eq.s32.totalorder %s16, 0
      %p102 = por %p100, %p101
      %p103 = scmp.ne.s32.totalorder %s92, %s95
      %p104 = scmp.eq.s32.totalorder %s21, 1
      %p105 = por %p103, %p104
      %p106 = scmp.ne.s32.totalorder %s95, %s96
      %p107 = scmp.eq.s32.totalorder %s21, 0
      %p108 = por %p106, %p107
      %p109 = scmp.ne.s32.totalorder %s95, %s96
      %p110 = scmp.eq.s32.totalorder %s22, 1
      %p111 = por %p109, %p110
      %p113 = scmp.ne.s32.totalorder %s96, %s112
      %p114 = scmp.eq.s32.totalorder %s22, 0
      %p115 = por %p113, %p114
      %s116 = ssub.s32 %s23, %s35
      %s117 = ssub.s32 %s24, %s31
      %s118 = sor.u32 %s116, %s117
      %p119 = scmp.eq.s32.totalorder %s118, 0
      %s121 = sadd.s32 %s120, 1
      %s122 = scalar_select %p119, %s120, %s121
      %p125 = pneg %p119
      %p126 = scmp.eq.s32.totalorder %s16, 1
      %p127 = por %p125, %p126
      %p128 = scmp.ne.s32.totalorder %s120, %s123
      %p129 = scmp.eq.s32.totalorder %s16, 0
      %p130 = por %p128, %p129
      %p131 = scmp.ne.s32.totalorder %s120, %s123
      %p132 = scmp.eq.s32.totalorder %s21, 1
      %p133 = por %p131, %p132
      %p134 = scmp.ne.s32.totalorder %s123, %s124
      %p135 = scmp.eq.s32.totalorder %s21, 0
      %p136 = por %p134, %p135
      %p137 = scmp.ne.s32.totalorder %s123, %s124
      %p138 = scmp.eq.s32.totalorder %s22, 1
      %p139 = por %p137, %p138
      %p141 = scmp.ne.s32.totalorder %s124, %s140
      %p142 = scmp.eq.s32.totalorder %s22, 0
      %p143 = por %p141, %p142
      %p144 = scmp.le.s32.totalorder 1, %s16
      %p145 = scmp.lt.s32.totalorder %s16, 3
      %p146 = pnand %p144, %p145
      %p147 = pneg %p146
      // Predicated region
      $region9: #{tpu_custom_call.1} parent=5 // pred_check
        _
      $region10: #{tpu_custom_call.1} parent=5 // pred_check_branch
        %149 = sbr.rel (%p146) target = $region12
      $region11: #{tpu_custom_call.1} parent=5 // pred_region
        %s150 = ssub.s32 %s16, 1
        // Predicated region
        $region13: #{tpu_custom_call.1} parent=11 // pred_check
          %p151 = pneg %p80
        $region14: #{tpu_custom_call.1} parent=11 // pred_check_branch
          %153 = sbr.rel (%p151) target = $region16
        $region15: #{tpu_custom_call.1} parent=11 // pred_region
          %p154 = scmp.lt.s32.totalorder %s26, 0
          %s155 = scalar_select %p154, %s26, 0
          %s156 = smul.addr %s155, 4
          %s157 = scalar_lea.vmem %s1, %s156
        $region16: #{tpu_custom_call.1} parent=11 // pred_fallthru
          _
      $region12: #{tpu_custom_call.1} parent=5 // pred_fallthru
        _
      %p158 = scmp.lt.s32.totalorder %s16, 2
      // Predicated region
      $region17: #{tpu_custom_call.1} parent=5 // pred_check
        %p159 = pneg %p158
      $region18: #{tpu_custom_call.1} parent=5 // pred_check_branch
        %161 = sbr.rel (%p159) target = $region20
      $region19: #{tpu_custom_call.1} parent=5 // pred_region
        // Predicated region
        $region21: #{tpu_custom_call.1} parent=19 // pred_check
          %p162 = pneg %p48
        $region22: #{tpu_custom_call.1} parent=19 // pred_check_branch
          %164 = sbr.rel (%p162) target = $region24
        $region23: #{tpu_custom_call.1} parent=19 // pred_region
          %p165 = scmp.lt.s32.totalorder %s23, 1
          %s166 = scalar_select %p165, %s23, 1
          %s167 = smul.addr %s166, 60
          %s168 = smul.addr %s167, 4
          %s169 = scalar_lea.vmem %s0, %s168
        $region24: #{tpu_custom_call.1} parent=19 // pred_fallthru
          _
      $region20: #{tpu_custom_call.1} parent=5 // pred_fallthru
        _
      %p170 = scmp.le.s32.totalorder 1, %s16
      %p171 = scmp.lt.s32.totalorder %s16, 3
      %p172 = pnand %p170, %p171
      %p173 = pneg %p172
      // Predicated region
      $region25: #{tpu_custom_call.1} parent=5 // pred_check
        _
      $region26: #{tpu_custom_call.1} parent=5 // pred_check_branch
        %175 = sbr.rel (%p172) target = $region28
      $region27: #{tpu_custom_call.1} parent=5 // pred_region
        %s176 = ssub.s32 %s16, 1
        %p177 = scmp.lt.s32.totalorder %s25, 1
        %s178 = scalar_select %p177, %s25, 1
        %s179 = smul.addr %s178, 60
        %s180 = smul.addr %s179, 4
        %s181 = scalar_lea.vmem %s0, %s180
        %p182 = pneg %p54
        %p183 = pneg %p51
        %p184 = scmp.lt.s32.totalorder %s26, 0
        %s185 = scalar_select %p184, %s26, 0
        %s186 = smul.addr %s185, 4
        %s187 = scalar_lea.vmem %s1, %s186
        %p188 = pneg %p80
        %p189 = pneg %p77
        %p190 = pneg %p108
        %p191 = pneg %p105
        %s192 = sand.u32 %s95, 1
        %s193 = scalar_lea.sflag [#allocation3], %s192
        %s194 = sand.u32 %s95, 1
        %s195 = smul.addr %s194, 128
        %s196 = scalar_lea.vmem [#allocation2], %s195
        %p197 = pneg %p136
        %p198 = pneg %p133
        %s199 = sand.u32 %s123, 1
        %s200 = scalar_lea.sflag [#allocation5], %s199
        %s201 = sand.u32 %s123, 1
        %s202 = smul.addr %s201, 2
        %s203 = scalar_lea.vmem [#allocation4], %s202
        %p204 = scmp.lt.s32.totalorder %s25, 1
        %s205 = scalar_select %p204, %s25, 1
        %s206 = smul.addr %s205, 60
        %s207 = smul.addr %s206, 4
        %s208 = scalar_lea.vmem %s0, %s207
        %p209 = scmp.lt.s32.totalorder %s26, 0
        %s210 = scalar_select %p209, %s26, 0
        %s211 = smul.addr %s210, 4
        %s212 = scalar_lea.vmem %s1, %s211
        %v214 = vld [vmem:[%s208] sm:$0xf]
        %v215 = vld [vmem:[%s208 + $0x4] sm:$0xf]
        %v216 = vld [vmem:[%s208 + $0x8] sm:$0xf]
        %v217 = vld [vmem:[%s208 + $0xc] sm:$0xf]
        %v218 = vld [vmem:[%s208 + $0x10] sm:$0xf]
        %v219 = vld [vmem:[%s208 + $0x14] sm:$0xf]
        %v220 = vld [vmem:[%s208 + $0x18] sm:$0xf]
        %v221 = vld [vmem:[%s208 + $0x1c] sm:$0xf]
        %v222 = vld [vmem:[%s208 + $0x20] sm:$0xf]
        %v223 = vld [vmem:[%s208 + $0x24] sm:$0xf]
        %v224 = vld [vmem:[%s208 + $0x28] sm:$0xf]
        %v225 = vld [vmem:[%s208 + $0x2c] sm:$0xf]
        %v226 = vld [vmem:[%s208 + $0x30] sm:$0xf]
        %v227 = vld [vmem:[%s208 + $0x34] sm:$0xf]
        %v228 = vld [vmem:[%s208 + $0x38] sm:$0xf]
        %v229 = vld [vmem:[%s208 + $0x3c] sm:$0xf]
        %v230 = vld [vmem:[%s208 + $0x40] sm:$0xf]
        %v231 = vld [vmem:[%s208 + $0x44] sm:$0xf]
        %v232 = vld [vmem:[%s208 + $0x48] sm:$0xf]
        %v233 = vld [vmem:[%s208 + $0x4c] sm:$0xf]
        %v234 = vld [vmem:[%s208 + $0x50] sm:$0xf]
        %v235 = vld [vmem:[%s208 + $0x54] sm:$0xf]
        %v236 = vld [vmem:[%s208 + $0x58] sm:$0xf]
        %v237 = vld [vmem:[%s208 + $0x5c] sm:$0xf]
        %v238 = vld [vmem:[%s208 + $0x60] sm:$0xf]
        %v239 = vld [vmem:[%s208 + $0x64] sm:$0xf]
        %v240 = vld [vmem:[%s208 + $0x68] sm:$0xf]
        %v241 = vld [vmem:[%s208 + $0x6c] sm:$0xf]
        %v242 = vld [vmem:[%s208 + $0x70] sm:$0xf]
        %v243 = vld [vmem:[%s208 + $0x74] sm:$0xf]
        %v244 = vld [vmem:[%s208 + $0x78] sm:$0xf]
        %v245 = vld [vmem:[%s208 + $0x7c] sm:$0xf]
        %v246 = vld [vmem:[%s208 + $0x80] sm:$0xf]
        %v247 = vld [vmem:[%s208 + $0x84] sm:$0xf]
        %v248 = vld [vmem:[%s208 + $0x88] sm:$0xf]
        %v249 = vld [vmem:[%s208 + $0x8c] sm:$0xf]
        %v250 = vld [vmem:[%s208 + $0x90] sm:$0xf]
        %v251 = vld [vmem:[%s208 + $0x94] sm:$0xf]
        %v252 = vld [vmem:[%s208 + $0x98] sm:$0xf]
        %v253 = vld [vmem:[%s208 + $0x9c] sm:$0xf]
        %v254 = vld [vmem:[%s208 + $0xa0] sm:$0xf]
        %v255 = vld [vmem:[%s208 + $0xa4] sm:$0xf]
        %v256 = vld [vmem:[%s208 + $0xa8] sm:$0xf]
        %v257 = vld [vmem:[%s208 + $0xac] sm:$0xf]
        %v258 = vld [vmem:[%s208 + $0xb0] sm:$0xf]
        %v259 = vld [vmem:[%s208 + $0xb4] sm:$0xf]
        %v260 = vld [vmem:[%s208 + $0xb8] sm:$0xf]
        %v261 = vld [vmem:[%s208 + $0xbc] sm:$0xf]
        %v262 = vld [vmem:[%s212] sm:$0xf]
        %v263 = vld [vmem:[%s212 + $0x4] sm:$0x3]
        %v264 = vld [vmem:[%s208 + $0xc0] sm:$0x1]
        %v265 = vld [vmem:[%s212 + $0x4] sm:$0xc]
        %v266 = vld [vmem:[%s212 + $0x8] sm:$0xf]
        %v316 = vunpack.c.l.b16 %v214
        %v317 = vunpack.c.l.b16 %v215
        %v318 = vunpack.c.l.b16 %v216
        %v319 = vunpack.c.l.b16 %v217
        %v320 = vunpack.c.l.b16 %v218
        %v321 = vunpack.c.l.b16 %v219
        %v322 = vunpack.c.l.b16 %v220
        %v323 = vunpack.c.l.b16 %v221
        %v324 = vunpack.c.l.b16 %v222
        %v325 = vunpack.c.l.b16 %v223
        %v326 = vunpack.c.l.b16 %v224
        %v327 = vunpack.c.l.b16 %v225
        %v328 = vunpack.c.l.b16 %v226
        %v329 = vunpack.c.l.b16 %v227
        %v330 = vunpack.c.l.b16 %v228
        %v331 = vunpack.c.l.b16 %v229
        %v332 = vunpack.c.l.b16 %v230
        %v333 = vunpack.c.l.b16 %v231
        %v334 = vunpack.c.l.b16 %v232
        %v335 = vunpack.c.l.b16 %v233
        %v336 = vunpack.c.l.b16 %v234
        %v337 = vunpack.c.l.b16 %v235
        %v338 = vunpack.c.l.b16 %v236
        %v339 = vunpack.c.l.b16 %v237
        %v340 = vunpack.c.l.b16 %v238
        %v341 = vunpack.c.l.b16 %v239
        %v342 = vunpack.c.l.b16 %v240
        %v343 = vunpack.c.l.b16 %v241
        %v344 = vunpack.c.l.b16 %v242
        %v345 = vunpack.c.l.b16 %v243
        %v346 = vunpack.c.l.b16 %v244
        %v347 = vunpack.c.l.b16 %v245
        %v348 = vunpack.c.l.b16 %v246
        %v349 = vunpack.c.l.b16 %v247
        %v350 = vunpack.c.l.b16 %v248
        %v351 = vunpack.c.l.b16 %v249
        %v352 = vunpack.c.l.b16 %v250
        %v353 = vunpack.c.l.b16 %v251
        %v354 = vunpack.c.l.b16 %v252
        %v355 = vunpack.c.l.b16 %v253
        %v356 = vunpack.c.l.b16 %v254
        %v357 = vunpack.c.l.b16 %v255
        %v358 = vunpack.c.l.b16 %v256
        %v359 = vunpack.c.l.b16 %v257
        %v360 = vunpack.c.l.b16 %v258
        %v361 = vunpack.c.l.b16 %v259
        %v362 = vunpack.c.l.b16 %v260
        %v363 = vunpack.c.l.b16 %v261
        %v364 = vunpack.c.l.b16 %v264
        %v365 = vpack.c.b16 %v317, %v316
        %v366 = vpack.c.b16 %v319, %v318
        %v367 = vpack.c.b16 %v321, %v320
        %v368 = vpack.c.b16 %v323, %v322
        %v369 = vpack.c.b16 %v325, %v324
        %v370 = vpack.c.b16 %v327, %v326
        %v371 = vpack.c.b16 %v329, %v328
        %v372 = vpack.c.b16 %v331, %v330
        %v373 = vpack.c.b16 %v333, %v332
        %v374 = vpack.c.b16 %v335, %v334
        %v375 = vpack.c.b16 %v337, %v336
        %v376 = vpack.c.b16 %v339, %v338
        %v377 = vpack.c.b16 %v341, %v340
        %v378 = vpack.c.b16 %v343, %v342
        %v379 = vpack.c.b16 %v345, %v344
        %v380 = vpack.c.b16 %v347, %v346
        %v381 = vpack.c.b16 %v349, %v348
        %v382 = vpack.c.b16 %v351, %v350
        %v383 = vpack.c.b16 %v353, %v352
        %v384 = vpack.c.b16 %v355, %v354
        %v385 = vpack.c.b16 %v357, %v356
        %v386 = vpack.c.b16 %v359, %v358
        %v387 = vpack.c.b16 %v361, %v360
        %v388 = vpack.c.b16 %v363, %v362
        %v389 = vpack.c.b16 %v364, %v364
        %vm390 = vsmask.f32 7424
        %v392 = vshrl.u32 %v365, 16
        %v394 = vshll.u32 %v365, 16
        %v396 = vrot.slane %v394, 1
        %v397 = vor.u32 %v392, %v396
        %v399 = vshll.u32 %v366, 16
        %v401 = vrot.slane %v399, 1
        %v402 = vsel %vm390, %v397, %v401
        %v403 = vshrl.u32 %v366, 16
        %v405 = vor.u32 %v403, %v401
        %v407 = vshll.u32 %v367, 16
        %v409 = vrot.slane %v407, 1
        %v410 = vsel %vm390, %v405, %v409
        %v411 = vshrl.u32 %v367, 16
        %v413 = vor.u32 %v411, %v409
        %v415 = vshll.u32 %v368, 16
        %v417 = vrot.slane %v415, 1
        %v418 = vsel %vm390, %v413, %v417
        %v419 = vshrl.u32 %v368, 16
        %v421 = vor.u32 %v419, %v417
        %v423 = vshll.u32 %v369, 16
        %v425 = vrot.slane %v423, 1
        %v426 = vsel %vm390, %v421, %v425
        %v427 = vshrl.u32 %v369, 16
        %v429 = vor.u32 %v427, %v425
        %v431 = vshll.u32 %v370, 16
        %v433 = vrot.slane %v431, 1
        %v434 = vsel %vm390, %v429, %v433
        %v435 = vshrl.u32 %v370, 16
        %v437 = vor.u32 %v435, %v433
        %v439 = vshll.u32 %v371, 16
        %v441 = vrot.slane %v439, 1
        %v442 = vsel %vm390, %v437, %v441
        %v443 = vshrl.u32 %v371, 16
        %v445 = vor.u32 %v443, %v441
        %v447 = vshll.u32 %v372, 16
        %v449 = vrot.slane %v447, 1
        %v450 = vsel %vm390, %v445, %v449
        %v451 = vshrl.u32 %v372, 16
        %v453 = vor.u32 %v451, %v449
        %v455 = vshll.u32 %v373, 16
        %v457 = vrot.slane %v455, 1
        %v458 = vsel %vm390, %v453, %v457
        %v459 = vshrl.u32 %v373, 16
        %v461 = vor.u32 %v459, %v457
        %v463 = vshll.u32 %v374, 16
        %v465 = vrot.slane %v463, 1
        %v466 = vsel %vm390, %v461, %v465
        %v467 = vshrl.u32 %v374, 16
        %v469 = vor.u32 %v467, %v465
        %v471 = vshll.u32 %v375, 16
        %v473 = vrot.slane %v471, 1
        %v474 = vsel %vm390, %v469, %v473
        %v475 = vshrl.u32 %v375, 16
        %v477 = vor.u32 %v475, %v473
        %v479 = vshll.u32 %v376, 16
        %v481 = vrot.slane %v479, 1
        %v482 = vsel %vm390, %v477, %v481
        %v483 = vshrl.u32 %v376, 16
        %v485 = vor.u32 %v483, %v481
        %v487 = vshll.u32 %v377, 16
        %v489 = vrot.slane %v487, 1
        %v490 = vsel %vm390, %v485, %v489
        %v491 = vshrl.u32 %v377, 16
        %v493 = vor.u32 %v491, %v489
        %v495 = vshll.u32 %v378, 16
        %v497 = vrot.slane %v495, 1
        %v498 = vsel %vm390, %v493, %v497
        %v499 = vshrl.u32 %v378, 16
        %v501 = vor.u32 %v499, %v497
        %v503 = vshll.u32 %v379, 16
        %v505 = vrot.slane %v503, 1
        %v506 = vsel %vm390, %v501, %v505
        %v507 = vshrl.u32 %v379, 16
        %v509 = vor.u32 %v507, %v505
        %v511 = vshll.u32 %v380, 16
        %v513 = vrot.slane %v511, 1
        %v514 = vsel %vm390, %v509, %v513
        %v515 = vshrl.u32 %v380, 16
        %v517 = vor.u32 %v515, %v513
        %v519 = vshll.u32 %v381, 16
        %v521 = vrot.slane %v519, 1
        %v522 = vsel %vm390, %v517, %v521
        %v523 = vshrl.u32 %v381, 16
        %v525 = vor.u32 %v523, %v521
        %v527 = vshll.u32 %v382, 16
        %v529 = vrot.slane %v527, 1
        %v530 = vsel %vm390, %v525, %v529
        %v531 = vshrl.u32 %v382, 16
        %v533 = vor.u32 %v531, %v529
        %v535 = vshll.u32 %v383, 16
        %v537 = vrot.slane %v535, 1
        %v538 = vsel %vm390, %v533, %v537
        %v539 = vshrl.u32 %v383, 16
        %v541 = vor.u32 %v539, %v537
        %v543 = vshll.u32 %v384, 16
        %v545 = vrot.slane %v543, 1
        %v546 = vsel %vm390, %v541, %v545
        %v547 = vshrl.u32 %v384, 16
        %v549 = vor.u32 %v547, %v545
        %v551 = vshll.u32 %v385, 16
        %v553 = vrot.slane %v551, 1
        %v554 = vsel %vm390, %v549, %v553
        %v555 = vshrl.u32 %v385, 16
        %v557 = vor.u32 %v555, %v553
        %v559 = vshll.u32 %v386, 16
        %v561 = vrot.slane %v559, 1
        %v562 = vsel %vm390, %v557, %v561
        %v563 = vshrl.u32 %v386, 16
        %v565 = vor.u32 %v563, %v561
        %v567 = vshll.u32 %v387, 16
        %v569 = vrot.slane %v567, 1
        %v570 = vsel %vm390, %v565, %v569
        %v571 = vshrl.u32 %v387, 16
        %v573 = vor.u32 %v571, %v569
        %v575 = vshll.u32 %v388, 16
        %v577 = vrot.slane %v575, 1
        %v578 = vsel %vm390, %v573, %v577
        %v579 = vshrl.u32 %v388, 16
        %v581 = vor.u32 %v579, %v577
        %v583 = vshll.u32 %v389, 16
        %v585 = vrot.slane %v583, 1
        %v586 = vsel %vm390, %v581, %v585
        %v589 = vunpack.c.l.b16 %v265
        %v590 = vunpack.c.l.b16 %v266
        %v591 = vpack.c.b16 %v590, %v589
        %v592 = vrot.slane %v591, 2
        %vm593 = vcmask 97280
        %v595 = vsel %vm593, %v402, 0
        %v598 = vsel %vm593, %v410, 0
        %v601 = vsel %vm593, %v418, 0
        %v604 = vsel %vm593, %v426, 0
        %v607 = vsel %vm593, %v434, 0
        %v610 = vsel %vm593, %v442, 0
        %v613 = vsel %vm593, %v450, 0
        %v616 = vsel %vm593, %v458, 0
        %v619 = vsel %vm593, %v466, 0
        %v622 = vsel %vm593, %v474, 0
        %v625 = vsel %vm593, %v482, 0
        %v628 = vsel %vm593, %v490, 0
        %v631 = vsel %vm593, %v498, 0
        %v634 = vsel %vm593, %v506, 0
        %v637 = vsel %vm593, %v514, 0
        %v640 = vsel %vm593, %v522, 0
        %v643 = vsel %vm593, %v530, 0
        %v646 = vsel %vm593, %v538, 0
        %v649 = vsel %vm593, %v546, 0
        %v652 = vsel %vm593, %v554, 0
        %v655 = vsel %vm593, %v562, 0
        %v658 = vsel %vm593, %v570, 0
        %v661 = vsel %vm593, %v578, 0
        %v664 = vsel %vm593, %v586, 0
        %vm666 = vcmask 1045504
        %v668 = vsel %vm666, %v592, 0
        %670 = vmatprep.subr.bf16.mxu0 0
        %671 = vmatpush1.bf16.msra.mxu0 %v668
        %672 = vmatprep.subr.bf16.mxu0 0
        %673 = vmatpush1.bf16.msra.mxu0 0
        %674 = vmatprep.subr.bf16.mxu0 0
        %675 = vmatpush1.bf16.msra.mxu0 0
        %676 = vmatprep.subr.bf16.mxu0 0
        %677 = vmatpush1.bf16.msra.mxu0 0
        %678 = vmatprep.subr.bf16.mxu0 0
        %679 = vmatpush1.bf16.msra.mxu0 0
        %680 = vmatprep.subr.bf16.mxu0 0
        %681 = vmatpush1.bf16.msra.mxu0 0
        %682 = vmatprep.subr.bf16.mxu0 0
        %683 = vmatpush1.bf16.msra.mxu0 0
        %684 = vmatprep.subr.bf16.mxu0 0
        %685 = vmatpush1.bf16.msra.mxu0 0
        %686 = vmatprep.subr.bf16.mxu0 0
        %687 = vmatpush1.bf16.msra.mxu0 0
        %688 = vmatprep.subr.bf16.mxu0 0
        %689 = vmatpush1.bf16.msra.mxu0 0
        %690 = vmatprep.subr.bf16.mxu0 0
        %691 = vmatpush1.bf16.msra.mxu0 0
        %692 = vmatprep.subr.bf16.mxu0 0
        %693 = vmatpush1.bf16.msra.mxu0 0
        %694 = vmatprep.subr.bf16.mxu0 0
        %695 = vmatpush1.bf16.msra.mxu0 0
        %696 = vmatprep.subr.bf16.mxu0 0
        %697 = vmatpush1.bf16.msra.mxu0 0
        %698 = vmatprep.subr.bf16.mxu0 0
        %699 = vmatpush1.bf16.msra.mxu0 0
        %700 = vmatprep.subr.bf16.mxu0 0
        %701 = vmatpush1.bf16.msra.mxu0 0
        %702 = vmatprep.mubr.bf16.mxu0 0
        %703 = vmatmul.mubr.bf16.gmra.mrb[0].mxu0 %v595
        %v704 = vpop.f32.mrb[0].mxu0
        %v705 = vadd.f32 0.0, %v704
        %v706 = vpop.f32.mrb[0].mxu0
        %v707 = vpop.f32.mrb[0].mxu0
        %v708 = vadd.f32 0.0, %v707
        %v709 = vpop.f32.mrb[0].mxu0
        %710 = vmatprep.mubr.bf16.mxu0 0
        %711 = vmatmul.mubr.bf16.gmra.mrb[0].mxu0 %v598
        %v712 = vpop.f32.mrb[0].mxu0
        %v713 = vpop.f32.mrb[0].mxu0
        %v714 = vpop.f32.mrb[0].mxu0
        %v715 = vadd.f32 0.0, %v714
        %v716 = vpop.f32.mrb[0].mxu0
        %717 = vmatprep.mubr.bf16.mxu0 0
        %718 = vmatmul.mubr.bf16.gmra.mrb[0].mxu0 %v601
        %v719 = vpop.f32.mrb[0].mxu0
        %v720 = vadd.f32 0.0, %v719
        %v721 = vpop.f32.mrb[0].mxu0
        %v722 = vpop.f32.mrb[0].mxu0
        %v723 = vpop.f32.mrb[0].mxu0
        %724 = vmatprep.mubr.bf16.mxu0 0
        %725 = vmatmul.mubr.bf16.gmra.mrb[0].mxu0 %v604
        %v726 = vpop.f32.mrb[0].mxu0
        %v727 = vadd.f32 0.0, %v726
        %v728 = vpop.f32.mrb[0].mxu0
        %v729 = vpop.f32.mrb[0].mxu0
        %v730 = vadd.f32 0.0, %v729
        %v731 = vpop.f32.mrb[0].mxu0
        %732 = vmatprep.mubr.bf16.mxu0 0
        %733 = vmatmul.mubr.bf16.gmra.mrb[0].mxu0 %v607
        %v734 = vpop.f32.mrb[0].mxu0
        %v735 = vpop.f32.mrb[0].mxu0
        %v736 = vpop.f32.mrb[0].mxu0
        %v737 = vadd.f32 0.0, %v736
        %v738 = vpop.f32.mrb[0].mxu0
        %739 = vmatprep.mubr.bf16.mxu0 0
        %740 = vmatmul.mubr.bf16.gmra.mrb[0].mxu0 %v610
        %v741 = vpop.f32.mrb[0].mxu0
        %v742 = vadd.f32 0.0, %v741
        %v743 = vpop.f32.mrb[0].mxu0
        %v744 = vpop.f32.mrb[0].mxu0
        %v745 = vpop.f32.mrb[0].mxu0
        %746 = vmatprep.mubr.bf16.mxu0 0
        %747 = vmatmul.mubr.bf16.gmra.mrb[0].mxu0 %v613
        %v748 = vpop.f32.mrb[0].mxu0
        %v749 = vadd.f32 0.0, %v748
        %v750 = vpop.f32.mrb[0].mxu0
        %v751 = vpop.f32.mrb[0].mxu0
        %v752 = vadd.f32 0.0, %v751
        %v753 = vpop.f32.mrb[0].mxu0
        %754 = vmatprep.mubr.bf16.mxu0 0
        %755 = vmatmul.mubr.bf16.gmra.mrb[0].mxu0 %v616
        %v756 = vpop.f32.mrb[0].mxu0
        %v757 = vpop.f32.mrb[0].mxu0
        %v758 = vpop.f32.mrb[0].mxu0
        %v759 = vadd.f32 0.0, %v758
        %v760 = vpop.f32.mrb[0].mxu0
        %761 = vmatprep.mubr.bf16.mxu0 0
        %762 = vmatmul.mubr.bf16.gmra.mrb[0].mxu0 %v619
        %v763 = vpop.f32.mrb[0].mxu0
        %v764 = vadd.f32 0.0, %v763
        %v765 = vpop.f32.mrb[0].mxu0
        %v766 = vpop.f32.mrb[0].mxu0
        %v767 = vpop.f32.mrb[0].mxu0
        %768 = vmatprep.mubr.bf16.mxu0 0
        %769 = vmatmul.mubr.bf16.gmra.mrb[0].mxu0 %v622
        %v770 = vpop.f32.mrb[0].mxu0
        %v771 = vadd.f32 0.0, %v770
        %v772 = vpop.f32.mrb[0].mxu0
        %v773 = vpop.f32.mrb[0].mxu0
        %v774 = vadd.f32 0.0, %v773
        %v775 = vpop.f32.mrb[0].mxu0
        %776 = vmatprep.mubr.bf16.mxu0 0
        %777 = vmatmul.mubr.bf16.gmra.mrb[0].mxu0 %v625
        %v778 = vpop.f32.mrb[0].mxu0
        %v779 = vpop.f32.mrb[0].mxu0
        %v780 = vpop.f32.mrb[0].mxu0
        %v781 = vadd.f32 0.0, %v780
        %v782 = vpop.f32.mrb[0].mxu0
        %783 = vmatprep.mubr.bf16.mxu0 0
        %784 = vmatmul.mubr.bf16.gmra.mrb[0].mxu0 %v628
        %v785 = vpop.f32.mrb[0].mxu0
        %v786 = vadd.f32 0.0, %v785
        %v787 = vpop.f32.mrb[0].mxu0
        %v788 = vpop.f32.mrb[0].mxu0
        %v789 = vpop.f32.mrb[0].mxu0
        %790 = vmatprep.mubr.bf16.mxu0 0
        %791 = vmatmul.mubr.bf16.gmra.mrb[0].mxu0 %v631
        %v792 = vpop.f32.mrb[0].mxu0
        %v793 = vadd.f32 0.0, %v792
        %v794 = vpop.f32.mrb[0].mxu0
        %v795 = vpop.f32.mrb[0].mxu0
        %v796 = vadd.f32 0.0, %v795
        %v797 = vpop.f32.mrb[0].mxu0
        %798 = vmatprep.mubr.bf16.mxu0 0
        %799 = vmatmul.mubr.bf16.gmra.mrb[0].mxu0 %v634
        %v800 = vpop.f32.mrb[0].mxu0
        %v801 = vpop.f32.mrb[0].mxu0
        %v802 = vpop.f32.mrb[0].mxu0
        %v803 = vadd.f32 0.0, %v802
        %v804 = vpop.f32.mrb[0].mxu0
        %805 = vmatprep.mubr.bf16.mxu0 0
        %806 = vmatmul.mubr.bf16.gmra.mrb[0].mxu0 %v637
        %v807 = vpop.f32.mrb[0].mxu0
        %v808 = vadd.f32 0.0, %v807
        %v809 = vpop.f32.mrb[0].mxu0
        %v810 = vpop.f32.mrb[0].mxu0
        %v811 = vpop.f32.mrb[0].mxu0
        %812 = vmatprep.mubr.bf16.mxu0 0
        %813 = vmatmul.mubr.bf16.gmra.mrb[0].mxu0 %v640
        %v814 = vpop.f32.mrb[0].mxu0
        %v815 = vadd.f32 0.0, %v814
        %v816 = vpop.f32.mrb[0].mxu0
        %v817 = vpop.f32.mrb[0].mxu0
        %v818 = vadd.f32 0.0, %v817
        %v819 = vpop.f32.mrb[0].mxu0
        %820 = vmatprep.mubr.bf16.mxu0 0
        %821 = vmatmul.mubr.bf16.gmra.mrb[0].mxu0 %v643
        %v822 = vpop.f32.mrb[0].mxu0
        %v823 = vpop.f32.mrb[0].mxu0
        %v824 = vpop.f32.mrb[0].mxu0
        %v825 = vadd.f32 0.0, %v824
        %v826 = vpop.f32.mrb[0].mxu0
        %827 = vmatprep.mubr.bf16.mxu0 0
        %828 = vmatmul.mubr.bf16.gmra.mrb[0].mxu0 %v646
        %v829 = vpop.f32.mrb[0].mxu0
        %v830 = vadd.f32 0.0, %v829
        %v831 = vpop.f32.mrb[0].mxu0
        %v832 = vpop.f32.mrb[0].mxu0
        %v833 = vpop.f32.mrb[0].mxu0
        %834 = vmatprep.mubr.bf16.mxu0 0
        %835 = vmatmul.mubr.bf16.gmra.mrb[0].mxu0 %v649
        %v836 = vpop.f32.mrb[0].mxu0
        %v837 = vadd.f32 0.0, %v836
        %v838 = vpop.f32.mrb[0].mxu0
        %v839 = vpop.f32.mrb[0].mxu0
        %v840 = vadd.f32 0.0, %v839
        %v841 = vpop.f32.mrb[0].mxu0
        %842 = vmatprep.mubr.bf16.mxu0 0
        %843 = vmatmul.mubr.bf16.gmra.mrb[0].mxu0 %v652
        %v844 = vpop.f32.mrb[0].mxu0
        %v845 = vpop.f32.mrb[0].mxu0
        %v846 = vpop.f32.mrb[0].mxu0
        %v847 = vadd.f32 0.0, %v846
        %v848 = vpop.f32.mrb[0].mxu0
        %849 = vmatprep.mubr.bf16.mxu0 0
        %850 = vmatmul.mubr.bf16.gmra.mrb[0].mxu0 %v655
        %v851 = vpop.f32.mrb[0].mxu0
        %v852 = vadd.f32 0.0, %v851
        %v853 = vpop.f32.mrb[0].mxu0
        %v854 = vpop.f32.mrb[0].mxu0
        %v855 = vpop.f32.mrb[0].mxu0
        %856 = vmatprep.mubr.bf16.mxu0 0
        %857 = vmatmul.mubr.bf16.gmra.mrb[0].mxu0 %v658
        %v858 = vpop.f32.mrb[0].mxu0
        %v859 = vadd.f32 0.0, %v858
        %v860 = vpop.f32.mrb[0].mxu0
        %v861 = vpop.f32.mrb[0].mxu0
        %v862 = vadd.f32 0.0, %v861
        %v863 = vpop.f32.mrb[0].mxu0
        %864 = vmatprep.mubr.bf16.mxu0 0
        %865 = vmatmul.mubr.bf16.gmra.mrb[0].mxu0 %v661
        %v866 = vpop.f32.mrb[0].mxu0
        %v867 = vpop.f32.mrb[0].mxu0
        %v868 = vpop.f32.mrb[0].mxu0
        %v869 = vadd.f32 0.0, %v868
        %v870 = vpop.f32.mrb[0].mxu0
        %871 = vmatprep.mubr.bf16.mxu0 0
        %872 = vmatmul.mubr.bf16.gmra.mrb[0].mxu0 %v664
        %v873 = vpop.f32.mrb[0].mxu0
        %v874 = vadd.f32 0.0, %v873
        %v875 = vpop.f32.mrb[0].mxu0
        %v876 = vpop.f32.mrb[0].mxu0
        %v877 = vpop.f32.mrb[0].mxu0
        %878 = vdwg.mxu0
        %v881 = vunpack.c.l.b16 %v262
        %v882 = vunpack.c.l.b16 %v263
        %v883 = vpack.c.b16 %v882, %v881
        %v884 = vsel %vm593, %v365, 0
        %v886 = vsel %vm593, %v366, 0
        %v888 = vsel %vm593, %v367, 0
        %v890 = vsel %vm593, %v368, 0
        %v892 = vsel %vm593, %v369, 0
        %v894 = vsel %vm593, %v370, 0
        %v896 = vsel %vm593, %v371, 0
        %v898 = vsel %vm593, %v372, 0
        %v900 = vsel %vm593, %v373, 0
        %v902 = vsel %vm593, %v374, 0
        %v904 = vsel %vm593, %v375, 0
        %v906 = vsel %vm593, %v376, 0
        %v908 = vsel %vm593, %v377, 0
        %v910 = vsel %vm593, %v378, 0
        %v912 = vsel %vm593, %v379, 0
        %v914 = vsel %vm593, %v380, 0
        %v916 = vsel %vm593, %v381, 0
        %v918 = vsel %vm593, %v382, 0
        %v920 = vsel %vm593, %v383, 0
        %v922 = vsel %vm593, %v384, 0
        %v924 = vsel %vm593, %v385, 0
        %v926 = vsel %vm593, %v386, 0
        %v928 = vsel %vm593, %v387, 0
        %v930 = vsel %vm593, %v388, 0
        %v933 = vsel %vm666, %v883, 0
        %935 = vmatprep.subr.bf16.mxu0 0
        %936 = vmatpush1.bf16.msra.mxu0 %v933
        %937 = vmatprep.subr.bf16.mxu0 0
        %938 = vmatpush1.bf16.msra.mxu0 0
        %939 = vmatprep.subr.bf16.mxu0 0
        %940 = vmatpush1.bf16.msra.mxu0 0
        %941 = vmatprep.subr.bf16.mxu0 0
        %942 = vmatpush1.bf16.msra.mxu0 0
        %943 = vmatprep.subr.bf16.mxu0 0
        %944 = vmatpush1.bf16.msra.mxu0 0
        %945 = vmatprep.subr.bf16.mxu0 0
        %946 = vmatpush1.bf16.msra.mxu0 0
        %947 = vmatprep.subr.bf16.mxu0 0
        %948 = vmatpush1.bf16.msra.mxu0 0
        %949 = vmatprep.subr.bf16.mxu0 0
        %950 = vmatpush1.bf16.msra.mxu0 0
        %951 = vmatprep.subr.bf16.mxu0 0
        %952 = vmatpush1.bf16.msra.mxu0 0
        %953 = vmatprep.subr.bf16.mxu0 0
        %954 = vmatpush1.bf16.msra.mxu0 0
        %955 = vmatprep.subr.bf16.mxu0 0
        %956 = vmatpush1.bf16.msra.mxu0 0
        %957 = vmatprep.subr.bf16.mxu0 0
        %958 = vmatpush1.bf16.msra.mxu0 0
        %959 = vmatprep.subr.bf16.mxu0 0
        %960 = vmatpush1.bf16.msra.mxu0 0
        %961 = vmatprep.subr.bf16.mxu0 0
        %962 = vmatpush1.bf16.msra.mxu0 0
        %963 = vmatprep.subr.bf16.mxu0 0
        %964 = vmatpush1.bf16.msra.mxu0 0
        %965 = vmatprep.subr.bf16.mxu0 0
        %966 = vmatpush1.bf16.msra.mxu0 0
        %967 = vmatprep.mubr.bf16.mxu0 0
        %968 = vmatmul.mubr.bf16.gmra.mrb[0].mxu0 %v884
        %v969 = vpop.f32.mrb[0].mxu0
        %v970 = vadd.f32 %v705, %v969
        %v971 = vpop.f32.mrb[0].mxu0
        %v972 = vpop.f32.mrb[0].mxu0
        %v973 = vadd.f32 %v708, %v972
        %v974 = vpop.f32.mrb[0].mxu0
        %975 = vmatprep.mubr.bf16.mxu0 0
        %976 = vmatmul.mubr.bf16.gmra.mrb[0].mxu0 %v886
        %v977 = vpop.f32.mrb[0].mxu0
        %v978 = vpop.f32.mrb[0].mxu0
        %v979 = vpop.f32.mrb[0].mxu0
        %v980 = vadd.f32 %v715, %v979
        %v981 = vpop.f32.mrb[0].mxu0
        %982 = vmatprep.mubr.bf16.mxu0 0
        %983 = vmatmul.mubr.bf16.gmra.mrb[0].mxu0 %v888
        %v984 = vpop.f32.mrb[0].mxu0
        %v985 = vadd.f32 %v720, %v984
        %v986 = vpop.f32.mrb[0].mxu0
        %v987 = vpop.f32.mrb[0].mxu0
        %v988 = vpop.f32.mrb[0].mxu0
        %989 = vmatprep.mubr.bf16.mxu0 0
        %990 = vmatmul.mubr.bf16.gmra.mrb[0].mxu0 %v890
        %v991 = vpop.f32.mrb[0].mxu0
        %v992 = vadd.f32 %v727, %v991
        %v993 = vpop.f32.mrb[0].mxu0
        %v994 = vpop.f32.mrb[0].mxu0
        %v995 = vadd.f32 %v730, %v994
        %v996 = vpop.f32.mrb[0].mxu0
        %997 = vmatprep.mubr.bf16.mxu0 0
        %998 = vmatmul.mubr.bf16.gmra.mrb[0].mxu0 %v892
        %v999 = vpop.f32.mrb[0].mxu0
        %v1000 = vpop.f32.mrb[0].mxu0
        %v1001 = vpop.f32.mrb[0].mxu0
        %v1002 = vadd.f32 %v737, %v1001
        %v1003 = vpop.f32.mrb[0].mxu0
        %1004 = vmatprep.mubr.bf16.mxu0 0
        %1005 = vmatmul.mubr.bf16.gmra.mrb[0].mxu0 %v894
        %v1006 = vpop.f32.mrb[0].mxu0
        %v1007 = vadd.f32 %v742, %v1006
        %v1008 = vpop.f32.mrb[0].mxu0
        %v1009 = vpop.f32.mrb[0].mxu0
        %v1010 = vpop.f32.mrb[0].mxu0
        %1011 = vmatprep.mubr.bf16.mxu0 0
        %1012 = vmatmul.mubr.bf16.gmra.mrb[0].mxu0 %v896
        %v1013 = vpop.f32.mrb[0].mxu0
        %v1014 = vadd.f32 %v749, %v1013
        %v1015 = vpop.f32.mrb[0].mxu0
        %v1016 = vpop.f32.mrb[0].mxu0
        %v1017 = vadd.f32 %v752, %v1016
        %v1018 = vpop.f32.mrb[0].mxu0
        %1019 = vmatprep.mubr.bf16.mxu0 0
        %1020 = vmatmul.mubr.bf16.gmra.mrb[0].mxu0 %v898
        %v1021 = vpop.f32.mrb[0].mxu0
        %v1022 = vpop.f32.mrb[0].mxu0
        %v1023 = vpop.f32.mrb[0].mxu0
        %v1024 = vadd.f32 %v759, %v1023
        %v1025 = vpop.f32.mrb[0].mxu0
        %1026 = vmatprep.mubr.bf16.mxu0 0
        %1027 = vmatmul.mubr.bf16.gmra.mrb[0].mxu0 %v900
        %v1028 = vpop.f32.mrb[0].mxu0
        %v1029 = vadd.f32 %v764, %v1028
        %v1030 = vpop.f32.mrb[0].mxu0
        %v1031 = vpop.f32.mrb[0].mxu0
        %v1032 = vpop.f32.mrb[0].mxu0
        %1033 = vmatprep.mubr.bf16.mxu0 0
        %1034 = vmatmul.mubr.bf16.gmra.mrb[0].mxu0 %v902
        %v1035 = vpop.f32.mrb[0].mxu0
        %v1036 = vadd.f32 %v771, %v1035
        %v1037 = vpop.f32.mrb[0].mxu0
        %v1038 = vpop.f32.mrb[0].mxu0
        %v1039 = vadd.f32 %v774, %v1038
        %v1040 = vpop.f32.mrb[0].mxu0
        %1041 = vmatprep.mubr.bf16.mxu0 0
        %1042 = vmatmul.mubr.bf16.gmra.mrb[0].mxu0 %v904
        %v1043 = vpop.f32.mrb[0].mxu0
        %v1044 = vpop.f32.mrb[0].mxu0
        %v1045 = vpop.f32.mrb[0].mxu0
        %v1046 = vadd.f32 %v781, %v1045
        %v1047 = vpop.f32.mrb[0].mxu0
        %1048 = vmatprep.mubr.bf16.mxu0 0
        %1049 = vmatmul.mubr.bf16.gmra.mrb[0].mxu0 %v906
        %v1050 = vpop.f32.mrb[0].mxu0
        %v1051 = vadd.f32 %v786, %v1050
        %v1052 = vpop.f32.mrb[0].mxu0
        %v1053 = vpop.f32.mrb[0].mxu0
        %v1054 = vpop.f32.mrb[0].mxu0
        %1055 = vmatprep.mubr.bf16.mxu0 0
        %1056 = vmatmul.mubr.bf16.gmra.mrb[0].mxu0 %v908
        %v1057 = vpop.f32.mrb[0].mxu0
        %v1058 = vadd.f32 %v793, %v1057
        %v1059 = vpop.f32.mrb[0].mxu0
        %v1060 = vpop.f32.mrb[0].mxu0
        %v1061 = vadd.f32 %v796, %v1060
        %v1062 = vpop.f32.mrb[0].mxu0
        %1063 = vmatprep.mubr.bf16.mxu0 0
        %1064 = vmatmul.mubr.bf16.gmra.mrb[0].mxu0 %v910
        %v1065 = vpop.f32.mrb[0].mxu0
        %v1066 = vpop.f32.mrb[0].mxu0
        %v1067 = vpop.f32.mrb[0].mxu0
        %v1068 = vadd.f32 %v803, %v1067
        %v1069 = vpop.f32.mrb[0].mxu0
        %1070 = vmatprep.mubr.bf16.mxu0 0
        %1071 = vmatmul.mubr.bf16.gmra.mrb[0].mxu0 %v912
        %v1072 = vpop.f32.mrb[0].mxu0
        %v1073 = vadd.f32 %v808, %v1072
        %v1074 = vpop.f32.mrb[0].mxu0
        %v1075 = vpop.f32.mrb[0].mxu0
        %v1076 = vpop.f32.mrb[0].mxu0
        %1077 = vmatprep.mubr.bf16.mxu0 0
        %1078 = vmatmul.mubr.bf16.gmra.mrb[0].mxu0 %v914
        %v1079 = vpop.f32.mrb[0].mxu0
        %v1080 = vadd.f32 %v815, %v1079
        %v1081 = vpop.f32.mrb[0].mxu0
        %v1082 = vpop.f32.mrb[0].mxu0
        %v1083 = vadd.f32 %v818, %v1082
        %v1084 = vpop.f32.mrb[0].mxu0
        %1085 = vmatprep.mubr.bf16.mxu0 0
        %1086 = vmatmul.mubr.bf16.gmra.mrb[0].mxu0 %v916
        %v1087 = vpop.f32.mrb[0].mxu0
        %v1088 = vpop.f32.mrb[0].mxu0
        %v1089 = vpop.f32.mrb[0].mxu0
        %v1090 = vadd.f32 %v825, %v1089
        %v1091 = vpop.f32.mrb[0].mxu0
        %1092 = vmatprep.mubr.bf16.mxu0 0
        %1093 = vmatmul.mubr.bf16.gmra.mrb[0].mxu0 %v918
        %v1094 = vpop.f32.mrb[0].mxu0
        %v1095 = vadd.f32 %v830, %v1094
        %v1096 = vpop.f32.mrb[0].mxu0
        %v1097 = vpop.f32.mrb[0].mxu0
        %v1098 = vpop.f32.mrb[0].mxu0
        %1099 = vmatprep.mubr.bf16.mxu0 0
        %1100 = vmatmul.mubr.bf16.gmra.mrb[0].mxu0 %v920
        %v1101 = vpop.f32.mrb[0].mxu0
        %v1102 = vadd.f32 %v837, %v1101
        %v1103 = vpop.f32.mrb[0].mxu0
        %v1104 = vpop.f32.mrb[0].mxu0
        %v1105 = vadd.f32 %v840, %v1104
        %v1106 = vpop.f32.mrb[0].mxu0
        %1107 = vmatprep.mubr.bf16.mxu0 0
        %1108 = vmatmul.mubr.bf16.gmra.mrb[0].mxu0 %v922
        %v1109 = vpop.f32.mrb[0].mxu0
        %v1110 = vpop.f32.mrb[0].mxu0
        %v1111 = vpop.f32.mrb[0].mxu0
        %v1112 = vadd.f32 %v847, %v1111
        %v1113 = vpop.f32.mrb[0].mxu0
        %1114 = vmatprep.mubr.bf16.mxu0 0
        %1115 = vmatmul.mubr.bf16.gmra.mrb[0].mxu0 %v924
        %v1116 = vpop.f32.mrb[0].mxu0
        %v1117 = vadd.f32 %v852, %v1116
        %v1118 = vpop.f32.mrb[0].mxu0
        %v1119 = vpop.f32.mrb[0].mxu0
        %v1120 = vpop.f32.mrb[0].mxu0
        %1121 = vmatprep.mubr.bf16.mxu0 0
        %1122 = vmatmul.mubr.bf16.gmra.mrb[0].mxu0 %v926
        %v1123 = vpop.f32.mrb[0].mxu0
        %v1124 = vadd.f32 %v859, %v1123
        %v1125 = vpop.f32.mrb[0].mxu0
        %v1126 = vpop.f32.mrb[0].mxu0
        %v1127 = vadd.f32 %v862, %v1126
        %v1128 = vpop.f32.mrb[0].mxu0
        %1129 = vmatprep.mubr.bf16.mxu0 0
        %1130 = vmatmul.mubr.bf16.gmra.mrb[0].mxu0 %v928
        %v1131 = vpop.f32.mrb[0].mxu0
        %v1132 = vpop.f32.mrb[0].mxu0
        %v1133 = vpop.f32.mrb[0].mxu0
        %v1134 = vadd.f32 %v869, %v1133
        %v1135 = vpop.f32.mrb[0].mxu0
        %1136 = vmatprep.mubr.bf16.mxu0 0
        %1137 = vmatmul.mubr.bf16.gmra.mrb[0].mxu0 %v930
        %v1138 = vpop.f32.mrb[0].mxu0
        %v1139 = vadd.f32 %v874, %v1138
        %v1140 = vpop.f32.mrb[0].mxu0
        %v1141 = vpop.f32.mrb[0].mxu0
        %v1142 = vpop.f32.mrb[0].mxu0
        %1143 = vdwg.mxu0
        %v1144 = vld [vmem:[%s208] sm:$0xe]
        %v1145 = vld [vmem:[%s212 + $0xc] sm:$0xf]
        %v1146 = vld [vmem:[%s212 + $0x10] sm:$0x3]
        %v1148 = vunpack.c.l.b16 %v1144
        %v1149 = vpack.c.b16 %v317, %v1148
        %vm1150 = vcmask 1046528
        %v1151 = vrot.slane %v1149, 1
        %v1152 = vrot.slane %v366, 1
        %v1153 = vsel %vm1150, %v1151, %v1152
        %v1154 = vrot.slane %v367, 1
        %v1155 = vsel %vm1150, %v1152, %v1154
        %v1156 = vrot.slane %v368, 1
        %v1157 = vsel %vm1150, %v1154, %v1156
        %v1158 = vrot.slane %v369, 1
        %v1159 = vsel %vm1150, %v1156, %v1158
        %v1160 = vrot.slane %v370, 1
        %v1161 = vsel %vm1150, %v1158, %v1160
        %v1162 = vrot.slane %v371, 1
        %v1163 = vsel %vm1150, %v1160, %v1162
        %v1164 = vrot.slane %v372, 1
        %v1165 = vsel %vm1150, %v1162, %v1164
        %v1166 = vrot.slane %v373, 1
        %v1167 = vsel %vm1150, %v1164, %v1166
        %v1168 = vrot.slane %v374, 1
        %v1169 = vsel %vm1150, %v1166, %v1168
        %v1170 = vrot.slane %v375, 1
        %v1171 = vsel %vm1150, %v1168, %v1170
        %v1172 = vrot.slane %v376, 1
        %v1173 = vsel %vm1150, %v1170, %v1172
        %v1174 = vrot.slane %v377, 1
        %v1175 = vsel %vm1150, %v1172, %v1174
        %v1176 = vrot.slane %v378, 1
        %v1177 = vsel %vm1150, %v1174, %v1176
        %v1178 = vrot.slane %v379, 1
        %v1179 = vsel %vm1150, %v1176, %v1178
        %v1180 = vrot.slane %v380, 1
        %v1181 = vsel %vm1150, %v1178, %v1180
        %v1182 = vrot.slane %v381, 1
        %v1183 = vsel %vm1150, %v1180, %v1182
        %v1184 = vrot.slane %v382, 1
        %v1185 = vsel %vm1150, %v1182, %v1184
        %v1186 = vrot.slane %v383, 1
        %v1187 = vsel %vm1150, %v1184, %v1186
        %v1188 = vrot.slane %v384, 1
        %v1189 = vsel %vm1150, %v1186, %v1188
        %v1190 = vrot.slane %v385, 1
        %v1191 = vsel %vm1150, %v1188, %v1190
        %v1192 = vrot.slane %v386, 1
        %v1193 = vsel %vm1150, %v1190, %v1192
        %v1194 = vrot.slane %v387, 1
        %v1195 = vsel %vm1150, %v1192, %v1194
        %v1196 = vrot.slane %v388, 1
        %v1197 = vsel %vm1150, %v1194, %v1196
        %v1198 = vrot.slane %v389, 1
        %v1199 = vsel %vm1150, %v1196, %v1198
        %v1202 = vunpack.c.l.b16 %v1145
        %v1203 = vunpack.c.l.b16 %v1146
        %v1204 = vpack.c.b16 %v1203, %v1202
        %v1206 = vsel %vm593, %v1153, 0
        %v1209 = vsel %vm593, %v1155, 0
        %v1212 = vsel %vm593, %v1157, 0
        %v1215 = vsel %vm593, %v1159, 0
        %v1218 = vsel %vm593, %v1161, 0
        %v1221 = vsel %vm593, %v1163, 0
        %v1224 = vsel %vm593, %v1165, 0
        %v1227 = vsel %vm593, %v1167, 0
        %v1230 = vsel %vm593, %v1169, 0
        %v1233 = vsel %vm593, %v1171, 0
        %v1236 = vsel %vm593, %v1173, 0
        %v1239 = vsel %vm593, %v1175, 0
        %v1242 = vsel %vm593, %v1177, 0
        %v1245 = vsel %vm593, %v1179, 0
        %v1248 = vsel %vm593, %v1181, 0
        %v1251 = vsel %vm593, %v1183, 0
        %v1254 = vsel %vm593, %v1185, 0
        %v1257 = vsel %vm593, %v1187, 0
        %v1260 = vsel %vm593, %v1189, 0
        %v1263 = vsel %vm593, %v1191, 0
        %v1266 = vsel %vm593, %v1193, 0
        %v1269 = vsel %vm593, %v1195, 0
        %v1272 = vsel %vm593, %v1197, 0
        %v1275 = vsel %vm593, %v1199, 0
        %v1278 = vsel %vm666, %v1204, 0
        %1280 = vmatprep.subr.bf16.mxu0 0
        %1281 = vmatpush1.bf16.msra.mxu0 %v1278
        %1282 = vmatprep.subr.bf16.mxu0 0
        %1283 = vmatpush1.bf16.msra.mxu0 0
        %1284 = vmatprep.subr.bf16.mxu0 0
        %1285 = vmatpush1.bf16.msra.mxu0 0
        %1286 = vmatprep.subr.bf16.mxu0 0
        %1287 = vmatpush1.bf16.msra.mxu0 0
        %1288 = vmatprep.subr.bf16.mxu0 0
        %1289 = vmatpush1.bf16.msra.mxu0 0
        %1290 = vmatprep.subr.bf16.mxu0 0
        %1291 = vmatpush1.bf16.msra.mxu0 0
        %1292 = vmatprep.subr.bf16.mxu0 0
        %1293 = vmatpush1.bf16.msra.mxu0 0
        %1294 = vmatprep.subr.bf16.mxu0 0
        %1295 = vmatpush1.bf16.msra.mxu0 0
        %1296 = vmatprep.subr.bf16.mxu0 0
        %1297 = vmatpush1.bf16.msra.mxu0 0
        %1298 = vmatprep.subr.bf16.mxu0 0
        %1299 = vmatpush1.bf16.msra.mxu0 0
        %1300 = vmatprep.subr.bf16.mxu0 0
        %1301 = vmatpush1.bf16.msra.mxu0 0
        %1302 = vmatprep.subr.bf16.mxu0 0
        %1303 = vmatpush1.bf16.msra.mxu0 0
        %1304 = vmatprep.subr.bf16.mxu0 0
        %1305 = vmatpush1.bf16.msra.mxu0 0
        %1306 = vmatprep.subr.bf16.mxu0 0
        %1307 = vmatpush1.bf16.msra.mxu0 0
        %1308 = vmatprep.subr.bf16.mxu0 0
        %1309 = vmatpush1.bf16.msra.mxu0 0
        %1310 = vmatprep.subr.bf16.mxu0 0
        %1311 = vmatpush1.bf16.msra.mxu0 0
        %1312 = vmatprep.mubr.bf16.mxu0 0
        %1313 = vmatmul.mubr.bf16.gmra.mrb[0].mxu0 %v1206
        %v1314 = vpop.f32.mrb[0].mxu0
        %v1315 = vadd.f32 0.0, %v1314
        %v1316 = vpop.f32.mrb[0].mxu0
        %v1317 = vpop.f32.mrb[0].mxu0
        %v1318 = vadd.f32 0.0, %v1317
        %v1319 = vpop.f32.mrb[0].mxu0
        %1320 = vmatprep.mubr.bf16.mxu0 0
        %1321 = vmatmul.mubr.bf16.gmra.mrb[0].mxu0 %v1209
        %v1322 = vpop.f32.mrb[0].mxu0
        %v1323 = vpop.f32.mrb[0].mxu0
        %v1324 = vpop.f32.mrb[0].mxu0
        %v1325 = vadd.f32 0.0, %v1324
        %v1326 = vpop.f32.mrb[0].mxu0
        %1327 = vmatprep.mubr.bf16.mxu0 0
        %1328 = vmatmul.mubr.bf16.gmra.mrb[0].mxu0 %v1212
        %v1329 = vpop.f32.mrb[0].mxu0
        %v1330 = vadd.f32 0.0, %v1329
        %v1331 = vpop.f32.mrb[0].mxu0
        %v1332 = vpop.f32.mrb[0].mxu0
        %v1333 = vpop.f32.mrb[0].mxu0
        %1334 = vmatprep.mubr.bf16.mxu0 0
        %1335 = vmatmul.mubr.bf16.gmra.mrb[0].mxu0 %v1215
        %v1336 = vpop.f32.mrb[0].mxu0
        %v1337 = vadd.f32 0.0, %v1336
        %v1338 = vpop.f32.mrb[0].mxu0
        %v1339 = vpop.f32.mrb[0].mxu0
        %v1340 = vadd.f32 0.0, %v1339
        %v1341 = vpop.f32.mrb[0].mxu0
        %1342 = vmatprep.mubr.bf16.mxu0 0
        %1343 = vmatmul.mubr.bf16.gmra.mrb[0].mxu0 %v1218
        %v1344 = vpop.f32.mrb[0].mxu0
        %v1345 = vpop.f32.mrb[0].mxu0
        %v1346 = vpop.f32.mrb[0].mxu0
        %v1347 = vadd.f32 0.0, %v1346
        %v1348 = vpop.f32.mrb[0].mxu0
        %1349 = vmatprep.mubr.bf16.mxu0 0
        %1350 = vmatmul.mubr.bf16.gmra.mrb[0].mxu0 %v1221
        %v1351 = vpop.f32.mrb[0].mxu0
        %v1352 = vadd.f32 0.0, %v1351
        %v1353 = vpop.f32.mrb[0].mxu0
        %v1354 = vpop.f32.mrb[0].mxu0
        %v1355 = vpop.f32.mrb[0].mxu0
        %1356 = vmatprep.mubr.bf16.mxu0 0
        %1357 = vmatmul.mubr.bf16.gmra.mrb[0].mxu0 %v1224
        %v1358 = vpop.f32.mrb[0].mxu0
        %v1359 = vadd.f32 0.0, %v1358
        %v1360 = vpop.f32.mrb[0].mxu0
        %v1361 = vpop.f32.mrb[0].mxu0
        %v1362 = vadd.f32 0.0, %v1361
        %v1363 = vpop.f32.mrb[0].mxu0
        %1364 = vmatprep.mubr.bf16.mxu0 0
        %1365 = vmatmul.mubr.bf16.gmra.mrb[0].mxu0 %v1227
        %v1366 = vpop.f32.mrb[0].mxu0
        %v1367 = vpop.f32.mrb[0].mxu0
        %v1368 = vpop.f32.mrb[0].mxu0
        %v1369 = vadd.f32 0.0, %v1368
        %v1370 = vpop.f32.mrb[0].mxu0
        %1371 = vmatprep.mubr.bf16.mxu0 0
        %1372 = vmatmul.mubr.bf16.gmra.mrb[0].mxu0 %v1230
        %v1373 = vpop.f32.mrb[0].mxu0
        %v1374 = vadd.f32 0.0, %v1373
        %v1375 = vpop.f32.mrb[0].mxu0
        %v1376 = vpop.f32.mrb[0].mxu0
        %v1377 = vpop.f32.mrb[0].mxu0
        %1378 = vmatprep.mubr.bf16.mxu0 0
        %1379 = vmatmul.mubr.bf16.gmra.mrb[0].mxu0 %v1233
        %v1380 = vpop.f32.mrb[0].mxu0
        %v1381 = vadd.f32 0.0, %v1380
        %v1382 = vpop.f32.mrb[0].mxu0
        %v1383 = vpop.f32.mrb[0].mxu0
        %v1384 = vadd.f32 0.0, %v1383
        %v1385 = vpop.f32.mrb[0].mxu0
        %1386 = vmatprep.mubr.bf16.mxu0 0
        %1387 = vmatmul.mubr.bf16.gmra.mrb[0].mxu0 %v1236
        %v1388 = vpop.f32.mrb[0].mxu0
        %v1389 = vpop.f32.mrb[0].mxu0
        %v1390 = vpop.f32.mrb[0].mxu0
        %v1391 = vadd.f32 0.0, %v1390
        %v1392 = vpop.f32.mrb[0].mxu0
        %1393 = vmatprep.mubr.bf16.mxu0 0
        %1394 = vmatmul.mubr.bf16.gmra.mrb[0].mxu0 %v1239
        %v1395 = vpop.f32.mrb[0].mxu0
        %v1396 = vadd.f32 0.0, %v1395
        %v1397 = vpop.f32.mrb[0].mxu0
        %v1398 = vpop.f32.mrb[0].mxu0
        %v1399 = vpop.f32.mrb[0].mxu0
        %1400 = vmatprep.mubr.bf16.mxu0 0
        %1401 = vmatmul.mubr.bf16.gmra.mrb[0].mxu0 %v1242
        %v1402 = vpop.f32.mrb[0].mxu0
        %v1403 = vadd.f32 0.0, %v1402
        %v1404 = vpop.f32.mrb[0].mxu0
        %v1405 = vpop.f32.mrb[0].mxu0
        %v1406 = vadd.f32 0.0, %v1405
        %v1407 = vpop.f32.mrb[0].mxu0
        %1408 = vmatprep.mubr.bf16.mxu0 0
        %1409 = vmatmul.mubr.bf16.gmra.mrb[0].mxu0 %v1245
        %v1410 = vpop.f32.mrb[0].mxu0
        %v1411 = vpop.f32.mrb[0].mxu0
        %v1412 = vpop.f32.mrb[0].mxu0
        %v1413 = vadd.f32 0.0, %v1412
        %v1414 = vpop.f32.mrb[0].mxu0
        %1415 = vmatprep.mubr.bf16.mxu0 0
        %1416 = vmatmul.mubr.bf16.gmra.mrb[0].mxu0 %v1248
        %v1417 = vpop.f32.mrb[0].mxu0
        %v1418 = vadd.f32 0.0, %v1417
        %v1419 = vpop.f32.mrb[0].mxu0
        %v1420 = vpop.f32.mrb[0].mxu0
        %v1421 = vpop.f32.mrb[0].mxu0
        %1422 = vmatprep.mubr.bf16.mxu0 0
        %1423 = vmatmul.mubr.bf16.gmra.mrb[0].mxu0 %v1251
        %v1424 = vpop.f32.mrb[0].mxu0
        %v1425 = vadd.f32 0.0, %v1424
        %v1426 = vpop.f32.mrb[0].mxu0
        %v1427 = vpop.f32.mrb[0].mxu0
        %v1428 = vadd.f32 0.0, %v1427
        %v1429 = vpop.f32.mrb[0].mxu0
        %1430 = vmatprep.mubr.bf16.mxu0 0
        %1431 = vmatmul.mubr.bf16.gmra.mrb[0].mxu0 %v1254
        %v1432 = vpop.f32.mrb[0].mxu0
        %v1433 = vpop.f32.mrb[0].mxu0
        %v1434 = vpop.f32.mrb[0].mxu0
        %v1435 = vadd.f32 0.0, %v1434
        %v1436 = vpop.f32.mrb[0].mxu0
        %1437 = vmatprep.mubr.bf16.mxu0 0
        %1438 = vmatmul.mubr.bf16.gmra.mrb[0].mxu0 %v1257
        %v1439 = vpop.f32.mrb[0].mxu0
        %v1440 = vadd.f32 0.0, %v1439
        %v1441 = vpop.f32.mrb[0].mxu0
        %v1442 = vpop.f32.mrb[0].mxu0
        %v1443 = vpop.f32.mrb[0].mxu0
        %1444 = vmatprep.mubr.bf16.mxu0 0
        %1445 = vmatmul.mubr.bf16.gmra.mrb[0].mxu0 %v1260
        %v1446 = vpop.f32.mrb[0].mxu0
        %v1447 = vadd.f32 0.0, %v1446
        %v1448 = vpop.f32.mrb[0].mxu0
        %v1449 = vpop.f32.mrb[0].mxu0
        %v1450 = vadd.f32 0.0, %v1449
        %v1451 = vpop.f32.mrb[0].mxu0
        %1452 = vmatprep.mubr.bf16.mxu0 0
        %1453 = vmatmul.mubr.bf16.gmra.mrb[0].mxu0 %v1263
        %v1454 = vpop.f32.mrb[0].mxu0
        %v1455 = vpop.f32.mrb[0].mxu0
        %v1456 = vpop.f32.mrb[0].mxu0
        %v1457 = vadd.f32 0.0, %v1456
        %v1458 = vpop.f32.mrb[0].mxu0
        %1459 = vmatprep.mubr.bf16.mxu0 0
        %1460 = vmatmul.mubr.bf16.gmra.mrb[0].mxu0 %v1266
        %v1461 = vpop.f32.mrb[0].mxu0
        %v1462 = vadd.f32 0.0, %v1461
        %v1463 = vpop.f32.mrb[0].mxu0
        %v1464 = vpop.f32.mrb[0].mxu0
        %v1465 = vpop.f32.mrb[0].mxu0
        %1466 = vmatprep.mubr.bf16.mxu0 0
        %1467 = vmatmul.mubr.bf16.gmra.mrb[0].mxu0 %v1269
        %v1468 = vpop.f32.mrb[0].mxu0
        %v1469 = vadd.f32 0.0, %v1468
        %v1470 = vpop.f32.mrb[0].mxu0
        %v1471 = vpop.f32.mrb[0].mxu0
        %v1472 = vadd.f32 0.0, %v1471
        %v1473 = vpop.f32.mrb[0].mxu0
        %1474 = vmatprep.mubr.bf16.mxu0 0
        %1475 = vmatmul.mubr.bf16.gmra.mrb[0].mxu0 %v1272
        %v1476 = vpop.f32.mrb[0].mxu0
        %v1477 = vpop.f32.mrb[0].mxu0
        %v1478 = vpop.f32.mrb[0].mxu0
        %v1479 = vadd.f32 0.0, %v1478
        %v1480 = vpop.f32.mrb[0].mxu0
        %1481 = vmatprep.mubr.bf16.mxu0 0
        %1482 = vmatmul.mubr.bf16.gmra.mrb[0].mxu0 %v1275
        %v1483 = vpop.f32.mrb[0].mxu0
        %v1484 = vadd.f32 0.0, %v1483
        %v1485 = vpop.f32.mrb[0].mxu0
        %v1486 = vpop.f32.mrb[0].mxu0
        %v1487 = vpop.f32.mrb[0].mxu0
        %1488 = vdwg.mxu0
        %v1489 = vadd.f32 %v970, %v1315
        %v1490 = vadd.f32 %v973, %v1318
        %v1491 = vadd.f32 %v980, %v1325
        %v1492 = vadd.f32 %v985, %v1330
        %v1493 = vadd.f32 %v992, %v1337
        %v1494 = vadd.f32 %v995, %v1340
        %v1495 = vadd.f32 %v1002, %v1347
        %v1496 = vadd.f32 %v1007, %v1352
        %v1497 = vadd.f32 %v1014, %v1359
        %v1498 = vadd.f32 %v1017, %v1362
        %v1499 = vadd.f32 %v1024, %v1369
        %v1500 = vadd.f32 %v1029, %v1374
        %v1501 = vadd.f32 %v1036, %v1381
        %v1502 = vadd.f32 %v1039, %v1384
        %v1503 = vadd.f32 %v1046, %v1391
        %v1504 = vadd.f32 %v1051, %v1396
        %v1505 = vadd.f32 %v1058, %v1403
        %v1506 = vadd.f32 %v1061, %v1406
        %v1507 = vadd.f32 %v1068, %v1413
        %v1508 = vadd.f32 %v1073, %v1418
        %v1509 = vadd.f32 %v1080, %v1425
        %v1510 = vadd.f32 %v1083, %v1428
        %v1511 = vadd.f32 %v1090, %v1435
        %v1512 = vadd.f32 %v1095, %v1440
        %v1513 = vadd.f32 %v1102, %v1447
        %v1514 = vadd.f32 %v1105, %v1450
        %v1515 = vadd.f32 %v1112, %v1457
        %v1516 = vadd.f32 %v1117, %v1462
        %v1517 = vadd.f32 %v1124, %v1469
        %v1518 = vadd.f32 %v1127, %v1472
        %v1519 = vadd.f32 %v1134, %v1479
        %v1520 = vadd.f32 %v1139, %v1484
        %v1521 = vld [vmem:[%s208 + $0xc0] sm:$0x3]
        %v1522 = vld [vmem:[%s212 + $0x10] sm:$0xc]
        %v1523 = vld [vmem:[%s212 + $0x14] sm:$0xf]
        %v1525 = vunpack.c.l.b16 %v1521
        %v1526 = vpack.c.b16 %v1525, %v1525
        %vm1527 = vsmask.f32 6400
        %v1529 = vshrl.u32 %v1149, 16
        %v1531 = vrot.slane %v1529, 1
        %v1532 = vshll.u32 %v1149, 16
        %v1534 = vrot.slane %v1532, 2
        %v1535 = vor.u32 %v1531, %v1534
        %v1536 = vrot.slane %v403, 1
        %v1537 = vrot.slane %v399, 2
        %v1538 = vor.u32 %v1536, %v1537
        %v1539 = vsel %vm1527, %v1535, %v1538
        %v1540 = vrot.slane %v411, 1
        %v1541 = vrot.slane %v407, 2
        %v1542 = vor.u32 %v1540, %v1541
        %v1543 = vsel %vm1527, %v1538, %v1542
        %v1544 = vrot.slane %v419, 1
        %v1545 = vrot.slane %v415, 2
        %v1546 = vor.u32 %v1544, %v1545
        %v1547 = vsel %vm1527, %v1542, %v1546
        %v1548 = vrot.slane %v427, 1
        %v1549 = vrot.slane %v423, 2
        %v1550 = vor.u32 %v1548, %v1549
        %v1551 = vsel %vm1527, %v1546, %v1550
        %v1552 = vrot.slane %v435, 1
        %v1553 = vrot.slane %v431, 2
        %v1554 = vor.u32 %v1552, %v1553
        %v1555 = vsel %vm1527, %v1550, %v1554
        %v1556 = vrot.slane %v443, 1
        %v1557 = vrot.slane %v439, 2
        %v1558 = vor.u32 %v1556, %v1557
        %v1559 = vsel %vm1527, %v1554, %v1558
        %v1560 = vrot.slane %v451, 1
        %v1561 = vrot.slane %v447, 2
        %v1562 = vor.u32 %v1560, %v1561
        %v1563 = vsel %vm1527, %v1558, %v1562
        %v1564 = vrot.slane %v459, 1
        %v1565 = vrot.slane %v455, 2
        %v1566 = vor.u32 %v1564, %v1565
        %v1567 = vsel %vm1527, %v1562, %v1566
        %v1568 = vrot.slane %v467, 1
        %v1569 = vrot.slane %v463, 2
        %v1570 = vor.u32 %v1568, %v1569
        %v1571 = vsel %vm1527, %v1566, %v1570
        %v1572 = vrot.slane %v475, 1
        %v1573 = vrot.slane %v471, 2
        %v1574 = vor.u32 %v1572, %v1573
        %v1575 = vsel %vm1527, %v1570, %v1574
        %v1576 = vrot.slane %v483, 1
        %v1577 = vrot.slane %v479, 2
        %v1578 = vor.u32 %v1576, %v1577
        %v1579 = vsel %vm1527, %v1574, %v1578
        %v1580 = vrot.slane %v491, 1
        %v1581 = vrot.slane %v487, 2
        %v1582 = vor.u32 %v1580, %v1581
        %v1583 = vsel %vm1527, %v1578, %v1582
        %v1584 = vrot.slane %v499, 1
        %v1585 = vrot.slane %v495, 2
        %v1586 = vor.u32 %v1584, %v1585
        %v1587 = vsel %vm1527, %v1582, %v1586
        %v1588 = vrot.slane %v507, 1
        %v1589 = vrot.slane %v503, 2
        %v1590 = vor.u32 %v1588, %v1589
        %v1591 = vsel %vm1527, %v1586, %v1590
        %v1592 = vrot.slane %v515, 1
        %v1593 = vrot.slane %v511, 2
        %v1594 = vor.u32 %v1592, %v1593
        %v1595 = vsel %vm1527, %v1590, %v1594
        %v1596 = vrot.slane %v523, 1
        %v1597 = vrot.slane %v519, 2
        %v1598 = vor.u32 %v1596, %v1597
        %v1599 = vsel %vm1527, %v1594, %v1598
        %v1600 = vrot.slane %v531, 1
        %v1601 = vrot.slane %v527, 2
        %v1602 = vor.u32 %v1600, %v1601
        %v1603 = vsel %vm1527, %v1598, %v1602
        %v1604 = vrot.slane %v539, 1
        %v1605 = vrot.slane %v535, 2
        %v1606 = vor.u32 %v1604, %v1605
        %v1607 = vsel %vm1527, %v1602, %v1606
        %v1608 = vrot.slane %v547, 1
        %v1609 = vrot.slane %v543, 2
        %v1610 = vor.u32 %v1608, %v1609
        %v1611 = vsel %vm1527, %v1606, %v1610
        %v1612 = vrot.slane %v555, 1
        %v1613 = vrot.slane %v551, 2
        %v1614 = vor.u32 %v1612, %v1613
        %v1615 = vsel %vm1527, %v1610, %v1614
        %v1616 = vrot.slane %v563, 1
        %v1617 = vrot.slane %v559, 2
        %v1618 = vor.u32 %v1616, %v1617
        %v1619 = vsel %vm1527, %v1614, %v1618
        %v1620 = vrot.slane %v571, 1
        %v1621 = vrot.slane %v567, 2
        %v1622 = vor.u32 %v1620, %v1621
        %v1623 = vsel %vm1527, %v1618, %v1622
        %v1624 = vrot.slane %v579, 1
        %v1625 = vrot.slane %v575, 2
        %v1626 = vor.u32 %v1624, %v1625
        %v1627 = vsel %vm1527, %v1622, %v1626
        %v1629 = vshrl.u32 %v1526, 16
        %v1631 = vrot.slane %v1629, 1
        %v1632 = vshll.u32 %v1526, 16
        %v1634 = vrot.slane %v1632, 2
        %v1635 = vor.u32 %v1631, %v1634
        %v1636 = vsel %vm1527, %v1626, %v1635
        %v1639 = vunpack.c.l.b16 %v1522
        %v1640 = vunpack.c.l.b16 %v1523
        %v1641 = vpack.c.b16 %v1640, %v1639
        %v1642 = vrot.slane %v1641, 2
        %v1644 = vsel %vm593, %v1539, 0
        %v1647 = vsel %vm593, %v1543, 0
        %v1650 = vsel %vm593, %v1547, 0
        %v1653 = vsel %vm593, %v1551, 0
        %v1656 = vsel %vm593, %v1555, 0
        %v1659 = vsel %vm593, %v1559, 0
        %v1662 = vsel %vm593, %v1563, 0
        %v1665 = vsel %vm593, %v1567, 0
        %v1668 = vsel %vm593, %v1571, 0
        %v1671 = vsel %vm593, %v1575, 0
        %v1674 = vsel %vm593, %v1579, 0
        %v1677 = vsel %vm593, %v1583, 0
        %v1680 = vsel %vm593, %v1587, 0
        %v1683 = vsel %vm593, %v1591, 0
        %v1686 = vsel %vm593, %v1595, 0
        %v1689 = vsel %vm593, %v1599, 0
        %v1692 = vsel %vm593, %v1603, 0
        %v1695 = vsel %vm593, %v1607, 0
        %v1698 = vsel %vm593, %v1611, 0
        %v1701 = vsel %vm593, %v1615, 0
        %v1704 = vsel %vm593, %v1619, 0
        %v1707 = vsel %vm593, %v1623, 0
        %v1710 = vsel %vm593, %v1627, 0
        %v1713 = vsel %vm593, %v1636, 0
        %v1716 = vsel %vm666, %v1642, 0
        %1718 = vmatprep.subr.bf16.mxu0 0
        %1719 = vmatpush1.bf16.msra.mxu0 %v1716
        %1720 = vmatprep.subr.bf16.mxu0 0
        %1721 = vmatpush1.bf16.msra.mxu0 0
        %1722 = vmatprep.subr.bf16.mxu0 0
        %1723 = vmatpush1.bf16.msra.mxu0 0
        %1724 = vmatprep.subr.bf16.mxu0 0
        %1725 = vmatpush1.bf16.msra.mxu0 0
        %1726 = vmatprep.subr.bf16.mxu0 0
        %1727 = vmatpush1.bf16.msra.mxu0 0
        %1728 = vmatprep.subr.bf16.mxu0 0
        %1729 = vmatpush1.bf16.msra.mxu0 0
        %1730 = vmatprep.subr.bf16.mxu0 0
        %1731 = vmatpush1.bf16.msra.mxu0 0
        %1732 = vmatprep.subr.bf16.mxu0 0
        %1733 = vmatpush1.bf16.msra.mxu0 0
        %1734 = vmatprep.subr.bf16.mxu0 0
        %1735 = vmatpush1.bf16.msra.mxu0 0
        %1736 = vmatprep.subr.bf16.mxu0 0
        %1737 = vmatpush1.bf16.msra.mxu0 0
        %1738 = vmatprep.subr.bf16.mxu0 0
        %1739 = vmatpush1.bf16.msra.mxu0 0
        %1740 = vmatprep.subr.bf16.mxu0 0
        %1741 = vmatpush1.bf16.msra.mxu0 0
        %1742 = vmatprep.subr.bf16.mxu0 0
        %1743 = vmatpush1.bf16.msra.mxu0 0
        %1744 = vmatprep.subr.bf16.mxu0 0
        %1745 = vmatpush1.bf16.msra.mxu0 0
        %1746 = vmatprep.subr.bf16.mxu0 0
        %1747 = vmatpush1.bf16.msra.mxu0 0
        %1748 = vmatprep.subr.bf16.mxu0 0
        %1749 = vmatpush1.bf16.msra.mxu0 0
        %1750 = vmatprep.mubr.bf16.mxu0 0
        %1751 = vmatmul.mubr.bf16.gmra.mrb[0].mxu0 %v1644
        %v1752 = vpop.f32.mrb[0].mxu0
        %v1753 = vadd.f32 0.0, %v1752
        %v1754 = vpop.f32.mrb[0].mxu0
        %v1755 = vpop.f32.mrb[0].mxu0
        %v1756 = vadd.f32 0.0, %v1755
        %v1757 = vpop.f32.mrb[0].mxu0
        %1758 = vmatprep.mubr.bf16.mxu0 0
        %1759 = vmatmul.mubr.bf16.gmra.mrb[0].mxu0 %v1647
        %v1760 = vpop.f32.mrb[0].mxu0
        %v1761 = vpop.f32.mrb[0].mxu0
        %v1762 = vpop.f32.mrb[0].mxu0
        %v1763 = vadd.f32 0.0, %v1762
        %v1764 = vpop.f32.mrb[0].mxu0
        %1765 = vmatprep.mubr.bf16.mxu0 0
        %1766 = vmatmul.mubr.bf16.gmra.mrb[0].mxu0 %v1650
        %v1767 = vpop.f32.mrb[0].mxu0
        %v1768 = vadd.f32 0.0, %v1767
        %v1769 = vpop.f32.mrb[0].mxu0
        %v1770 = vpop.f32.mrb[0].mxu0
        %v1771 = vpop.f32.mrb[0].mxu0
        %1772 = vmatprep.mubr.bf16.mxu0 0
        %1773 = vmatmul.mubr.bf16.gmra.mrb[0].mxu0 %v1653
        %v1774 = vpop.f32.mrb[0].mxu0
        %v1775 = vadd.f32 0.0, %v1774
        %v1776 = vpop.f32.mrb[0].mxu0
        %v1777 = vpop.f32.mrb[0].mxu0
        %v1778 = vadd.f32 0.0, %v1777
        %v1779 = vpop.f32.mrb[0].mxu0
        %1780 = vmatprep.mubr.bf16.mxu0 0
        %1781 = vmatmul.mubr.bf16.gmra.mrb[0].mxu0 %v1656
        %v1782 = vpop.f32.mrb[0].mxu0
        %v1783 = vpop.f32.mrb[0].mxu0
        %v1784 = vpop.f32.mrb[0].mxu0
        %v1785 = vadd.f32 0.0, %v1784
        %v1786 = vpop.f32.mrb[0].mxu0
        %1787 = vmatprep.mubr.bf16.mxu0 0
        %1788 = vmatmul.mubr.bf16.gmra.mrb[0].mxu0 %v1659
        %v1789 = vpop.f32.mrb[0].mxu0
        %v1790 = vadd.f32 0.0, %v1789
        %v1791 = vpop.f32.mrb[0].mxu0
        %v1792 = vpop.f32.mrb[0].mxu0
        %v1793 = vpop.f32.mrb[0].mxu0
        %1794 = vmatprep.mubr.bf16.mxu0 0
        %1795 = vmatmul.mubr.bf16.gmra.mrb[0].mxu0 %v1662
        %v1796 = vpop.f32.mrb[0].mxu0
        %v1797 = vadd.f32 0.0, %v1796
        %v1798 = vpop.f32.mrb[0].mxu0
        %v1799 = vpop.f32.mrb[0].mxu0
        %v1800 = vadd.f32 0.0, %v1799
        %v1801 = vpop.f32.mrb[0].mxu0
        %1802 = vmatprep.mubr.bf16.mxu0 0
        %1803 = vmatmul.mubr.bf16.gmra.mrb[0].mxu0 %v1665
        %v1804 = vpop.f32.mrb[0].mxu0
        %v1805 = vpop.f32.mrb[0].mxu0
        %v1806 = vpop.f32.mrb[0].mxu0
        %v1807 = vadd.f32 0.0, %v1806
        %v1808 = vpop.f32.mrb[0].mxu0
        %1809 = vmatprep.mubr.bf16.mxu0 0
        %1810 = vmatmul.mubr.bf16.gmra.mrb[0].mxu0 %v1668
        %v1811 = vpop.f32.mrb[0].mxu0
        %v1812 = vadd.f32 0.0, %v1811
        %v1813 = vpop.f32.mrb[0].mxu0
        %v1814 = vpop.f32.mrb[0].mxu0
        %v1815 = vpop.f32.mrb[0].mxu0
        %1816 = vmatprep.mubr.bf16.mxu0 0
        %1817 = vmatmul.mubr.bf16.gmra.mrb[0].mxu0 %v1671
        %v1818 = vpop.f32.mrb[0].mxu0
        %v1819 = vadd.f32 0.0, %v1818
        %v1820 = vpop.f32.mrb[0].mxu0
        %v1821 = vpop.f32.mrb[0].mxu0
        %v1822 = vadd.f32 0.0, %v1821
        %v1823 = vpop.f32.mrb[0].mxu0
        %1824 = vmatprep.mubr.bf16.mxu0 0
        %1825 = vmatmul.mubr.bf16.gmra.mrb[0].mxu0 %v1674
        %v1826 = vpop.f32.mrb[0].mxu0
        %v1827 = vpop.f32.mrb[0].mxu0
        %v1828 = vpop.f32.mrb[0].mxu0
        %v1829 = vadd.f32 0.0, %v1828
        %v1830 = vpop.f32.mrb[0].mxu0
        %1831 = vmatprep.mubr.bf16.mxu0 0
        %1832 = vmatmul.mubr.bf16.gmra.mrb[0].mxu0 %v1677
        %v1833 = vpop.f32.mrb[0].mxu0
        %v1834 = vadd.f32 0.0, %v1833
        %v1835 = vpop.f32.mrb[0].mxu0
        %v1836 = vpop.f32.mrb[0].mxu0
        %v1837 = vpop.f32.mrb[0].mxu0
        %1838 = vmatprep.mubr.bf16.mxu0 0
        %1839 = vmatmul.mubr.bf16.gmra.mrb[0].mxu0 %v1680
        %v1840 = vpop.f32.mrb[0].mxu0
        %v1841 = vadd.f32 0.0, %v1840
        %v1842 = vpop.f32.mrb[0].mxu0
        %v1843 = vpop.f32.mrb[0].mxu0
        %v1844 = vadd.f32 0.0, %v1843
        %v1845 = vpop.f32.mrb[0].mxu0
        %1846 = vmatprep.mubr.bf16.mxu0 0
        %1847 = vmatmul.mubr.bf16.gmra.mrb[0].mxu0 %v1683
        %v1848 = vpop.f32.mrb[0].mxu0
        %v1849 = vpop.f32.mrb[0].mxu0
        %v1850 = vpop.f32.mrb[0].mxu0
        %v1851 = vadd.f32 0.0, %v1850
        %v1852 = vpop.f32.mrb[0].mxu0
        %1853 = vmatprep.mubr.bf16.mxu0 0
        %1854 = vmatmul.mubr.bf16.gmra.mrb[0].mxu0 %v1686
        %v1855 = vpop.f32.mrb[0].mxu0
        %v1856 = vadd.f32 0.0, %v1855
        %v1857 = vpop.f32.mrb[0].mxu0
        %v1858 = vpop.f32.mrb[0].mxu0
        %v1859 = vpop.f32.mrb[0].mxu0
        %1860 = vmatprep.mubr.bf16.mxu0 0
        %1861 = vmatmul.mubr.bf16.gmra.mrb[0].mxu0 %v1689
        %v1862 = vpop.f32.mrb[0].mxu0
        %v1863 = vadd.f32 0.0, %v1862
        %v1864 = vpop.f32.mrb[0].mxu0
        %v1865 = vpop.f32.mrb[0].mxu0
        %v1866 = vadd.f32 0.0, %v1865
        %v1867 = vpop.f32.mrb[0].mxu0
        %1868 = vmatprep.mubr.bf16.mxu0 0
        %1869 = vmatmul.mubr.bf16.gmra.mrb[0].mxu0 %v1692
        %v1870 = vpop.f32.mrb[0].mxu0
        %v1871 = vpop.f32.mrb[0].mxu0
        %v1872 = vpop.f32.mrb[0].mxu0
        %v1873 = vadd.f32 0.0, %v1872
        %v1874 = vpop.f32.mrb[0].mxu0
        %1875 = vmatprep.mubr.bf16.mxu0 0
        %1876 = vmatmul.mubr.bf16.gmra.mrb[0].mxu0 %v1695
        %v1877 = vpop.f32.mrb[0].mxu0
        %v1878 = vadd.f32 0.0, %v1877
        %v1879 = vpop.f32.mrb[0].mxu0
        %v1880 = vpop.f32.mrb[0].mxu0
        %v1881 = vpop.f32.mrb[0].mxu0
        %1882 = vmatprep.mubr.bf16.mxu0 0
        %1883 = vmatmul.mubr.bf16.gmra.mrb[0].mxu0 %v1698
        %v1884 = vpop.f32.mrb[0].mxu0
        %v1885 = vadd.f32 0.0, %v1884
        %v1886 = vpop.f32.mrb[0].mxu0
        %v1887 = vpop.f32.mrb[0].mxu0
        %v1888 = vadd.f32 0.0, %v1887
        %v1889 = vpop.f32.mrb[0].mxu0
        %1890 = vmatprep.mubr.bf16.mxu0 0
        %1891 = vmatmul.mubr.bf16.gmra.mrb[0].mxu0 %v1701
        %v1892 = vpop.f32.mrb[0].mxu0
        %v1893 = vpop.f32.mrb[0].mxu0
        %v1894 = vpop.f32.mrb[0].mxu0
        %v1895 = vadd.f32 0.0, %v1894
        %v1896 = vpop.f32.mrb[0].mxu0
        %1897 = vmatprep.mubr.bf16.mxu0 0
        %1898 = vmatmul.mubr.bf16.gmra.mrb[0].mxu0 %v1704
        %v1899 = vpop.f32.mrb[0].mxu0
        %v1900 = vadd.f32 0.0, %v1899
        %v1901 = vpop.f32.mrb[0].mxu0
        %v1902 = vpop.f32.mrb[0].mxu0
        %v1903 = vpop.f32.mrb[0].mxu0
        %1904 = vmatprep.mubr.bf16.mxu0 0
        %1905 = vmatmul.mubr.bf16.gmra.mrb[0].mxu0 %v1707
        %v1906 = vpop.f32.mrb[0].mxu0
        %v1907 = vadd.f32 0.0, %v1906
        %v1908 = vpop.f32.mrb[0].mxu0
        %v1909 = vpop.f32.mrb[0].mxu0
        %v1910 = vadd.f32 0.0, %v1909
        %v1911 = vpop.f32.mrb[0].mxu0
        %1912 = vmatprep.mubr.bf16.mxu0 0
        %1913 = vmatmul.mubr.bf16.gmra.mrb[0].mxu0 %v1710
        %v1914 = vpop.f32.mrb[0].mxu0
        %v1915 = vpop.f32.mrb[0].mxu0
        %v1916 = vpop.f32.mrb[0].mxu0
        %v1917 = vadd.f32 0.0, %v1916
        %v1918 = vpop.f32.mrb[0].mxu0
        %1919 = vmatprep.mubr.bf16.mxu0 0
        %1920 = vmatmul.mubr.bf16.gmra.mrb[0].mxu0 %v1713
        %v1921 = vpop.f32.mrb[0].mxu0
        %v1922 = vadd.f32 0.0, %v1921
        %v1923 = vpop.f32.mrb[0].mxu0
        %v1924 = vpop.f32.mrb[0].mxu0
        %v1925 = vpop.f32.mrb[0].mxu0
        %1926 = vdwg.mxu0
        %v1927 = vadd.f32 %v1489, %v1753
        %v1928 = vadd.f32 %v1490, %v1756
        %v1929 = vadd.f32 %v1491, %v1763
        %v1930 = vadd.f32 %v1492, %v1768
        %v1931 = vadd.f32 %v1493, %v1775
        %v1932 = vadd.f32 %v1494, %v1778
        %v1933 = vadd.f32 %v1495, %v1785
        %v1934 = vadd.f32 %v1496, %v1790
        %v1935 = vadd.f32 %v1497, %v1797
        %v1936 = vadd.f32 %v1498, %v1800
        %v1937 = vadd.f32 %v1499, %v1807
        %v1938 = vadd.f32 %v1500, %v1812
        %v1939 = vadd.f32 %v1501, %v1819
        %v1940 = vadd.f32 %v1502, %v1822
        %v1941 = vadd.f32 %v1503, %v1829
        %v1942 = vadd.f32 %v1504, %v1834
        %v1943 = vadd.f32 %v1505, %v1841
        %v1944 = vadd.f32 %v1506, %v1844
        %v1945 = vadd.f32 %v1507, %v1851
        %v1946 = vadd.f32 %v1508, %v1856
        %v1947 = vadd.f32 %v1509, %v1863
        %v1948 = vadd.f32 %v1510, %v1866
        %v1949 = vadd.f32 %v1511, %v1873
        %v1950 = vadd.f32 %v1512, %v1878
        %v1951 = vadd.f32 %v1513, %v1885
        %v1952 = vadd.f32 %v1514, %v1888
        %v1953 = vadd.f32 %v1515, %v1895
        %v1954 = vadd.f32 %v1516, %v1900
        %v1955 = vadd.f32 %v1517, %v1907
        %v1956 = vadd.f32 %v1518, %v1910
        %v1957 = vadd.f32 %v1519, %v1917
        %v1958 = vadd.f32 %v1520, %v1922
        %v1959 = vld [vmem:[%s208 + $0xc] sm:$0xf]
        %v1960 = vld [vmem:[%s208 + $0x10] sm:$0xf]
        %v1961 = vld [vmem:[%s208 + $0x14] sm:$0xf]
        %v1962 = vld [vmem:[%s208 + $0x18] sm:$0xf]
        %v1963 = vld [vmem:[%s208 + $0x1c] sm:$0xf]
        %v1964 = vld [vmem:[%s208 + $0x20] sm:$0xf]
        %v1965 = vld [vmem:[%s208 + $0x24] sm:$0xf]
        %v1966 = vld [vmem:[%s208 + $0x28] sm:$0xf]
        %v1967 = vld [vmem:[%s208 + $0x2c] sm:$0xf]
        %v1968 = vld [vmem:[%s208 + $0x30] sm:$0xf]
        %v1969 = vld [vmem:[%s208 + $0x34] sm:$0xf]
        %v1970 = vld [vmem:[%s208 + $0x38] sm:$0xf]
        %v1971 = vld [vmem:[%s208 + $0x3c] sm:$0xf]
        %v1972 = vld [vmem:[%s208 + $0x40] sm:$0xf]
        %v1973 = vld [vmem:[%s208 + $0x44] sm:$0xf]
        %v1974 = vld [vmem:[%s208 + $0x48] sm:$0xf]
        %v1975 = vld [vmem:[%s208 + $0x4c] sm:$0xf]
        %v1976 = vld [vmem:[%s208 + $0x50] sm:$0xf]
        %v1977 = vld [vmem:[%s208 + $0x54] sm:$0xf]
        %v1978 = vld [vmem:[%s208 + $0x58] sm:$0xf]
        %v1979 = vld [vmem:[%s208 + $0x5c] sm:$0xf]
        %v1980 = vld [vmem:[%s208 + $0x60] sm:$0xf]
        %v1981 = vld [vmem:[%s208 + $0x64] sm:$0xf]
        %v1982 = vld [vmem:[%s208 + $0x68] sm:$0xf]
        %v1983 = vld [vmem:[%s208 + $0x6c] sm:$0xf]
        %v1984 = vld [vmem:[%s208 + $0x70] sm:$0xf]
        %v1985 = vld [vmem:[%s208 + $0x74] sm:$0xf]
        %v1986 = vld [vmem:[%s208 + $0x78] sm:$0xf]
        %v1987 = vld [vmem:[%s208 + $0x7c] sm:$0xf]
        %v1988 = vld [vmem:[%s208 + $0x80] sm:$0xf]
        %v1989 = vld [vmem:[%s208 + $0x84] sm:$0xf]
        %v1990 = vld [vmem:[%s208 + $0x88] sm:$0xf]
        %v1991 = vld [vmem:[%s208 + $0x8c] sm:$0xf]
        %v1992 = vld [vmem:[%s208 + $0x90] sm:$0xf]
        %v1993 = vld [vmem:[%s208 + $0x94] sm:$0xf]
        %v1994 = vld [vmem:[%s208 + $0x98] sm:$0xf]
        %v1995 = vld [vmem:[%s208 + $0x9c] sm:$0xf]
        %v1996 = vld [vmem:[%s208 + $0xa0] sm:$0xf]
        %v1997 = vld [vmem:[%s208 + $0xa4] sm:$0xf]
        %v1998 = vld [vmem:[%s208 + $0xa8] sm:$0xf]
        %v1999 = vld [vmem:[%s208 + $0xac] sm:$0xf]
        %v2000 = vld [vmem:[%s208 + $0xb0] sm:$0xf]
        %v2001 = vld [vmem:[%s208 + $0xb4] sm:$0xf]
        %v2002 = vld [vmem:[%s208 + $0xb8] sm:$0xf]
        %v2003 = vld [vmem:[%s208 + $0xbc] sm:$0xf]
        %v2004 = vld [vmem:[%s208 + $0xc0] sm:$0xf]
        %v2005 = vld [vmem:[%s208 + $0xc4] sm:$0xf]
        %v2006 = vld [vmem:[%s208 + $0xc8] sm:$0xf]
        %v2007 = vld [vmem:[%s212 + $0x18] sm:$0xf]
        %v2008 = vld [vmem:[%s212 + $0x1c] sm:$0x3]
        %v2057 = vunpack.c.l.b16 %v1959
        %v2058 = vunpack.c.l.b16 %v1960
        %v2059 = vunpack.c.l.b16 %v1961
        %v2060 = vunpack.c.l.b16 %v1962
        %v2061 = vunpack.c.l.b16 %v1963
        %v2062 = vunpack.c.l.b16 %v1964
        %v2063 = vunpack.c.l.b16 %v1965
        %v2064 = vunpack.c.l.b16 %v1966
        %v2065 = vunpack.c.l.b16 %v1967
        %v2066 = vunpack.c.l.b16 %v1968
        %v2067 = vunpack.c.l.b16 %v1969
        %v2068 = vunpack.c.l.b16 %v1970
        %v2069 = vunpack.c.l.b16 %v1971
        %v2070 = vunpack.c.l.b16 %v1972
        %v2071 = vunpack.c.l.b16 %v1973
        %v2072 = vunpack.c.l.b16 %v1974
        %v2073 = vunpack.c.l.b16 %v1975
        %v2074 = vunpack.c.l.b16 %v1976
        %v2075 = vunpack.c.l.b16 %v1977
        %v2076 = vunpack.c.l.b16 %v1978
        %v2077 = vunpack.c.l.b16 %v1979
        %v2078 = vunpack.c.l.b16 %v1980
        %v2079 = vunpack.c.l.b16 %v1981
        %v2080 = vunpack.c.l.b16 %v1982
        %v2081 = vunpack.c.l.b16 %v1983
        %v2082 = vunpack.c.l.b16 %v1984
        %v2083 = vunpack.c.l.b16 %v1985
        %v2084 = vunpack.c.l.b16 %v1986
        %v2085 = vunpack.c.l.b16 %v1987
        %v2086 = vunpack.c.l.b16 %v1988
        %v2087 = vunpack.c.l.b16 %v1989
        %v2088 = vunpack.c.l.b16 %v1990
        %v2089 = vunpack.c.l.b16 %v1991
        %v2090 = vunpack.c.l.b16 %v1992
        %v2091 = vunpack.c.l.b16 %v1993
        %v2092 = vunpack.c.l.b16 %v1994
        %v2093 = vunpack.c.l.b16 %v1995
        %v2094 = vunpack.c.l.b16 %v1996
        %v2095 = vunpack.c.l.b16 %v1997
        %v2096 = vunpack.c.l.b16 %v1998
        %v2097 = vunpack.c.l.b16 %v1999
        %v2098 = vunpack.c.l.b16 %v2000
        %v2099 = vunpack.c.l.b16 %v2001
        %v2100 = vunpack.c.l.b16 %v2002
        %v2101 = vunpack.c.l.b16 %v2003
        %v2102 = vunpack.c.l.b16 %v2004
        %v2103 = vunpack.c.l.b16 %v2005
        %v2104 = vunpack.c.l.b16 %v2006
        %v2105 = vpack.c.b16 %v2058, %v2057
        %v2106 = vpack.c.b16 %v2060, %v2059
        %v2107 = vpack.c.b16 %v2062, %v2061
        %v2108 = vpack.c.b16 %v2064, %v2063
        %v2109 = vpack.c.b16 %v2066, %v2065
        %v2110 = vpack.c.b16 %v2068, %v2067
        %v2111 = vpack.c.b16 %v2070, %v2069
        %v2112 = vpack.c.b16 %v2072, %v2071
        %v2113 = vpack.c.b16 %v2074, %v2073
        %v2114 = vpack.c.b16 %v2076, %v2075
        %v2115 = vpack.c.b16 %v2078, %v2077
        %v2116 = vpack.c.b16 %v2080, %v2079
        %v2117 = vpack.c.b16 %v2082, %v2081
        %v2118 = vpack.c.b16 %v2084, %v2083
        %v2119 = vpack.c.b16 %v2086, %v2085
        %v2120 = vpack.c.b16 %v2088, %v2087
        %v2121 = vpack.c.b16 %v2090, %v2089
        %v2122 = vpack.c.b16 %v2092, %v2091
        %v2123 = vpack.c.b16 %v2094, %v2093
        %v2124 = vpack.c.b16 %v2096, %v2095
        %v2125 = vpack.c.b16 %v2098, %v2097
        %v2126 = vpack.c.b16 %v2100, %v2099
        %v2127 = vpack.c.b16 %v2102, %v2101
        %v2128 = vpack.c.b16 %v2104, %v2103
        %v2131 = vunpack.c.l.b16 %v2007
        %v2132 = vunpack.c.l.b16 %v2008
        %v2133 = vpack.c.b16 %v2132, %v2131
        %v2135 = vsel %vm593, %v2105, 0
        %v2138 = vsel %vm593, %v2106, 0
        %v2141 = vsel %vm593, %v2107, 0
        %v2144 = vsel %vm593, %v2108, 0
        %v2147 = vsel %vm593, %v2109, 0
        %v2150 = vsel %vm593, %v2110, 0
        %v2153 = vsel %vm593, %v2111, 0
        %v2156 = vsel %vm593, %v2112, 0
        %v2159 = vsel %vm593, %v2113, 0
        %v2162 = vsel %vm593, %v2114, 0
        %v2165 = vsel %vm593, %v2115, 0
        %v2168 = vsel %vm593, %v2116, 0
        %v2171 = vsel %vm593, %v2117, 0
        %v2174 = vsel %vm593, %v2118, 0
        %v2177 = vsel %vm593, %v2119, 0
        %v2180 = vsel %vm593, %v2120, 0
        %v2183 = vsel %vm593, %v2121, 0
        %v2186 = vsel %vm593, %v2122, 0
        %v2189 = vsel %vm593, %v2123, 0
        %v2192 = vsel %vm593, %v2124, 0
        %v2195 = vsel %vm593, %v2125, 0
        %v2198 = vsel %vm593, %v2126, 0
        %v2201 = vsel %vm593, %v2127, 0
        %v2204 = vsel %vm593, %v2128, 0
        %v2207 = vsel %vm666, %v2133, 0
        %2209 = vmatprep.subr.bf16.mxu0 0
        %2210 = vmatpush1.bf16.msra.mxu0 %v2207
        %2211 = vmatprep.subr.bf16.mxu0 0
        %2212 = vmatpush1.bf16.msra.mxu0 0
        %2213 = vmatprep.subr.bf16.mxu0 0
        %2214 = vmatpush1.bf16.msra.mxu0 0
        %2215 = vmatprep.subr.bf16.mxu0 0
        %2216 = vmatpush1.bf16.msra.mxu0 0
        %2217 = vmatprep.subr.bf16.mxu0 0
        %2218 = vmatpush1.bf16.msra.mxu0 0
        %2219 = vmatprep.subr.bf16.mxu0 0
        %2220 = vmatpush1.bf16.msra.mxu0 0
        %2221 = vmatprep.subr.bf16.mxu0 0
        %2222 = vmatpush1.bf16.msra.mxu0 0
        %2223 = vmatprep.subr.bf16.mxu0 0
        %2224 = vmatpush1.bf16.msra.mxu0 0
        %2225 = vmatprep.subr.bf16.mxu0 0
        %2226 = vmatpush1.bf16.msra.mxu0 0
        %2227 = vmatprep.subr.bf16.mxu0 0
        %2228 = vmatpush1.bf16.msra.mxu0 0
        %2229 = vmatprep.subr.bf16.mxu0 0
        %2230 = vmatpush1.bf16.msra.mxu0 0
        %2231 = vmatprep.subr.bf16.mxu0 0
        %2232 = vmatpush1.bf16.msra.mxu0 0
        %2233 = vmatprep.subr.bf16.mxu0 0
        %2234 = vmatpush1.bf16.msra.mxu0 0
        %2235 = vmatprep.subr.bf16.mxu0 0
        %2236 = vmatpush1.bf16.msra.mxu0 0
        %2237 = vmatprep.subr.bf16.mxu0 0
        %2238 = vmatpush1.bf16.msra.mxu0 0
        %2239 = vmatprep.subr.bf16.mxu0 0
        %2240 = vmatpush1.bf16.msra.mxu0 0
        %2241 = vmatprep.mubr.bf16.mxu0 0
        %2242 = vmatmul.mubr.bf16.gmra.mrb[0].mxu0 %v2135
        %v2243 = vpop.f32.mrb[0].mxu0
        %v2244 = vadd.f32 0.0, %v2243
        %v2245 = vpop.f32.mrb[0].mxu0
        %v2246 = vpop.f32.mrb[0].mxu0
        %v2247 = vadd.f32 0.0, %v2246
        %v2248 = vpop.f32.mrb[0].mxu0
        %2249 = vmatprep.mubr.bf16.mxu0 0
        %2250 = vmatmul.mubr.bf16.gmra.mrb[0].mxu0 %v2138
        %v2251 = vpop.f32.mrb[0].mxu0
        %v2252 = vpop.f32.mrb[0].mxu0
        %v2253 = vpop.f32.mrb[0].mxu0
        %v2254 = vadd.f32 0.0, %v2253
        %v2255 = vpop.f32.mrb[0].mxu0
        %2256 = vmatprep.mubr.bf16.mxu0 0
        %2257 = vmatmul.mubr.bf16.gmra.mrb[0].mxu0 %v2141
        %v2258 = vpop.f32.mrb[0].mxu0
        %v2259 = vadd.f32 0.0, %v2258
        %v2260 = vpop.f32.mrb[0].mxu0
        %v2261 = vpop.f32.mrb[0].mxu0
        %v2262 = vpop.f32.mrb[0].mxu0
        %2263 = vmatprep.mubr.bf16.mxu0 0
        %2264 = vmatmul.mubr.bf16.gmra.mrb[0].mxu0 %v2144
        %v2265 = vpop.f32.mrb[0].mxu0
        %v2266 = vadd.f32 0.0, %v2265
        %v2267 = vpop.f32.mrb[0].mxu0
        %v2268 = vpop.f32.mrb[0].mxu0
        %v2269 = vadd.f32 0.0, %v2268
        %v2270 = vpop.f32.mrb[0].mxu0
        %2271 = vmatprep.mubr.bf16.mxu0 0
        %2272 = vmatmul.mubr.bf16.gmra.mrb[0].mxu0 %v2147
        %v2273 = vpop.f32.mrb[0].mxu0
        %v2274 = vpop.f32.mrb[0].mxu0
        %v2275 = vpop.f32.mrb[0].mxu0
        %v2276 = vadd.f32 0.0, %v2275
        %v2277 = vpop.f32.mrb[0].mxu0
        %2278 = vmatprep.mubr.bf16.mxu0 0
        %2279 = vmatmul.mubr.bf16.gmra.mrb[0].mxu0 %v2150
        %v2280 = vpop.f32.mrb[0].mxu0
        %v2281 = vadd.f32 0.0, %v2280
        %v2282 = vpop.f32.mrb[0].mxu0
        %v2283 = vpop.f32.mrb[0].mxu0
        %v2284 = vpop.f32.mrb[0].mxu0
        %2285 = vmatprep.mubr.bf16.mxu0 0
        %2286 = vmatmul.mubr.bf16.gmra.mrb[0].mxu0 %v2153
        %v2287 = vpop.f32.mrb[0].mxu0
        %v2288 = vadd.f32 0.0, %v2287
        %v2289 = vpop.f32.mrb[0].mxu0
        %v2290 = vpop.f32.mrb[0].mxu0
        %v2291 = vadd.f32 0.0, %v2290
        %v2292 = vpop.f32.mrb[0].mxu0
        %2293 = vmatprep.mubr.bf16.mxu0 0
        %2294 = vmatmul.mubr.bf16.gmra.mrb[0].mxu0 %v2156
        %v2295 = vpop.f32.mrb[0].mxu0
        %v2296 = vpop.f32.mrb[0].mxu0
        %v2297 = vpop.f32.mrb[0].mxu0
        %v2298 = vadd.f32 0.0, %v2297
        %v2299 = vpop.f32.mrb[0].mxu0
        %2300 = vmatprep.mubr.bf16.mxu0 0
        %2301 = vmatmul.mubr.bf16.gmra.mrb[0].mxu0 %v2159
        %v2302 = vpop.f32.mrb[0].mxu0
        %v2303 = vadd.f32 0.0, %v2302
        %v2304 = vpop.f32.mrb[0].mxu0
        %v2305 = vpop.f32.mrb[0].mxu0
        %v2306 = vpop.f32.mrb[0].mxu0
        %2307 = vmatprep.mubr.bf16.mxu0 0
        %2308 = vmatmul.mubr.bf16.gmra.mrb[0].mxu0 %v2162
        %v2309 = vpop.f32.mrb[0].mxu0
        %v2310 = vadd.f32 0.0, %v2309
        %v2311 = vpop.f32.mrb[0].mxu0
        %v2312 = vpop.f32.mrb[0].mxu0
        %v2313 = vadd.f32 0.0, %v2312
        %v2314 = vpop.f32.mrb[0].mxu0
        %2315 = vmatprep.mubr.bf16.mxu0 0
        %2316 = vmatmul.mubr.bf16.gmra.mrb[0].mxu0 %v2165
        %v2317 = vpop.f32.mrb[0].mxu0
        %v2318 = vpop.f32.mrb[0].mxu0
        %v2319 = vpop.f32.mrb[0].mxu0
        %v2320 = vadd.f32 0.0, %v2319
        %v2321 = vpop.f32.mrb[0].mxu0
        %2322 = vmatprep.mubr.bf16.mxu0 0
        %2323 = vmatmul.mubr.bf16.gmra.mrb[0].mxu0 %v2168
        %v2324 = vpop.f32.mrb[0].mxu0
        %v2325 = vadd.f32 0.0, %v2324
        %v2326 = vpop.f32.mrb[0].mxu0
        %v2327 = vpop.f32.mrb[0].mxu0
        %v2328 = vpop.f32.mrb[0].mxu0
        %2329 = vmatprep.mubr.bf16.mxu0 0
        %2330 = vmatmul.mubr.bf16.gmra.mrb[0].mxu0 %v2171
        %v2331 = vpop.f32.mrb[0].mxu0
        %v2332 = vadd.f32 0.0, %v2331
        %v2333 = vpop.f32.mrb[0].mxu0
        %v2334 = vpop.f32.mrb[0].mxu0
        %v2335 = vadd.f32 0.0, %v2334
        %v2336 = vpop.f32.mrb[0].mxu0
        %2337 = vmatprep.mubr.bf16.mxu0 0
        %2338 = vmatmul.mubr.bf16.gmra.mrb[0].mxu0 %v2174
        %v2339 = vpop.f32.mrb[0].mxu0
        %v2340 = vpop.f32.mrb[0].mxu0
        %v2341 = vpop.f32.mrb[0].mxu0
        %v2342 = vadd.f32 0.0, %v2341
        %v2343 = vpop.f32.mrb[0].mxu0
        %2344 = vmatprep.mubr.bf16.mxu0 0
        %2345 = vmatmul.mubr.bf16.gmra.mrb[0].mxu0 %v2177
        %v2346 = vpop.f32.mrb[0].mxu0
        %v2347 = vadd.f32 0.0, %v2346
        %v2348 = vpop.f32.mrb[0].mxu0
        %v2349 = vpop.f32.mrb[0].mxu0
        %v2350 = vpop.f32.mrb[0].mxu0
        %2351 = vmatprep.mubr.bf16.mxu0 0
        %2352 = vmatmul.mubr.bf16.gmra.mrb[0].mxu0 %v2180
        %v2353 = vpop.f32.mrb[0].mxu0
        %v2354 = vadd.f32 0.0, %v2353
        %v2355 = vpop.f32.mrb[0].mxu0
        %v2356 = vpop.f32.mrb[0].mxu0
        %v2357 = vadd.f32 0.0, %v2356
        %v2358 = vpop.f32.mrb[0].mxu0
        %2359 = vmatprep.mubr.bf16.mxu0 0
        %2360 = vmatmul.mubr.bf16.gmra.mrb[0].mxu0 %v2183
        %v2361 = vpop.f32.mrb[0].mxu0
        %v2362 = vpop.f32.mrb[0].mxu0
        %v2363 = vpop.f32.mrb[0].mxu0
        %v2364 = vadd.f32 0.0, %v2363
        %v2365 = vpop.f32.mrb[0].mxu0
        %2366 = vmatprep.mubr.bf16.mxu0 0
        %2367 = vmatmul.mubr.bf16.gmra.mrb[0].mxu0 %v2186
        %v2368 = vpop.f32.mrb[0].mxu0
        %v2369 = vadd.f32 0.0, %v2368
        %v2370 = vpop.f32.mrb[0].mxu0
        %v2371 = vpop.f32.mrb[0].mxu0
        %v2372 = vpop.f32.mrb[0].mxu0
        %2373 = vmatprep.mubr.bf16.mxu0 0
        %2374 = vmatmul.mubr.bf16.gmra.mrb[0].mxu0 %v2189
        %v2375 = vpop.f32.mrb[0].mxu0
        %v2376 = vadd.f32 0.0, %v2375
        %v2377 = vpop.f32.mrb[0].mxu0
        %v2378 = vpop.f32.mrb[0].mxu0
        %v2379 = vadd.f32 0.0, %v2378
        %v2380 = vpop.f32.mrb[0].mxu0
        %2381 = vmatprep.mubr.bf16.mxu0 0
        %2382 = vmatmul.mubr.bf16.gmra.mrb[0].mxu0 %v2192
        %v2383 = vpop.f32.mrb[0].mxu0
        %v2384 = vpop.f32.mrb[0].mxu0
        %v2385 = vpop.f32.mrb[0].mxu0
        %v2386 = vadd.f32 0.0, %v2385
        %v2387 = vpop.f32.mrb[0].mxu0
        %2388 = vmatprep.mubr.bf16.mxu0 0
        %2389 = vmatmul.mubr.bf16.gmra.mrb[0].mxu0 %v2195
        %v2390 = vpop.f32.mrb[0].mxu0
        %v2391 = vadd.f32 0.0, %v2390
        %v2392 = vpop.f32.mrb[0].mxu0
        %v2393 = vpop.f32.mrb[0].mxu0
        %v2394 = vpop.f32.mrb[0].mxu0
        %2395 = vmatprep.mubr.bf16.mxu0 0
        %2396 = vmatmul.mubr.bf16.gmra.mrb[0].mxu0 %v2198
        %v2397 = vpop.f32.mrb[0].mxu0
        %v2398 = vadd.f32 0.0, %v2397
        %v2399 = vpop.f32.mrb[0].mxu0
        %v2400 = vpop.f32.mrb[0].mxu0
        %v2401 = vadd.f32 0.0, %v2400
        %v2402 = vpop.f32.mrb[0].mxu0
        %2403 = vmatprep.mubr.bf16.mxu0 0
        %2404 = vmatmul.mubr.bf16.gmra.mrb[0].mxu0 %v2201
        %v2405 = vpop.f32.mrb[0].mxu0
        %v2406 = vpop.f32.mrb[0].mxu0
        %v2407 = vpop.f32.mrb[0].mxu0
        %v2408 = vadd.f32 0.0, %v2407
        %v2409 = vpop.f32.mrb[0].mxu0
        %2410 = vmatprep.mubr.bf16.mxu0 0
        %2411 = vmatmul.mubr.bf16.gmra.mrb[0].mxu0 %v2204
        %v2412 = vpop.f32.mrb[0].mxu0
        %v2413 = vadd.f32 0.0, %v2412
        %v2414 = vpop.f32.mrb[0].mxu0
        %v2415 = vpop.f32.mrb[0].mxu0
        %v2416 = vpop.f32.mrb[0].mxu0
        %2417 = vdwg.mxu0
        %v2418 = vadd.f32 %v1927, %v2244
        %v2419 = vadd.f32 %v1928, %v2247
        %v2420 = vadd.f32 %v1929, %v2254
        %v2421 = vadd.f32 %v1930, %v2259
        %v2422 = vadd.f32 %v1931, %v2266
        %v2423 = vadd.f32 %v1932, %v2269
        %v2424 = vadd.f32 %v1933, %v2276
        %v2425 = vadd.f32 %v1934, %v2281
        %v2426 = vadd.f32 %v1935, %v2288
        %v2427 = vadd.f32 %v1936, %v2291
        %v2428 = vadd.f32 %v1937, %v2298
        %v2429 = vadd.f32 %v1938, %v2303
        %v2430 = vadd.f32 %v1939, %v2310
        %v2431 = vadd.f32 %v1940, %v2313
        %v2432 = vadd.f32 %v1941, %v2320
        %v2433 = vadd.f32 %v1942, %v2325
        %v2434 = vadd.f32 %v1943, %v2332
        %v2435 = vadd.f32 %v1944, %v2335
        %v2436 = vadd.f32 %v1945, %v2342
        %v2437 = vadd.f32 %v1946, %v2347
        %v2438 = vadd.f32 %v1947, %v2354
        %v2439 = vadd.f32 %v1948, %v2357
        %v2440 = vadd.f32 %v1949, %v2364
        %v2441 = vadd.f32 %v1950, %v2369
        %v2442 = vadd.f32 %v1951, %v2376
        %v2443 = vadd.f32 %v1952, %v2379
        %v2444 = vadd.f32 %v1953, %v2386
        %v2445 = vadd.f32 %v1954, %v2391
        %v2446 = vadd.f32 %v1955, %v2398
        %v2447 = vadd.f32 %v1956, %v2401
        %v2448 = vadd.f32 %v1957, %v2408
        %v2449 = vadd.f32 %v1958, %v2413
        %v2450 = vld [vmem:[%s208 + $0xc] sm:$0xf]
        %v2451 = vld [vmem:[%s208 + $0x10] sm:$0xf]
        %v2452 = vld [vmem:[%s208 + $0x14] sm:$0xf]
        %v2453 = vld [vmem:[%s208 + $0x18] sm:$0xf]
        %v2454 = vld [vmem:[%s208 + $0x1c] sm:$0xf]
        %v2455 = vld [vmem:[%s208 + $0x20] sm:$0xf]
        %v2456 = vld [vmem:[%s208 + $0x24] sm:$0xf]
        %v2457 = vld [vmem:[%s208 + $0x28] sm:$0xf]
        %v2458 = vld [vmem:[%s208 + $0x2c] sm:$0xf]
        %v2459 = vld [vmem:[%s208 + $0x30] sm:$0xf]
        %v2460 = vld [vmem:[%s208 + $0x34] sm:$0xf]
        %v2461 = vld [vmem:[%s208 + $0x38] sm:$0xf]
        %v2462 = vld [vmem:[%s208 + $0x3c] sm:$0xf]
        %v2463 = vld [vmem:[%s208 + $0x40] sm:$0xf]
        %v2464 = vld [vmem:[%s208 + $0x44] sm:$0xf]
        %v2465 = vld [vmem:[%s208 + $0x48] sm:$0xf]
        %v2466 = vld [vmem:[%s208 + $0x4c] sm:$0xf]
        %v2467 = vld [vmem:[%s208 + $0x50] sm:$0xf]
        %v2468 = vld [vmem:[%s208 + $0x54] sm:$0xf]
        %v2469 = vld [vmem:[%s208 + $0x58] sm:$0xf]
        %v2470 = vld [vmem:[%s208 + $0x5c] sm:$0xf]
        %v2471 = vld [vmem:[%s208 + $0x60] sm:$0xf]
        %v2472 = vld [vmem:[%s208 + $0x64] sm:$0xf]
        %v2473 = vld [vmem:[%s208 + $0x68] sm:$0xf]
        %v2474 = vld [vmem:[%s208 + $0x6c] sm:$0xf]
        %v2475 = vld [vmem:[%s208 + $0x70] sm:$0xf]
        %v2476 = vld [vmem:[%s208 + $0x74] sm:$0xf]
        %v2477 = vld [vmem:[%s208 + $0x78] sm:$0xf]
        %v2478 = vld [vmem:[%s208 + $0x7c] sm:$0xf]
        %v2479 = vld [vmem:[%s208 + $0x80] sm:$0xf]
        %v2480 = vld [vmem:[%s208 + $0x84] sm:$0xf]
        %v2481 = vld [vmem:[%s208 + $0x88] sm:$0xf]
        %v2482 = vld [vmem:[%s208 + $0x8c] sm:$0xf]
        %v2483 = vld [vmem:[%s208 + $0x90] sm:$0xf]
        %v2484 = vld [vmem:[%s208 + $0x94] sm:$0xf]
        %v2485 = vld [vmem:[%s208 + $0x98] sm:$0xf]
        %v2486 = vld [vmem:[%s208 + $0x9c] sm:$0xf]
        %v2487 = vld [vmem:[%s208 + $0xa0] sm:$0xf]
        %v2488 = vld [vmem:[%s208 + $0xa4] sm:$0xf]
        %v2489 = vld [vmem:[%s208 + $0xa8] sm:$0xf]
        %v2490 = vld [vmem:[%s208 + $0xac] sm:$0xf]
        %v2491 = vld [vmem:[%s208 + $0xb0] sm:$0xf]
        %v2492 = vld [vmem:[%s208 + $0xb4] sm:$0xf]
        %v2493 = vld [vmem:[%s208 + $0xb8] sm:$0xf]
        %v2494 = vld [vmem:[%s208 + $0xbc] sm:$0xf]
        %v2495 = vld [vmem:[%s208 + $0xc0] sm:$0xf]
        %v2496 = vld [vmem:[%s208 + $0xc4] sm:$0xf]
        %v2497 = vld [vmem:[%s208 + $0xc8] sm:$0xf]
        %v2498 = vld [vmem:[%s208 + $0xcc] sm:$0x1]
        %v2499 = vld [vmem:[%s212 + $0x1c] sm:$0xc]
        %v2500 = vld [vmem:[%s212 + $0x20] sm:$0xf]
        %v2550 = vunpack.c.l.b16 %v2450
        %v2551 = vunpack.c.l.b16 %v2451
        %v2552 = vunpack.c.l.b16 %v2452
        %v2553 = vunpack.c.l.b16 %v2453
        %v2554 = vunpack.c.l.b16 %v2454
        %v2555 = vunpack.c.l.b16 %v2455
        %v2556 = vunpack.c.l.b16 %v2456
        %v2557 = vunpack.c.l.b16 %v2457
        %v2558 = vunpack.c.l.b16 %v2458
        %v2559 = vunpack.c.l.b16 %v2459
        %v2560 = vunpack.c.l.b16 %v2460
        %v2561 = vunpack.c.l.b16 %v2461
        %v2562 = vunpack.c.l.b16 %v2462
        %v2563 = vunpack.c.l.b16 %v2463
        %v2564 = vunpack.c.l.b16 %v2464
        %v2565 = vunpack.c.l.b16 %v2465
        %v2566 = vunpack.c.l.b16 %v2466
        %v2567 = vunpack.c.l.b16 %v2467
        %v2568 = vunpack.c.l.b16 %v2468
        %v2569 = vunpack.c.l.b16 %v2469
        %v2570 = vunpack.c.l.b16 %v2470
        %v2571 = vunpack.c.l.b16 %v2471
        %v2572 = vunpack.c.l.b16 %v2472
        %v2573 = vunpack.c.l.b16 %v2473
        %v2574 = vunpack.c.l.b16 %v2474
        %v2575 = vunpack.c.l.b16 %v2475
        %v2576 = vunpack.c.l.b16 %v2476
        %v2577 = vunpack.c.l.b16 %v2477
        %v2578 = vunpack.c.l.b16 %v2478
        %v2579 = vunpack.c.l.b16 %v2479
        %v2580 = vunpack.c.l.b16 %v2480
        %v2581 = vunpack.c.l.b16 %v2481
        %v2582 = vunpack.c.l.b16 %v2482
        %v2583 = vunpack.c.l.b16 %v2483
        %v2584 = vunpack.c.l.b16 %v2484
        %v2585 = vunpack.c.l.b16 %v2485
        %v2586 = vunpack.c.l.b16 %v2486
        %v2587 = vunpack.c.l.b16 %v2487
        %v2588 = vunpack.c.l.b16 %v2488
        %v2589 = vunpack.c.l.b16 %v2489
        %v2590 = vunpack.c.l.b16 %v2490
        %v2591 = vunpack.c.l.b16 %v2491
        %v2592 = vunpack.c.l.b16 %v2492
        %v2593 = vunpack.c.l.b16 %v2493
        %v2594 = vunpack.c.l.b16 %v2494
        %v2595 = vunpack.c.l.b16 %v2495
        %v2596 = vunpack.c.l.b16 %v2496
        %v2597 = vunpack.c.l.b16 %v2497
        %v2598 = vunpack.c.l.b16 %v2498
        %v2599 = vpack.c.b16 %v2551, %v2550
        %v2600 = vpack.c.b16 %v2553, %v2552
        %v2601 = vpack.c.b16 %v2555, %v2554
        %v2602 = vpack.c.b16 %v2557, %v2556
        %v2603 = vpack.c.b16 %v2559, %v2558
        %v2604 = vpack.c.b16 %v2561, %v2560
        %v2605 = vpack.c.b16 %v2563, %v2562
        %v2606 = vpack.c.b16 %v2565, %v2564
        %v2607 = vpack.c.b16 %v2567, %v2566
        %v2608 = vpack.c.b16 %v2569, %v2568
        %v2609 = vpack.c.b16 %v2571, %v2570
        %v2610 = vpack.c.b16 %v2573, %v2572
        %v2611 = vpack.c.b16 %v2575, %v2574
        %v2612 = vpack.c.b16 %v2577, %v2576
        %v2613 = vpack.c.b16 %v2579, %v2578
        %v2614 = vpack.c.b16 %v2581, %v2580
        %v2615 = vpack.c.b16 %v2583, %v2582
        %v2616 = vpack.c.b16 %v2585, %v2584
        %v2617 = vpack.c.b16 %v2587, %v2586
        %v2618 = vpack.c.b16 %v2589, %v2588
        %v2619 = vpack.c.b16 %v2591, %v2590
        %v2620 = vpack.c.b16 %v2593, %v2592
        %v2621 = vpack.c.b16 %v2595, %v2594
        %v2622 = vpack.c.b16 %v2597, %v2596
        %v2623 = vpack.c.b16 %v2598, %v2598
        %v2625 = vshrl.u32 %v2599, 16
        %v2627 = vshll.u32 %v2599, 16
        %v2629 = vrot.slane %v2627, 1
        %v2630 = vor.u32 %v2625, %v2629
        %v2632 = vshll.u32 %v2600, 16
        %v2634 = vrot.slane %v2632, 1
        %v2635 = vsel %vm390, %v2630, %v2634
        %v2636 = vshrl.u32 %v2600, 16
        %v2638 = vor.u32 %v2636, %v2634
        %v2640 = vshll.u32 %v2601, 16
        %v2642 = vrot.slane %v2640, 1
        %v2643 = vsel %vm390, %v2638, %v2642
        %v2644 = vshrl.u32 %v2601, 16
        %v2646 = vor.u32 %v2644, %v2642
        %v2648 = vshll.u32 %v2602, 16
        %v2650 = vrot.slane %v2648, 1
        %v2651 = vsel %vm390, %v2646, %v2650
        %v2652 = vshrl.u32 %v2602, 16
        %v2654 = vor.u32 %v2652, %v2650
        %v2656 = vshll.u32 %v2603, 16
        %v2658 = vrot.slane %v2656, 1
        %v2659 = vsel %vm390, %v2654, %v2658
        %v2660 = vshrl.u32 %v2603, 16
        %v2662 = vor.u32 %v2660, %v2658
        %v2664 = vshll.u32 %v2604, 16
        %v2666 = vrot.slane %v2664, 1
        %v2667 = vsel %vm390, %v2662, %v2666
        %v2668 = vshrl.u32 %v2604, 16
        %v2670 = vor.u32 %v2668, %v2666
        %v2672 = vshll.u32 %v2605, 16
        %v2674 = vrot.slane %v2672, 1
        %v2675 = vsel %vm390, %v2670, %v2674
        %v2676 = vshrl.u32 %v2605, 16
        %v2678 = vor.u32 %v2676, %v2674
        %v2680 = vshll.u32 %v2606, 16
        %v2682 = vrot.slane %v2680, 1
        %v2683 = vsel %vm390, %v2678, %v2682
        %v2684 = vshrl.u32 %v2606, 16
        %v2686 = vor.u32 %v2684, %v2682
        %v2688 = vshll.u32 %v2607, 16
        %v2690 = vrot.slane %v2688, 1
        %v2691 = vsel %vm390, %v2686, %v2690
        %v2692 = vshrl.u32 %v2607, 16
        %v2694 = vor.u32 %v2692, %v2690
        %v2696 = vshll.u32 %v2608, 16
        %v2698 = vrot.slane %v2696, 1
        %v2699 = vsel %vm390, %v2694, %v2698
        %v2700 = vshrl.u32 %v2608, 16
        %v2702 = vor.u32 %v2700, %v2698
        %v2704 = vshll.u32 %v2609, 16
        %v2706 = vrot.slane %v2704, 1
        %v2707 = vsel %vm390, %v2702, %v2706
        %v2708 = vshrl.u32 %v2609, 16
        %v2710 = vor.u32 %v2708, %v2706
        %v2712 = vshll.u32 %v2610, 16
        %v2714 = vrot.slane %v2712, 1
        %v2715 = vsel %vm390, %v2710, %v2714
        %v2716 = vshrl.u32 %v2610, 16
        %v2718 = vor.u32 %v2716, %v2714
        %v2720 = vshll.u32 %v2611, 16
        %v2722 = vrot.slane %v2720, 1
        %v2723 = vsel %vm390, %v2718, %v2722
        %v2724 = vshrl.u32 %v2611, 16
        %v2726 = vor.u32 %v2724, %v2722
        %v2728 = vshll.u32 %v2612, 16
        %v2730 = vrot.slane %v2728, 1
        %v2731 = vsel %vm390, %v2726, %v2730
        %v2732 = vshrl.u32 %v2612, 16
        %v2734 = vor.u32 %v2732, %v2730
        %v2736 = vshll.u32 %v2613, 16
        %v2738 = vrot.slane %v2736, 1
        %v2739 = vsel %vm390, %v2734, %v2738
        %v2740 = vshrl.u32 %v2613, 16
        %v2742 = vor.u32 %v2740, %v2738
        %v2744 = vshll.u32 %v2614, 16
        %v2746 = vrot.slane %v2744, 1
        %v2747 = vsel %vm390, %v2742, %v2746
        %v2748 = vshrl.u32 %v2614, 16
        %v2750 = vor.u32 %v2748, %v2746
        %v2752 = vshll.u32 %v2615, 16
        %v2754 = vrot.slane %v2752, 1
        %v2755 = vsel %vm390, %v2750, %v2754
        %v2756 = vshrl.u32 %v2615, 16
        %v2758 = vor.u32 %v2756, %v2754
        %v2760 = vshll.u32 %v2616, 16
        %v2762 = vrot.slane %v2760, 1
        %v2763 = vsel %vm390, %v2758, %v2762
        %v2764 = vshrl.u32 %v2616, 16
        %v2766 = vor.u32 %v2764, %v2762
        %v2768 = vshll.u32 %v2617, 16
        %v2770 = vrot.slane %v2768, 1
        %v2771 = vsel %vm390, %v2766, %v2770
        %v2772 = vshrl.u32 %v2617, 16
        %v2774 = vor.u32 %v2772, %v2770
        %v2776 = vshll.u32 %v2618, 16
        %v2778 = vrot.slane %v2776, 1
        %v2779 = vsel %vm390, %v2774, %v2778
        %v2780 = vshrl.u32 %v2618, 16
        %v2782 = vor.u32 %v2780, %v2778
        %v2784 = vshll.u32 %v2619, 16
        %v2786 = vrot.slane %v2784, 1
        %v2787 = vsel %vm390, %v2782, %v2786
        %v2788 = vshrl.u32 %v2619, 16
        %v2790 = vor.u32 %v2788, %v2786
        %v2792 = vshll.u32 %v2620, 16
        %v2794 = vrot.slane %v2792, 1
        %v2795 = vsel %vm390, %v2790, %v2794
        %v2796 = vshrl.u32 %v2620, 16
        %v2798 = vor.u32 %v2796, %v2794
        %v2800 = vshll.u32 %v2621, 16
        %v2802 = vrot.slane %v2800, 1
        %v2803 = vsel %vm390, %v2798, %v2802
        %v2804 = vshrl.u32 %v2621, 16
        %v2806 = vor.u32 %v2804, %v2802
        %v2808 = vshll.u32 %v2622, 16
        %v2810 = vrot.slane %v2808, 1
        %v2811 = vsel %vm390, %v2806, %v2810
        %v2812 = vshrl.u32 %v2622, 16
        %v2814 = vor.u32 %v2812, %v2810
        %v2816 = vshll.u32 %v2623, 16
        %v2818 = vrot.slane %v2816, 1
        %v2819 = vsel %vm390, %v2814, %v2818
        %v2822 = vunpack.c.l.b16 %v2499
        %v2823 = vunpack.c.l.b16 %v2500
        %v2824 = vpack.c.b16 %v2823, %v2822
        %v2825 = vrot.slane %v2824, 2
        %v2827 = vsel %vm593, %v2635, 0
        %v2830 = vsel %vm593, %v2643, 0
        %v2833 = vsel %vm593, %v2651, 0
        %v2836 = vsel %vm593, %v2659, 0
        %v2839 = vsel %vm593, %v2667, 0
        %v2842 = vsel %vm593, %v2675, 0
        %v2845 = vsel %vm593, %v2683, 0
        %v2848 = vsel %vm593, %v2691, 0
        %v2851 = vsel %vm593, %v2699, 0
        %v2854 = vsel %vm593, %v2707, 0
        %v2857 = vsel %vm593, %v2715, 0
        %v2860 = vsel %vm593, %v2723, 0
        %v2863 = vsel %vm593, %v2731, 0
        %v2866 = vsel %vm593, %v2739, 0
        %v2869 = vsel %vm593, %v2747, 0
        %v2872 = vsel %vm593, %v2755, 0
        %v2875 = vsel %vm593, %v2763, 0
        %v2878 = vsel %vm593, %v2771, 0
        %v2881 = vsel %vm593, %v2779, 0
        %v2884 = vsel %vm593, %v2787, 0
        %v2887 = vsel %vm593, %v2795, 0
        %v2890 = vsel %vm593, %v2803, 0
        %v2893 = vsel %vm593, %v2811, 0
        %v2896 = vsel %vm593, %v2819, 0
        %v2899 = vsel %vm666, %v2825, 0
        %2901 = vmatprep.subr.bf16.mxu0 0
        %2902 = vmatpush1.bf16.msra.mxu0 %v2899
        %2903 = vmatprep.subr.bf16.mxu0 0
        %2904 = vmatpush1.bf16.msra.mxu0 0
        %2905 = vmatprep.subr.bf16.mxu0 0
        %2906 = vmatpush1.bf16.msra.mxu0 0
        %2907 = vmatprep.subr.bf16.mxu0 0
        %2908 = vmatpush1.bf16.msra.mxu0 0
        %2909 = vmatprep.subr.bf16.mxu0 0
        %2910 = vmatpush1.bf16.msra.mxu0 0
        %2911 = vmatprep.subr.bf16.mxu0 0
        %2912 = vmatpush1.bf16.msra.mxu0 0
        %2913 = vmatprep.subr.bf16.mxu0 0
        %2914 = vmatpush1.bf16.msra.mxu0 0
        %2915 = vmatprep.subr.bf16.mxu0 0
        %2916 = vmatpush1.bf16.msra.mxu0 0
        %2917 = vmatprep.subr.bf16.mxu0 0
        %2918 = vmatpush1.bf16.msra.mxu0 0
        %2919 = vmatprep.subr.bf16.mxu0 0
        %2920 = vmatpush1.bf16.msra.mxu0 0
        %2921 = vmatprep.subr.bf16.mxu0 0
        %2922 = vmatpush1.bf16.msra.mxu0 0
        %2923 = vmatprep.subr.bf16.mxu0 0
        %2924 = vmatpush1.bf16.msra.mxu0 0
        %2925 = vmatprep.subr.bf16.mxu0 0
        %2926 = vmatpush1.bf16.msra.mxu0 0
        %2927 = vmatprep.subr.bf16.mxu0 0
        %2928 = vmatpush1.bf16.msra.mxu0 0
        %2929 = vmatprep.subr.bf16.mxu0 0
        %2930 = vmatpush1.bf16.msra.mxu0 0
        %2931 = vmatprep.subr.bf16.mxu0 0
        %2932 = vmatpush1.bf16.msra.mxu0 0
        %2933 = vmatprep.mubr.bf16.mxu0 0
        %2934 = vmatmul.mubr.bf16.gmra.mrb[0].mxu0 %v2827
        %v2935 = vpop.f32.mrb[0].mxu0
        %v2936 = vadd.f32 0.0, %v2935
        %v2937 = vpop.f32.mrb[0].mxu0
        %v2938 = vpop.f32.mrb[0].mxu0
        %v2939 = vadd.f32 0.0, %v2938
        %v2940 = vpop.f32.mrb[0].mxu0
        %2941 = vmatprep.mubr.bf16.mxu0 0
        %2942 = vmatmul.mubr.bf16.gmra.mrb[0].mxu0 %v2830
        %v2943 = vpop.f32.mrb[0].mxu0
        %v2944 = vpop.f32.mrb[0].mxu0
        %v2945 = vpop.f32.mrb[0].mxu0
        %v2946 = vadd.f32 0.0, %v2945
        %v2947 = vpop.f32.mrb[0].mxu0
        %2948 = vmatprep.mubr.bf16.mxu0 0
        %2949 = vmatmul.mubr.bf16.gmra.mrb[0].mxu0 %v2833
        %v2950 = vpop.f32.mrb[0].mxu0
        %v2951 = vadd.f32 0.0, %v2950
        %v2952 = vpop.f32.mrb[0].mxu0
        %v2953 = vpop.f32.mrb[0].mxu0
        %v2954 = vpop.f32.mrb[0].mxu0
        %2955 = vmatprep.mubr.bf16.mxu0 0
        %2956 = vmatmul.mubr.bf16.gmra.mrb[0].mxu0 %v2836
        %v2957 = vpop.f32.mrb[0].mxu0
        %v2958 = vadd.f32 0.0, %v2957
        %v2959 = vpop.f32.mrb[0].mxu0
        %v2960 = vpop.f32.mrb[0].mxu0
        %v2961 = vadd.f32 0.0, %v2960
        %v2962 = vpop.f32.mrb[0].mxu0
        %2963 = vmatprep.mubr.bf16.mxu0 0
        %2964 = vmatmul.mubr.bf16.gmra.mrb[0].mxu0 %v2839
        %v2965 = vpop.f32.mrb[0].mxu0
        %v2966 = vpop.f32.mrb[0].mxu0
        %v2967 = vpop.f32.mrb[0].mxu0
        %v2968 = vadd.f32 0.0, %v2967
        %v2969 = vpop.f32.mrb[0].mxu0
        %2970 = vmatprep.mubr.bf16.mxu0 0
        %2971 = vmatmul.mubr.bf16.gmra.mrb[0].mxu0 %v2842
        %v2972 = vpop.f32.mrb[0].mxu0
        %v2973 = vadd.f32 0.0, %v2972
        %v2974 = vpop.f32.mrb[0].mxu0
        %v2975 = vpop.f32.mrb[0].mxu0
        %v2976 = vpop.f32.mrb[0].mxu0
        %2977 = vmatprep.mubr.bf16.mxu0 0
        %2978 = vmatmul.mubr.bf16.gmra.mrb[0].mxu0 %v2845
        %v2979 = vpop.f32.mrb[0].mxu0
        %v2980 = vadd.f32 0.0, %v2979
        %v2981 = vpop.f32.mrb[0].mxu0
        %v2982 = vpop.f32.mrb[0].mxu0
        %v2983 = vadd.f32 0.0, %v2982
        %v2984 = vpop.f32.mrb[0].mxu0
        %2985 = vmatprep.mubr.bf16.mxu0 0
        %2986 = vmatmul.mubr.bf16.gmra.mrb[0].mxu0 %v2848
        %v2987 = vpop.f32.mrb[0].mxu0
        %v2988 = vpop.f32.mrb[0].mxu0
        %v2989 = vpop.f32.mrb[0].mxu0
        %v2990 = vadd.f32 0.0, %v2989
        %v2991 = vpop.f32.mrb[0].mxu0
        %2992 = vmatprep.mubr.bf16.mxu0 0
        %2993 = vmatmul.mubr.bf16.gmra.mrb[0].mxu0 %v2851
        %v2994 = vpop.f32.mrb[0].mxu0
        %v2995 = vadd.f32 0.0, %v2994
        %v2996 = vpop.f32.mrb[0].mxu0
        %v2997 = vpop.f32.mrb[0].mxu0
        %v2998 = vpop.f32.mrb[0].mxu0
        %2999 = vmatprep.mubr.bf16.mxu0 0
        %3000 = vmatmul.mubr.bf16.gmra.mrb[0].mxu0 %v2854
        %v3001 = vpop.f32.mrb[0].mxu0
        %v3002 = vadd.f32 0.0, %v3001
        %v3003 = vpop.f32.mrb[0].mxu0
        %v3004 = vpop.f32.mrb[0].mxu0
        %v3005 = vadd.f32 0.0, %v3004
        %v3006 = vpop.f32.mrb[0].mxu0
        %3007 = vmatprep.mubr.bf16.mxu0 0
        %3008 = vmatmul.mubr.bf16.gmra.mrb[0].mxu0 %v2857
        %v3009 = vpop.f32.mrb[0].mxu0
        %v3010 = vpop.f32.mrb[0].mxu0
        %v3011 = vpop.f32.mrb[0].mxu0
        %v3012 = vadd.f32 0.0, %v3011
        %v3013 = vpop.f32.mrb[0].mxu0
        %3014 = vmatprep.mubr.bf16.mxu0 0
        %3015 = vmatmul.mubr.bf16.gmra.mrb[0].mxu0 %v2860
        %v3016 = vpop.f32.mrb[0].mxu0
        %v3017 = vadd.f32 0.0, %v3016
        %v3018 = vpop.f32.mrb[0].mxu0
        %v3019 = vpop.f32.mrb[0].mxu0
        %v3020 = vpop.f32.mrb[0].mxu0
        %3021 = vmatprep.mubr.bf16.mxu0 0
        %3022 = vmatmul.mubr.bf16.gmra.mrb[0].mxu0 %v2863
        %v3023 = vpop.f32.mrb[0].mxu0
        %v3024 = vadd.f32 0.0, %v3023
        %v3025 = vpop.f32.mrb[0].mxu0
        %v3026 = vpop.f32.mrb[0].mxu0
        %v3027 = vadd.f32 0.0, %v3026
        %v3028 = vpop.f32.mrb[0].mxu0
        %3029 = vmatprep.mubr.bf16.mxu0 0
        %3030 = vmatmul.mubr.bf16.gmra.mrb[0].mxu0 %v2866
        %v3031 = vpop.f32.mrb[0].mxu0
        %v3032 = vpop.f32.mrb[0].mxu0
        %v3033 = vpop.f32.mrb[0].mxu0
        %v3034 = vadd.f32 0.0, %v3033
        %v3035 = vpop.f32.mrb[0].mxu0
        %3036 = vmatprep.mubr.bf16.mxu0 0
        %3037 = vmatmul.mubr.bf16.gmra.mrb[0].mxu0 %v2869
        %v3038 = vpop.f32.mrb[0].mxu0
        %v3039 = vadd.f32 0.0, %v3038
        %v3040 = vpop.f32.mrb[0].mxu0
        %v3041 = vpop.f32.mrb[0].mxu0
        %v3042 = vpop.f32.mrb[0].mxu0
        %3043 = vmatprep.mubr.bf16.mxu0 0
        %3044 = vmatmul.mubr.bf16.gmra.mrb[0].mxu0 %v2872
        %v3045 = vpop.f32.mrb[0].mxu0
        %v3046 = vadd.f32 0.0, %v3045
        %v3047 = vpop.f32.mrb[0].mxu0
        %v3048 = vpop.f32.mrb[0].mxu0
        %v3049 = vadd.f32 0.0, %v3048
        %v3050 = vpop.f32.mrb[0].mxu0
        %3051 = vmatprep.mubr.bf16.mxu0 0
        %3052 = vmatmul.mubr.bf16.gmra.mrb[0].mxu0 %v2875
        %v3053 = vpop.f32.mrb[0].mxu0
        %v3054 = vpop.f32.mrb[0].mxu0
        %v3055 = vpop.f32.mrb[0].mxu0
        %v3056 = vadd.f32 0.0, %v3055
        %v3057 = vpop.f32.mrb[0].mxu0
        %3058 = vmatprep.mubr.bf16.mxu0 0
        %3059 = vmatmul.mubr.bf16.gmra.mrb[0].mxu0 %v2878
        %v3060 = vpop.f32.mrb[0].mxu0
        %v3061 = vadd.f32 0.0, %v3060
        %v3062 = vpop.f32.mrb[0].mxu0
        %v3063 = vpop.f32.mrb[0].mxu0
        %v3064 = vpop.f32.mrb[0].mxu0
        %3065 = vmatprep.mubr.bf16.mxu0 0
        %3066 = vmatmul.mubr.bf16.gmra.mrb[0].mxu0 %v2881
        %v3067 = vpop.f32.mrb[0].mxu0
        %v3068 = vadd.f32 0.0, %v3067
        %v3069 = vpop.f32.mrb[0].mxu0
        %v3070 = vpop.f32.mrb[0].mxu0
        %v3071 = vadd.f32 0.0, %v3070
        %v3072 = vpop.f32.mrb[0].mxu0
        %3073 = vmatprep.mubr.bf16.mxu0 0
        %3074 = vmatmul.mubr.bf16.gmra.mrb[0].mxu0 %v2884
        %v3075 = vpop.f32.mrb[0].mxu0
        %v3076 = vpop.f32.mrb[0].mxu0
        %v3077 = vpop.f32.mrb[0].mxu0
        %v3078 = vadd.f32 0.0, %v3077
        %v3079 = vpop.f32.mrb[0].mxu0
        %3080 = vmatprep.mubr.bf16.mxu0 0
        %3081 = vmatmul.mubr.bf16.gmra.mrb[0].mxu0 %v2887
        %v3082 = vpop.f32.mrb[0].mxu0
        %v3083 = vadd.f32 0.0, %v3082
        %v3084 = vpop.f32.mrb[0].mxu0
        %v3085 = vpop.f32.mrb[0].mxu0
        %v3086 = vpop.f32.mrb[0].mxu0
        %3087 = vmatprep.mubr.bf16.mxu0 0
        %3088 = vmatmul.mubr.bf16.gmra.mrb[0].mxu0 %v2890
        %v3089 = vpop.f32.mrb[0].mxu0
        %v3090 = vadd.f32 0.0, %v3089
        %v3091 = vpop.f32.mrb[0].mxu0
        %v3092 = vpop.f32.mrb[0].mxu0
        %v3093 = vadd.f32 0.0, %v3092
        %v3094 = vpop.f32.mrb[0].mxu0
        %3095 = vmatprep.mubr.bf16.mxu0 0
        %3096 = vmatmul.mubr.bf16.gmra.mrb[0].mxu0 %v2893
        %v3097 = vpop.f32.mrb[0].mxu0
        %v3098 = vpop.f32.mrb[0].mxu0
        %v3099 = vpop.f32.mrb[0].mxu0
        %v3100 = vadd.f32 0.0, %v3099
        %v3101 = vpop.f32.mrb[0].mxu0
        %3102 = vmatprep.mubr.bf16.mxu0 0
        %3103 = vmatmul.mubr.bf16.gmra.mrb[0].mxu0 %v2896
        %v3104 = vpop.f32.mrb[0].mxu0
        %v3105 = vadd.f32 0.0, %v3104
        %v3106 = vpop.f32.mrb[0].mxu0
        %v3107 = vpop.f32.mrb[0].mxu0
        %v3108 = vpop.f32.mrb[0].mxu0
        %3109 = vdwg.mxu0
        %v3110 = vadd.f32 %v2418, %v2936
        %v3111 = vadd.f32 %v2419, %v2939
        %v3112 = vadd.f32 %v2420, %v2946
        %v3113 = vadd.f32 %v2421, %v2951
        %v3114 = vadd.f32 %v2422, %v2958
        %v3115 = vadd.f32 %v2423, %v2961
        %v3116 = vadd.f32 %v2424, %v2968
        %v3117 = vadd.f32 %v2425, %v2973
        %v3118 = vadd.f32 %v2426, %v2980
        %v3119 = vadd.f32 %v2427, %v2983
        %v3120 = vadd.f32 %v2428, %v2990
        %v3121 = vadd.f32 %v2429, %v2995
        %v3122 = vadd.f32 %v2430, %v3002
        %v3123 = vadd.f32 %v2431, %v3005
        %v3124 = vadd.f32 %v2432, %v3012
        %v3125 = vadd.f32 %v2433, %v3017
        %v3126 = vadd.f32 %v2434, %v3024
        %v3127 = vadd.f32 %v2435, %v3027
        %v3128 = vadd.f32 %v2436, %v3034
        %v3129 = vadd.f32 %v2437, %v3039
        %v3130 = vadd.f32 %v2438, %v3046
        %v3131 = vadd.f32 %v2439, %v3049
        %v3132 = vadd.f32 %v2440, %v3056
        %v3133 = vadd.f32 %v2441, %v3061
        %v3134 = vadd.f32 %v2442, %v3068
        %v3135 = vadd.f32 %v2443, %v3071
        %v3136 = vadd.f32 %v2444, %v3078
        %v3137 = vadd.f32 %v2445, %v3083
        %v3138 = vadd.f32 %v2446, %v3090
        %v3139 = vadd.f32 %v2447, %v3093
        %v3140 = vadd.f32 %v2448, %v3100
        %v3141 = vadd.f32 %v2449, %v3105
        %v3142 = vld [vmem:[%s208 + $0xc] sm:$0xe]
        %v3143 = vld [vmem:[%s212 + $0x24] sm:$0xf]
        %v3144 = vld [vmem:[%s212 + $0x28] sm:$0x3]
        %v3146 = vunpack.c.l.b16 %v3142
        %v3147 = vpack.c.b16 %v2551, %v3146
        %v3148 = vrot.slane %v3147, 1
        %v3149 = vrot.slane %v2600, 1
        %v3150 = vsel %vm1150, %v3148, %v3149
        %v3151 = vrot.slane %v2601, 1
        %v3152 = vsel %vm1150, %v3149, %v3151
        %v3153 = vrot.slane %v2602, 1
        %v3154 = vsel %vm1150, %v3151, %v3153
        %v3155 = vrot.slane %v2603, 1
        %v3156 = vsel %vm1150, %v3153, %v3155
        %v3157 = vrot.slane %v2604, 1
        %v3158 = vsel %vm1150, %v3155, %v3157
        %v3159 = vrot.slane %v2605, 1
        %v3160 = vsel %vm1150, %v3157, %v3159
        %v3161 = vrot.slane %v2606, 1
        %v3162 = vsel %vm1150, %v3159, %v3161
        %v3163 = vrot.slane %v2607, 1
        %v3164 = vsel %vm1150, %v3161, %v3163
        %v3165 = vrot.slane %v2608, 1
        %v3166 = vsel %vm1150, %v3163, %v3165
        %v3167 = vrot.slane %v2609, 1
        %v3168 = vsel %vm1150, %v3165, %v3167
        %v3169 = vrot.slane %v2610, 1
        %v3170 = vsel %vm1150, %v3167, %v3169
        %v3171 = vrot.slane %v2611, 1
        %v3172 = vsel %vm1150, %v3169, %v3171
        %v3173 = vrot.slane %v2612, 1
        %v3174 = vsel %vm1150, %v3171, %v3173
        %v3175 = vrot.slane %v2613, 1
        %v3176 = vsel %vm1150, %v3173, %v3175
        %v3177 = vrot.slane %v2614, 1
        %v3178 = vsel %vm1150, %v3175, %v3177
        %v3179 = vrot.slane %v2615, 1
        %v3180 = vsel %vm1150, %v3177, %v3179
        %v3181 = vrot.slane %v2616, 1
        %v3182 = vsel %vm1150, %v3179, %v3181
        %v3183 = vrot.slane %v2617, 1
        %v3184 = vsel %vm1150, %v3181, %v3183
        %v3185 = vrot.slane %v2618, 1
        %v3186 = vsel %vm1150, %v3183, %v3185
        %v3187 = vrot.slane %v2619, 1
        %v3188 = vsel %vm1150, %v3185, %v3187
        %v3189 = vrot.slane %v2620, 1
        %v3190 = vsel %vm1150, %v3187, %v3189
        %v3191 = vrot.slane %v2621, 1
        %v3192 = vsel %vm1150, %v3189, %v3191
        %v3193 = vrot.slane %v2622, 1
        %v3194 = vsel %vm1150, %v3191, %v3193
        %v3195 = vrot.slane %v2623, 1
        %v3196 = vsel %vm1150, %v3193, %v3195
        %v3199 = vunpack.c.l.b16 %v3143
        %v3200 = vunpack.c.l.b16 %v3144
        %v3201 = vpack.c.b16 %v3200, %v3199
        %v3203 = vsel %vm593, %v3150, 0
        %v3206 = vsel %vm593, %v3152, 0
        %v3209 = vsel %vm593, %v3154, 0
        %v3212 = vsel %vm593, %v3156, 0
        %v3215 = vsel %vm593, %v3158, 0
        %v3218 = vsel %vm593, %v3160, 0
        %v3221 = vsel %vm593, %v3162, 0
        %v3224 = vsel %vm593, %v3164, 0
        %v3227 = vsel %vm593, %v3166, 0
        %v3230 = vsel %vm593, %v3168, 0
        %v3233 = vsel %vm593, %v3170, 0
        %v3236 = vsel %vm593, %v3172, 0
        %v3239 = vsel %vm593, %v3174, 0
        %v3242 = vsel %vm593, %v3176, 0
        %v3245 = vsel %vm593, %v3178, 0
        %v3248 = vsel %vm593, %v3180, 0
        %v3251 = vsel %vm593, %v3182, 0
        %v3254 = vsel %vm593, %v3184, 0
        %v3257 = vsel %vm593, %v3186, 0
        %v3260 = vsel %vm593, %v3188, 0
        %v3263 = vsel %vm593, %v3190, 0
        %v3266 = vsel %vm593, %v3192, 0
        %v3269 = vsel %vm593, %v3194, 0
        %v3272 = vsel %vm593, %v3196, 0
        %v3275 = vsel %vm666, %v3201, 0
        %3277 = vmatprep.subr.bf16.mxu0 0
        %3278 = vmatpush1.bf16.msra.mxu0 %v3275
        %3279 = vmatprep.subr.bf16.mxu0 0
        %3280 = vmatpush1.bf16.msra.mxu0 0
        %3281 = vmatprep.subr.bf16.mxu0 0
        %3282 = vmatpush1.bf16.msra.mxu0 0
        %3283 = vmatprep.subr.bf16.mxu0 0
        %3284 = vmatpush1.bf16.msra.mxu0 0
        %3285 = vmatprep.subr.bf16.mxu0 0
        %3286 = vmatpush1.bf16.msra.mxu0 0
        %3287 = vmatprep.subr.bf16.mxu0 0
        %3288 = vmatpush1.bf16.msra.mxu0 0
        %3289 = vmatprep.subr.bf16.mxu0 0
        %3290 = vmatpush1.bf16.msra.mxu0 0
        %3291 = vmatprep.subr.bf16.mxu0 0
        %3292 = vmatpush1.bf16.msra.mxu0 0
        %3293 = vmatprep.subr.bf16.mxu0 0
        %3294 = vmatpush1.bf16.msra.mxu0 0
        %3295 = vmatprep.subr.bf16.mxu0 0
        %3296 = vmatpush1.bf16.msra.mxu0 0
        %3297 = vmatprep.subr.bf16.mxu0 0
        %3298 = vmatpush1.bf16.msra.mxu0 0
        %3299 = vmatprep.subr.bf16.mxu0 0
        %3300 = vmatpush1.bf16.msra.mxu0 0
        %3301 = vmatprep.subr.bf16.mxu0 0
        %3302 = vmatpush1.bf16.msra.mxu0 0
        %3303 = vmatprep.subr.bf16.mxu0 0
        %3304 = vmatpush1.bf16.msra.mxu0 0
        %3305 = vmatprep.subr.bf16.mxu0 0
        %3306 = vmatpush1.bf16.msra.mxu0 0
        %3307 = vmatprep.subr.bf16.mxu0 0
        %3308 = vmatpush1.bf16.msra.mxu0 0
        %3309 = vmatprep.mubr.bf16.mxu0 0
        %3310 = vmatmul.mubr.bf16.gmra.mrb[0].mxu0 %v3203
        %v3311 = vpop.f32.mrb[0].mxu0
        %v3312 = vadd.f32 0.0, %v3311
        %v3313 = vpop.f32.mrb[0].mxu0
        %v3314 = vpop.f32.mrb[0].mxu0
        %v3315 = vadd.f32 0.0, %v3314
        %v3316 = vpop.f32.mrb[0].mxu0
        %3317 = vmatprep.mubr.bf16.mxu0 0
        %3318 = vmatmul.mubr.bf16.gmra.mrb[0].mxu0 %v3206
        %v3319 = vpop.f32.mrb[0].mxu0
        %v3320 = vpop.f32.mrb[0].mxu0
        %v3321 = vpop.f32.mrb[0].mxu0
        %v3322 = vadd.f32 0.0, %v3321
        %v3323 = vpop.f32.mrb[0].mxu0
        %3324 = vmatprep.mubr.bf16.mxu0 0
        %3325 = vmatmul.mubr.bf16.gmra.mrb[0].mxu0 %v3209
        %v3326 = vpop.f32.mrb[0].mxu0
        %v3327 = vadd.f32 0.0, %v3326
        %v3328 = vpop.f32.mrb[0].mxu0
        %v3329 = vpop.f32.mrb[0].mxu0
        %v3330 = vpop.f32.mrb[0].mxu0
        %3331 = vmatprep.mubr.bf16.mxu0 0
        %3332 = vmatmul.mubr.bf16.gmra.mrb[0].mxu0 %v3212
        %v3333 = vpop.f32.mrb[0].mxu0
        %v3334 = vadd.f32 0.0, %v3333
        %v3335 = vpop.f32.mrb[0].mxu0
        %v3336 = vpop.f32.mrb[0].mxu0
        %v3337 = vadd.f32 0.0, %v3336
        %v3338 = vpop.f32.mrb[0].mxu0
        %3339 = vmatprep.mubr.bf16.mxu0 0
        %3340 = vmatmul.mubr.bf16.gmra.mrb[0].mxu0 %v3215
        %v3341 = vpop.f32.mrb[0].mxu0
        %v3342 = vpop.f32.mrb[0].mxu0
        %v3343 = vpop.f32.mrb[0].mxu0
        %v3344 = vadd.f32 0.0, %v3343
        %v3345 = vpop.f32.mrb[0].mxu0
        %3346 = vmatprep.mubr.bf16.mxu0 0
        %3347 = vmatmul.mubr.bf16.gmra.mrb[0].mxu0 %v3218
        %v3348 = vpop.f32.mrb[0].mxu0
        %v3349 = vadd.f32 0.0, %v3348
        %v3350 = vpop.f32.mrb[0].mxu0
        %v3351 = vpop.f32.mrb[0].mxu0
        %v3352 = vpop.f32.mrb[0].mxu0
        %3353 = vmatprep.mubr.bf16.mxu0 0
        %3354 = vmatmul.mubr.bf16.gmra.mrb[0].mxu0 %v3221
        %v3355 = vpop.f32.mrb[0].mxu0
        %v3356 = vadd.f32 0.0, %v3355
        %v3357 = vpop.f32.mrb[0].mxu0
        %v3358 = vpop.f32.mrb[0].mxu0
        %v3359 = vadd.f32 0.0, %v3358
        %v3360 = vpop.f32.mrb[0].mxu0
        %3361 = vmatprep.mubr.bf16.mxu0 0
        %3362 = vmatmul.mubr.bf16.gmra.mrb[0].mxu0 %v3224
        %v3363 = vpop.f32.mrb[0].mxu0
        %v3364 = vpop.f32.mrb[0].mxu0
        %v3365 = vpop.f32.mrb[0].mxu0
        %v3366 = vadd.f32 0.0, %v3365
        %v3367 = vpop.f32.mrb[0].mxu0
        %3368 = vmatprep.mubr.bf16.mxu0 0
        %3369 = vmatmul.mubr.bf16.gmra.mrb[0].mxu0 %v3227
        %v3370 = vpop.f32.mrb[0].mxu0
        %v3371 = vadd.f32 0.0, %v3370
        %v3372 = vpop.f32.mrb[0].mxu0
        %v3373 = vpop.f32.mrb[0].mxu0
        %v3374 = vpop.f32.mrb[0].mxu0
        %3375 = vmatprep.mubr.bf16.mxu0 0
        %3376 = vmatmul.mubr.bf16.gmra.mrb[0].mxu0 %v3230
        %v3377 = vpop.f32.mrb[0].mxu0
        %v3378 = vadd.f32 0.0, %v3377
        %v3379 = vpop.f32.mrb[0].mxu0
        %v3380 = vpop.f32.mrb[0].mxu0
        %v3381 = vadd.f32 0.0, %v3380
        %v3382 = vpop.f32.mrb[0].mxu0
        %3383 = vmatprep.mubr.bf16.mxu0 0
        %3384 = vmatmul.mubr.bf16.gmra.mrb[0].mxu0 %v3233
        %v3385 = vpop.f32.mrb[0].mxu0
        %v3386 = vpop.f32.mrb[0].mxu0
        %v3387 = vpop.f32.mrb[0].mxu0
        %v3388 = vadd.f32 0.0, %v3387
        %v3389 = vpop.f32.mrb[0].mxu0
        %3390 = vmatprep.mubr.bf16.mxu0 0
        %3391 = vmatmul.mubr.bf16.gmra.mrb[0].mxu0 %v3236
        %v3392 = vpop.f32.mrb[0].mxu0
        %v3393 = vadd.f32 0.0, %v3392
        %v3394 = vpop.f32.mrb[0].mxu0
        %v3395 = vpop.f32.mrb[0].mxu0
        %v3396 = vpop.f32.mrb[0].mxu0
        %3397 = vmatprep.mubr.bf16.mxu0 0
        %3398 = vmatmul.mubr.bf16.gmra.mrb[0].mxu0 %v3239
        %v3399 = vpop.f32.mrb[0].mxu0
        %v3400 = vadd.f32 0.0, %v3399
        %v3401 = vpop.f32.mrb[0].mxu0
        %v3402 = vpop.f32.mrb[0].mxu0
        %v3403 = vadd.f32 0.0, %v3402
        %v3404 = vpop.f32.mrb[0].mxu0
        %3405 = vmatprep.mubr.bf16.mxu0 0
        %3406 = vmatmul.mubr.bf16.gmra.mrb[0].mxu0 %v3242
        %v3407 = vpop.f32.mrb[0].mxu0
        %v3408 = vpop.f32.mrb[0].mxu0
        %v3409 = vpop.f32.mrb[0].mxu0
        %v3410 = vadd.f32 0.0, %v3409
        %v3411 = vpop.f32.mrb[0].mxu0
        %3412 = vmatprep.mubr.bf16.mxu0 0
        %3413 = vmatmul.mubr.bf16.gmra.mrb[0].mxu0 %v3245
        %v3414 = vpop.f32.mrb[0].mxu0
        %v3415 = vadd.f32 0.0, %v3414
        %v3416 = vpop.f32.mrb[0].mxu0
        %v3417 = vpop.f32.mrb[0].mxu0
        %v3418 = vpop.f32.mrb[0].mxu0
        %3419 = vmatprep.mubr.bf16.mxu0 0
        %3420 = vmatmul.mubr.bf16.gmra.mrb[0].mxu0 %v3248
        %v3421 = vpop.f32.mrb[0].mxu0
        %v3422 = vadd.f32 0.0, %v3421
        %v3423 = vpop.f32.mrb[0].mxu0
        %v3424 = vpop.f32.mrb[0].mxu0
        %v3425 = vadd.f32 0.0, %v3424
        %v3426 = vpop.f32.mrb[0].mxu0
        %3427 = vmatprep.mubr.bf16.mxu0 0
        %3428 = vmatmul.mubr.bf16.gmra.mrb[0].mxu0 %v3251
        %v3429 = vpop.f32.mrb[0].mxu0
        %v3430 = vpop.f32.mrb[0].mxu0
        %v3431 = vpop.f32.mrb[0].mxu0
        %v3432 = vadd.f32 0.0, %v3431
        %v3433 = vpop.f32.mrb[0].mxu0
        %3434 = vmatprep.mubr.bf16.mxu0 0
        %3435 = vmatmul.mubr.bf16.gmra.mrb[0].mxu0 %v3254
        %v3436 = vpop.f32.mrb[0].mxu0
        %v3437 = vadd.f32 0.0, %v3436
        %v3438 = vpop.f32.mrb[0].mxu0
        %v3439 = vpop.f32.mrb[0].mxu0
        %v3440 = vpop.f32.mrb[0].mxu0
        %3441 = vmatprep.mubr.bf16.mxu0 0
        %3442 = vmatmul.mubr.bf16.gmra.mrb[0].mxu0 %v3257
        %v3443 = vpop.f32.mrb[0].mxu0
        %v3444 = vadd.f32 0.0, %v3443
        %v3445 = vpop.f32.mrb[0].mxu0
        %v3446 = vpop.f32.mrb[0].mxu0
        %v3447 = vadd.f32 0.0, %v3446
        %v3448 = vpop.f32.mrb[0].mxu0
        %3449 = vmatprep.mubr.bf16.mxu0 0
        %3450 = vmatmul.mubr.bf16.gmra.mrb[0].mxu0 %v3260
        %v3451 = vpop.f32.mrb[0].mxu0
        %v3452 = vpop.f32.mrb[0].mxu0
        %v3453 = vpop.f32.mrb[0].mxu0
        %v3454 = vadd.f32 0.0, %v3453
        %v3455 = vpop.f32.mrb[0].mxu0
        %3456 = vmatprep.mubr.bf16.mxu0 0
        %3457 = vmatmul.mubr.bf16.gmra.mrb[0].mxu0 %v3263
        %v3458 = vpop.f32.mrb[0].mxu0
        %v3459 = vadd.f32 0.0, %v3458
        %v3460 = vpop.f32.mrb[0].mxu0
        %v3461 = vpop.f32.mrb[0].mxu0
        %v3462 = vpop.f32.mrb[0].mxu0
        %3463 = vmatprep.mubr.bf16.mxu0 0
        %3464 = vmatmul.mubr.bf16.gmra.mrb[0].mxu0 %v3266
        %v3465 = vpop.f32.mrb[0].mxu0
        %v3466 = vadd.f32 0.0, %v3465
        %v3467 = vpop.f32.mrb[0].mxu0
        %v3468 = vpop.f32.mrb[0].mxu0
        %v3469 = vadd.f32 0.0, %v3468
        %v3470 = vpop.f32.mrb[0].mxu0
        %3471 = vmatprep.mubr.bf16.mxu0 0
        %3472 = vmatmul.mubr.bf16.gmra.mrb[0].mxu0 %v3269
        %v3473 = vpop.f32.mrb[0].mxu0
        %v3474 = vpop.f32.mrb[0].mxu0
        %v3475 = vpop.f32.mrb[0].mxu0
        %v3476 = vadd.f32 0.0, %v3475
        %v3477 = vpop.f32.mrb[0].mxu0
        %3478 = vmatprep.mubr.bf16.mxu0 0
        %3479 = vmatmul.mubr.bf16.gmra.mrb[0].mxu0 %v3272
        %v3480 = vpop.f32.mrb[0].mxu0
        %v3481 = vadd.f32 0.0, %v3480
        %v3482 = vpop.f32.mrb[0].mxu0
        %v3483 = vpop.f32.mrb[0].mxu0
        %v3484 = vpop.f32.mrb[0].mxu0
        %3485 = vdwg.mxu0
        %v3486 = vadd.f32 %v3110, %v3312
        %v3487 = vadd.f32 %v3111, %v3315
        %v3488 = vadd.f32 %v3112, %v3322
        %v3489 = vadd.f32 %v3113, %v3327
        %v3490 = vadd.f32 %v3114, %v3334
        %v3491 = vadd.f32 %v3115, %v3337
        %v3492 = vadd.f32 %v3116, %v3344
        %v3493 = vadd.f32 %v3117, %v3349
        %v3494 = vadd.f32 %v3118, %v3356
        %v3495 = vadd.f32 %v3119, %v3359
        %v3496 = vadd.f32 %v3120, %v3366
        %v3497 = vadd.f32 %v3121, %v3371
        %v3498 = vadd.f32 %v3122, %v3378
        %v3499 = vadd.f32 %v3123, %v3381
        %v3500 = vadd.f32 %v3124, %v3388
        %v3501 = vadd.f32 %v3125, %v3393
        %v3502 = vadd.f32 %v3126, %v3400
        %v3503 = vadd.f32 %v3127, %v3403
        %v3504 = vadd.f32 %v3128, %v3410
        %v3505 = vadd.f32 %v3129, %v3415
        %v3506 = vadd.f32 %v3130, %v3422
        %v3507 = vadd.f32 %v3131, %v3425
        %v3508 = vadd.f32 %v3132, %v3432
        %v3509 = vadd.f32 %v3133, %v3437
        %v3510 = vadd.f32 %v3134, %v3444
        %v3511 = vadd.f32 %v3135, %v3447
        %v3512 = vadd.f32 %v3136, %v3454
        %v3513 = vadd.f32 %v3137, %v3459
        %v3514 = vadd.f32 %v3138, %v3466
        %v3515 = vadd.f32 %v3139, %v3469
        %v3516 = vadd.f32 %v3140, %v3476
        %v3517 = vadd.f32 %v3141, %v3481
        %v3518 = vld [vmem:[%s208 + $0xcc] sm:$0x3]
        %v3519 = vld [vmem:[%s212 + $0x28] sm:$0xc]
        %v3520 = vld [vmem:[%s212 + $0x2c] sm:$0xf]
        %v3522 = vunpack.c.l.b16 %v3518
        %v3523 = vpack.c.b16 %v3522, %v3522
        %v3525 = vshrl.u32 %v3147, 16
        %v3527 = vrot.slane %v3525, 1
        %v3528 = vshll.u32 %v3147, 16
        %v3530 = vrot.slane %v3528, 2
        %v3531 = vor.u32 %v3527, %v3530
        %v3532 = vrot.slane %v2636, 1
        %v3533 = vrot.slane %v2632, 2
        %v3534 = vor.u32 %v3532, %v3533
        %v3535 = vsel %vm1527, %v3531, %v3534
        %v3536 = vrot.slane %v2644, 1
        %v3537 = vrot.slane %v2640, 2
        %v3538 = vor.u32 %v3536, %v3537
        %v3539 = vsel %vm1527, %v3534, %v3538
        %v3540 = vrot.slane %v2652, 1
        %v3541 = vrot.slane %v2648, 2
        %v3542 = vor.u32 %v3540, %v3541
        %v3543 = vsel %vm1527, %v3538, %v3542
        %v3544 = vrot.slane %v2660, 1
        %v3545 = vrot.slane %v2656, 2
        %v3546 = vor.u32 %v3544, %v3545
        %v3547 = vsel %vm1527, %v3542, %v3546
        %v3548 = vrot.slane %v2668, 1
        %v3549 = vrot.slane %v2664, 2
        %v3550 = vor.u32 %v3548, %v3549
        %v3551 = vsel %vm1527, %v3546, %v3550
        %v3552 = vrot.slane %v2676, 1
        %v3553 = vrot.slane %v2672, 2
        %v3554 = vor.u32 %v3552, %v3553
        %v3555 = vsel %vm1527, %v3550, %v3554
        %v3556 = vrot.slane %v2684, 1
        %v3557 = vrot.slane %v2680, 2
        %v3558 = vor.u32 %v3556, %v3557
        %v3559 = vsel %vm1527, %v3554, %v3558
        %v3560 = vrot.slane %v2692, 1
        %v3561 = vrot.slane %v2688, 2
        %v3562 = vor.u32 %v3560, %v3561
        %v3563 = vsel %vm1527, %v3558, %v3562
        %v3564 = vrot.slane %v2700, 1
        %v3565 = vrot.slane %v2696, 2
        %v3566 = vor.u32 %v3564, %v3565
        %v3567 = vsel %vm1527, %v3562, %v3566
        %v3568 = vrot.slane %v2708, 1
        %v3569 = vrot.slane %v2704, 2
        %v3570 = vor.u32 %v3568, %v3569
        %v3571 = vsel %vm1527, %v3566, %v3570
        %v3572 = vrot.slane %v2716, 1
        %v3573 = vrot.slane %v2712, 2
        %v3574 = vor.u32 %v3572, %v3573
        %v3575 = vsel %vm1527, %v3570, %v3574
        %v3576 = vrot.slane %v2724, 1
        %v3577 = vrot.slane %v2720, 2
        %v3578 = vor.u32 %v3576, %v3577
        %v3579 = vsel %vm1527, %v3574, %v3578
        %v3580 = vrot.slane %v2732, 1
        %v3581 = vrot.slane %v2728, 2
        %v3582 = vor.u32 %v3580, %v3581
        %v3583 = vsel %vm1527, %v3578, %v3582
        %v3584 = vrot.slane %v2740, 1
        %v3585 = vrot.slane %v2736, 2
        %v3586 = vor.u32 %v3584, %v3585
        %v3587 = vsel %vm1527, %v3582, %v3586
        %v3588 = vrot.slane %v2748, 1
        %v3589 = vrot.slane %v2744, 2
        %v3590 = vor.u32 %v3588, %v3589
        %v3591 = vsel %vm1527, %v3586, %v3590
        %v3592 = vrot.slane %v2756, 1
        %v3593 = vrot.slane %v2752, 2
        %v3594 = vor.u32 %v3592, %v3593
        %v3595 = vsel %vm1527, %v3590, %v3594
        %v3596 = vrot.slane %v2764, 1
        %v3597 = vrot.slane %v2760, 2
        %v3598 = vor.u32 %v3596, %v3597
        %v3599 = vsel %vm1527, %v3594, %v3598
        %v3600 = vrot.slane %v2772, 1
        %v3601 = vrot.slane %v2768, 2
        %v3602 = vor.u32 %v3600, %v3601
        %v3603 = vsel %vm1527, %v3598, %v3602
        %v3604 = vrot.slane %v2780, 1
        %v3605 = vrot.slane %v2776, 2
        %v3606 = vor.u32 %v3604, %v3605
        %v3607 = vsel %vm1527, %v3602, %v3606
        %v3608 = vrot.slane %v2788, 1
        %v3609 = vrot.slane %v2784, 2
        %v3610 = vor.u32 %v3608, %v3609
        %v3611 = vsel %vm1527, %v3606, %v3610
        %v3612 = vrot.slane %v2796, 1
        %v3613 = vrot.slane %v2792, 2
        %v3614 = vor.u32 %v3612, %v3613
        %v3615 = vsel %vm1527, %v3610, %v3614
        %v3616 = vrot.slane %v2804, 1
        %v3617 = vrot.slane %v2800, 2
        %v3618 = vor.u32 %v3616, %v3617
        %v3619 = vsel %vm1527, %v3614, %v3618
        %v3620 = vrot.slane %v2812, 1
        %v3621 = vrot.slane %v2808, 2
        %v3622 = vor.u32 %v3620, %v3621
        %v3623 = vsel %vm1527, %v3618, %v3622
        %v3625 = vshrl.u32 %v3523, 16
        %v3627 = vrot.slane %v3625, 1
        %v3628 = vshll.u32 %v3523, 16
        %v3630 = vrot.slane %v3628, 2
        %v3631 = vor.u32 %v3627, %v3630
        %v3632 = vsel %vm1527, %v3622, %v3631
        %v3635 = vunpack.c.l.b16 %v3519
        %v3636 = vunpack.c.l.b16 %v3520
        %v3637 = vpack.c.b16 %v3636, %v3635
        %v3638 = vrot.slane %v3637, 2
        %v3640 = vsel %vm593, %v3535, 0
        %v3643 = vsel %vm593, %v3539, 0
        %v3646 = vsel %vm593, %v3543, 0
        %v3649 = vsel %vm593, %v3547, 0
        %v3652 = vsel %vm593, %v3551, 0
        %v3655 = vsel %vm593, %v3555, 0
        %v3658 = vsel %vm593, %v3559, 0
        %v3661 = vsel %vm593, %v3563, 0
        %v3664 = vsel %vm593, %v3567, 0
        %v3667 = vsel %vm593, %v3571, 0
        %v3670 = vsel %vm593, %v3575, 0
        %v3673 = vsel %vm593, %v3579, 0
        %v3676 = vsel %vm593, %v3583, 0
        %v3679 = vsel %vm593, %v3587, 0
        %v3682 = vsel %vm593, %v3591, 0
        %v3685 = vsel %vm593, %v3595, 0
        %v3688 = vsel %vm593, %v3599, 0
        %v3691 = vsel %vm593, %v3603, 0
        %v3694 = vsel %vm593, %v3607, 0
        %v3697 = vsel %vm593, %v3611, 0
        %v3700 = vsel %vm593, %v3615, 0
        %v3703 = vsel %vm593, %v3619, 0
        %v3706 = vsel %vm593, %v3623, 0
        %v3709 = vsel %vm593, %v3632, 0
        %v3712 = vsel %vm666, %v3638, 0
        %3714 = vmatprep.subr.bf16.mxu0 0
        %3715 = vmatpush1.bf16.msra.mxu0 %v3712
        %3716 = vmatprep.subr.bf16.mxu0 0
        %3717 = vmatpush1.bf16.msra.mxu0 0
        %3718 = vmatprep.subr.bf16.mxu0 0
        %3719 = vmatpush1.bf16.msra.mxu0 0
        %3720 = vmatprep.subr.bf16.mxu0 0
        %3721 = vmatpush1.bf16.msra.mxu0 0
        %3722 = vmatprep.subr.bf16.mxu0 0
        %3723 = vmatpush1.bf16.msra.mxu0 0
        %3724 = vmatprep.subr.bf16.mxu0 0
        %3725 = vmatpush1.bf16.msra.mxu0 0
        %3726 = vmatprep.subr.bf16.mxu0 0
        %3727 = vmatpush1.bf16.msra.mxu0 0
        %3728 = vmatprep.subr.bf16.mxu0 0
        %3729 = vmatpush1.bf16.msra.mxu0 0
        %3730 = vmatprep.subr.bf16.mxu0 0
        %3731 = vmatpush1.bf16.msra.mxu0 0
        %3732 = vmatprep.subr.bf16.mxu0 0
        %3733 = vmatpush1.bf16.msra.mxu0 0
        %3734 = vmatprep.subr.bf16.mxu0 0
        %3735 = vmatpush1.bf16.msra.mxu0 0
        %3736 = vmatprep.subr.bf16.mxu0 0
        %3737 = vmatpush1.bf16.msra.mxu0 0
        %3738 = vmatprep.subr.bf16.mxu0 0
        %3739 = vmatpush1.bf16.msra.mxu0 0
        %3740 = vmatprep.subr.bf16.mxu0 0
        %3741 = vmatpush1.bf16.msra.mxu0 0
        %3742 = vmatprep.subr.bf16.mxu0 0
        %3743 = vmatpush1.bf16.msra.mxu0 0
        %3744 = vmatprep.subr.bf16.mxu0 0
        %3745 = vmatpush1.bf16.msra.mxu0 0
        %3746 = vmatprep.mubr.bf16.mxu0 0
        %3747 = vmatmul.mubr.bf16.gmra.mrb[0].mxu0 %v3640
        %v3748 = vpop.f32.mrb[0].mxu0
        %v3749 = vadd.f32 0.0, %v3748
        %v3750 = vpop.f32.mrb[0].mxu0
        %v3751 = vpop.f32.mrb[0].mxu0
        %v3752 = vadd.f32 0.0, %v3751
        %v3753 = vpop.f32.mrb[0].mxu0
        %3754 = vmatprep.mubr.bf16.mxu0 0
        %3755 = vmatmul.mubr.bf16.gmra.mrb[0].mxu0 %v3643
        %v3756 = vpop.f32.mrb[0].mxu0
        %v3757 = vpop.f32.mrb[0].mxu0
        %v3758 = vpop.f32.mrb[0].mxu0
        %v3759 = vadd.f32 0.0, %v3758
        %v3760 = vpop.f32.mrb[0].mxu0
        %3761 = vmatprep.mubr.bf16.mxu0 0
        %3762 = vmatmul.mubr.bf16.gmra.mrb[0].mxu0 %v3646
        %v3763 = vpop.f32.mrb[0].mxu0
        %v3764 = vadd.f32 0.0, %v3763
        %v3765 = vpop.f32.mrb[0].mxu0
        %v3766 = vpop.f32.mrb[0].mxu0
        %v3767 = vpop.f32.mrb[0].mxu0
        %3768 = vmatprep.mubr.bf16.mxu0 0
        %3769 = vmatmul.mubr.bf16.gmra.mrb[0].mxu0 %v3649
        %v3770 = vpop.f32.mrb[0].mxu0
        %v3771 = vadd.f32 0.0, %v3770
        %v3772 = vpop.f32.mrb[0].mxu0
        %v3773 = vpop.f32.mrb[0].mxu0
        %v3774 = vadd.f32 0.0, %v3773
        %v3775 = vpop.f32.mrb[0].mxu0
        %3776 = vmatprep.mubr.bf16.mxu0 0
        %3777 = vmatmul.mubr.bf16.gmra.mrb[0].mxu0 %v3652
        %v3778 = vpop.f32.mrb[0].mxu0
        %v3779 = vpop.f32.mrb[0].mxu0
        %v3780 = vpop.f32.mrb[0].mxu0
        %v3781 = vadd.f32 0.0, %v3780
        %v3782 = vpop.f32.mrb[0].mxu0
        %3783 = vmatprep.mubr.bf16.mxu0 0
        %3784 = vmatmul.mubr.bf16.gmra.mrb[0].mxu0 %v3655
        %v3785 = vpop.f32.mrb[0].mxu0
        %v3786 = vadd.f32 0.0, %v3785
        %v3787 = vpop.f32.mrb[0].mxu0
        %v3788 = vpop.f32.mrb[0].mxu0
        %v3789 = vpop.f32.mrb[0].mxu0
        %3790 = vmatprep.mubr.bf16.mxu0 0
        %3791 = vmatmul.mubr.bf16.gmra.mrb[0].mxu0 %v3658
        %v3792 = vpop.f32.mrb[0].mxu0
        %v3793 = vadd.f32 0.0, %v3792
        %v3794 = vpop.f32.mrb[0].mxu0
        %v3795 = vpop.f32.mrb[0].mxu0
        %v3796 = vadd.f32 0.0, %v3795
        %v3797 = vpop.f32.mrb[0].mxu0
        %3798 = vmatprep.mubr.bf16.mxu0 0
        %3799 = vmatmul.mubr.bf16.gmra.mrb[0].mxu0 %v3661
        %v3800 = vpop.f32.mrb[0].mxu0
        %v3801 = vpop.f32.mrb[0].mxu0
        %v3802 = vpop.f32.mrb[0].mxu0
        %v3803 = vadd.f32 0.0, %v3802
        %v3804 = vpop.f32.mrb[0].mxu0
        %3805 = vmatprep.mubr.bf16.mxu0 0
        %3806 = vmatmul.mubr.bf16.gmra.mrb[0].mxu0 %v3664
        %v3807 = vpop.f32.mrb[0].mxu0
        %v3808 = vadd.f32 0.0, %v3807
        %v3809 = vpop.f32.mrb[0].mxu0
        %v3810 = vpop.f32.mrb[0].mxu0
        %v3811 = vpop.f32.mrb[0].mxu0
        %3812 = vmatprep.mubr.bf16.mxu0 0
        %3813 = vmatmul.mubr.bf16.gmra.mrb[0].mxu0 %v3667
        %v3814 = vpop.f32.mrb[0].mxu0
        %v3815 = vadd.f32 0.0, %v3814
        %v3816 = vpop.f32.mrb[0].mxu0
        %v3817 = vpop.f32.mrb[0].mxu0
        %v3818 = vadd.f32 0.0, %v3817
        %v3819 = vpop.f32.mrb[0].mxu0
        %3820 = vmatprep.mubr.bf16.mxu0 0
        %3821 = vmatmul.mubr.bf16.gmra.mrb[0].mxu0 %v3670
        %v3822 = vpop.f32.mrb[0].mxu0
        %v3823 = vpop.f32.mrb[0].mxu0
        %v3824 = vpop.f32.mrb[0].mxu0
        %v3825 = vadd.f32 0.0, %v3824
        %v3826 = vpop.f32.mrb[0].mxu0
        %3827 = vmatprep.mubr.bf16.mxu0 0
        %3828 = vmatmul.mubr.bf16.gmra.mrb[0].mxu0 %v3673
        %v3829 = vpop.f32.mrb[0].mxu0
        %v3830 = vadd.f32 0.0, %v3829
        %v3831 = vpop.f32.mrb[0].mxu0
        %v3832 = vpop.f32.mrb[0].mxu0
        %v3833 = vpop.f32.mrb[0].mxu0
        %3834 = vmatprep.mubr.bf16.mxu0 0
        %3835 = vmatmul.mubr.bf16.gmra.mrb[0].mxu0 %v3676
        %v3836 = vpop.f32.mrb[0].mxu0
        %v3837 = vadd.f32 0.0, %v3836
        %v3838 = vpop.f32.mrb[0].mxu0
        %v3839 = vpop.f32.mrb[0].mxu0
        %v3840 = vadd.f32 0.0, %v3839
        %v3841 = vpop.f32.mrb[0].mxu0
        %3842 = vmatprep.mubr.bf16.mxu0 0
        %3843 = vmatmul.mubr.bf16.gmra.mrb[0].mxu0 %v3679
        %v3844 = vpop.f32.mrb[0].mxu0
        %v3845 = vpop.f32.mrb[0].mxu0
        %v3846 = vpop.f32.mrb[0].mxu0
        %v3847 = vadd.f32 0.0, %v3846
        %v3848 = vpop.f32.mrb[0].mxu0
        %3849 = vmatprep.mubr.bf16.mxu0 0
        %3850 = vmatmul.mubr.bf16.gmra.mrb[0].mxu0 %v3682
        %v3851 = vpop.f32.mrb[0].mxu0
        %v3852 = vadd.f32 0.0, %v3851
        %v3853 = vpop.f32.mrb[0].mxu0
        %v3854 = vpop.f32.mrb[0].mxu0
        %v3855 = vpop.f32.mrb[0].mxu0
        %3856 = vmatprep.mubr.bf16.mxu0 0
        %3857 = vmatmul.mubr.bf16.gmra.mrb[0].mxu0 %v3685
        %v3858 = vpop.f32.mrb[0].mxu0
        %v3859 = vadd.f32 0.0, %v3858
        %v3860 = vpop.f32.mrb[0].mxu0
        %v3861 = vpop.f32.mrb[0].mxu0
        %v3862 = vadd.f32 0.0, %v3861
        %v3863 = vpop.f32.mrb[0].mxu0
        %3864 = vmatprep.mubr.bf16.mxu0 0
        %3865 = vmatmul.mubr.bf16.gmra.mrb[0].mxu0 %v3688
        %v3866 = vpop.f32.mrb[0].mxu0
        %v3867 = vpop.f32.mrb[0].mxu0
        %v3868 = vpop.f32.mrb[0].mxu0
        %v3869 = vadd.f32 0.0, %v3868
        %v3870 = vpop.f32.mrb[0].mxu0
        %3871 = vmatprep.mubr.bf16.mxu0 0
        %3872 = vmatmul.mubr.bf16.gmra.mrb[0].mxu0 %v3691
        %v3873 = vpop.f32.mrb[0].mxu0
        %v3874 = vadd.f32 0.0, %v3873
        %v3875 = vpop.f32.mrb[0].mxu0
        %v3876 = vpop.f32.mrb[0].mxu0
        %v3877 = vpop.f32.mrb[0].mxu0
        %3878 = vmatprep.mubr.bf16.mxu0 0
        %3879 = vmatmul.mubr.bf16.gmra.mrb[0].mxu0 %v3694
        %v3880 = vpop.f32.mrb[0].mxu0
        %v3881 = vadd.f32 0.0, %v3880
        %v3882 = vpop.f32.mrb[0].mxu0
        %v3883 = vpop.f32.mrb[0].mxu0
        %v3884 = vadd.f32 0.0, %v3883
        %v3885 = vpop.f32.mrb[0].mxu0
        %3886 = vmatprep.mubr.bf16.mxu0 0
        %3887 = vmatmul.mubr.bf16.gmra.mrb[0].mxu0 %v3697
        %v3888 = vpop.f32.mrb[0].mxu0
        %v3889 = vpop.f32.mrb[0].mxu0
        %v3890 = vpop.f32.mrb[0].mxu0
        %v3891 = vadd.f32 0.0, %v3890
        %v3892 = vpop.f32.mrb[0].mxu0
        %3893 = vmatprep.mubr.bf16.mxu0 0
        %3894 = vmatmul.mubr.bf16.gmra.mrb[0].mxu0 %v3700
        %v3895 = vpop.f32.mrb[0].mxu0
        %v3896 = vadd.f32 0.0, %v3895
        %v3897 = vpop.f32.mrb[0].mxu0
        %v3898 = vpop.f32.mrb[0].mxu0
        %v3899 = vpop.f32.mrb[0].mxu0
        %3900 = vmatprep.mubr.bf16.mxu0 0
        %3901 = vmatmul.mubr.bf16.gmra.mrb[0].mxu0 %v3703
        %v3902 = vpop.f32.mrb[0].mxu0
        %v3903 = vadd.f32 0.0, %v3902
        %v3904 = vpop.f32.mrb[0].mxu0
        %v3905 = vpop.f32.mrb[0].mxu0
        %v3906 = vadd.f32 0.0, %v3905
        %v3907 = vpop.f32.mrb[0].mxu0
        %3908 = vmatprep.mubr.bf16.mxu0 0
        %3909 = vmatmul.mubr.bf16.gmra.mrb[0].mxu0 %v3706
        %v3910 = vpop.f32.mrb[0].mxu0
        %v3911 = vpop.f32.mrb[0].mxu0
        %v3912 = vpop.f32.mrb[0].mxu0
        %v3913 = vadd.f32 0.0, %v3912
        %v3914 = vpop.f32.mrb[0].mxu0
        %3915 = vmatprep.mubr.bf16.mxu0 0
        %3916 = vmatmul.mubr.bf16.gmra.mrb[0].mxu0 %v3709
        %v3917 = vpop.f32.mrb[0].mxu0
        %v3918 = vadd.f32 0.0, %v3917
        %v3919 = vpop.f32.mrb[0].mxu0
        %v3920 = vpop.f32.mrb[0].mxu0
        %v3921 = vpop.f32.mrb[0].mxu0
        %3922 = vdwg.mxu0
        %v3923 = vadd.f32 %v3486, %v3749
        %v3924 = vadd.f32 %v3487, %v3752
        %v3925 = vadd.f32 %v3488, %v3759
        %v3926 = vadd.f32 %v3489, %v3764
        %v3927 = vadd.f32 %v3490, %v3771
        %v3928 = vadd.f32 %v3491, %v3774
        %v3929 = vadd.f32 %v3492, %v3781
        %v3930 = vadd.f32 %v3493, %v3786
        %v3931 = vadd.f32 %v3494, %v3793
        %v3932 = vadd.f32 %v3495, %v3796
        %v3933 = vadd.f32 %v3496, %v3803
        %v3934 = vadd.f32 %v3497, %v3808
        %v3935 = vadd.f32 %v3498, %v3815
        %v3936 = vadd.f32 %v3499, %v3818
        %v3937 = vadd.f32 %v3500, %v3825
        %v3938 = vadd.f32 %v3501, %v3830
        %v3939 = vadd.f32 %v3502, %v3837
        %v3940 = vadd.f32 %v3503, %v3840
        %v3941 = vadd.f32 %v3504, %v3847
        %v3942 = vadd.f32 %v3505, %v3852
        %v3943 = vadd.f32 %v3506, %v3859
        %v3944 = vadd.f32 %v3507, %v3862
        %v3945 = vadd.f32 %v3508, %v3869
        %v3946 = vadd.f32 %v3509, %v3874
        %v3947 = vadd.f32 %v3510, %v3881
        %v3948 = vadd.f32 %v3511, %v3884
        %v3949 = vadd.f32 %v3512, %v3891
        %v3950 = vadd.f32 %v3513, %v3896
        %v3951 = vadd.f32 %v3514, %v3903
        %v3952 = vadd.f32 %v3515, %v3906
        %v3953 = vadd.f32 %v3516, %v3913
        %v3954 = vadd.f32 %v3517, %v3918
        %v3955 = vld [vmem:[%s208 + $0x18] sm:$0xf]
        %v3956 = vld [vmem:[%s208 + $0x1c] sm:$0xf]
        %v3957 = vld [vmem:[%s208 + $0x20] sm:$0xf]
        %v3958 = vld [vmem:[%s208 + $0x24] sm:$0xf]
        %v3959 = vld [vmem:[%s208 + $0x28] sm:$0xf]
        %v3960 = vld [vmem:[%s208 + $0x2c] sm:$0xf]
        %v3961 = vld [vmem:[%s208 + $0x30] sm:$0xf]
        %v3962 = vld [vmem:[%s208 + $0x34] sm:$0xf]
        %v3963 = vld [vmem:[%s208 + $0x38] sm:$0xf]
        %v3964 = vld [vmem:[%s208 + $0x3c] sm:$0xf]
        %v3965 = vld [vmem:[%s208 + $0x40] sm:$0xf]
        %v3966 = vld [vmem:[%s208 + $0x44] sm:$0xf]
        %v3967 = vld [vmem:[%s208 + $0x48] sm:$0xf]
        %v3968 = vld [vmem:[%s208 + $0x4c] sm:$0xf]
        %v3969 = vld [vmem:[%s208 + $0x50] sm:$0xf]
        %v3970 = vld [vmem:[%s208 + $0x54] sm:$0xf]
        %v3971 = vld [vmem:[%s208 + $0x58] sm:$0xf]
        %v3972 = vld [vmem:[%s208 + $0x5c] sm:$0xf]
        %v3973 = vld [vmem:[%s208 + $0x60] sm:$0xf]
        %v3974 = vld [vmem:[%s208 + $0x64] sm:$0xf]
        %v3975 = vld [vmem:[%s208 + $0x68] sm:$0xf]
        %v3976 = vld [vmem:[%s208 + $0x6c] sm:$0xf]
        %v3977 = vld [vmem:[%s208 + $0x70] sm:$0xf]
        %v3978 = vld [vmem:[%s208 + $0x74] sm:$0xf]
        %v3979 = vld [vmem:[%s208 + $0x78] sm:$0xf]
        %v3980 = vld [vmem:[%s208 + $0x7c] sm:$0xf]
        %v3981 = vld [vmem:[%s208 + $0x80] sm:$0xf]
        %v3982 = vld [vmem:[%s208 + $0x84] sm:$0xf]
        %v3983 = vld [vmem:[%s208 + $0x88] sm:$0xf]
        %v3984 = vld [vmem:[%s208 + $0x8c] sm:$0xf]
        %v3985 = vld [vmem:[%s208 + $0x90] sm:$0xf]
        %v3986 = vld [vmem:[%s208 + $0x94] sm:$0xf]
        %v3987 = vld [vmem:[%s208 + $0x98] sm:$0xf]
        %v3988 = vld [vmem:[%s208 + $0x9c] sm:$0xf]
        %v3989 = vld [vmem:[%s208 + $0xa0] sm:$0xf]
        %v3990 = vld [vmem:[%s208 + $0xa4] sm:$0xf]
        %v3991 = vld [vmem:[%s208 + $0xa8] sm:$0xf]
        %v3992 = vld [vmem:[%s208 + $0xac] sm:$0xf]
        %v3993 = vld [vmem:[%s208 + $0xb0] sm:$0xf]
        %v3994 = vld [vmem:[%s208 + $0xb4] sm:$0xf]
        %v3995 = vld [vmem:[%s208 + $0xb8] sm:$0xf]
        %v3996 = vld [vmem:[%s208 + $0xbc] sm:$0xf]
        %v3997 = vld [vmem:[%s208 + $0xc0] sm:$0xf]
        %v3998 = vld [vmem:[%s208 + $0xc4] sm:$0xf]
        %v3999 = vld [vmem:[%s208 + $0xc8] sm:$0xf]
        %v4000 = vld [vmem:[%s208 + $0xcc] sm:$0xf]
        %v4001 = vld [vmem:[%s208 + $0xd0] sm:$0xf]
        %v4002 = vld [vmem:[%s208 + $0xd4] sm:$0xf]
        %v4003 = vld [vmem:[%s212 + $0x30] sm:$0xf]
        %v4004 = vld [vmem:[%s212 + $0x34] sm:$0x3]
        %v4053 = vunpack.c.l.b16 %v3955
        %v4054 = vunpack.c.l.b16 %v3956
        %v4055 = vunpack.c.l.b16 %v3957
        %v4056 = vunpack.c.l.b16 %v3958
        %v4057 = vunpack.c.l.b16 %v3959
        %v4058 = vunpack.c.l.b16 %v3960
        %v4059 = vunpack.c.l.b16 %v3961
        %v4060 = vunpack.c.l.b16 %v3962
        %v4061 = vunpack.c.l.b16 %v3963
        %v4062 = vunpack.c.l.b16 %v3964
        %v4063 = vunpack.c.l.b16 %v3965
        %v4064 = vunpack.c.l.b16 %v3966
        %v4065 = vunpack.c.l.b16 %v3967
        %v4066 = vunpack.c.l.b16 %v3968
        %v4067 = vunpack.c.l.b16 %v3969
        %v4068 = vunpack.c.l.b16 %v3970
        %v4069 = vunpack.c.l.b16 %v3971
        %v4070 = vunpack.c.l.b16 %v3972
        %v4071 = vunpack.c.l.b16 %v3973
        %v4072 = vunpack.c.l.b16 %v3974
        %v4073 = vunpack.c.l.b16 %v3975
        %v4074 = vunpack.c.l.b16 %v3976
        %v4075 = vunpack.c.l.b16 %v3977
        %v4076 = vunpack.c.l.b16 %v3978
        %v4077 = vunpack.c.l.b16 %v3979
        %v4078 = vunpack.c.l.b16 %v3980
        %v4079 = vunpack.c.l.b16 %v3981
        %v4080 = vunpack.c.l.b16 %v3982
        %v4081 = vunpack.c.l.b16 %v3983
        %v4082 = vunpack.c.l.b16 %v3984
        %v4083 = vunpack.c.l.b16 %v3985
        %v4084 = vunpack.c.l.b16 %v3986
        %v4085 = vunpack.c.l.b16 %v3987
        %v4086 = vunpack.c.l.b16 %v3988
        %v4087 = vunpack.c.l.b16 %v3989
        %v4088 = vunpack.c.l.b16 %v3990
        %v4089 = vunpack.c.l.b16 %v3991
        %v4090 = vunpack.c.l.b16 %v3992
        %v4091 = vunpack.c.l.b16 %v3993
        %v4092 = vunpack.c.l.b16 %v3994
        %v4093 = vunpack.c.l.b16 %v3995
        %v4094 = vunpack.c.l.b16 %v3996
        %v4095 = vunpack.c.l.b16 %v3997
        %v4096 = vunpack.c.l.b16 %v3998
        %v4097 = vunpack.c.l.b16 %v3999
        %v4098 = vunpack.c.l.b16 %v4000
        %v4099 = vunpack.c.l.b16 %v4001
        %v4100 = vunpack.c.l.b16 %v4002
        %v4101 = vpack.c.b16 %v4054, %v4053
        %v4102 = vpack.c.b16 %v4056, %v4055
        %v4103 = vpack.c.b16 %v4058, %v4057
        %v4104 = vpack.c.b16 %v4060, %v4059
        %v4105 = vpack.c.b16 %v4062, %v4061
        %v4106 = vpack.c.b16 %v4064, %v4063
        %v4107 = vpack.c.b16 %v4066, %v4065
        %v4108 = vpack.c.b16 %v4068, %v4067
        %v4109 = vpack.c.b16 %v4070, %v4069
        %v4110 = vpack.c.b16 %v4072, %v4071
        %v4111 = vpack.c.b16 %v4074, %v4073
        %v4112 = vpack.c.b16 %v4076, %v4075
        %v4113 = vpack.c.b16 %v4078, %v4077
        %v4114 = vpack.c.b16 %v4080, %v4079
        %v4115 = vpack.c.b16 %v4082, %v4081
        %v4116 = vpack.c.b16 %v4084, %v4083
        %v4117 = vpack.c.b16 %v4086, %v4085
        %v4118 = vpack.c.b16 %v4088, %v4087
        %v4119 = vpack.c.b16 %v4090, %v4089
        %v4120 = vpack.c.b16 %v4092, %v4091
        %v4121 = vpack.c.b16 %v4094, %v4093
        %v4122 = vpack.c.b16 %v4096, %v4095
        %v4123 = vpack.c.b16 %v4098, %v4097
        %v4124 = vpack.c.b16 %v4100, %v4099
        %v4127 = vunpack.c.l.b16 %v4003
        %v4128 = vunpack.c.l.b16 %v4004
        %v4129 = vpack.c.b16 %v4128, %v4127
        %v4131 = vsel %vm593, %v4101, 0
        %v4134 = vsel %vm593, %v4102, 0
        %v4137 = vsel %vm593, %v4103, 0
        %v4140 = vsel %vm593, %v4104, 0
        %v4143 = vsel %vm593, %v4105, 0
        %v4146 = vsel %vm593, %v4106, 0
        %v4149 = vsel %vm593, %v4107, 0
        %v4152 = vsel %vm593, %v4108, 0
        %v4155 = vsel %vm593, %v4109, 0
        %v4158 = vsel %vm593, %v4110, 0
        %v4161 = vsel %vm593, %v4111, 0
        %v4164 = vsel %vm593, %v4112, 0
        %v4167 = vsel %vm593, %v4113, 0
        %v4170 = vsel %vm593, %v4114, 0
        %v4173 = vsel %vm593, %v4115, 0
        %v4176 = vsel %vm593, %v4116, 0
        %v4179 = vsel %vm593, %v4117, 0
        %v4182 = vsel %vm593, %v4118, 0
        %v4185 = vsel %vm593, %v4119, 0
        %v4188 = vsel %vm593, %v4120, 0
        %v4191 = vsel %vm593, %v4121, 0
        %v4194 = vsel %vm593, %v4122, 0
        %v4197 = vsel %vm593, %v4123, 0
        %v4200 = vsel %vm593, %v4124, 0
        %v4203 = vsel %vm666, %v4129, 0
        %4205 = vmatprep.subr.bf16.mxu0 0
        %4206 = vmatpush1.bf16.msra.mxu0 %v4203
        %4207 = vmatprep.subr.bf16.mxu0 0
        %4208 = vmatpush1.bf16.msra.mxu0 0
        %4209 = vmatprep.subr.bf16.mxu0 0
        %4210 = vmatpush1.bf16.msra.mxu0 0
        %4211 = vmatprep.subr.bf16.mxu0 0
        %4212 = vmatpush1.bf16.msra.mxu0 0
        %4213 = vmatprep.subr.bf16.mxu0 0
        %4214 = vmatpush1.bf16.msra.mxu0 0
        %4215 = vmatprep.subr.bf16.mxu0 0
        %4216 = vmatpush1.bf16.msra.mxu0 0
        %4217 = vmatprep.subr.bf16.mxu0 0
        %4218 = vmatpush1.bf16.msra.mxu0 0
        %4219 = vmatprep.subr.bf16.mxu0 0
        %4220 = vmatpush1.bf16.msra.mxu0 0
        %4221 = vmatprep.subr.bf16.mxu0 0
        %4222 = vmatpush1.bf16.msra.mxu0 0
        %4223 = vmatprep.subr.bf16.mxu0 0
        %4224 = vmatpush1.bf16.msra.mxu0 0
        %4225 = vmatprep.subr.bf16.mxu0 0
        %4226 = vmatpush1.bf16.msra.mxu0 0
        %4227 = vmatprep.subr.bf16.mxu0 0
        %4228 = vmatpush1.bf16.msra.mxu0 0
        %4229 = vmatprep.subr.bf16.mxu0 0
        %4230 = vmatpush1.bf16.msra.mxu0 0
        %4231 = vmatprep.subr.bf16.mxu0 0
        %4232 = vmatpush1.bf16.msra.mxu0 0
        %4233 = vmatprep.subr.bf16.mxu0 0
        %4234 = vmatpush1.bf16.msra.mxu0 0
        %4235 = vmatprep.subr.bf16.mxu0 0
        %4236 = vmatpush1.bf16.msra.mxu0 0
        %4237 = vmatprep.mubr.bf16.mxu0 0
        %4238 = vmatmul.mubr.bf16.gmra.mrb[0].mxu0 %v4131
        %v4239 = vpop.f32.mrb[0].mxu0
        %v4240 = vadd.f32 0.0, %v4239
        %v4241 = vpop.f32.mrb[0].mxu0
        %v4242 = vpop.f32.mrb[0].mxu0
        %v4243 = vadd.f32 0.0, %v4242
        %v4244 = vpop.f32.mrb[0].mxu0
        %4245 = vmatprep.mubr.bf16.mxu0 0
        %4246 = vmatmul.mubr.bf16.gmra.mrb[0].mxu0 %v4134
        %v4247 = vpop.f32.mrb[0].mxu0
        %v4248 = vpop.f32.mrb[0].mxu0
        %v4249 = vpop.f32.mrb[0].mxu0
        %v4250 = vadd.f32 0.0, %v4249
        %v4251 = vpop.f32.mrb[0].mxu0
        %4252 = vmatprep.mubr.bf16.mxu0 0
        %4253 = vmatmul.mubr.bf16.gmra.mrb[0].mxu0 %v4137
        %v4254 = vpop.f32.mrb[0].mxu0
        %v4255 = vadd.f32 0.0, %v4254
        %v4256 = vpop.f32.mrb[0].mxu0
        %v4257 = vpop.f32.mrb[0].mxu0
        %v4258 = vpop.f32.mrb[0].mxu0
        %4259 = vmatprep.mubr.bf16.mxu0 0
        %4260 = vmatmul.mubr.bf16.gmra.mrb[0].mxu0 %v4140
        %v4261 = vpop.f32.mrb[0].mxu0
        %v4262 = vadd.f32 0.0, %v4261
        %v4263 = vpop.f32.mrb[0].mxu0
        %v4264 = vpop.f32.mrb[0].mxu0
        %v4265 = vadd.f32 0.0, %v4264
        %v4266 = vpop.f32.mrb[0].mxu0
        %4267 = vmatprep.mubr.bf16.mxu0 0
        %4268 = vmatmul.mubr.bf16.gmra.mrb[0].mxu0 %v4143
        %v4269 = vpop.f32.mrb[0].mxu0
        %v4270 = vpop.f32.mrb[0].mxu0
        %v4271 = vpop.f32.mrb[0].mxu0
        %v4272 = vadd.f32 0.0, %v4271
        %v4273 = vpop.f32.mrb[0].mxu0
        %4274 = vmatprep.mubr.bf16.mxu0 0
        %4275 = vmatmul.mubr.bf16.gmra.mrb[0].mxu0 %v4146
        %v4276 = vpop.f32.mrb[0].mxu0
        %v4277 = vadd.f32 0.0, %v4276
        %v4278 = vpop.f32.mrb[0].mxu0
        %v4279 = vpop.f32.mrb[0].mxu0
        %v4280 = vpop.f32.mrb[0].mxu0
        %4281 = vmatprep.mubr.bf16.mxu0 0
        %4282 = vmatmul.mubr.bf16.gmra.mrb[0].mxu0 %v4149
        %v4283 = vpop.f32.mrb[0].mxu0
        %v4284 = vadd.f32 0.0, %v4283
        %v4285 = vpop.f32.mrb[0].mxu0
        %v4286 = vpop.f32.mrb[0].mxu0
        %v4287 = vadd.f32 0.0, %v4286
        %v4288 = vpop.f32.mrb[0].mxu0
        %4289 = vmatprep.mubr.bf16.mxu0 0
        %4290 = vmatmul.mubr.bf16.gmra.mrb[0].mxu0 %v4152
        %v4291 = vpop.f32.mrb[0].mxu0
        %v4292 = vpop.f32.mrb[0].mxu0
        %v4293 = vpop.f32.mrb[0].mxu0
        %v4294 = vadd.f32 0.0, %v4293
        %v4295 = vpop.f32.mrb[0].mxu0
        %4296 = vmatprep.mubr.bf16.mxu0 0
        %4297 = vmatmul.mubr.bf16.gmra.mrb[0].mxu0 %v4155
        %v4298 = vpop.f32.mrb[0].mxu0
        %v4299 = vadd.f32 0.0, %v4298
        %v4300 = vpop.f32.mrb[0].mxu0
        %v4301 = vpop.f32.mrb[0].mxu0
        %v4302 = vpop.f32.mrb[0].mxu0
        %4303 = vmatprep.mubr.bf16.mxu0 0
        %4304 = vmatmul.mubr.bf16.gmra.mrb[0].mxu0 %v4158
        %v4305 = vpop.f32.mrb[0].mxu0
        %v4306 = vadd.f32 0.0, %v4305
        %v4307 = vpop.f32.mrb[0].mxu0
        %v4308 = vpop.f32.mrb[0].mxu0
        %v4309 = vadd.f32 0.0, %v4308
        %v4310 = vpop.f32.mrb[0].mxu0
        %4311 = vmatprep.mubr.bf16.mxu0 0
        %4312 = vmatmul.mubr.bf16.gmra.mrb[0].mxu0 %v4161
        %v4313 = vpop.f32.mrb[0].mxu0
        %v4314 = vpop.f32.mrb[0].mxu0
        %v4315 = vpop.f32.mrb[0].mxu0
        %v4316 = vadd.f32 0.0, %v4315
        %v4317 = vpop.f32.mrb[0].mxu0
        %4318 = vmatprep.mubr.bf16.mxu0 0
        %4319 = vmatmul.mubr.bf16.gmra.mrb[0].mxu0 %v4164
        %v4320 = vpop.f32.mrb[0].mxu0
        %v4321 = vadd.f32 0.0, %v4320
        %v4322 = vpop.f32.mrb[0].mxu0
        %v4323 = vpop.f32.mrb[0].mxu0
        %v4324 = vpop.f32.mrb[0].mxu0
        %4325 = vmatprep.mubr.bf16.mxu0 0
        %4326 = vmatmul.mubr.bf16.gmra.mrb[0].mxu0 %v4167
        %v4327 = vpop.f32.mrb[0].mxu0
        %v4328 = vadd.f32 0.0, %v4327
        %v4329 = vpop.f32.mrb[0].mxu0
        %v4330 = vpop.f32.mrb[0].mxu0
        %v4331 = vadd.f32 0.0, %v4330
        %v4332 = vpop.f32.mrb[0].mxu0
        %4333 = vmatprep.mubr.bf16.mxu0 0
        %4334 = vmatmul.mubr.bf16.gmra.mrb[0].mxu0 %v4170
        %v4335 = vpop.f32.mrb[0].mxu0
        %v4336 = vpop.f32.mrb[0].mxu0
        %v4337 = vpop.f32.mrb[0].mxu0
        %v4338 = vadd.f32 0.0, %v4337
        %v4339 = vpop.f32.mrb[0].mxu0
        %4340 = vmatprep.mubr.bf16.mxu0 0
        %4341 = vmatmul.mubr.bf16.gmra.mrb[0].mxu0 %v4173
        %v4342 = vpop.f32.mrb[0].mxu0
        %v4343 = vadd.f32 0.0, %v4342
        %v4344 = vpop.f32.mrb[0].mxu0
        %v4345 = vpop.f32.mrb[0].mxu0
        %v4346 = vpop.f32.mrb[0].mxu0
        %4347 = vmatprep.mubr.bf16.mxu0 0
        %4348 = vmatmul.mubr.bf16.gmra.mrb[0].mxu0 %v4176
        %v4349 = vpop.f32.mrb[0].mxu0
        %v4350 = vadd.f32 0.0, %v4349
        %v4351 = vpop.f32.mrb[0].mxu0
        %v4352 = vpop.f32.mrb[0].mxu0
        %v4353 = vadd.f32 0.0, %v4352
        %v4354 = vpop.f32.mrb[0].mxu0
        %4355 = vmatprep.mubr.bf16.mxu0 0
        %4356 = vmatmul.mubr.bf16.gmra.mrb[0].mxu0 %v4179
        %v4357 = vpop.f32.mrb[0].mxu0
        %v4358 = vpop.f32.mrb[0].mxu0
        %v4359 = vpop.f32.mrb[0].mxu0
        %v4360 = vadd.f32 0.0, %v4359
        %v4361 = vpop.f32.mrb[0].mxu0
        %4362 = vmatprep.mubr.bf16.mxu0 0
        %4363 = vmatmul.mubr.bf16.gmra.mrb[0].mxu0 %v4182
        %v4364 = vpop.f32.mrb[0].mxu0
        %v4365 = vadd.f32 0.0, %v4364
        %v4366 = vpop.f32.mrb[0].mxu0
        %v4367 = vpop.f32.mrb[0].mxu0
        %v4368 = vpop.f32.mrb[0].mxu0
        %4369 = vmatprep.mubr.bf16.mxu0 0
        %4370 = vmatmul.mubr.bf16.gmra.mrb[0].mxu0 %v4185
        %v4371 = vpop.f32.mrb[0].mxu0
        %v4372 = vadd.f32 0.0, %v4371
        %v4373 = vpop.f32.mrb[0].mxu0
        %v4374 = vpop.f32.mrb[0].mxu0
        %v4375 = vadd.f32 0.0, %v4374
        %v4376 = vpop.f32.mrb[0].mxu0
        %4377 = vmatprep.mubr.bf16.mxu0 0
        %4378 = vmatmul.mubr.bf16.gmra.mrb[0].mxu0 %v4188
        %v4379 = vpop.f32.mrb[0].mxu0
        %v4380 = vpop.f32.mrb[0].mxu0
        %v4381 = vpop.f32.mrb[0].mxu0
        %v4382 = vadd.f32 0.0, %v4381
        %v4383 = vpop.f32.mrb[0].mxu0
        %4384 = vmatprep.mubr.bf16.mxu0 0
        %4385 = vmatmul.mubr.bf16.gmra.mrb[0].mxu0 %v4191
        %v4386 = vpop.f32.mrb[0].mxu0
        %v4387 = vadd.f32 0.0, %v4386
        %v4388 = vpop.f32.mrb[0].mxu0
        %v4389 = vpop.f32.mrb[0].mxu0
        %v4390 = vpop.f32.mrb[0].mxu0
        %4391 = vmatprep.mubr.bf16.mxu0 0
        %4392 = vmatmul.mubr.bf16.gmra.mrb[0].mxu0 %v4194
        %v4393 = vpop.f32.mrb[0].mxu0
        %v4394 = vadd.f32 0.0, %v4393
        %v4395 = vpop.f32.mrb[0].mxu0
        %v4396 = vpop.f32.mrb[0].mxu0
        %v4397 = vadd.f32 0.0, %v4396
        %v4398 = vpop.f32.mrb[0].mxu0
        %4399 = vmatprep.mubr.bf16.mxu0 0
        %4400 = vmatmul.mubr.bf16.gmra.mrb[0].mxu0 %v4197
        %v4401 = vpop.f32.mrb[0].mxu0
        %v4402 = vpop.f32.mrb[0].mxu0
        %v4403 = vpop.f32.mrb[0].mxu0
        %v4404 = vadd.f32 0.0, %v4403
        %v4405 = vpop.f32.mrb[0].mxu0
        %4406 = vmatprep.mubr.bf16.mxu0 0
        %4407 = vmatmul.mubr.bf16.gmra.mrb[0].mxu0 %v4200
        %v4408 = vpop.f32.mrb[0].mxu0
        %v4409 = vadd.f32 0.0, %v4408
        %v4410 = vpop.f32.mrb[0].mxu0
        %v4411 = vpop.f32.mrb[0].mxu0
        %v4412 = vpop.f32.mrb[0].mxu0
        %4413 = vdwg.mxu0
        %v4414 = vadd.f32 %v3923, %v4240
        %v4415 = vadd.f32 %v3924, %v4243
        %v4416 = vadd.f32 %v3925, %v4250
        %v4417 = vadd.f32 %v3926, %v4255
        %v4418 = vadd.f32 %v3927, %v4262
        %v4419 = vadd.f32 %v3928, %v4265
        %v4420 = vadd.f32 %v3929, %v4272
        %v4421 = vadd.f32 %v3930, %v4277
        %v4422 = vadd.f32 %v3931, %v4284
        %v4423 = vadd.f32 %v3932, %v4287
        %v4424 = vadd.f32 %v3933, %v4294
        %v4425 = vadd.f32 %v3934, %v4299
        %v4426 = vadd.f32 %v3935, %v4306
        %v4427 = vadd.f32 %v3936, %v4309
        %v4428 = vadd.f32 %v3937, %v4316
        %v4429 = vadd.f32 %v3938, %v4321
        %v4430 = vadd.f32 %v3939, %v4328
        %v4431 = vadd.f32 %v3940, %v4331
        %v4432 = vadd.f32 %v3941, %v4338
        %v4433 = vadd.f32 %v3942, %v4343
        %v4434 = vadd.f32 %v3943, %v4350
        %v4435 = vadd.f32 %v3944, %v4353
        %v4436 = vadd.f32 %v3945, %v4360
        %v4437 = vadd.f32 %v3946, %v4365
        %v4438 = vadd.f32 %v3947, %v4372
        %v4439 = vadd.f32 %v3948, %v4375
        %v4440 = vadd.f32 %v3949, %v4382
        %v4441 = vadd.f32 %v3950, %v4387
        %v4442 = vadd.f32 %v3951, %v4394
        %v4443 = vadd.f32 %v3952, %v4397
        %v4444 = vadd.f32 %v3953, %v4404
        %v4445 = vadd.f32 %v3954, %v4409
        %v4446 = vld [vmem:[%s208 + $0x18] sm:$0xf]
        %v4447 = vld [vmem:[%s208 + $0x1c] sm:$0xf]
        %v4448 = vld [vmem:[%s208 + $0x20] sm:$0xf]
        %v4449 = vld [vmem:[%s208 + $0x24] sm:$0xf]
        %v4450 = vld [vmem:[%s208 + $0x28] sm:$0xf]
        %v4451 = vld [vmem:[%s208 + $0x2c] sm:$0xf]
        %v4452 = vld [vmem:[%s208 + $0x30] sm:$0xf]
        %v4453 = vld [vmem:[%s208 + $0x34] sm:$0xf]
        %v4454 = vld [vmem:[%s208 + $0x38] sm:$0xf]
        %v4455 = vld [vmem:[%s208 + $0x3c] sm:$0xf]
        %v4456 = vld [vmem:[%s208 + $0x40] sm:$0xf]
        %v4457 = vld [vmem:[%s208 + $0x44] sm:$0xf]
        %v4458 = vld [vmem:[%s208 + $0x48] sm:$0xf]
        %v4459 = vld [vmem:[%s208 + $0x4c] sm:$0xf]
        %v4460 = vld [vmem:[%s208 + $0x50] sm:$0xf]
        %v4461 = vld [vmem:[%s208 + $0x54] sm:$0xf]
        %v4462 = vld [vmem:[%s208 + $0x58] sm:$0xf]
        %v4463 = vld [vmem:[%s208 + $0x5c] sm:$0xf]
        %v4464 = vld [vmem:[%s208 + $0x60] sm:$0xf]
        %v4465 = vld [vmem:[%s208 + $0x64] sm:$0xf]
        %v4466 = vld [vmem:[%s208 + $0x68] sm:$0xf]
        %v4467 = vld [vmem:[%s208 + $0x6c] sm:$0xf]
        %v4468 = vld [vmem:[%s208 + $0x70] sm:$0xf]
        %v4469 = vld [vmem:[%s208 + $0x74] sm:$0xf]
        %v4470 = vld [vmem:[%s208 + $0x78] sm:$0xf]
        %v4471 = vld [vmem:[%s208 + $0x7c] sm:$0xf]
        %v4472 = vld [vmem:[%s208 + $0x80] sm:$0xf]
        %v4473 = vld [vmem:[%s208 + $0x84] sm:$0xf]
        %v4474 = vld [vmem:[%s208 + $0x88] sm:$0xf]
        %v4475 = vld [vmem:[%s208 + $0x8c] sm:$0xf]
        %v4476 = vld [vmem:[%s208 + $0x90] sm:$0xf]
        %v4477 = vld [vmem:[%s208 + $0x94] sm:$0xf]
        %v4478 = vld [vmem:[%s208 + $0x98] sm:$0xf]
        %v4479 = vld [vmem:[%s208 + $0x9c] sm:$0xf]
        %v4480 = vld [vmem:[%s208 + $0xa0] sm:$0xf]
        %v4481 = vld [vmem:[%s208 + $0xa4] sm:$0xf]
        %v4482 = vld [vmem:[%s208 + $0xa8] sm:$0xf]
        %v4483 = vld [vmem:[%s208 + $0xac] sm:$0xf]
        %v4484 = vld [vmem:[%s208 + $0xb0] sm:$0xf]
        %v4485 = vld [vmem:[%s208 + $0xb4] sm:$0xf]
        %v4486 = vld [vmem:[%s208 + $0xb8] sm:$0xf]
        %v4487 = vld [vmem:[%s208 + $0xbc] sm:$0xf]
        %v4488 = vld [vmem:[%s208 + $0xc0] sm:$0xf]
        %v4489 = vld [vmem:[%s208 + $0xc4] sm:$0xf]
        %v4490 = vld [vmem:[%s208 + $0xc8] sm:$0xf]
        %v4491 = vld [vmem:[%s208 + $0xcc] sm:$0xf]
        %v4492 = vld [vmem:[%s208 + $0xd0] sm:$0xf]
        %v4493 = vld [vmem:[%s208 + $0xd4] sm:$0xf]
        %v4494 = vld [vmem:[%s208 + $0xd8] sm:$0x1]
        %v4495 = vld [vmem:[%s212 + $0x34] sm:$0xc]
        %v4496 = vld [vmem:[%s212 + $0x38] sm:$0xf]
        %v4546 = vunpack.c.l.b16 %v4446
        %v4547 = vunpack.c.l.b16 %v4447
        %v4548 = vunpack.c.l.b16 %v4448
        %v4549 = vunpack.c.l.b16 %v4449
        %v4550 = vunpack.c.l.b16 %v4450
        %v4551 = vunpack.c.l.b16 %v4451
        %v4552 = vunpack.c.l.b16 %v4452
        %v4553 = vunpack.c.l.b16 %v4453
        %v4554 = vunpack.c.l.b16 %v4454
        %v4555 = vunpack.c.l.b16 %v4455
        %v4556 = vunpack.c.l.b16 %v4456
        %v4557 = vunpack.c.l.b16 %v4457
        %v4558 = vunpack.c.l.b16 %v4458
        %v4559 = vunpack.c.l.b16 %v4459
        %v4560 = vunpack.c.l.b16 %v4460
        %v4561 = vunpack.c.l.b16 %v4461
        %v4562 = vunpack.c.l.b16 %v4462
        %v4563 = vunpack.c.l.b16 %v4463
        %v4564 = vunpack.c.l.b16 %v4464
        %v4565 = vunpack.c.l.b16 %v4465
        %v4566 = vunpack.c.l.b16 %v4466
        %v4567 = vunpack.c.l.b16 %v4467
        %v4568 = vunpack.c.l.b16 %v4468
        %v4569 = vunpack.c.l.b16 %v4469
        %v4570 = vunpack.c.l.b16 %v4470
        %v4571 = vunpack.c.l.b16 %v4471
        %v4572 = vunpack.c.l.b16 %v4472
        %v4573 = vunpack.c.l.b16 %v4473
        %v4574 = vunpack.c.l.b16 %v4474
        %v4575 = vunpack.c.l.b16 %v4475
        %v4576 = vunpack.c.l.b16 %v4476
        %v4577 = vunpack.c.l.b16 %v4477
        %v4578 = vunpack.c.l.b16 %v4478
        %v4579 = vunpack.c.l.b16 %v4479
        %v4580 = vunpack.c.l.b16 %v4480
        %v4581 = vunpack.c.l.b16 %v4481
        %v4582 = vunpack.c.l.b16 %v4482
        %v4583 = vunpack.c.l.b16 %v4483
        %v4584 = vunpack.c.l.b16 %v4484
        %v4585 = vunpack.c.l.b16 %v4485
        %v4586 = vunpack.c.l.b16 %v4486
        %v4587 = vunpack.c.l.b16 %v4487
        %v4588 = vunpack.c.l.b16 %v4488
        %v4589 = vunpack.c.l.b16 %v4489
        %v4590 = vunpack.c.l.b16 %v4490
        %v4591 = vunpack.c.l.b16 %v4491
        %v4592 = vunpack.c.l.b16 %v4492
        %v4593 = vunpack.c.l.b16 %v4493
        %v4594 = vunpack.c.l.b16 %v4494
        %v4595 = vpack.c.b16 %v4547, %v4546
        %v4596 = vpack.c.b16 %v4549, %v4548
        %v4597 = vpack.c.b16 %v4551, %v4550
        %v4598 = vpack.c.b16 %v4553, %v4552
        %v4599 = vpack.c.b16 %v4555, %v4554
        %v4600 = vpack.c.b16 %v4557, %v4556
        %v4601 = vpack.c.b16 %v4559, %v4558
        %v4602 = vpack.c.b16 %v4561, %v4560
        %v4603 = vpack.c.b16 %v4563, %v4562
        %v4604 = vpack.c.b16 %v4565, %v4564
        %v4605 = vpack.c.b16 %v4567, %v4566
        %v4606 = vpack.c.b16 %v4569, %v4568
        %v4607 = vpack.c.b16 %v4571, %v4570
        %v4608 = vpack.c.b16 %v4573, %v4572
        %v4609 = vpack.c.b16 %v4575, %v4574
        %v4610 = vpack.c.b16 %v4577, %v4576
        %v4611 = vpack.c.b16 %v4579, %v4578
        %v4612 = vpack.c.b16 %v4581, %v4580
        %v4613 = vpack.c.b16 %v4583, %v4582
        %v4614 = vpack.c.b16 %v4585, %v4584
        %v4615 = vpack.c.b16 %v4587, %v4586
        %v4616 = vpack.c.b16 %v4589, %v4588
        %v4617 = vpack.c.b16 %v4591, %v4590
        %v4618 = vpack.c.b16 %v4593, %v4592
        %v4619 = vpack.c.b16 %v4594, %v4594
        %v4621 = vshrl.u32 %v4595, 16
        %v4623 = vshll.u32 %v4595, 16
        %v4625 = vrot.slane %v4623, 1
        %v4626 = vor.u32 %v4621, %v4625
        %v4628 = vshll.u32 %v4596, 16
        %v4630 = vrot.slane %v4628, 1
        %v4631 = vsel %vm390, %v4626, %v4630
        %v4632 = vshrl.u32 %v4596, 16
        %v4634 = vor.u32 %v4632, %v4630
        %v4636 = vshll.u32 %v4597, 16
        %v4638 = vrot.slane %v4636, 1
        %v4639 = vsel %vm390, %v4634, %v4638
        %v4640 = vshrl.u32 %v4597, 16
        %v4642 = vor.u32 %v4640, %v4638
        %v4644 = vshll.u32 %v4598, 16
        %v4646 = vrot.slane %v4644, 1
        %v4647 = vsel %vm390, %v4642, %v4646
        %v4648 = vshrl.u32 %v4598, 16
        %v4650 = vor.u32 %v4648, %v4646
        %v4652 = vshll.u32 %v4599, 16
        %v4654 = vrot.slane %v4652, 1
        %v4655 = vsel %vm390, %v4650, %v4654
        %v4656 = vshrl.u32 %v4599, 16
        %v4658 = vor.u32 %v4656, %v4654
        %v4660 = vshll.u32 %v4600, 16
        %v4662 = vrot.slane %v4660, 1
        %v4663 = vsel %vm390, %v4658, %v4662
        %v4664 = vshrl.u32 %v4600, 16
        %v4666 = vor.u32 %v4664, %v4662
        %v4668 = vshll.u32 %v4601, 16
        %v4670 = vrot.slane %v4668, 1
        %v4671 = vsel %vm390, %v4666, %v4670
        %v4672 = vshrl.u32 %v4601, 16
        %v4674 = vor.u32 %v4672, %v4670
        %v4676 = vshll.u32 %v4602, 16
        %v4678 = vrot.slane %v4676, 1
        %v4679 = vsel %vm390, %v4674, %v4678
        %v4680 = vshrl.u32 %v4602, 16
        %v4682 = vor.u32 %v4680, %v4678
        %v4684 = vshll.u32 %v4603, 16
        %v4686 = vrot.slane %v4684, 1
        %v4687 = vsel %vm390, %v4682, %v4686
        %v4688 = vshrl.u32 %v4603, 16
        %v4690 = vor.u32 %v4688, %v4686
        %v4692 = vshll.u32 %v4604, 16
        %v4694 = vrot.slane %v4692, 1
        %v4695 = vsel %vm390, %v4690, %v4694
        %v4696 = vshrl.u32 %v4604, 16
        %v4698 = vor.u32 %v4696, %v4694
        %v4700 = vshll.u32 %v4605, 16
        %v4702 = vrot.slane %v4700, 1
        %v4703 = vsel %vm390, %v4698, %v4702
        %v4704 = vshrl.u32 %v4605, 16
        %v4706 = vor.u32 %v4704, %v4702
        %v4708 = vshll.u32 %v4606, 16
        %v4710 = vrot.slane %v4708, 1
        %v4711 = vsel %vm390, %v4706, %v4710
        %v4712 = vshrl.u32 %v4606, 16
        %v4714 = vor.u32 %v4712, %v4710
        %v4716 = vshll.u32 %v4607, 16
        %v4718 = vrot.slane %v4716, 1
        %v4719 = vsel %vm390, %v4714, %v4718
        %v4720 = vshrl.u32 %v4607, 16
        %v4722 = vor.u32 %v4720, %v4718
        %v4724 = vshll.u32 %v4608, 16
        %v4726 = vrot.slane %v4724, 1
        %v4727 = vsel %vm390, %v4722, %v4726
        %v4728 = vshrl.u32 %v4608, 16
        %v4730 = vor.u32 %v4728, %v4726
        %v4732 = vshll.u32 %v4609, 16
        %v4734 = vrot.slane %v4732, 1
        %v4735 = vsel %vm390, %v4730, %v4734
        %v4736 = vshrl.u32 %v4609, 16
        %v4738 = vor.u32 %v4736, %v4734
        %v4740 = vshll.u32 %v4610, 16
        %v4742 = vrot.slane %v4740, 1
        %v4743 = vsel %vm390, %v4738, %v4742
        %v4744 = vshrl.u32 %v4610, 16
        %v4746 = vor.u32 %v4744, %v4742
        %v4748 = vshll.u32 %v4611, 16
        %v4750 = vrot.slane %v4748, 1
        %v4751 = vsel %vm390, %v4746, %v4750
        %v4752 = vshrl.u32 %v4611, 16
        %v4754 = vor.u32 %v4752, %v4750
        %v4756 = vshll.u32 %v4612, 16
        %v4758 = vrot.slane %v4756, 1
        %v4759 = vsel %vm390, %v4754, %v4758
        %v4760 = vshrl.u32 %v4612, 16
        %v4762 = vor.u32 %v4760, %v4758
        %v4764 = vshll.u32 %v4613, 16
        %v4766 = vrot.slane %v4764, 1
        %v4767 = vsel %vm390, %v4762, %v4766
        %v4768 = vshrl.u32 %v4613, 16
        %v4770 = vor.u32 %v4768, %v4766
        %v4772 = vshll.u32 %v4614, 16
        %v4774 = vrot.slane %v4772, 1
        %v4775 = vsel %vm390, %v4770, %v4774
        %v4776 = vshrl.u32 %v4614, 16
        %v4778 = vor.u32 %v4776, %v4774
        %v4780 = vshll.u32 %v4615, 16
        %v4782 = vrot.slane %v4780, 1
        %v4783 = vsel %vm390, %v4778, %v4782
        %v4784 = vshrl.u32 %v4615, 16
        %v4786 = vor.u32 %v4784, %v4782
        %v4788 = vshll.u32 %v4616, 16
        %v4790 = vrot.slane %v4788, 1
        %v4791 = vsel %vm390, %v4786, %v4790
        %v4792 = vshrl.u32 %v4616, 16
        %v4794 = vor.u32 %v4792, %v4790
        %v4796 = vshll.u32 %v4617, 16
        %v4798 = vrot.slane %v4796, 1
        %v4799 = vsel %vm390, %v4794, %v4798
        %v4800 = vshrl.u32 %v4617, 16
        %v4802 = vor.u32 %v4800, %v4798
        %v4804 = vshll.u32 %v4618, 16
        %v4806 = vrot.slane %v4804, 1
        %v4807 = vsel %vm390, %v4802, %v4806
        %v4808 = vshrl.u32 %v4618, 16
        %v4810 = vor.u32 %v4808, %v4806
        %v4812 = vshll.u32 %v4619, 16
        %v4814 = vrot.slane %v4812, 1
        %v4815 = vsel %vm390, %v4810, %v4814
        %v4818 = vunpack.c.l.b16 %v4495
        %v4819 = vunpack.c.l.b16 %v4496
        %v4820 = vpack.c.b16 %v4819, %v4818
        %v4821 = vrot.slane %v4820, 2
        %v4823 = vsel %vm593, %v4631, 0
        %v4826 = vsel %vm593, %v4639, 0
        %v4829 = vsel %vm593, %v4647, 0
        %v4832 = vsel %vm593, %v4655, 0
        %v4835 = vsel %vm593, %v4663, 0
        %v4838 = vsel %vm593, %v4671, 0
        %v4841 = vsel %vm593, %v4679, 0
        %v4844 = vsel %vm593, %v4687, 0
        %v4847 = vsel %vm593, %v4695, 0
        %v4850 = vsel %vm593, %v4703, 0
        %v4853 = vsel %vm593, %v4711, 0
        %v4856 = vsel %vm593, %v4719, 0
        %v4859 = vsel %vm593, %v4727, 0
        %v4862 = vsel %vm593, %v4735, 0
        %v4865 = vsel %vm593, %v4743, 0
        %v4868 = vsel %vm593, %v4751, 0
        %v4871 = vsel %vm593, %v4759, 0
        %v4874 = vsel %vm593, %v4767, 0
        %v4877 = vsel %vm593, %v4775, 0
        %v4880 = vsel %vm593, %v4783, 0
        %v4883 = vsel %vm593, %v4791, 0
        %v4886 = vsel %vm593, %v4799, 0
        %v4889 = vsel %vm593, %v4807, 0
        %v4892 = vsel %vm593, %v4815, 0
        %v4895 = vsel %vm666, %v4821, 0
        %4897 = vmatprep.subr.bf16.mxu0 0
        %4898 = vmatpush1.bf16.msra.mxu0 %v4895
        %4899 = vmatprep.subr.bf16.mxu0 0
        %4900 = vmatpush1.bf16.msra.mxu0 0
        %4901 = vmatprep.subr.bf16.mxu0 0
        %4902 = vmatpush1.bf16.msra.mxu0 0
        %4903 = vmatprep.subr.bf16.mxu0 0
        %4904 = vmatpush1.bf16.msra.mxu0 0
        %4905 = vmatprep.subr.bf16.mxu0 0
        %4906 = vmatpush1.bf16.msra.mxu0 0
        %4907 = vmatprep.subr.bf16.mxu0 0
        %4908 = vmatpush1.bf16.msra.mxu0 0
        %4909 = vmatprep.subr.bf16.mxu0 0
        %4910 = vmatpush1.bf16.msra.mxu0 0
        %4911 = vmatprep.subr.bf16.mxu0 0
        %4912 = vmatpush1.bf16.msra.mxu0 0
        %4913 = vmatprep.subr.bf16.mxu0 0
        %4914 = vmatpush1.bf16.msra.mxu0 0
        %4915 = vmatprep.subr.bf16.mxu0 0
        %4916 = vmatpush1.bf16.msra.mxu0 0
        %4917 = vmatprep.subr.bf16.mxu0 0
        %4918 = vmatpush1.bf16.msra.mxu0 0
        %4919 = vmatprep.subr.bf16.mxu0 0
        %4920 = vmatpush1.bf16.msra.mxu0 0
        %4921 = vmatprep.subr.bf16.mxu0 0
        %4922 = vmatpush1.bf16.msra.mxu0 0
        %4923 = vmatprep.subr.bf16.mxu0 0
        %4924 = vmatpush1.bf16.msra.mxu0 0
        %4925 = vmatprep.subr.bf16.mxu0 0
        %4926 = vmatpush1.bf16.msra.mxu0 0
        %4927 = vmatprep.subr.bf16.mxu0 0
        %4928 = vmatpush1.bf16.msra.mxu0 0
        %4929 = vmatprep.mubr.bf16.mxu0 0
        %4930 = vmatmul.mubr.bf16.gmra.mrb[0].mxu0 %v4823
        %v4931 = vpop.f32.mrb[0].mxu0
        %v4932 = vadd.f32 0.0, %v4931
        %v4933 = vpop.f32.mrb[0].mxu0
        %v4934 = vpop.f32.mrb[0].mxu0
        %v4935 = vadd.f32 0.0, %v4934
        %v4936 = vpop.f32.mrb[0].mxu0
        %4937 = vmatprep.mubr.bf16.mxu0 0
        %4938 = vmatmul.mubr.bf16.gmra.mrb[0].mxu0 %v4826
        %v4939 = vpop.f32.mrb[0].mxu0
        %v4940 = vpop.f32.mrb[0].mxu0
        %v4941 = vpop.f32.mrb[0].mxu0
        %v4942 = vadd.f32 0.0, %v4941
        %v4943 = vpop.f32.mrb[0].mxu0
        %4944 = vmatprep.mubr.bf16.mxu0 0
        %4945 = vmatmul.mubr.bf16.gmra.mrb[0].mxu0 %v4829
        %v4946 = vpop.f32.mrb[0].mxu0
        %v4947 = vadd.f32 0.0, %v4946
        %v4948 = vpop.f32.mrb[0].mxu0
        %v4949 = vpop.f32.mrb[0].mxu0
        %v4950 = vpop.f32.mrb[0].mxu0
        %4951 = vmatprep.mubr.bf16.mxu0 0
        %4952 = vmatmul.mubr.bf16.gmra.mrb[0].mxu0 %v4832
        %v4953 = vpop.f32.mrb[0].mxu0
        %v4954 = vadd.f32 0.0, %v4953
        %v4955 = vpop.f32.mrb[0].mxu0
        %v4956 = vpop.f32.mrb[0].mxu0
        %v4957 = vadd.f32 0.0, %v4956
        %v4958 = vpop.f32.mrb[0].mxu0
        %4959 = vmatprep.mubr.bf16.mxu0 0
        %4960 = vmatmul.mubr.bf16.gmra.mrb[0].mxu0 %v4835
        %v4961 = vpop.f32.mrb[0].mxu0
        %v4962 = vpop.f32.mrb[0].mxu0
        %v4963 = vpop.f32.mrb[0].mxu0
        %v4964 = vadd.f32 0.0, %v4963
        %v4965 = vpop.f32.mrb[0].mxu0
        %4966 = vmatprep.mubr.bf16.mxu0 0
        %4967 = vmatmul.mubr.bf16.gmra.mrb[0].mxu0 %v4838
        %v4968 = vpop.f32.mrb[0].mxu0
        %v4969 = vadd.f32 0.0, %v4968
        %v4970 = vpop.f32.mrb[0].mxu0
        %v4971 = vpop.f32.mrb[0].mxu0
        %v4972 = vpop.f32.mrb[0].mxu0
        %4973 = vmatprep.mubr.bf16.mxu0 0
        %4974 = vmatmul.mubr.bf16.gmra.mrb[0].mxu0 %v4841
        %v4975 = vpop.f32.mrb[0].mxu0
        %v4976 = vadd.f32 0.0, %v4975
        %v4977 = vpop.f32.mrb[0].mxu0
        %v4978 = vpop.f32.mrb[0].mxu0
        %v4979 = vadd.f32 0.0, %v4978
        %v4980 = vpop.f32.mrb[0].mxu0
        %4981 = vmatprep.mubr.bf16.mxu0 0
        %4982 = vmatmul.mubr.bf16.gmra.mrb[0].mxu0 %v4844
        %v4983 = vpop.f32.mrb[0].mxu0
        %v4984 = vpop.f32.mrb[0].mxu0
        %v4985 = vpop.f32.mrb[0].mxu0
        %v4986 = vadd.f32 0.0, %v4985
        %v4987 = vpop.f32.mrb[0].mxu0
        %4988 = vmatprep.mubr.bf16.mxu0 0
        %4989 = vmatmul.mubr.bf16.gmra.mrb[0].mxu0 %v4847
        %v4990 = vpop.f32.mrb[0].mxu0
        %v4991 = vadd.f32 0.0, %v4990
        %v4992 = vpop.f32.mrb[0].mxu0
        %v4993 = vpop.f32.mrb[0].mxu0
        %v4994 = vpop.f32.mrb[0].mxu0
        %4995 = vmatprep.mubr.bf16.mxu0 0
        %4996 = vmatmul.mubr.bf16.gmra.mrb[0].mxu0 %v4850
        %v4997 = vpop.f32.mrb[0].mxu0
        %v4998 = vadd.f32 0.0, %v4997
        %v4999 = vpop.f32.mrb[0].mxu0
        %v5000 = vpop.f32.mrb[0].mxu0
        %v5001 = vadd.f32 0.0, %v5000
        %v5002 = vpop.f32.mrb[0].mxu0
        %5003 = vmatprep.mubr.bf16.mxu0 0
        %5004 = vmatmul.mubr.bf16.gmra.mrb[0].mxu0 %v4853
        %v5005 = vpop.f32.mrb[0].mxu0
        %v5006 = vpop.f32.mrb[0].mxu0
        %v5007 = vpop.f32.mrb[0].mxu0
        %v5008 = vadd.f32 0.0, %v5007
        %v5009 = vpop.f32.mrb[0].mxu0
        %5010 = vmatprep.mubr.bf16.mxu0 0
        %5011 = vmatmul.mubr.bf16.gmra.mrb[0].mxu0 %v4856
        %v5012 = vpop.f32.mrb[0].mxu0
        %v5013 = vadd.f32 0.0, %v5012
        %v5014 = vpop.f32.mrb[0].mxu0
        %v5015 = vpop.f32.mrb[0].mxu0
        %v5016 = vpop.f32.mrb[0].mxu0
        %5017 = vmatprep.mubr.bf16.mxu0 0
        %5018 = vmatmul.mubr.bf16.gmra.mrb[0].mxu0 %v4859
        %v5019 = vpop.f32.mrb[0].mxu0
        %v5020 = vadd.f32 0.0, %v5019
        %v5021 = vpop.f32.mrb[0].mxu0
        %v5022 = vpop.f32.mrb[0].mxu0
        %v5023 = vadd.f32 0.0, %v5022
        %v5024 = vpop.f32.mrb[0].mxu0
        %5025 = vmatprep.mubr.bf16.mxu0 0
        %5026 = vmatmul.mubr.bf16.gmra.mrb[0].mxu0 %v4862
        %v5027 = vpop.f32.mrb[0].mxu0
        %v5028 = vpop.f32.mrb[0].mxu0
        %v5029 = vpop.f32.mrb[0].mxu0
        %v5030 = vadd.f32 0.0, %v5029
        %v5031 = vpop.f32.mrb[0].mxu0
        %5032 = vmatprep.mubr.bf16.mxu0 0
        %5033 = vmatmul.mubr.bf16.gmra.mrb[0].mxu0 %v4865
        %v5034 = vpop.f32.mrb[0].mxu0
        %v5035 = vadd.f32 0.0, %v5034
        %v5036 = vpop.f32.mrb[0].mxu0
        %v5037 = vpop.f32.mrb[0].mxu0
        %v5038 = vpop.f32.mrb[0].mxu0
        %5039 = vmatprep.mubr.bf16.mxu0 0
        %5040 = vmatmul.mubr.bf16.gmra.mrb[0].mxu0 %v4868
        %v5041 = vpop.f32.mrb[0].mxu0
        %v5042 = vadd.f32 0.0, %v5041
        %v5043 = vpop.f32.mrb[0].mxu0
        %v5044 = vpop.f32.mrb[0].mxu0
        %v5045 = vadd.f32 0.0, %v5044
        %v5046 = vpop.f32.mrb[0].mxu0
        %5047 = vmatprep.mubr.bf16.mxu0 0
        %5048 = vmatmul.mubr.bf16.gmra.mrb[0].mxu0 %v4871
        %v5049 = vpop.f32.mrb[0].mxu0
        %v5050 = vpop.f32.mrb[0].mxu0
        %v5051 = vpop.f32.mrb[0].mxu0
        %v5052 = vadd.f32 0.0, %v5051
        %v5053 = vpop.f32.mrb[0].mxu0
        %5054 = vmatprep.mubr.bf16.mxu0 0
        %5055 = vmatmul.mubr.bf16.gmra.mrb[0].mxu0 %v4874
        %v5056 = vpop.f32.mrb[0].mxu0
        %v5057 = vadd.f32 0.0, %v5056
        %v5058 = vpop.f32.mrb[0].mxu0
        %v5059 = vpop.f32.mrb[0].mxu0
        %v5060 = vpop.f32.mrb[0].mxu0
        %5061 = vmatprep.mubr.bf16.mxu0 0
        %5062 = vmatmul.mubr.bf16.gmra.mrb[0].mxu0 %v4877
        %v5063 = vpop.f32.mrb[0].mxu0
        %v5064 = vadd.f32 0.0, %v5063
        %v5065 = vpop.f32.mrb[0].mxu0
        %v5066 = vpop.f32.mrb[0].mxu0
        %v5067 = vadd.f32 0.0, %v5066
        %v5068 = vpop.f32.mrb[0].mxu0
        %5069 = vmatprep.mubr.bf16.mxu0 0
        %5070 = vmatmul.mubr.bf16.gmra.mrb[0].mxu0 %v4880
        %v5071 = vpop.f32.mrb[0].mxu0
        %v5072 = vpop.f32.mrb[0].mxu0
        %v5073 = vpop.f32.mrb[0].mxu0
        %v5074 = vadd.f32 0.0, %v5073
        %v5075 = vpop.f32.mrb[0].mxu0
        %5076 = vmatprep.mubr.bf16.mxu0 0
        %5077 = vmatmul.mubr.bf16.gmra.mrb[0].mxu0 %v4883
        %v5078 = vpop.f32.mrb[0].mxu0
        %v5079 = vadd.f32 0.0, %v5078
        %v5080 = vpop.f32.mrb[0].mxu0
        %v5081 = vpop.f32.mrb[0].mxu0
        %v5082 = vpop.f32.mrb[0].mxu0
        %5083 = vmatprep.mubr.bf16.mxu0 0
        %5084 = vmatmul.mubr.bf16.gmra.mrb[0].mxu0 %v4886
        %v5085 = vpop.f32.mrb[0].mxu0
        %v5086 = vadd.f32 0.0, %v5085
        %v5087 = vpop.f32.mrb[0].mxu0
        %v5088 = vpop.f32.mrb[0].mxu0
        %v5089 = vadd.f32 0.0, %v5088
        %v5090 = vpop.f32.mrb[0].mxu0
        %5091 = vmatprep.mubr.bf16.mxu0 0
        %5092 = vmatmul.mubr.bf16.gmra.mrb[0].mxu0 %v4889
        %v5093 = vpop.f32.mrb[0].mxu0
        %v5094 = vpop.f32.mrb[0].mxu0
        %v5095 = vpop.f32.mrb[0].mxu0
        %v5096 = vadd.f32 0.0, %v5095
        %v5097 = vpop.f32.mrb[0].mxu0
        %5098 = vmatprep.mubr.bf16.mxu0 0
        %5099 = vmatmul.mubr.bf16.gmra.mrb[0].mxu0 %v4892
        %v5100 = vpop.f32.mrb[0].mxu0
        %v5101 = vadd.f32 0.0, %v5100
        %v5102 = vpop.f32.mrb[0].mxu0
        %v5103 = vpop.f32.mrb[0].mxu0
        %v5104 = vpop.f32.mrb[0].mxu0
        %5105 = vdwg.mxu0
        %v5106 = vadd.f32 %v4414, %v4932
        %v5107 = vadd.f32 %v4415, %v4935
        %v5108 = vadd.f32 %v4416, %v4942
        %v5109 = vadd.f32 %v4417, %v4947
        %v5110 = vadd.f32 %v4418, %v4954
        %v5111 = vadd.f32 %v4419, %v4957
        %v5112 = vadd.f32 %v4420, %v4964
        %v5113 = vadd.f32 %v4421, %v4969
        %v5114 = vadd.f32 %v4422, %v4976
        %v5115 = vadd.f32 %v4423, %v4979
        %v5116 = vadd.f32 %v4424, %v4986
        %v5117 = vadd.f32 %v4425, %v4991
        %v5118 = vadd.f32 %v4426, %v4998
        %v5119 = vadd.f32 %v4427, %v5001
        %v5120 = vadd.f32 %v4428, %v5008
        %v5121 = vadd.f32 %v4429, %v5013
        %v5122 = vadd.f32 %v4430, %v5020
        %v5123 = vadd.f32 %v4431, %v5023
        %v5124 = vadd.f32 %v4432, %v5030
        %v5125 = vadd.f32 %v4433, %v5035
        %v5126 = vadd.f32 %v4434, %v5042
        %v5127 = vadd.f32 %v4435, %v5045
        %v5128 = vadd.f32 %v4436, %v5052
        %v5129 = vadd.f32 %v4437, %v5057
        %v5130 = vadd.f32 %v4438, %v5064
        %v5131 = vadd.f32 %v4439, %v5067
        %v5132 = vadd.f32 %v4440, %v5074
        %v5133 = vadd.f32 %v4441, %v5079
        %v5134 = vadd.f32 %v4442, %v5086
        %v5135 = vadd.f32 %v4443, %v5089
        %v5136 = vadd.f32 %v4444, %v5096
        %v5137 = vadd.f32 %v4445, %v5101
        %v5138 = vld [vmem:[%s208 + $0x18] sm:$0xe]
        %v5139 = vld [vmem:[%s212 + $0x3c] sm:$0xf]
        %v5140 = vld [vmem:[%s212 + $0x40] sm:$0x3]
        %v5142 = vunpack.c.l.b16 %v5138
        %v5143 = vpack.c.b16 %v4547, %v5142
        %v5144 = vrot.slane %v5143, 1
        %v5145 = vrot.slane %v4596, 1
        %v5146 = vsel %vm1150, %v5144, %v5145
        %v5147 = vrot.slane %v4597, 1
        %v5148 = vsel %vm1150, %v5145, %v5147
        %v5149 = vrot.slane %v4598, 1
        %v5150 = vsel %vm1150, %v5147, %v5149
        %v5151 = vrot.slane %v4599, 1
        %v5152 = vsel %vm1150, %v5149, %v5151
        %v5153 = vrot.slane %v4600, 1
        %v5154 = vsel %vm1150, %v5151, %v5153
        %v5155 = vrot.slane %v4601, 1
        %v5156 = vsel %vm1150, %v5153, %v5155
        %v5157 = vrot.slane %v4602, 1
        %v5158 = vsel %vm1150, %v5155, %v5157
        %v5159 = vrot.slane %v4603, 1
        %v5160 = vsel %vm1150, %v5157, %v5159
        %v5161 = vrot.slane %v4604, 1
        %v5162 = vsel %vm1150, %v5159, %v5161
        %v5163 = vrot.slane %v4605, 1
        %v5164 = vsel %vm1150, %v5161, %v5163
        %v5165 = vrot.slane %v4606, 1
        %v5166 = vsel %vm1150, %v5163, %v5165
        %v5167 = vrot.slane %v4607, 1
        %v5168 = vsel %vm1150, %v5165, %v5167
        %v5169 = vrot.slane %v4608, 1
        %v5170 = vsel %vm1150, %v5167, %v5169
        %v5171 = vrot.slane %v4609, 1
        %v5172 = vsel %vm1150, %v5169, %v5171
        %v5173 = vrot.slane %v4610, 1
        %v5174 = vsel %vm1150, %v5171, %v5173
        %v5175 = vrot.slane %v4611, 1
        %v5176 = vsel %vm1150, %v5173, %v5175
        %v5177 = vrot.slane %v4612, 1
        %v5178 = vsel %vm1150, %v5175, %v5177
        %v5179 = vrot.slane %v4613, 1
        %v5180 = vsel %vm1150, %v5177, %v5179
        %v5181 = vrot.slane %v4614, 1
        %v5182 = vsel %vm1150, %v5179, %v5181
        %v5183 = vrot.slane %v4615, 1
        %v5184 = vsel %vm1150, %v5181, %v5183
        %v5185 = vrot.slane %v4616, 1
        %v5186 = vsel %vm1150, %v5183, %v5185
        %v5187 = vrot.slane %v4617, 1
        %v5188 = vsel %vm1150, %v5185, %v5187
        %v5189 = vrot.slane %v4618, 1
        %v5190 = vsel %vm1150, %v5187, %v5189
        %v5191 = vrot.slane %v4619, 1
        %v5192 = vsel %vm1150, %v5189, %v5191
        %v5195 = vunpack.c.l.b16 %v5139
        %v5196 = vunpack.c.l.b16 %v5140
        %v5197 = vpack.c.b16 %v5196, %v5195
        %v5199 = vsel %vm593, %v5146, 0
        %v5202 = vsel %vm593, %v5148, 0
        %v5205 = vsel %vm593, %v5150, 0
        %v5208 = vsel %vm593, %v5152, 0
        %v5211 = vsel %vm593, %v5154, 0
        %v5214 = vsel %vm593, %v5156, 0
        %v5217 = vsel %vm593, %v5158, 0
        %v5220 = vsel %vm593, %v5160, 0
        %v5223 = vsel %vm593, %v5162, 0
        %v5226 = vsel %vm593, %v5164, 0
        %v5229 = vsel %vm593, %v5166, 0
        %v5232 = vsel %vm593, %v5168, 0
        %v5235 = vsel %vm593, %v5170, 0
        %v5238 = vsel %vm593, %v5172, 0
        %v5241 = vsel %vm593, %v5174, 0
        %v5244 = vsel %vm593, %v5176, 0
        %v5247 = vsel %vm593, %v5178, 0
        %v5250 = vsel %vm593, %v5180, 0
        %v5253 = vsel %vm593, %v5182, 0
        %v5256 = vsel %vm593, %v5184, 0
        %v5259 = vsel %vm593, %v5186, 0
        %v5262 = vsel %vm593, %v5188, 0
        %v5265 = vsel %vm593, %v5190, 0
        %v5268 = vsel %vm593, %v5192, 0
        %v5271 = vsel %vm666, %v5197, 0
        %5273 = vmatprep.subr.bf16.mxu0 0
        %5274 = vmatpush1.bf16.msra.mxu0 %v5271
        %5275 = vmatprep.subr.bf16.mxu0 0
        %5276 = vmatpush1.bf16.msra.mxu0 0
        %5277 = vmatprep.subr.bf16.mxu0 0
        %5278 = vmatpush1.bf16.msra.mxu0 0
        %5279 = vmatprep.subr.bf16.mxu0 0
        %5280 = vmatpush1.bf16.msra.mxu0 0
        %5281 = vmatprep.subr.bf16.mxu0 0
        %5282 = vmatpush1.bf16.msra.mxu0 0
        %5283 = vmatprep.subr.bf16.mxu0 0
        %5284 = vmatpush1.bf16.msra.mxu0 0
        %5285 = vmatprep.subr.bf16.mxu0 0
        %5286 = vmatpush1.bf16.msra.mxu0 0
        %5287 = vmatprep.subr.bf16.mxu0 0
        %5288 = vmatpush1.bf16.msra.mxu0 0
        %5289 = vmatprep.subr.bf16.mxu0 0
        %5290 = vmatpush1.bf16.msra.mxu0 0
        %5291 = vmatprep.subr.bf16.mxu0 0
        %5292 = vmatpush1.bf16.msra.mxu0 0
        %5293 = vmatprep.subr.bf16.mxu0 0
        %5294 = vmatpush1.bf16.msra.mxu0 0
        %5295 = vmatprep.subr.bf16.mxu0 0
        %5296 = vmatpush1.bf16.msra.mxu0 0
        %5297 = vmatprep.subr.bf16.mxu0 0
        %5298 = vmatpush1.bf16.msra.mxu0 0
        %5299 = vmatprep.subr.bf16.mxu0 0
        %5300 = vmatpush1.bf16.msra.mxu0 0
        %5301 = vmatprep.subr.bf16.mxu0 0
        %5302 = vmatpush1.bf16.msra.mxu0 0
        %5303 = vmatprep.subr.bf16.mxu0 0
        %5304 = vmatpush1.bf16.msra.mxu0 0
        %5305 = vmatprep.mubr.bf16.mxu0 0
        %5306 = vmatmul.mubr.bf16.gmra.mrb[0].mxu0 %v5199
        %v5307 = vpop.f32.mrb[0].mxu0
        %v5308 = vadd.f32 0.0, %v5307
        %v5309 = vpop.f32.mrb[0].mxu0
        %v5310 = vpop.f32.mrb[0].mxu0
        %v5311 = vadd.f32 0.0, %v5310
        %v5312 = vpop.f32.mrb[0].mxu0
        %5313 = vmatprep.mubr.bf16.mxu0 0
        %5314 = vmatmul.mubr.bf16.gmra.mrb[0].mxu0 %v5202
        %v5315 = vpop.f32.mrb[0].mxu0
        %v5316 = vpop.f32.mrb[0].mxu0
        %v5317 = vpop.f32.mrb[0].mxu0
        %v5318 = vadd.f32 0.0, %v5317
        %v5319 = vpop.f32.mrb[0].mxu0
        %5320 = vmatprep.mubr.bf16.mxu0 0
        %5321 = vmatmul.mubr.bf16.gmra.mrb[0].mxu0 %v5205
        %v5322 = vpop.f32.mrb[0].mxu0
        %v5323 = vadd.f32 0.0, %v5322
        %v5324 = vpop.f32.mrb[0].mxu0
        %v5325 = vpop.f32.mrb[0].mxu0
        %v5326 = vpop.f32.mrb[0].mxu0
        %5327 = vmatprep.mubr.bf16.mxu0 0
        %5328 = vmatmul.mubr.bf16.gmra.mrb[0].mxu0 %v5208
        %v5329 = vpop.f32.mrb[0].mxu0
        %v5330 = vadd.f32 0.0, %v5329
        %v5331 = vpop.f32.mrb[0].mxu0
        %v5332 = vpop.f32.mrb[0].mxu0
        %v5333 = vadd.f32 0.0, %v5332
        %v5334 = vpop.f32.mrb[0].mxu0
        %5335 = vmatprep.mubr.bf16.mxu0 0
        %5336 = vmatmul.mubr.bf16.gmra.mrb[0].mxu0 %v5211
        %v5337 = vpop.f32.mrb[0].mxu0
        %v5338 = vpop.f32.mrb[0].mxu0
        %v5339 = vpop.f32.mrb[0].mxu0
        %v5340 = vadd.f32 0.0, %v5339
        %v5341 = vpop.f32.mrb[0].mxu0
        %5342 = vmatprep.mubr.bf16.mxu0 0
        %5343 = vmatmul.mubr.bf16.gmra.mrb[0].mxu0 %v5214
        %v5344 = vpop.f32.mrb[0].mxu0
        %v5345 = vadd.f32 0.0, %v5344
        %v5346 = vpop.f32.mrb[0].mxu0
        %v5347 = vpop.f32.mrb[0].mxu0
        %v5348 = vpop.f32.mrb[0].mxu0
        %5349 = vmatprep.mubr.bf16.mxu0 0
        %5350 = vmatmul.mubr.bf16.gmra.mrb[0].mxu0 %v5217
        %v5351 = vpop.f32.mrb[0].mxu0
        %v5352 = vadd.f32 0.0, %v5351
        %v5353 = vpop.f32.mrb[0].mxu0
        %v5354 = vpop.f32.mrb[0].mxu0
        %v5355 = vadd.f32 0.0, %v5354
        %v5356 = vpop.f32.mrb[0].mxu0
        %5357 = vmatprep.mubr.bf16.mxu0 0
        %5358 = vmatmul.mubr.bf16.gmra.mrb[0].mxu0 %v5220
        %v5359 = vpop.f32.mrb[0].mxu0
        %v5360 = vpop.f32.mrb[0].mxu0
        %v5361 = vpop.f32.mrb[0].mxu0
        %v5362 = vadd.f32 0.0, %v5361
        %v5363 = vpop.f32.mrb[0].mxu0
        %5364 = vmatprep.mubr.bf16.mxu0 0
        %5365 = vmatmul.mubr.bf16.gmra.mrb[0].mxu0 %v5223
        %v5366 = vpop.f32.mrb[0].mxu0
        %v5367 = vadd.f32 0.0, %v5366
        %v5368 = vpop.f32.mrb[0].mxu0
        %v5369 = vpop.f32.mrb[0].mxu0
        %v5370 = vpop.f32.mrb[0].mxu0
        %5371 = vmatprep.mubr.bf16.mxu0 0
        %5372 = vmatmul.mubr.bf16.gmra.mrb[0].mxu0 %v5226
        %v5373 = vpop.f32.mrb[0].mxu0
        %v5374 = vadd.f32 0.0, %v5373
        %v5375 = vpop.f32.mrb[0].mxu0
        %v5376 = vpop.f32.mrb[0].mxu0
        %v5377 = vadd.f32 0.0, %v5376
        %v5378 = vpop.f32.mrb[0].mxu0
        %5379 = vmatprep.mubr.bf16.mxu0 0
        %5380 = vmatmul.mubr.bf16.gmra.mrb[0].mxu0 %v5229
        %v5381 = vpop.f32.mrb[0].mxu0
        %v5382 = vpop.f32.mrb[0].mxu0
        %v5383 = vpop.f32.mrb[0].mxu0
        %v5384 = vadd.f32 0.0, %v5383
        %v5385 = vpop.f32.mrb[0].mxu0
        %5386 = vmatprep.mubr.bf16.mxu0 0
        %5387 = vmatmul.mubr.bf16.gmra.mrb[0].mxu0 %v5232
        %v5388 = vpop.f32.mrb[0].mxu0
        %v5389 = vadd.f32 0.0, %v5388
        %v5390 = vpop.f32.mrb[0].mxu0
        %v5391 = vpop.f32.mrb[0].mxu0
        %v5392 = vpop.f32.mrb[0].mxu0
        %5393 = vmatprep.mubr.bf16.mxu0 0
        %5394 = vmatmul.mubr.bf16.gmra.mrb[0].mxu0 %v5235
        %v5395 = vpop.f32.mrb[0].mxu0
        %v5396 = vadd.f32 0.0, %v5395
        %v5397 = vpop.f32.mrb[0].mxu0
        %v5398 = vpop.f32.mrb[0].mxu0
        %v5399 = vadd.f32 0.0, %v5398
        %v5400 = vpop.f32.mrb[0].mxu0
        %5401 = vmatprep.mubr.bf16.mxu0 0
        %5402 = vmatmul.mubr.bf16.gmra.mrb[0].mxu0 %v5238
        %v5403 = vpop.f32.mrb[0].mxu0
        %v5404 = vpop.f32.mrb[0].mxu0
        %v5405 = vpop.f32.mrb[0].mxu0
        %v5406 = vadd.f32 0.0, %v5405
        %v5407 = vpop.f32.mrb[0].mxu0
        %5408 = vmatprep.mubr.bf16.mxu0 0
        %5409 = vmatmul.mubr.bf16.gmra.mrb[0].mxu0 %v5241
        %v5410 = vpop.f32.mrb[0].mxu0
        %v5411 = vadd.f32 0.0, %v5410
        %v5412 = vpop.f32.mrb[0].mxu0
        %v5413 = vpop.f32.mrb[0].mxu0
        %v5414 = vpop.f32.mrb[0].mxu0
        %5415 = vmatprep.mubr.bf16.mxu0 0
        %5416 = vmatmul.mubr.bf16.gmra.mrb[0].mxu0 %v5244
        %v5417 = vpop.f32.mrb[0].mxu0
        %v5418 = vadd.f32 0.0, %v5417
        %v5419 = vpop.f32.mrb[0].mxu0
        %v5420 = vpop.f32.mrb[0].mxu0
        %v5421 = vadd.f32 0.0, %v5420
        %v5422 = vpop.f32.mrb[0].mxu0
        %5423 = vmatprep.mubr.bf16.mxu0 0
        %5424 = vmatmul.mubr.bf16.gmra.mrb[0].mxu0 %v5247
        %v5425 = vpop.f32.mrb[0].mxu0
        %v5426 = vpop.f32.mrb[0].mxu0
        %v5427 = vpop.f32.mrb[0].mxu0
        %v5428 = vadd.f32 0.0, %v5427
        %v5429 = vpop.f32.mrb[0].mxu0
        %5430 = vmatprep.mubr.bf16.mxu0 0
        %5431 = vmatmul.mubr.bf16.gmra.mrb[0].mxu0 %v5250
        %v5432 = vpop.f32.mrb[0].mxu0
        %v5433 = vadd.f32 0.0, %v5432
        %v5434 = vpop.f32.mrb[0].mxu0
        %v5435 = vpop.f32.mrb[0].mxu0
        %v5436 = vpop.f32.mrb[0].mxu0
        %5437 = vmatprep.mubr.bf16.mxu0 0
        %5438 = vmatmul.mubr.bf16.gmra.mrb[0].mxu0 %v5253
        %v5439 = vpop.f32.mrb[0].mxu0
        %v5440 = vadd.f32 0.0, %v5439
        %v5441 = vpop.f32.mrb[0].mxu0
        %v5442 = vpop.f32.mrb[0].mxu0
        %v5443 = vadd.f32 0.0, %v5442
        %v5444 = vpop.f32.mrb[0].mxu0
        %5445 = vmatprep.mubr.bf16.mxu0 0
        %5446 = vmatmul.mubr.bf16.gmra.mrb[0].mxu0 %v5256
        %v5447 = vpop.f32.mrb[0].mxu0
        %v5448 = vpop.f32.mrb[0].mxu0
        %v5449 = vpop.f32.mrb[0].mxu0
        %v5450 = vadd.f32 0.0, %v5449
        %v5451 = vpop.f32.mrb[0].mxu0
        %5452 = vmatprep.mubr.bf16.mxu0 0
        %5453 = vmatmul.mubr.bf16.gmra.mrb[0].mxu0 %v5259
        %v5454 = vpop.f32.mrb[0].mxu0
        %v5455 = vadd.f32 0.0, %v5454
        %v5456 = vpop.f32.mrb[0].mxu0
        %v5457 = vpop.f32.mrb[0].mxu0
        %v5458 = vpop.f32.mrb[0].mxu0
        %5459 = vmatprep.mubr.bf16.mxu0 0
        %5460 = vmatmul.mubr.bf16.gmra.mrb[0].mxu0 %v5262
        %v5461 = vpop.f32.mrb[0].mxu0
        %v5462 = vadd.f32 0.0, %v5461
        %v5463 = vpop.f32.mrb[0].mxu0
        %v5464 = vpop.f32.mrb[0].mxu0
        %v5465 = vadd.f32 0.0, %v5464
        %v5466 = vpop.f32.mrb[0].mxu0
        %5467 = vmatprep.mubr.bf16.mxu0 0
        %5468 = vmatmul.mubr.bf16.gmra.mrb[0].mxu0 %v5265
        %v5469 = vpop.f32.mrb[0].mxu0
        %v5470 = vpop.f32.mrb[0].mxu0
        %v5471 = vpop.f32.mrb[0].mxu0
        %v5472 = vadd.f32 0.0, %v5471
        %v5473 = vpop.f32.mrb[0].mxu0
        %5474 = vmatprep.mubr.bf16.mxu0 0
        %5475 = vmatmul.mubr.bf16.gmra.mrb[0].mxu0 %v5268
        %v5476 = vpop.f32.mrb[0].mxu0
        %v5477 = vadd.f32 0.0, %v5476
        %v5478 = vpop.f32.mrb[0].mxu0
        %v5479 = vpop.f32.mrb[0].mxu0
        %v5480 = vpop.f32.mrb[0].mxu0
        %5481 = vdwg.mxu0
        %v5482 = vadd.f32 %v5106, %v5308
        %v5483 = vadd.f32 %v5107, %v5311
        %v5484 = vadd.f32 %v5108, %v5318
        %v5485 = vadd.f32 %v5109, %v5323
        %v5486 = vadd.f32 %v5110, %v5330
        %v5487 = vadd.f32 %v5111, %v5333
        %v5488 = vadd.f32 %v5112, %v5340
        %v5489 = vadd.f32 %v5113, %v5345
        %v5490 = vadd.f32 %v5114, %v5352
        %v5491 = vadd.f32 %v5115, %v5355
        %v5492 = vadd.f32 %v5116, %v5362
        %v5493 = vadd.f32 %v5117, %v5367
        %v5494 = vadd.f32 %v5118, %v5374
        %v5495 = vadd.f32 %v5119, %v5377
        %v5496 = vadd.f32 %v5120, %v5384
        %v5497 = vadd.f32 %v5121, %v5389
        %v5498 = vadd.f32 %v5122, %v5396
        %v5499 = vadd.f32 %v5123, %v5399
        %v5500 = vadd.f32 %v5124, %v5406
        %v5501 = vadd.f32 %v5125, %v5411
        %v5502 = vadd.f32 %v5126, %v5418
        %v5503 = vadd.f32 %v5127, %v5421
        %v5504 = vadd.f32 %v5128, %v5428
        %v5505 = vadd.f32 %v5129, %v5433
        %v5506 = vadd.f32 %v5130, %v5440
        %v5507 = vadd.f32 %v5131, %v5443
        %v5508 = vadd.f32 %v5132, %v5450
        %v5509 = vadd.f32 %v5133, %v5455
        %v5510 = vadd.f32 %v5134, %v5462
        %v5511 = vadd.f32 %v5135, %v5465
        %v5512 = vadd.f32 %v5136, %v5472
        %v5513 = vadd.f32 %v5137, %v5477
        %v5514 = vld [vmem:[%s208 + $0xd8] sm:$0x3]
        %v5515 = vld [vmem:[%s212 + $0x40] sm:$0xc]
        %v5516 = vld [vmem:[%s212 + $0x44] sm:$0xf]
        %v5518 = vunpack.c.l.b16 %v5514
        %v5519 = vpack.c.b16 %v5518, %v5518
        %v5521 = vshrl.u32 %v5143, 16
        %v5523 = vrot.slane %v5521, 1
        %v5524 = vshll.u32 %v5143, 16
        %v5526 = vrot.slane %v5524, 2
        %v5527 = vor.u32 %v5523, %v5526
        %v5528 = vrot.slane %v4632, 1
        %v5529 = vrot.slane %v4628, 2
        %v5530 = vor.u32 %v5528, %v5529
        %v5531 = vsel %vm1527, %v5527, %v5530
        %v5532 = vrot.slane %v4640, 1
        %v5533 = vrot.slane %v4636, 2
        %v5534 = vor.u32 %v5532, %v5533
        %v5535 = vsel %vm1527, %v5530, %v5534
        %v5536 = vrot.slane %v4648, 1
        %v5537 = vrot.slane %v4644, 2
        %v5538 = vor.u32 %v5536, %v5537
        %v5539 = vsel %vm1527, %v5534, %v5538
        %v5540 = vrot.slane %v4656, 1
        %v5541 = vrot.slane %v4652, 2
        %v5542 = vor.u32 %v5540, %v5541
        %v5543 = vsel %vm1527, %v5538, %v5542
        %v5544 = vrot.slane %v4664, 1
        %v5545 = vrot.slane %v4660, 2
        %v5546 = vor.u32 %v5544, %v5545
        %v5547 = vsel %vm1527, %v5542, %v5546
        %v5548 = vrot.slane %v4672, 1
        %v5549 = vrot.slane %v4668, 2
        %v5550 = vor.u32 %v5548, %v5549
        %v5551 = vsel %vm1527, %v5546, %v5550
        %v5552 = vrot.slane %v4680, 1
        %v5553 = vrot.slane %v4676, 2
        %v5554 = vor.u32 %v5552, %v5553
        %v5555 = vsel %vm1527, %v5550, %v5554
        %v5556 = vrot.slane %v4688, 1
        %v5557 = vrot.slane %v4684, 2
        %v5558 = vor.u32 %v5556, %v5557
        %v5559 = vsel %vm1527, %v5554, %v5558
        %v5560 = vrot.slane %v4696, 1
        %v5561 = vrot.slane %v4692, 2
        %v5562 = vor.u32 %v5560, %v5561
        %v5563 = vsel %vm1527, %v5558, %v5562
        %v5564 = vrot.slane %v4704, 1
        %v5565 = vrot.slane %v4700, 2
        %v5566 = vor.u32 %v5564, %v5565
        %v5567 = vsel %vm1527, %v5562, %v5566
        %v5568 = vrot.slane %v4712, 1
        %v5569 = vrot.slane %v4708, 2
        %v5570 = vor.u32 %v5568, %v5569
        %v5571 = vsel %vm1527, %v5566, %v5570
        %v5572 = vrot.slane %v4720, 1
        %v5573 = vrot.slane %v4716, 2
        %v5574 = vor.u32 %v5572, %v5573
        %v5575 = vsel %vm1527, %v5570, %v5574
        %v5576 = vrot.slane %v4728, 1
        %v5577 = vrot.slane %v4724, 2
        %v5578 = vor.u32 %v5576, %v5577
        %v5579 = vsel %vm1527, %v5574, %v5578
        %v5580 = vrot.slane %v4736, 1
        %v5581 = vrot.slane %v4732, 2
        %v5582 = vor.u32 %v5580, %v5581
        %v5583 = vsel %vm1527, %v5578, %v5582
        %v5584 = vrot.slane %v4744, 1
        %v5585 = vrot.slane %v4740, 2
        %v5586 = vor.u32 %v5584, %v5585
        %v5587 = vsel %vm1527, %v5582, %v5586
        %v5588 = vrot.slane %v4752, 1
        %v5589 = vrot.slane %v4748, 2
        %v5590 = vor.u32 %v5588, %v5589
        %v5591 = vsel %vm1527, %v5586, %v5590
        %v5592 = vrot.slane %v4760, 1
        %v5593 = vrot.slane %v4756, 2
        %v5594 = vor.u32 %v5592, %v5593
        %v5595 = vsel %vm1527, %v5590, %v5594
        %v5596 = vrot.slane %v4768, 1
        %v5597 = vrot.slane %v4764, 2
        %v5598 = vor.u32 %v5596, %v5597
        %v5599 = vsel %vm1527, %v5594, %v5598
        %v5600 = vrot.slane %v4776, 1
        %v5601 = vrot.slane %v4772, 2
        %v5602 = vor.u32 %v5600, %v5601
        %v5603 = vsel %vm1527, %v5598, %v5602
        %v5604 = vrot.slane %v4784, 1
        %v5605 = vrot.slane %v4780, 2
        %v5606 = vor.u32 %v5604, %v5605
        %v5607 = vsel %vm1527, %v5602, %v5606
        %v5608 = vrot.slane %v4792, 1
        %v5609 = vrot.slane %v4788, 2
        %v5610 = vor.u32 %v5608, %v5609
        %v5611 = vsel %vm1527, %v5606, %v5610
        %v5612 = vrot.slane %v4800, 1
        %v5613 = vrot.slane %v4796, 2
        %v5614 = vor.u32 %v5612, %v5613
        %v5615 = vsel %vm1527, %v5610, %v5614
        %v5616 = vrot.slane %v4808, 1
        %v5617 = vrot.slane %v4804, 2
        %v5618 = vor.u32 %v5616, %v5617
        %v5619 = vsel %vm1527, %v5614, %v5618
        %v5621 = vshrl.u32 %v5519, 16
        %v5623 = vrot.slane %v5621, 1
        %v5624 = vshll.u32 %v5519, 16
        %v5626 = vrot.slane %v5624, 2
        %v5627 = vor.u32 %v5623, %v5626
        %v5628 = vsel %vm1527, %v5618, %v5627
        %v5631 = vunpack.c.l.b16 %v5515
        %v5632 = vunpack.c.l.b16 %v5516
        %v5633 = vpack.c.b16 %v5632, %v5631
        %v5634 = vrot.slane %v5633, 2
        %v5636 = vsel %vm593, %v5531, 0
        %v5639 = vsel %vm593, %v5535, 0
        %v5642 = vsel %vm593, %v5539, 0
        %v5645 = vsel %vm593, %v5543, 0
        %v5648 = vsel %vm593, %v5547, 0
        %v5651 = vsel %vm593, %v5551, 0
        %v5654 = vsel %vm593, %v5555, 0
        %v5657 = vsel %vm593, %v5559, 0
        %v5660 = vsel %vm593, %v5563, 0
        %v5663 = vsel %vm593, %v5567, 0
        %v5666 = vsel %vm593, %v5571, 0
        %v5669 = vsel %vm593, %v5575, 0
        %v5672 = vsel %vm593, %v5579, 0
        %v5675 = vsel %vm593, %v5583, 0
        %v5678 = vsel %vm593, %v5587, 0
        %v5681 = vsel %vm593, %v5591, 0
        %v5684 = vsel %vm593, %v5595, 0
        %v5687 = vsel %vm593, %v5599, 0
        %v5690 = vsel %vm593, %v5603, 0
        %v5693 = vsel %vm593, %v5607, 0
        %v5696 = vsel %vm593, %v5611, 0
        %v5699 = vsel %vm593, %v5615, 0
        %v5702 = vsel %vm593, %v5619, 0
        %v5705 = vsel %vm593, %v5628, 0
        %v5708 = vsel %vm666, %v5634, 0
        %5710 = vmatprep.subr.bf16.mxu0 0
        %5711 = vmatpush1.bf16.msra.mxu0 %v5708
        %5712 = vmatprep.subr.bf16.mxu0 0
        %5713 = vmatpush1.bf16.msra.mxu0 0
        %5714 = vmatprep.subr.bf16.mxu0 0
        %5715 = vmatpush1.bf16.msra.mxu0 0
        %5716 = vmatprep.subr.bf16.mxu0 0
        %5717 = vmatpush1.bf16.msra.mxu0 0
        %5718 = vmatprep.subr.bf16.mxu0 0
        %5719 = vmatpush1.bf16.msra.mxu0 0
        %5720 = vmatprep.subr.bf16.mxu0 0
        %5721 = vmatpush1.bf16.msra.mxu0 0
        %5722 = vmatprep.subr.bf16.mxu0 0
        %5723 = vmatpush1.bf16.msra.mxu0 0
        %5724 = vmatprep.subr.bf16.mxu0 0
        %5725 = vmatpush1.bf16.msra.mxu0 0
        %5726 = vmatprep.subr.bf16.mxu0 0
        %5727 = vmatpush1.bf16.msra.mxu0 0
        %5728 = vmatprep.subr.bf16.mxu0 0
        %5729 = vmatpush1.bf16.msra.mxu0 0
        %5730 = vmatprep.subr.bf16.mxu0 0
        %5731 = vmatpush1.bf16.msra.mxu0 0
        %5732 = vmatprep.subr.bf16.mxu0 0
        %5733 = vmatpush1.bf16.msra.mxu0 0
        %5734 = vmatprep.subr.bf16.mxu0 0
        %5735 = vmatpush1.bf16.msra.mxu0 0
        %5736 = vmatprep.subr.bf16.mxu0 0
        %5737 = vmatpush1.bf16.msra.mxu0 0
        %5738 = vmatprep.subr.bf16.mxu0 0
        %5739 = vmatpush1.bf16.msra.mxu0 0
        %5740 = vmatprep.subr.bf16.mxu0 0
        %5741 = vmatpush1.bf16.msra.mxu0 0
        %5742 = vmatprep.mubr.bf16.mxu0 0
        %5743 = vmatmul.mubr.bf16.gmra.mrb[0].mxu0 %v5636
        %v5744 = vpop.f32.mrb[0].mxu0
        %v5745 = vadd.f32 0.0, %v5744
        %v5746 = vpop.f32.mrb[0].mxu0
        %v5747 = vpop.f32.mrb[0].mxu0
        %v5748 = vadd.f32 0.0, %v5747
        %v5749 = vpop.f32.mrb[0].mxu0
        %5750 = vmatprep.mubr.bf16.mxu0 0
        %5751 = vmatmul.mubr.bf16.gmra.mrb[0].mxu0 %v5639
        %v5752 = vpop.f32.mrb[0].mxu0
        %v5753 = vpop.f32.mrb[0].mxu0
        %v5754 = vpop.f32.mrb[0].mxu0
        %v5755 = vadd.f32 0.0, %v5754
        %v5756 = vpop.f32.mrb[0].mxu0
        %5757 = vmatprep.mubr.bf16.mxu0 0
        %5758 = vmatmul.mubr.bf16.gmra.mrb[0].mxu0 %v5642
        %v5759 = vpop.f32.mrb[0].mxu0
        %v5760 = vadd.f32 0.0, %v5759
        %v5761 = vpop.f32.mrb[0].mxu0
        %v5762 = vpop.f32.mrb[0].mxu0
        %v5763 = vpop.f32.mrb[0].mxu0
        %5764 = vmatprep.mubr.bf16.mxu0 0
        %5765 = vmatmul.mubr.bf16.gmra.mrb[0].mxu0 %v5645
        %v5766 = vpop.f32.mrb[0].mxu0
        %v5767 = vadd.f32 0.0, %v5766
        %v5768 = vpop.f32.mrb[0].mxu0
        %v5769 = vpop.f32.mrb[0].mxu0
        %v5770 = vadd.f32 0.0, %v5769
        %v5771 = vpop.f32.mrb[0].mxu0
        %5772 = vmatprep.mubr.bf16.mxu0 0
        %5773 = vmatmul.mubr.bf16.gmra.mrb[0].mxu0 %v5648
        %v5774 = vpop.f32.mrb[0].mxu0
        %v5775 = vpop.f32.mrb[0].mxu0
        %v5776 = vpop.f32.mrb[0].mxu0
        %v5777 = vadd.f32 0.0, %v5776
        %v5778 = vpop.f32.mrb[0].mxu0
        %5779 = vmatprep.mubr.bf16.mxu0 0
        %5780 = vmatmul.mubr.bf16.gmra.mrb[0].mxu0 %v5651
        %v5781 = vpop.f32.mrb[0].mxu0
        %v5782 = vadd.f32 0.0, %v5781
        %v5783 = vpop.f32.mrb[0].mxu0
        %v5784 = vpop.f32.mrb[0].mxu0
        %v5785 = vpop.f32.mrb[0].mxu0
        %5786 = vmatprep.mubr.bf16.mxu0 0
        %5787 = vmatmul.mubr.bf16.gmra.mrb[0].mxu0 %v5654
        %v5788 = vpop.f32.mrb[0].mxu0
        %v5789 = vadd.f32 0.0, %v5788
        %v5790 = vpop.f32.mrb[0].mxu0
        %v5791 = vpop.f32.mrb[0].mxu0
        %v5792 = vadd.f32 0.0, %v5791
        %v5793 = vpop.f32.mrb[0].mxu0
        %5794 = vmatprep.mubr.bf16.mxu0 0
        %5795 = vmatmul.mubr.bf16.gmra.mrb[0].mxu0 %v5657
        %v5796 = vpop.f32.mrb[0].mxu0
        %v5797 = vpop.f32.mrb[0].mxu0
        %v5798 = vpop.f32.mrb[0].mxu0
        %v5799 = vadd.f32 0.0, %v5798
        %v5800 = vpop.f32.mrb[0].mxu0
        %5801 = vmatprep.mubr.bf16.mxu0 0
        %5802 = vmatmul.mubr.bf16.gmra.mrb[0].mxu0 %v5660
        %v5803 = vpop.f32.mrb[0].mxu0
        %v5804 = vadd.f32 0.0, %v5803
        %v5805 = vpop.f32.mrb[0].mxu0
        %v5806 = vpop.f32.mrb[0].mxu0
        %v5807 = vpop.f32.mrb[0].mxu0
        %5808 = vmatprep.mubr.bf16.mxu0 0
        %5809 = vmatmul.mubr.bf16.gmra.mrb[0].mxu0 %v5663
        %v5810 = vpop.f32.mrb[0].mxu0
        %v5811 = vadd.f32 0.0, %v5810
        %v5812 = vpop.f32.mrb[0].mxu0
        %v5813 = vpop.f32.mrb[0].mxu0
        %v5814 = vadd.f32 0.0, %v5813
        %v5815 = vpop.f32.mrb[0].mxu0
        %5816 = vmatprep.mubr.bf16.mxu0 0
        %5817 = vmatmul.mubr.bf16.gmra.mrb[0].mxu0 %v5666
        %v5818 = vpop.f32.mrb[0].mxu0
        %v5819 = vpop.f32.mrb[0].mxu0
        %v5820 = vpop.f32.mrb[0].mxu0
        %v5821 = vadd.f32 0.0, %v5820
        %v5822 = vpop.f32.mrb[0].mxu0
        %5823 = vmatprep.mubr.bf16.mxu0 0
        %5824 = vmatmul.mubr.bf16.gmra.mrb[0].mxu0 %v5669
        %v5825 = vpop.f32.mrb[0].mxu0
        %v5826 = vadd.f32 0.0, %v5825
        %v5827 = vpop.f32.mrb[0].mxu0
        %v5828 = vpop.f32.mrb[0].mxu0
        %v5829 = vpop.f32.mrb[0].mxu0
        %5830 = vmatprep.mubr.bf16.mxu0 0
        %5831 = vmatmul.mubr.bf16.gmra.mrb[0].mxu0 %v5672
        %v5832 = vpop.f32.mrb[0].mxu0
        %v5833 = vadd.f32 0.0, %v5832
        %v5834 = vpop.f32.mrb[0].mxu0
        %v5835 = vpop.f32.mrb[0].mxu0
        %v5836 = vadd.f32 0.0, %v5835
        %v5837 = vpop.f32.mrb[0].mxu0
        %5838 = vmatprep.mubr.bf16.mxu0 0
        %5839 = vmatmul.mubr.bf16.gmra.mrb[0].mxu0 %v5675
        %v5840 = vpop.f32.mrb[0].mxu0
        %v5841 = vpop.f32.mrb[0].mxu0
        %v5842 = vpop.f32.mrb[0].mxu0
        %v5843 = vadd.f32 0.0, %v5842
        %v5844 = vpop.f32.mrb[0].mxu0
        %5845 = vmatprep.mubr.bf16.mxu0 0
        %5846 = vmatmul.mubr.bf16.gmra.mrb[0].mxu0 %v5678
        %v5847 = vpop.f32.mrb[0].mxu0
        %v5848 = vadd.f32 0.0, %v5847
        %v5849 = vpop.f32.mrb[0].mxu0
        %v5850 = vpop.f32.mrb[0].mxu0
        %v5851 = vpop.f32.mrb[0].mxu0
        %5852 = vmatprep.mubr.bf16.mxu0 0
        %5853 = vmatmul.mubr.bf16.gmra.mrb[0].mxu0 %v5681
        %v5854 = vpop.f32.mrb[0].mxu0
        %v5855 = vadd.f32 0.0, %v5854
        %v5856 = vpop.f32.mrb[0].mxu0
        %v5857 = vpop.f32.mrb[0].mxu0
        %v5858 = vadd.f32 0.0, %v5857
        %v5859 = vpop.f32.mrb[0].mxu0
        %5860 = vmatprep.mubr.bf16.mxu0 0
        %5861 = vmatmul.mubr.bf16.gmra.mrb[0].mxu0 %v5684
        %v5862 = vpop.f32.mrb[0].mxu0
        %v5863 = vpop.f32.mrb[0].mxu0
        %v5864 = vpop.f32.mrb[0].mxu0
        %v5865 = vadd.f32 0.0, %v5864
        %v5866 = vpop.f32.mrb[0].mxu0
        %5867 = vmatprep.mubr.bf16.mxu0 0
        %5868 = vmatmul.mubr.bf16.gmra.mrb[0].mxu0 %v5687
        %v5869 = vpop.f32.mrb[0].mxu0
        %v5870 = vadd.f32 0.0, %v5869
        %v5871 = vpop.f32.mrb[0].mxu0
        %v5872 = vpop.f32.mrb[0].mxu0
        %v5873 = vpop.f32.mrb[0].mxu0
        %5874 = vmatprep.mubr.bf16.mxu0 0
        %5875 = vmatmul.mubr.bf16.gmra.mrb[0].mxu0 %v5690
        %v5876 = vpop.f32.mrb[0].mxu0
        %v5877 = vadd.f32 0.0, %v5876
        %v5878 = vpop.f32.mrb[0].mxu0
        %v5879 = vpop.f32.mrb[0].mxu0
        %v5880 = vadd.f32 0.0, %v5879
        %v5881 = vpop.f32.mrb[0].mxu0
        %5882 = vmatprep.mubr.bf16.mxu0 0
        %5883 = vmatmul.mubr.bf16.gmra.mrb[0].mxu0 %v5693
        %v5884 = vpop.f32.mrb[0].mxu0
        %v5885 = vpop.f32.mrb[0].mxu0
        %v5886 = vpop.f32.mrb[0].mxu0
        %v5887 = vadd.f32 0.0, %v5886
        %v5888 = vpop.f32.mrb[0].mxu0
        %5889 = vmatprep.mubr.bf16.mxu0 0
        %5890 = vmatmul.mubr.bf16.gmra.mrb[0].mxu0 %v5696
        %v5891 = vpop.f32.mrb[0].mxu0
        %v5892 = vadd.f32 0.0, %v5891
        %v5893 = vpop.f32.mrb[0].mxu0
        %v5894 = vpop.f32.mrb[0].mxu0
        %v5895 = vpop.f32.mrb[0].mxu0
        %5896 = vmatprep.mubr.bf16.mxu0 0
        %5897 = vmatmul.mubr.bf16.gmra.mrb[0].mxu0 %v5699
        %v5898 = vpop.f32.mrb[0].mxu0
        %v5899 = vadd.f32 0.0, %v5898
        %v5900 = vpop.f32.mrb[0].mxu0
        %v5901 = vpop.f32.mrb[0].mxu0
        %v5902 = vadd.f32 0.0, %v5901
        %v5903 = vpop.f32.mrb[0].mxu0
        %5904 = vmatprep.mubr.bf16.mxu0 0
        %5905 = vmatmul.mubr.bf16.gmra.mrb[0].mxu0 %v5702
        %v5906 = vpop.f32.mrb[0].mxu0
        %v5907 = vpop.f32.mrb[0].mxu0
        %v5908 = vpop.f32.mrb[0].mxu0
        %v5909 = vadd.f32 0.0, %v5908
        %v5910 = vpop.f32.mrb[0].mxu0
        %5911 = vmatprep.mubr.bf16.mxu0 0
        %5912 = vmatmul.mubr.bf16.gmra.mrb[0].mxu0 %v5705
        %v5913 = vpop.f32.mrb[0].mxu0
        %v5914 = vadd.f32 0.0, %v5913
        %v5915 = vpop.f32.mrb[0].mxu0
        %v5916 = vpop.f32.mrb[0].mxu0
        %v5917 = vpop.f32.mrb[0].mxu0
        %5918 = vdwg.mxu0
        %v5919 = vadd.f32 %v5482, %v5745
        %v5920 = vadd.f32 %v5483, %v5748
        %v5921 = vadd.f32 %v5484, %v5755
        %v5922 = vadd.f32 %v5485, %v5760
        %v5923 = vadd.f32 %v5486, %v5767
        %v5924 = vadd.f32 %v5487, %v5770
        %v5925 = vadd.f32 %v5488, %v5777
        %v5926 = vadd.f32 %v5489, %v5782
        %v5927 = vadd.f32 %v5490, %v5789
        %v5928 = vadd.f32 %v5491, %v5792
        %v5929 = vadd.f32 %v5492, %v5799
        %v5930 = vadd.f32 %v5493, %v5804
        %v5931 = vadd.f32 %v5494, %v5811
        %v5932 = vadd.f32 %v5495, %v5814
        %v5933 = vadd.f32 %v5496, %v5821
        %v5934 = vadd.f32 %v5497, %v5826
        %v5935 = vadd.f32 %v5498, %v5833
        %v5936 = vadd.f32 %v5499, %v5836
        %v5937 = vadd.f32 %v5500, %v5843
        %v5938 = vadd.f32 %v5501, %v5848
        %v5939 = vadd.f32 %v5502, %v5855
        %v5940 = vadd.f32 %v5503, %v5858
        %v5941 = vadd.f32 %v5504, %v5865
        %v5942 = vadd.f32 %v5505, %v5870
        %v5943 = vadd.f32 %v5506, %v5877
        %v5944 = vadd.f32 %v5507, %v5880
        %v5945 = vadd.f32 %v5508, %v5887
        %v5946 = vadd.f32 %v5509, %v5892
        %v5947 = vadd.f32 %v5510, %v5899
        %v5948 = vadd.f32 %v5511, %v5902
        %v5949 = vadd.f32 %v5512, %v5909
        %v5950 = vadd.f32 %v5513, %v5914
        %v5951 = vld [vmem:[%s208 + $0x24] sm:$0xf]
        %v5952 = vld [vmem:[%s208 + $0x28] sm:$0xf]
        %v5953 = vld [vmem:[%s208 + $0x2c] sm:$0xf]
        %v5954 = vld [vmem:[%s208 + $0x30] sm:$0xf]
        %v5955 = vld [vmem:[%s208 + $0x34] sm:$0xf]
        %v5956 = vld [vmem:[%s208 + $0x38] sm:$0xf]
        %v5957 = vld [vmem:[%s208 + $0x3c] sm:$0xf]
        %v5958 = vld [vmem:[%s208 + $0x40] sm:$0xf]
        %v5959 = vld [vmem:[%s208 + $0x44] sm:$0xf]
        %v5960 = vld [vmem:[%s208 + $0x48] sm:$0xf]
        %v5961 = vld [vmem:[%s208 + $0x4c] sm:$0xf]
        %v5962 = vld [vmem:[%s208 + $0x50] sm:$0xf]
        %v5963 = vld [vmem:[%s208 + $0x54] sm:$0xf]
        %v5964 = vld [vmem:[%s208 + $0x58] sm:$0xf]
        %v5965 = vld [vmem:[%s208 + $0x5c] sm:$0xf]
        %v5966 = vld [vmem:[%s208 + $0x60] sm:$0xf]
        %v5967 = vld [vmem:[%s208 + $0x64] sm:$0xf]
        %v5968 = vld [vmem:[%s208 + $0x68] sm:$0xf]
        %v5969 = vld [vmem:[%s208 + $0x6c] sm:$0xf]
        %v5970 = vld [vmem:[%s208 + $0x70] sm:$0xf]
        %v5971 = vld [vmem:[%s208 + $0x74] sm:$0xf]
        %v5972 = vld [vmem:[%s208 + $0x78] sm:$0xf]
        %v5973 = vld [vmem:[%s208 + $0x7c] sm:$0xf]
        %v5974 = vld [vmem:[%s208 + $0x80] sm:$0xf]
        %v5975 = vld [vmem:[%s208 + $0x84] sm:$0xf]
        %v5976 = vld [vmem:[%s208 + $0x88] sm:$0xf]
        %v5977 = vld [vmem:[%s208 + $0x8c] sm:$0xf]
        %v5978 = vld [vmem:[%s208 + $0x90] sm:$0xf]
        %v5979 = vld [vmem:[%s208 + $0x94] sm:$0xf]
        %v5980 = vld [vmem:[%s208 + $0x98] sm:$0xf]
        %v5981 = vld [vmem:[%s208 + $0x9c] sm:$0xf]
        %v5982 = vld [vmem:[%s208 + $0xa0] sm:$0xf]
        %v5983 = vld [vmem:[%s208 + $0xa4] sm:$0xf]
        %v5984 = vld [vmem:[%s208 + $0xa8] sm:$0xf]
        %v5985 = vld [vmem:[%s208 + $0xac] sm:$0xf]
        %v5986 = vld [vmem:[%s208 + $0xb0] sm:$0xf]
        %v5987 = vld [vmem:[%s208 + $0xb4] sm:$0xf]
        %v5988 = vld [vmem:[%s208 + $0xb8] sm:$0xf]
        %v5989 = vld [vmem:[%s208 + $0xbc] sm:$0xf]
        %v5990 = vld [vmem:[%s208 + $0xc0] sm:$0xf]
        %v5991 = vld [vmem:[%s208 + $0xc4] sm:$0xf]
        %v5992 = vld [vmem:[%s208 + $0xc8] sm:$0xf]
        %v5993 = vld [vmem:[%s208 + $0xcc] sm:$0xf]
        %v5994 = vld [vmem:[%s208 + $0xd0] sm:$0xf]
        %v5995 = vld [vmem:[%s208 + $0xd4] sm:$0xf]
        %v5996 = vld [vmem:[%s208 + $0xd8] sm:$0xf]
        %v5997 = vld [vmem:[%s208 + $0xdc] sm:$0xf]
        %v5998 = vld [vmem:[%s208 + $0xe0] sm:$0xf]
        %v5999 = vld [vmem:[%s212 + $0x48] sm:$0xf]
        %v6000 = vld [vmem:[%s212 + $0x4c] sm:$0x3]
        %v6049 = vunpack.c.l.b16 %v5951
        %v6050 = vunpack.c.l.b16 %v5952
        %v6051 = vunpack.c.l.b16 %v5953
        %v6052 = vunpack.c.l.b16 %v5954
        %v6053 = vunpack.c.l.b16 %v5955
        %v6054 = vunpack.c.l.b16 %v5956
        %v6055 = vunpack.c.l.b16 %v5957
        %v6056 = vunpack.c.l.b16 %v5958
        %v6057 = vunpack.c.l.b16 %v5959
        %v6058 = vunpack.c.l.b16 %v5960
        %v6059 = vunpack.c.l.b16 %v5961
        %v6060 = vunpack.c.l.b16 %v5962
        %v6061 = vunpack.c.l.b16 %v5963
        %v6062 = vunpack.c.l.b16 %v5964
        %v6063 = vunpack.c.l.b16 %v5965
        %v6064 = vunpack.c.l.b16 %v5966
        %v6065 = vunpack.c.l.b16 %v5967
        %v6066 = vunpack.c.l.b16 %v5968
        %v6067 = vunpack.c.l.b16 %v5969
        %v6068 = vunpack.c.l.b16 %v5970
        %v6069 = vunpack.c.l.b16 %v5971
        %v6070 = vunpack.c.l.b16 %v5972
        %v6071 = vunpack.c.l.b16 %v5973
        %v6072 = vunpack.c.l.b16 %v5974
        %v6073 = vunpack.c.l.b16 %v5975
        %v6074 = vunpack.c.l.b16 %v5976
        %v6075 = vunpack.c.l.b16 %v5977
        %v6076 = vunpack.c.l.b16 %v5978
        %v6077 = vunpack.c.l.b16 %v5979
        %v6078 = vunpack.c.l.b16 %v5980
        %v6079 = vunpack.c.l.b16 %v5981
        %v6080 = vunpack.c.l.b16 %v5982
        %v6081 = vunpack.c.l.b16 %v5983
        %v6082 = vunpack.c.l.b16 %v5984
        %v6083 = vunpack.c.l.b16 %v5985
        %v6084 = vunpack.c.l.b16 %v5986
        %v6085 = vunpack.c.l.b16 %v5987
        %v6086 = vunpack.c.l.b16 %v5988
        %v6087 = vunpack.c.l.b16 %v5989
        %v6088 = vunpack.c.l.b16 %v5990
        %v6089 = vunpack.c.l.b16 %v5991
        %v6090 = vunpack.c.l.b16 %v5992
        %v6091 = vunpack.c.l.b16 %v5993
        %v6092 = vunpack.c.l.b16 %v5994
        %v6093 = vunpack.c.l.b16 %v5995
        %v6094 = vunpack.c.l.b16 %v5996
        %v6095 = vunpack.c.l.b16 %v5997
        %v6096 = vunpack.c.l.b16 %v5998
        %v6097 = vpack.c.b16 %v6050, %v6049
        %v6098 = vpack.c.b16 %v6052, %v6051
        %v6099 = vpack.c.b16 %v6054, %v6053
        %v6100 = vpack.c.b16 %v6056, %v6055
        %v6101 = vpack.c.b16 %v6058, %v6057
        %v6102 = vpack.c.b16 %v6060, %v6059
        %v6103 = vpack.c.b16 %v6062, %v6061
        %v6104 = vpack.c.b16 %v6064, %v6063
        %v6105 = vpack.c.b16 %v6066, %v6065
        %v6106 = vpack.c.b16 %v6068, %v6067
        %v6107 = vpack.c.b16 %v6070, %v6069
        %v6108 = vpack.c.b16 %v6072, %v6071
        %v6109 = vpack.c.b16 %v6074, %v6073
        %v6110 = vpack.c.b16 %v6076, %v6075
        %v6111 = vpack.c.b16 %v6078, %v6077
        %v6112 = vpack.c.b16 %v6080, %v6079
        %v6113 = vpack.c.b16 %v6082, %v6081
        %v6114 = vpack.c.b16 %v6084, %v6083
        %v6115 = vpack.c.b16 %v6086, %v6085
        %v6116 = vpack.c.b16 %v6088, %v6087
        %v6117 = vpack.c.b16 %v6090, %v6089
        %v6118 = vpack.c.b16 %v6092, %v6091
        %v6119 = vpack.c.b16 %v6094, %v6093
        %v6120 = vpack.c.b16 %v6096, %v6095
        %v6123 = vunpack.c.l.b16 %v5999
        %v6124 = vunpack.c.l.b16 %v6000
        %v6125 = vpack.c.b16 %v6124, %v6123
        %v6127 = vsel %vm593, %v6097, 0
        %v6130 = vsel %vm593, %v6098, 0
        %v6133 = vsel %vm593, %v6099, 0
        %v6136 = vsel %vm593, %v6100, 0
        %v6139 = vsel %vm593, %v6101, 0
        %v6142 = vsel %vm593, %v6102, 0
        %v6145 = vsel %vm593, %v6103, 0
        %v6148 = vsel %vm593, %v6104, 0
        %v6151 = vsel %vm593, %v6105, 0
        %v6154 = vsel %vm593, %v6106, 0
        %v6157 = vsel %vm593, %v6107, 0
        %v6160 = vsel %vm593, %v6108, 0
        %v6163 = vsel %vm593, %v6109, 0
        %v6166 = vsel %vm593, %v6110, 0
        %v6169 = vsel %vm593, %v6111, 0
        %v6172 = vsel %vm593, %v6112, 0
        %v6175 = vsel %vm593, %v6113, 0
        %v6178 = vsel %vm593, %v6114, 0
        %v6181 = vsel %vm593, %v6115, 0
        %v6184 = vsel %vm593, %v6116, 0
        %v6187 = vsel %vm593, %v6117, 0
        %v6190 = vsel %vm593, %v6118, 0
        %v6193 = vsel %vm593, %v6119, 0
        %v6196 = vsel %vm593, %v6120, 0
        %v6199 = vsel %vm666, %v6125, 0
        %6201 = vmatprep.subr.bf16.mxu0 0
        %6202 = vmatpush1.bf16.msra.mxu0 %v6199
        %6203 = vmatprep.subr.bf16.mxu0 0
        %6204 = vmatpush1.bf16.msra.mxu0 0
        %6205 = vmatprep.subr.bf16.mxu0 0
        %6206 = vmatpush1.bf16.msra.mxu0 0
        %6207 = vmatprep.subr.bf16.mxu0 0
        %6208 = vmatpush1.bf16.msra.mxu0 0
        %6209 = vmatprep.subr.bf16.mxu0 0
        %6210 = vmatpush1.bf16.msra.mxu0 0
        %6211 = vmatprep.subr.bf16.mxu0 0
        %6212 = vmatpush1.bf16.msra.mxu0 0
        %6213 = vmatprep.subr.bf16.mxu0 0
        %6214 = vmatpush1.bf16.msra.mxu0 0
        %6215 = vmatprep.subr.bf16.mxu0 0
        %6216 = vmatpush1.bf16.msra.mxu0 0
        %6217 = vmatprep.subr.bf16.mxu0 0
        %6218 = vmatpush1.bf16.msra.mxu0 0
        %6219 = vmatprep.subr.bf16.mxu0 0
        %6220 = vmatpush1.bf16.msra.mxu0 0
        %6221 = vmatprep.subr.bf16.mxu0 0
        %6222 = vmatpush1.bf16.msra.mxu0 0
        %6223 = vmatprep.subr.bf16.mxu0 0
        %6224 = vmatpush1.bf16.msra.mxu0 0
        %6225 = vmatprep.subr.bf16.mxu0 0
        %6226 = vmatpush1.bf16.msra.mxu0 0
        %6227 = vmatprep.subr.bf16.mxu0 0
        %6228 = vmatpush1.bf16.msra.mxu0 0
        %6229 = vmatprep.subr.bf16.mxu0 0
        %6230 = vmatpush1.bf16.msra.mxu0 0
        %6231 = vmatprep.subr.bf16.mxu0 0
        %6232 = vmatpush1.bf16.msra.mxu0 0
        %6233 = vmatprep.mubr.bf16.mxu0 0
        %6234 = vmatmul.mubr.bf16.gmra.mrb[0].mxu0 %v6127
        %v6235 = vpop.f32.mrb[0].mxu0
        %v6236 = vadd.f32 0.0, %v6235
        %v6237 = vpop.f32.mrb[0].mxu0
        %v6238 = vpop.f32.mrb[0].mxu0
        %v6239 = vadd.f32 0.0, %v6238
        %v6240 = vpop.f32.mrb[0].mxu0
        %6241 = vmatprep.mubr.bf16.mxu0 0
        %6242 = vmatmul.mubr.bf16.gmra.mrb[0].mxu0 %v6130
        %v6243 = vpop.f32.mrb[0].mxu0
        %v6244 = vpop.f32.mrb[0].mxu0
        %v6245 = vpop.f32.mrb[0].mxu0
        %v6246 = vadd.f32 0.0, %v6245
        %v6247 = vpop.f32.mrb[0].mxu0
        %6248 = vmatprep.mubr.bf16.mxu0 0
        %6249 = vmatmul.mubr.bf16.gmra.mrb[0].mxu0 %v6133
        %v6250 = vpop.f32.mrb[0].mxu0
        %v6251 = vadd.f32 0.0, %v6250
        %v6252 = vpop.f32.mrb[0].mxu0
        %v6253 = vpop.f32.mrb[0].mxu0
        %v6254 = vpop.f32.mrb[0].mxu0
        %6255 = vmatprep.mubr.bf16.mxu0 0
        %6256 = vmatmul.mubr.bf16.gmra.mrb[0].mxu0 %v6136
        %v6257 = vpop.f32.mrb[0].mxu0
        %v6258 = vadd.f32 0.0, %v6257
        %v6259 = vpop.f32.mrb[0].mxu0
        %v6260 = vpop.f32.mrb[0].mxu0
        %v6261 = vadd.f32 0.0, %v6260
        %v6262 = vpop.f32.mrb[0].mxu0
        %6263 = vmatprep.mubr.bf16.mxu0 0
        %6264 = vmatmul.mubr.bf16.gmra.mrb[0].mxu0 %v6139
        %v6265 = vpop.f32.mrb[0].mxu0
        %v6266 = vpop.f32.mrb[0].mxu0
        %v6267 = vpop.f32.mrb[0].mxu0
        %v6268 = vadd.f32 0.0, %v6267
        %v6269 = vpop.f32.mrb[0].mxu0
        %6270 = vmatprep.mubr.bf16.mxu0 0
        %6271 = vmatmul.mubr.bf16.gmra.mrb[0].mxu0 %v6142
        %v6272 = vpop.f32.mrb[0].mxu0
        %v6273 = vadd.f32 0.0, %v6272
        %v6274 = vpop.f32.mrb[0].mxu0
        %v6275 = vpop.f32.mrb[0].mxu0
        %v6276 = vpop.f32.mrb[0].mxu0
        %6277 = vmatprep.mubr.bf16.mxu0 0
        %6278 = vmatmul.mubr.bf16.gmra.mrb[0].mxu0 %v6145
        %v6279 = vpop.f32.mrb[0].mxu0
        %v6280 = vadd.f32 0.0, %v6279
        %v6281 = vpop.f32.mrb[0].mxu0
        %v6282 = vpop.f32.mrb[0].mxu0
        %v6283 = vadd.f32 0.0, %v6282
        %v6284 = vpop.f32.mrb[0].mxu0
        %6285 = vmatprep.mubr.bf16.mxu0 0
        %6286 = vmatmul.mubr.bf16.gmra.mrb[0].mxu0 %v6148
        %v6287 = vpop.f32.mrb[0].mxu0
        %v6288 = vpop.f32.mrb[0].mxu0
        %v6289 = vpop.f32.mrb[0].mxu0
        %v6290 = vadd.f32 0.0, %v6289
        %v6291 = vpop.f32.mrb[0].mxu0
        %6292 = vmatprep.mubr.bf16.mxu0 0
        %6293 = vmatmul.mubr.bf16.gmra.mrb[0].mxu0 %v6151
        %v6294 = vpop.f32.mrb[0].mxu0
        %v6295 = vadd.f32 0.0, %v6294
        %v6296 = vpop.f32.mrb[0].mxu0
        %v6297 = vpop.f32.mrb[0].mxu0
        %v6298 = vpop.f32.mrb[0].mxu0
        %6299 = vmatprep.mubr.bf16.mxu0 0
        %6300 = vmatmul.mubr.bf16.gmra.mrb[0].mxu0 %v6154
        %v6301 = vpop.f32.mrb[0].mxu0
        %v6302 = vadd.f32 0.0, %v6301
        %v6303 = vpop.f32.mrb[0].mxu0
        %v6304 = vpop.f32.mrb[0].mxu0
        %v6305 = vadd.f32 0.0, %v6304
        %v6306 = vpop.f32.mrb[0].mxu0
        %6307 = vmatprep.mubr.bf16.mxu0 0
        %6308 = vmatmul.mubr.bf16.gmra.mrb[0].mxu0 %v6157
        %v6309 = vpop.f32.mrb[0].mxu0
        %v6310 = vpop.f32.mrb[0].mxu0
        %v6311 = vpop.f32.mrb[0].mxu0
        %v6312 = vadd.f32 0.0, %v6311
        %v6313 = vpop.f32.mrb[0].mxu0
        %6314 = vmatprep.mubr.bf16.mxu0 0
        %6315 = vmatmul.mubr.bf16.gmra.mrb[0].mxu0 %v6160
        %v6316 = vpop.f32.mrb[0].mxu0
        %v6317 = vadd.f32 0.0, %v6316
        %v6318 = vpop.f32.mrb[0].mxu0
        %v6319 = vpop.f32.mrb[0].mxu0
        %v6320 = vpop.f32.mrb[0].mxu0
        %6321 = vmatprep.mubr.bf16.mxu0 0
        %6322 = vmatmul.mubr.bf16.gmra.mrb[0].mxu0 %v6163
        %v6323 = vpop.f32.mrb[0].mxu0
        %v6324 = vadd.f32 0.0, %v6323
        %v6325 = vpop.f32.mrb[0].mxu0
        %v6326 = vpop.f32.mrb[0].mxu0
        %v6327 = vadd.f32 0.0, %v6326
        %v6328 = vpop.f32.mrb[0].mxu0
        %6329 = vmatprep.mubr.bf16.mxu0 0
        %6330 = vmatmul.mubr.bf16.gmra.mrb[0].mxu0 %v6166
        %v6331 = vpop.f32.mrb[0].mxu0
        %v6332 = vpop.f32.mrb[0].mxu0
        %v6333 = vpop.f32.mrb[0].mxu0
        %v6334 = vadd.f32 0.0, %v6333
        %v6335 = vpop.f32.mrb[0].mxu0
        %6336 = vmatprep.mubr.bf16.mxu0 0
        %6337 = vmatmul.mubr.bf16.gmra.mrb[0].mxu0 %v6169
        %v6338 = vpop.f32.mrb[0].mxu0
        %v6339 = vadd.f32 0.0, %v6338
        %v6340 = vpop.f32.mrb[0].mxu0
        %v6341 = vpop.f32.mrb[0].mxu0
        %v6342 = vpop.f32.mrb[0].mxu0
        %6343 = vmatprep.mubr.bf16.mxu0 0
        %6344 = vmatmul.mubr.bf16.gmra.mrb[0].mxu0 %v6172
        %v6345 = vpop.f32.mrb[0].mxu0
        %v6346 = vadd.f32 0.0, %v6345
        %v6347 = vpop.f32.mrb[0].mxu0
        %v6348 = vpop.f32.mrb[0].mxu0
        %v6349 = vadd.f32 0.0, %v6348
        %v6350 = vpop.f32.mrb[0].mxu0
        %6351 = vmatprep.mubr.bf16.mxu0 0
        %6352 = vmatmul.mubr.bf16.gmra.mrb[0].mxu0 %v6175
        %v6353 = vpop.f32.mrb[0].mxu0
        %v6354 = vpop.f32.mrb[0].mxu0
        %v6355 = vpop.f32.mrb[0].mxu0
        %v6356 = vadd.f32 0.0, %v6355
        %v6357 = vpop.f32.mrb[0].mxu0
        %6358 = vmatprep.mubr.bf16.mxu0 0
        %6359 = vmatmul.mubr.bf16.gmra.mrb[0].mxu0 %v6178
        %v6360 = vpop.f32.mrb[0].mxu0
        %v6361 = vadd.f32 0.0, %v6360
        %v6362 = vpop.f32.mrb[0].mxu0
        %v6363 = vpop.f32.mrb[0].mxu0
        %v6364 = vpop.f32.mrb[0].mxu0
        %6365 = vmatprep.mubr.bf16.mxu0 0
        %6366 = vmatmul.mubr.bf16.gmra.mrb[0].mxu0 %v6181
        %v6367 = vpop.f32.mrb[0].mxu0
        %v6368 = vadd.f32 0.0, %v6367
        %v6369 = vpop.f32.mrb[0].mxu0
        %v6370 = vpop.f32.mrb[0].mxu0
        %v6371 = vadd.f32 0.0, %v6370
        %v6372 = vpop.f32.mrb[0].mxu0
        %6373 = vmatprep.mubr.bf16.mxu0 0
        %6374 = vmatmul.mubr.bf16.gmra.mrb[0].mxu0 %v6184
        %v6375 = vpop.f32.mrb[0].mxu0
        %v6376 = vpop.f32.mrb[0].mxu0
        %v6377 = vpop.f32.mrb[0].mxu0
        %v6378 = vadd.f32 0.0, %v6377
        %v6379 = vpop.f32.mrb[0].mxu0
        %6380 = vmatprep.mubr.bf16.mxu0 0
        %6381 = vmatmul.mubr.bf16.gmra.mrb[0].mxu0 %v6187
        %v6382 = vpop.f32.mrb[0].mxu0
        %v6383 = vadd.f32 0.0, %v6382
        %v6384 = vpop.f32.mrb[0].mxu0
        %v6385 = vpop.f32.mrb[0].mxu0
        %v6386 = vpop.f32.mrb[0].mxu0
        %6387 = vmatprep.mubr.bf16.mxu0 0
        %6388 = vmatmul.mubr.bf16.gmra.mrb[0].mxu0 %v6190
        %v6389 = vpop.f32.mrb[0].mxu0
        %v6390 = vadd.f32 0.0, %v6389
        %v6391 = vpop.f32.mrb[0].mxu0
        %v6392 = vpop.f32.mrb[0].mxu0
        %v6393 = vadd.f32 0.0, %v6392
        %v6394 = vpop.f32.mrb[0].mxu0
        %6395 = vmatprep.mubr.bf16.mxu0 0
        %6396 = vmatmul.mubr.bf16.gmra.mrb[0].mxu0 %v6193
        %v6397 = vpop.f32.mrb[0].mxu0
        %v6398 = vpop.f32.mrb[0].mxu0
        %v6399 = vpop.f32.mrb[0].mxu0
        %v6400 = vadd.f32 0.0, %v6399
        %v6401 = vpop.f32.mrb[0].mxu0
        %6402 = vmatprep.mubr.bf16.mxu0 0
        %6403 = vmatmul.mubr.bf16.gmra.mrb[0].mxu0 %v6196
        %v6404 = vpop.f32.mrb[0].mxu0
        %v6405 = vadd.f32 0.0, %v6404
        %v6406 = vpop.f32.mrb[0].mxu0
        %v6407 = vpop.f32.mrb[0].mxu0
        %v6408 = vpop.f32.mrb[0].mxu0
        %6409 = vdwg.mxu0
        %v6410 = vadd.f32 %v5919, %v6236
        %v6411 = vadd.f32 %v5920, %v6239
        %v6412 = vadd.f32 %v5921, %v6246
        %v6413 = vadd.f32 %v5922, %v6251
        %v6414 = vadd.f32 %v5923, %v6258
        %v6415 = vadd.f32 %v5924, %v6261
        %v6416 = vadd.f32 %v5925, %v6268
        %v6417 = vadd.f32 %v5926, %v6273
        %v6418 = vadd.f32 %v5927, %v6280
        %v6419 = vadd.f32 %v5928, %v6283
        %v6420 = vadd.f32 %v5929, %v6290
        %v6421 = vadd.f32 %v5930, %v6295
        %v6422 = vadd.f32 %v5931, %v6302
        %v6423 = vadd.f32 %v5932, %v6305
        %v6424 = vadd.f32 %v5933, %v6312
        %v6425 = vadd.f32 %v5934, %v6317
        %v6426 = vadd.f32 %v5935, %v6324
        %v6427 = vadd.f32 %v5936, %v6327
        %v6428 = vadd.f32 %v5937, %v6334
        %v6429 = vadd.f32 %v5938, %v6339
        %v6430 = vadd.f32 %v5939, %v6346
        %v6431 = vadd.f32 %v5940, %v6349
        %v6432 = vadd.f32 %v5941, %v6356
        %v6433 = vadd.f32 %v5942, %v6361
        %v6434 = vadd.f32 %v5943, %v6368
        %v6435 = vadd.f32 %v5944, %v6371
        %v6436 = vadd.f32 %v5945, %v6378
        %v6437 = vadd.f32 %v5946, %v6383
        %v6438 = vadd.f32 %v5947, %v6390
        %v6439 = vadd.f32 %v5948, %v6393
        %v6440 = vadd.f32 %v5949, %v6400
        %v6441 = vadd.f32 %v5950, %v6405
        %v6442 = vld [vmem:[%s208 + $0x24] sm:$0xf]
        %v6443 = vld [vmem:[%s208 + $0x28] sm:$0xf]
        %v6444 = vld [vmem:[%s208 + $0x2c] sm:$0xf]
        %v6445 = vld [vmem:[%s208 + $0x30] sm:$0xf]
        %v6446 = vld [vmem:[%s208 + $0x34] sm:$0xf]
        %v6447 = vld [vmem:[%s208 + $0x38] sm:$0xf]
        %v6448 = vld [vmem:[%s208 + $0x3c] sm:$0xf]
        %v6449 = vld [vmem:[%s208 + $0x40] sm:$0xf]
        %v6450 = vld [vmem:[%s208 + $0x44] sm:$0xf]
        %v6451 = vld [vmem:[%s208 + $0x48] sm:$0xf]
        %v6452 = vld [vmem:[%s208 + $0x4c] sm:$0xf]
        %v6453 = vld [vmem:[%s208 + $0x50] sm:$0xf]
        %v6454 = vld [vmem:[%s208 + $0x54] sm:$0xf]
        %v6455 = vld [vmem:[%s208 + $0x58] sm:$0xf]
        %v6456 = vld [vmem:[%s208 + $0x5c] sm:$0xf]
        %v6457 = vld [vmem:[%s208 + $0x60] sm:$0xf]
        %v6458 = vld [vmem:[%s208 + $0x64] sm:$0xf]
        %v6459 = vld [vmem:[%s208 + $0x68] sm:$0xf]
        %v6460 = vld [vmem:[%s208 + $0x6c] sm:$0xf]
        %v6461 = vld [vmem:[%s208 + $0x70] sm:$0xf]
        %v6462 = vld [vmem:[%s208 + $0x74] sm:$0xf]
        %v6463 = vld [vmem:[%s208 + $0x78] sm:$0xf]
        %v6464 = vld [vmem:[%s208 + $0x7c] sm:$0xf]
        %v6465 = vld [vmem:[%s208 + $0x80] sm:$0xf]
        %v6466 = vld [vmem:[%s208 + $0x84] sm:$0xf]
        %v6467 = vld [vmem:[%s208 + $0x88] sm:$0xf]
        %v6468 = vld [vmem:[%s208 + $0x8c] sm:$0xf]
        %v6469 = vld [vmem:[%s208 + $0x90] sm:$0xf]
        %v6470 = vld [vmem:[%s208 + $0x94] sm:$0xf]
        %v6471 = vld [vmem:[%s208 + $0x98] sm:$0xf]
        %v6472 = vld [vmem:[%s208 + $0x9c] sm:$0xf]
        %v6473 = vld [vmem:[%s208 + $0xa0] sm:$0xf]
        %v6474 = vld [vmem:[%s208 + $0xa4] sm:$0xf]
        %v6475 = vld [vmem:[%s208 + $0xa8] sm:$0xf]
        %v6476 = vld [vmem:[%s208 + $0xac] sm:$0xf]
        %v6477 = vld [vmem:[%s208 + $0xb0] sm:$0xf]
        %v6478 = vld [vmem:[%s208 + $0xb4] sm:$0xf]
        %v6479 = vld [vmem:[%s208 + $0xb8] sm:$0xf]
        %v6480 = vld [vmem:[%s208 + $0xbc] sm:$0xf]
        %v6481 = vld [vmem:[%s208 + $0xc0] sm:$0xf]
        %v6482 = vld [vmem:[%s208 + $0xc4] sm:$0xf]
        %v6483 = vld [vmem:[%s208 + $0xc8] sm:$0xf]
        %v6484 = vld [vmem:[%s208 + $0xcc] sm:$0xf]
        %v6485 = vld [vmem:[%s208 + $0xd0] sm:$0xf]
        %v6486 = vld [vmem:[%s208 + $0xd4] sm:$0xf]
        %v6487 = vld [vmem:[%s208 + $0xd8] sm:$0xf]
        %v6488 = vld [vmem:[%s208 + $0xdc] sm:$0xf]
        %v6489 = vld [vmem:[%s208 + $0xe0] sm:$0xf]
        %v6490 = vld [vmem:[%s208 + $0xe4] sm:$0x1]
        %v6491 = vld [vmem:[%s212 + $0x4c] sm:$0xc]
        %v6492 = vld [vmem:[%s212 + $0x50] sm:$0xf]
        %v6542 = vunpack.c.l.b16 %v6442
        %v6543 = vunpack.c.l.b16 %v6443
        %v6544 = vunpack.c.l.b16 %v6444
        %v6545 = vunpack.c.l.b16 %v6445
        %v6546 = vunpack.c.l.b16 %v6446
        %v6547 = vunpack.c.l.b16 %v6447
        %v6548 = vunpack.c.l.b16 %v6448
        %v6549 = vunpack.c.l.b16 %v6449
        %v6550 = vunpack.c.l.b16 %v6450
        %v6551 = vunpack.c.l.b16 %v6451
        %v6552 = vunpack.c.l.b16 %v6452
        %v6553 = vunpack.c.l.b16 %v6453
        %v6554 = vunpack.c.l.b16 %v6454
        %v6555 = vunpack.c.l.b16 %v6455
        %v6556 = vunpack.c.l.b16 %v6456
        %v6557 = vunpack.c.l.b16 %v6457
        %v6558 = vunpack.c.l.b16 %v6458
        %v6559 = vunpack.c.l.b16 %v6459
        %v6560 = vunpack.c.l.b16 %v6460
        %v6561 = vunpack.c.l.b16 %v6461
        %v6562 = vunpack.c.l.b16 %v6462
        %v6563 = vunpack.c.l.b16 %v6463
        %v6564 = vunpack.c.l.b16 %v6464
        %v6565 = vunpack.c.l.b16 %v6465
        %v6566 = vunpack.c.l.b16 %v6466
        %v6567 = vunpack.c.l.b16 %v6467
        %v6568 = vunpack.c.l.b16 %v6468
        %v6569 = vunpack.c.l.b16 %v6469
        %v6570 = vunpack.c.l.b16 %v6470
        %v6571 = vunpack.c.l.b16 %v6471
        %v6572 = vunpack.c.l.b16 %v6472
        %v6573 = vunpack.c.l.b16 %v6473
        %v6574 = vunpack.c.l.b16 %v6474
        %v6575 = vunpack.c.l.b16 %v6475
        %v6576 = vunpack.c.l.b16 %v6476
        %v6577 = vunpack.c.l.b16 %v6477
        %v6578 = vunpack.c.l.b16 %v6478
        %v6579 = vunpack.c.l.b16 %v6479
        %v6580 = vunpack.c.l.b16 %v6480
        %v6581 = vunpack.c.l.b16 %v6481
        %v6582 = vunpack.c.l.b16 %v6482
        %v6583 = vunpack.c.l.b16 %v6483
        %v6584 = vunpack.c.l.b16 %v6484
        %v6585 = vunpack.c.l.b16 %v6485
        %v6586 = vunpack.c.l.b16 %v6486
        %v6587 = vunpack.c.l.b16 %v6487
        %v6588 = vunpack.c.l.b16 %v6488
        %v6589 = vunpack.c.l.b16 %v6489
        %v6590 = vunpack.c.l.b16 %v6490
        %v6591 = vpack.c.b16 %v6543, %v6542
        %v6592 = vpack.c.b16 %v6545, %v6544
        %v6593 = vpack.c.b16 %v6547, %v6546
        %v6594 = vpack.c.b16 %v6549, %v6548
        %v6595 = vpack.c.b16 %v6551, %v6550
        %v6596 = vpack.c.b16 %v6553, %v6552
        %v6597 = vpack.c.b16 %v6555, %v6554
        %v6598 = vpack.c.b16 %v6557, %v6556
        %v6599 = vpack.c.b16 %v6559, %v6558
        %v6600 = vpack.c.b16 %v6561, %v6560
        %v6601 = vpack.c.b16 %v6563, %v6562
        %v6602 = vpack.c.b16 %v6565, %v6564
        %v6603 = vpack.c.b16 %v6567, %v6566
        %v6604 = vpack.c.b16 %v6569, %v6568
        %v6605 = vpack.c.b16 %v6571, %v6570
        %v6606 = vpack.c.b16 %v6573, %v6572
        %v6607 = vpack.c.b16 %v6575, %v6574
        %v6608 = vpack.c.b16 %v6577, %v6576
        %v6609 = vpack.c.b16 %v6579, %v6578
        %v6610 = vpack.c.b16 %v6581, %v6580
        %v6611 = vpack.c.b16 %v6583, %v6582
        %v6612 = vpack.c.b16 %v6585, %v6584
        %v6613 = vpack.c.b16 %v6587, %v6586
        %v6614 = vpack.c.b16 %v6589, %v6588
        %v6615 = vpack.c.b16 %v6590, %v6590
        %v6617 = vshrl.u32 %v6591, 16
        %v6619 = vshll.u32 %v6591, 16
        %v6621 = vrot.slane %v6619, 1
        %v6622 = vor.u32 %v6617, %v6621
        %v6624 = vshll.u32 %v6592, 16
        %v6626 = vrot.slane %v6624, 1
        %v6627 = vsel %vm390, %v6622, %v6626
        %v6628 = vshrl.u32 %v6592, 16
        %v6630 = vor.u32 %v6628, %v6626
        %v6632 = vshll.u32 %v6593, 16
        %v6634 = vrot.slane %v6632, 1
        %v6635 = vsel %vm390, %v6630, %v6634
        %v6636 = vshrl.u32 %v6593, 16
        %v6638 = vor.u32 %v6636, %v6634
        %v6640 = vshll.u32 %v6594, 16
        %v6642 = vrot.slane %v6640, 1
        %v6643 = vsel %vm390, %v6638, %v6642
        %v6644 = vshrl.u32 %v6594, 16
        %v6646 = vor.u32 %v6644, %v6642
        %v6648 = vshll.u32 %v6595, 16
        %v6650 = vrot.slane %v6648, 1
        %v6651 = vsel %vm390, %v6646, %v6650
        %v6652 = vshrl.u32 %v6595, 16
        %v6654 = vor.u32 %v6652, %v6650
        %v6656 = vshll.u32 %v6596, 16
        %v6658 = vrot.slane %v6656, 1
        %v6659 = vsel %vm390, %v6654, %v6658
        %v6660 = vshrl.u32 %v6596, 16
        %v6662 = vor.u32 %v6660, %v6658
        %v6664 = vshll.u32 %v6597, 16
        %v6666 = vrot.slane %v6664, 1
        %v6667 = vsel %vm390, %v6662, %v6666
        %v6668 = vshrl.u32 %v6597, 16
        %v6670 = vor.u32 %v6668, %v6666
        %v6672 = vshll.u32 %v6598, 16
        %v6674 = vrot.slane %v6672, 1
        %v6675 = vsel %vm390, %v6670, %v6674
        %v6676 = vshrl.u32 %v6598, 16
        %v6678 = vor.u32 %v6676, %v6674
        %v6680 = vshll.u32 %v6599, 16
        %v6682 = vrot.slane %v6680, 1
        %v6683 = vsel %vm390, %v6678, %v6682
        %v6684 = vshrl.u32 %v6599, 16
        %v6686 = vor.u32 %v6684, %v6682
        %v6688 = vshll.u32 %v6600, 16
        %v6690 = vrot.slane %v6688, 1
        %v6691 = vsel %vm390, %v6686, %v6690
        %v6692 = vshrl.u32 %v6600, 16
        %v6694 = vor.u32 %v6692, %v6690
        %v6696 = vshll.u32 %v6601, 16
        %v6698 = vrot.slane %v6696, 1
        %v6699 = vsel %vm390, %v6694, %v6698
        %v6700 = vshrl.u32 %v6601, 16
        %v6702 = vor.u32 %v6700, %v6698
        %v6704 = vshll.u32 %v6602, 16
        %v6706 = vrot.slane %v6704, 1
        %v6707 = vsel %vm390, %v6702, %v6706
        %v6708 = vshrl.u32 %v6602, 16
        %v6710 = vor.u32 %v6708, %v6706
        %v6712 = vshll.u32 %v6603, 16
        %v6714 = vrot.slane %v6712, 1
        %v6715 = vsel %vm390, %v6710, %v6714
        %v6716 = vshrl.u32 %v6603, 16
        %v6718 = vor.u32 %v6716, %v6714
        %v6720 = vshll.u32 %v6604, 16
        %v6722 = vrot.slane %v6720, 1
        %v6723 = vsel %vm390, %v6718, %v6722
        %v6724 = vshrl.u32 %v6604, 16
        %v6726 = vor.u32 %v6724, %v6722
        %v6728 = vshll.u32 %v6605, 16
        %v6730 = vrot.slane %v6728, 1
        %v6731 = vsel %vm390, %v6726, %v6730
        %v6732 = vshrl.u32 %v6605, 16
        %v6734 = vor.u32 %v6732, %v6730
        %v6736 = vshll.u32 %v6606, 16
        %v6738 = vrot.slane %v6736, 1
        %v6739 = vsel %vm390, %v6734, %v6738
        %v6740 = vshrl.u32 %v6606, 16
        %v6742 = vor.u32 %v6740, %v6738
        %v6744 = vshll.u32 %v6607, 16
        %v6746 = vrot.slane %v6744, 1
        %v6747 = vsel %vm390, %v6742, %v6746
        %v6748 = vshrl.u32 %v6607, 16
        %v6750 = vor.u32 %v6748, %v6746
        %v6752 = vshll.u32 %v6608, 16
        %v6754 = vrot.slane %v6752, 1
        %v6755 = vsel %vm390, %v6750, %v6754
        %v6756 = vshrl.u32 %v6608, 16
        %v6758 = vor.u32 %v6756, %v6754
        %v6760 = vshll.u32 %v6609, 16
        %v6762 = vrot.slane %v6760, 1
        %v6763 = vsel %vm390, %v6758, %v6762
        %v6764 = vshrl.u32 %v6609, 16
        %v6766 = vor.u32 %v6764, %v6762
        %v6768 = vshll.u32 %v6610, 16
        %v6770 = vrot.slane %v6768, 1
        %v6771 = vsel %vm390, %v6766, %v6770
        %v6772 = vshrl.u32 %v6610, 16
        %v6774 = vor.u32 %v6772, %v6770
        %v6776 = vshll.u32 %v6611, 16
        %v6778 = vrot.slane %v6776, 1
        %v6779 = vsel %vm390, %v6774, %v6778
        %v6780 = vshrl.u32 %v6611, 16
        %v6782 = vor.u32 %v6780, %v6778
        %v6784 = vshll.u32 %v6612, 16
        %v6786 = vrot.slane %v6784, 1
        %v6787 = vsel %vm390, %v6782, %v6786
        %v6788 = vshrl.u32 %v6612, 16
        %v6790 = vor.u32 %v6788, %v6786
        %v6792 = vshll.u32 %v6613, 16
        %v6794 = vrot.slane %v6792, 1
        %v6795 = vsel %vm390, %v6790, %v6794
        %v6796 = vshrl.u32 %v6613, 16
        %v6798 = vor.u32 %v6796, %v6794
        %v6800 = vshll.u32 %v6614, 16
        %v6802 = vrot.slane %v6800, 1
        %v6803 = vsel %vm390, %v6798, %v6802
        %v6804 = vshrl.u32 %v6614, 16
        %v6806 = vor.u32 %v6804, %v6802
        %v6808 = vshll.u32 %v6615, 16
        %v6810 = vrot.slane %v6808, 1
        %v6811 = vsel %vm390, %v6806, %v6810
        %v6814 = vunpack.c.l.b16 %v6491
        %v6815 = vunpack.c.l.b16 %v6492
        %v6816 = vpack.c.b16 %v6815, %v6814
        %v6817 = vrot.slane %v6816, 2
        %v6819 = vsel %vm593, %v6627, 0
        %v6822 = vsel %vm593, %v6635, 0
        %v6825 = vsel %vm593, %v6643, 0
        %v6828 = vsel %vm593, %v6651, 0
        %v6831 = vsel %vm593, %v6659, 0
        %v6834 = vsel %vm593, %v6667, 0
        %v6837 = vsel %vm593, %v6675, 0
        %v6840 = vsel %vm593, %v6683, 0
        %v6843 = vsel %vm593, %v6691, 0
        %v6846 = vsel %vm593, %v6699, 0
        %v6849 = vsel %vm593, %v6707, 0
        %v6852 = vsel %vm593, %v6715, 0
        %v6855 = vsel %vm593, %v6723, 0
        %v6858 = vsel %vm593, %v6731, 0
        %v6861 = vsel %vm593, %v6739, 0
        %v6864 = vsel %vm593, %v6747, 0
        %v6867 = vsel %vm593, %v6755, 0
        %v6870 = vsel %vm593, %v6763, 0
        %v6873 = vsel %vm593, %v6771, 0
        %v6876 = vsel %vm593, %v6779, 0
        %v6879 = vsel %vm593, %v6787, 0
        %v6882 = vsel %vm593, %v6795, 0
        %v6885 = vsel %vm593, %v6803, 0
        %v6888 = vsel %vm593, %v6811, 0
        %v6891 = vsel %vm666, %v6817, 0
        %6893 = vmatprep.subr.bf16.mxu0 0
        %6894 = vmatpush1.bf16.msra.mxu0 %v6891
        %6895 = vmatprep.subr.bf16.mxu0 0
        %6896 = vmatpush1.bf16.msra.mxu0 0
        %6897 = vmatprep.subr.bf16.mxu0 0
        %6898 = vmatpush1.bf16.msra.mxu0 0
        %6899 = vmatprep.subr.bf16.mxu0 0
        %6900 = vmatpush1.bf16.msra.mxu0 0
        %6901 = vmatprep.subr.bf16.mxu0 0
        %6902 = vmatpush1.bf16.msra.mxu0 0
        %6903 = vmatprep.subr.bf16.mxu0 0
        %6904 = vmatpush1.bf16.msra.mxu0 0
        %6905 = vmatprep.subr.bf16.mxu0 0
        %6906 = vmatpush1.bf16.msra.mxu0 0
        %6907 = vmatprep.subr.bf16.mxu0 0
        %6908 = vmatpush1.bf16.msra.mxu0 0
        %6909 = vmatprep.subr.bf16.mxu0 0
        %6910 = vmatpush1.bf16.msra.mxu0 0
        %6911 = vmatprep.subr.bf16.mxu0 0
        %6912 = vmatpush1.bf16.msra.mxu0 0
        %6913 = vmatprep.subr.bf16.mxu0 0
        %6914 = vmatpush1.bf16.msra.mxu0 0
        %6915 = vmatprep.subr.bf16.mxu0 0
        %6916 = vmatpush1.bf16.msra.mxu0 0
        %6917 = vmatprep.subr.bf16.mxu0 0
        %6918 = vmatpush1.bf16.msra.mxu0 0
        %6919 = vmatprep.subr.bf16.mxu0 0
        %6920 = vmatpush1.bf16.msra.mxu0 0
        %6921 = vmatprep.subr.bf16.mxu0 0
        %6922 = vmatpush1.bf16.msra.mxu0 0
        %6923 = vmatprep.subr.bf16.mxu0 0
        %6924 = vmatpush1.bf16.msra.mxu0 0
        %6925 = vmatprep.mubr.bf16.mxu0 0
        %6926 = vmatmul.mubr.bf16.gmra.mrb[0].mxu0 %v6819
        %v6927 = vpop.f32.mrb[0].mxu0
        %v6928 = vadd.f32 0.0, %v6927
        %v6929 = vpop.f32.mrb[0].mxu0
        %v6930 = vpop.f32.mrb[0].mxu0
        %v6931 = vadd.f32 0.0, %v6930
        %v6932 = vpop.f32.mrb[0].mxu0
        %6933 = vmatprep.mubr.bf16.mxu0 0
        %6934 = vmatmul.mubr.bf16.gmra.mrb[0].mxu0 %v6822
        %v6935 = vpop.f32.mrb[0].mxu0
        %v6936 = vpop.f32.mrb[0].mxu0
        %v6937 = vpop.f32.mrb[0].mxu0
        %v6938 = vadd.f32 0.0, %v6937
        %v6939 = vpop.f32.mrb[0].mxu0
        %6940 = vmatprep.mubr.bf16.mxu0 0
        %6941 = vmatmul.mubr.bf16.gmra.mrb[0].mxu0 %v6825
        %v6942 = vpop.f32.mrb[0].mxu0
        %v6943 = vadd.f32 0.0, %v6942
        %v6944 = vpop.f32.mrb[0].mxu0
        %v6945 = vpop.f32.mrb[0].mxu0
        %v6946 = vpop.f32.mrb[0].mxu0
        %6947 = vmatprep.mubr.bf16.mxu0 0
        %6948 = vmatmul.mubr.bf16.gmra.mrb[0].mxu0 %v6828
        %v6949 = vpop.f32.mrb[0].mxu0
        %v6950 = vadd.f32 0.0, %v6949
        %v6951 = vpop.f32.mrb[0].mxu0
        %v6952 = vpop.f32.mrb[0].mxu0
        %v6953 = vadd.f32 0.0, %v6952
        %v6954 = vpop.f32.mrb[0].mxu0
        %6955 = vmatprep.mubr.bf16.mxu0 0
        %6956 = vmatmul.mubr.bf16.gmra.mrb[0].mxu0 %v6831
        %v6957 = vpop.f32.mrb[0].mxu0
        %v6958 = vpop.f32.mrb[0].mxu0
        %v6959 = vpop.f32.mrb[0].mxu0
        %v6960 = vadd.f32 0.0, %v6959
        %v6961 = vpop.f32.mrb[0].mxu0
        %6962 = vmatprep.mubr.bf16.mxu0 0
        %6963 = vmatmul.mubr.bf16.gmra.mrb[0].mxu0 %v6834
        %v6964 = vpop.f32.mrb[0].mxu0
        %v6965 = vadd.f32 0.0, %v6964
        %v6966 = vpop.f32.mrb[0].mxu0
        %v6967 = vpop.f32.mrb[0].mxu0
        %v6968 = vpop.f32.mrb[0].mxu0
        %6969 = vmatprep.mubr.bf16.mxu0 0
        %6970 = vmatmul.mubr.bf16.gmra.mrb[0].mxu0 %v6837
        %v6971 = vpop.f32.mrb[0].mxu0
        %v6972 = vadd.f32 0.0, %v6971
        %v6973 = vpop.f32.mrb[0].mxu0
        %v6974 = vpop.f32.mrb[0].mxu0
        %v6975 = vadd.f32 0.0, %v6974
        %v6976 = vpop.f32.mrb[0].mxu0
        %6977 = vmatprep.mubr.bf16.mxu0 0
        %6978 = vmatmul.mubr.bf16.gmra.mrb[0].mxu0 %v6840
        %v6979 = vpop.f32.mrb[0].mxu0
        %v6980 = vpop.f32.mrb[0].mxu0
        %v6981 = vpop.f32.mrb[0].mxu0
        %v6982 = vadd.f32 0.0, %v6981
        %v6983 = vpop.f32.mrb[0].mxu0
        %6984 = vmatprep.mubr.bf16.mxu0 0
        %6985 = vmatmul.mubr.bf16.gmra.mrb[0].mxu0 %v6843
        %v6986 = vpop.f32.mrb[0].mxu0
        %v6987 = vadd.f32 0.0, %v6986
        %v6988 = vpop.f32.mrb[0].mxu0
        %v6989 = vpop.f32.mrb[0].mxu0
        %v6990 = vpop.f32.mrb[0].mxu0
        %6991 = vmatprep.mubr.bf16.mxu0 0
        %6992 = vmatmul.mubr.bf16.gmra.mrb[0].mxu0 %v6846
        %v6993 = vpop.f32.mrb[0].mxu0
        %v6994 = vadd.f32 0.0, %v6993
        %v6995 = vpop.f32.mrb[0].mxu0
        %v6996 = vpop.f32.mrb[0].mxu0
        %v6997 = vadd.f32 0.0, %v6996
        %v6998 = vpop.f32.mrb[0].mxu0
        %6999 = vmatprep.mubr.bf16.mxu0 0
        %7000 = vmatmul.mubr.bf16.gmra.mrb[0].mxu0 %v6849
        %v7001 = vpop.f32.mrb[0].mxu0
        %v7002 = vpop.f32.mrb[0].mxu0
        %v7003 = vpop.f32.mrb[0].mxu0
        %v7004 = vadd.f32 0.0, %v7003
        %v7005 = vpop.f32.mrb[0].mxu0
        %7006 = vmatprep.mubr.bf16.mxu0 0
        %7007 = vmatmul.mubr.bf16.gmra.mrb[0].mxu0 %v6852
        %v7008 = vpop.f32.mrb[0].mxu0
        %v7009 = vadd.f32 0.0, %v7008
        %v7010 = vpop.f32.mrb[0].mxu0
        %v7011 = vpop.f32.mrb[0].mxu0
        %v7012 = vpop.f32.mrb[0].mxu0
        %7013 = vmatprep.mubr.bf16.mxu0 0
        %7014 = vmatmul.mubr.bf16.gmra.mrb[0].mxu0 %v6855
        %v7015 = vpop.f32.mrb[0].mxu0
        %v7016 = vadd.f32 0.0, %v7015
        %v7017 = vpop.f32.mrb[0].mxu0
        %v7018 = vpop.f32.mrb[0].mxu0
        %v7019 = vadd.f32 0.0, %v7018
        %v7020 = vpop.f32.mrb[0].mxu0
        %7021 = vmatprep.mubr.bf16.mxu0 0
        %7022 = vmatmul.mubr.bf16.gmra.mrb[0].mxu0 %v6858
        %v7023 = vpop.f32.mrb[0].mxu0
        %v7024 = vpop.f32.mrb[0].mxu0
        %v7025 = vpop.f32.mrb[0].mxu0
        %v7026 = vadd.f32 0.0, %v7025
        %v7027 = vpop.f32.mrb[0].mxu0
        %7028 = vmatprep.mubr.bf16.mxu0 0
        %7029 = vmatmul.mubr.bf16.gmra.mrb[0].mxu0 %v6861
        %v7030 = vpop.f32.mrb[0].mxu0
        %v7031 = vadd.f32 0.0, %v7030
        %v7032 = vpop.f32.mrb[0].mxu0
        %v7033 = vpop.f32.mrb[0].mxu0
        %v7034 = vpop.f32.mrb[0].mxu0
        %7035 = vmatprep.mubr.bf16.mxu0 0
        %7036 = vmatmul.mubr.bf16.gmra.mrb[0].mxu0 %v6864
        %v7037 = vpop.f32.mrb[0].mxu0
        %v7038 = vadd.f32 0.0, %v7037
        %v7039 = vpop.f32.mrb[0].mxu0
        %v7040 = vpop.f32.mrb[0].mxu0
        %v7041 = vadd.f32 0.0, %v7040
        %v7042 = vpop.f32.mrb[0].mxu0
        %7043 = vmatprep.mubr.bf16.mxu0 0
        %7044 = vmatmul.mubr.bf16.gmra.mrb[0].mxu0 %v6867
        %v7045 = vpop.f32.mrb[0].mxu0
        %v7046 = vpop.f32.mrb[0].mxu0
        %v7047 = vpop.f32.mrb[0].mxu0
        %v7048 = vadd.f32 0.0, %v7047
        %v7049 = vpop.f32.mrb[0].mxu0
        %7050 = vmatprep.mubr.bf16.mxu0 0
        %7051 = vmatmul.mubr.bf16.gmra.mrb[0].mxu0 %v6870
        %v7052 = vpop.f32.mrb[0].mxu0
        %v7053 = vadd.f32 0.0, %v7052
        %v7054 = vpop.f32.mrb[0].mxu0
        %v7055 = vpop.f32.mrb[0].mxu0
        %v7056 = vpop.f32.mrb[0].mxu0
        %7057 = vmatprep.mubr.bf16.mxu0 0
        %7058 = vmatmul.mubr.bf16.gmra.mrb[0].mxu0 %v6873
        %v7059 = vpop.f32.mrb[0].mxu0
        %v7060 = vadd.f32 0.0, %v7059
        %v7061 = vpop.f32.mrb[0].mxu0
        %v7062 = vpop.f32.mrb[0].mxu0
        %v7063 = vadd.f32 0.0, %v7062
        %v7064 = vpop.f32.mrb[0].mxu0
        %7065 = vmatprep.mubr.bf16.mxu0 0
        %7066 = vmatmul.mubr.bf16.gmra.mrb[0].mxu0 %v6876
        %v7067 = vpop.f32.mrb[0].mxu0
        %v7068 = vpop.f32.mrb[0].mxu0
        %v7069 = vpop.f32.mrb[0].mxu0
        %v7070 = vadd.f32 0.0, %v7069
        %v7071 = vpop.f32.mrb[0].mxu0
        %7072 = vmatprep.mubr.bf16.mxu0 0
        %7073 = vmatmul.mubr.bf16.gmra.mrb[0].mxu0 %v6879
        %v7074 = vpop.f32.mrb[0].mxu0
        %v7075 = vadd.f32 0.0, %v7074
        %v7076 = vpop.f32.mrb[0].mxu0
        %v7077 = vpop.f32.mrb[0].mxu0
        %v7078 = vpop.f32.mrb[0].mxu0
        %7079 = vmatprep.mubr.bf16.mxu0 0
        %7080 = vmatmul.mubr.bf16.gmra.mrb[0].mxu0 %v6882
        %v7081 = vpop.f32.mrb[0].mxu0
        %v7082 = vadd.f32 0.0, %v7081
        %v7083 = vpop.f32.mrb[0].mxu0
        %v7084 = vpop.f32.mrb[0].mxu0
        %v7085 = vadd.f32 0.0, %v7084
        %v7086 = vpop.f32.mrb[0].mxu0
        %7087 = vmatprep.mubr.bf16.mxu0 0
        %7088 = vmatmul.mubr.bf16.gmra.mrb[0].mxu0 %v6885
        %v7089 = vpop.f32.mrb[0].mxu0
        %v7090 = vpop.f32.mrb[0].mxu0
        %v7091 = vpop.f32.mrb[0].mxu0
        %v7092 = vadd.f32 0.0, %v7091
        %v7093 = vpop.f32.mrb[0].mxu0
        %7094 = vmatprep.mubr.bf16.mxu0 0
        %7095 = vmatmul.mubr.bf16.gmra.mrb[0].mxu0 %v6888
        %v7096 = vpop.f32.mrb[0].mxu0
        %v7097 = vadd.f32 0.0, %v7096
        %v7098 = vpop.f32.mrb[0].mxu0
        %v7099 = vpop.f32.mrb[0].mxu0
        %v7100 = vpop.f32.mrb[0].mxu0
        %7101 = vdwg.mxu0
        %v7102 = vadd.f32 %v6410, %v6928
        %v7103 = vadd.f32 %v6411, %v6931
        %v7104 = vadd.f32 %v6412, %v6938
        %v7105 = vadd.f32 %v6413, %v6943
        %v7106 = vadd.f32 %v6414, %v6950
        %v7107 = vadd.f32 %v6415, %v6953
        %v7108 = vadd.f32 %v6416, %v6960
        %v7109 = vadd.f32 %v6417, %v6965
        %v7110 = vadd.f32 %v6418, %v6972
        %v7111 = vadd.f32 %v6419, %v6975
        %v7112 = vadd.f32 %v6420, %v6982
        %v7113 = vadd.f32 %v6421, %v6987
        %v7114 = vadd.f32 %v6422, %v6994
        %v7115 = vadd.f32 %v6423, %v6997
        %v7116 = vadd.f32 %v6424, %v7004
        %v7117 = vadd.f32 %v6425, %v7009
        %v7118 = vadd.f32 %v6426, %v7016
        %v7119 = vadd.f32 %v6427, %v7019
        %v7120 = vadd.f32 %v6428, %v7026
        %v7121 = vadd.f32 %v6429, %v7031
        %v7122 = vadd.f32 %v6430, %v7038
        %v7123 = vadd.f32 %v6431, %v7041
        %v7124 = vadd.f32 %v6432, %v7048
        %v7125 = vadd.f32 %v6433, %v7053
        %v7126 = vadd.f32 %v6434, %v7060
        %v7127 = vadd.f32 %v6435, %v7063
        %v7128 = vadd.f32 %v6436, %v7070
        %v7129 = vadd.f32 %v6437, %v7075
        %v7130 = vadd.f32 %v6438, %v7082
        %v7131 = vadd.f32 %v6439, %v7085
        %v7132 = vadd.f32 %v6440, %v7092
        %v7133 = vadd.f32 %v6441, %v7097
        %v7134 = vld [vmem:[%s208 + $0x24] sm:$0xe]
        %v7135 = vld [vmem:[%s212 + $0x54] sm:$0xf]
        %v7136 = vld [vmem:[%s212 + $0x58] sm:$0x3]
        %v7138 = vunpack.c.l.b16 %v7134
        %v7139 = vpack.c.b16 %v6543, %v7138
        %v7140 = vrot.slane %v7139, 1
        %v7141 = vrot.slane %v6592, 1
        %v7142 = vsel %vm1150, %v7140, %v7141
        %v7143 = vrot.slane %v6593, 1
        %v7144 = vsel %vm1150, %v7141, %v7143
        %v7145 = vrot.slane %v6594, 1
        %v7146 = vsel %vm1150, %v7143, %v7145
        %v7147 = vrot.slane %v6595, 1
        %v7148 = vsel %vm1150, %v7145, %v7147
        %v7149 = vrot.slane %v6596, 1
        %v7150 = vsel %vm1150, %v7147, %v7149
        %v7151 = vrot.slane %v6597, 1
        %v7152 = vsel %vm1150, %v7149, %v7151
        %v7153 = vrot.slane %v6598, 1
        %v7154 = vsel %vm1150, %v7151, %v7153
        %v7155 = vrot.slane %v6599, 1
        %v7156 = vsel %vm1150, %v7153, %v7155
        %v7157 = vrot.slane %v6600, 1
        %v7158 = vsel %vm1150, %v7155, %v7157
        %v7159 = vrot.slane %v6601, 1
        %v7160 = vsel %vm1150, %v7157, %v7159
        %v7161 = vrot.slane %v6602, 1
        %v7162 = vsel %vm1150, %v7159, %v7161
        %v7163 = vrot.slane %v6603, 1
        %v7164 = vsel %vm1150, %v7161, %v7163
        %v7165 = vrot.slane %v6604, 1
        %v7166 = vsel %vm1150, %v7163, %v7165
        %v7167 = vrot.slane %v6605, 1
        %v7168 = vsel %vm1150, %v7165, %v7167
        %v7169 = vrot.slane %v6606, 1
        %v7170 = vsel %vm1150, %v7167, %v7169
        %v7171 = vrot.slane %v6607, 1
        %v7172 = vsel %vm1150, %v7169, %v7171
        %v7173 = vrot.slane %v6608, 1
        %v7174 = vsel %vm1150, %v7171, %v7173
        %v7175 = vrot.slane %v6609, 1
        %v7176 = vsel %vm1150, %v7173, %v7175
        %v7177 = vrot.slane %v6610, 1
        %v7178 = vsel %vm1150, %v7175, %v7177
        %v7179 = vrot.slane %v6611, 1
        %v7180 = vsel %vm1150, %v7177, %v7179
        %v7181 = vrot.slane %v6612, 1
        %v7182 = vsel %vm1150, %v7179, %v7181
        %v7183 = vrot.slane %v6613, 1
        %v7184 = vsel %vm1150, %v7181, %v7183
        %v7185 = vrot.slane %v6614, 1
        %v7186 = vsel %vm1150, %v7183, %v7185
        %v7187 = vrot.slane %v6615, 1
        %v7188 = vsel %vm1150, %v7185, %v7187
        %v7191 = vunpack.c.l.b16 %v7135
        %v7192 = vunpack.c.l.b16 %v7136
        %v7193 = vpack.c.b16 %v7192, %v7191
        %v7195 = vsel %vm593, %v7142, 0
        %v7198 = vsel %vm593, %v7144, 0
        %v7201 = vsel %vm593, %v7146, 0
        %v7204 = vsel %vm593, %v7148, 0
        %v7207 = vsel %vm593, %v7150, 0
        %v7210 = vsel %vm593, %v7152, 0
        %v7213 = vsel %vm593, %v7154, 0
        %v7216 = vsel %vm593, %v7156, 0
        %v7219 = vsel %vm593, %v7158, 0
        %v7222 = vsel %vm593, %v7160, 0
        %v7225 = vsel %vm593, %v7162, 0
        %v7228 = vsel %vm593, %v7164, 0
        %v7231 = vsel %vm593, %v7166, 0
        %v7234 = vsel %vm593, %v7168, 0
        %v7237 = vsel %vm593, %v7170, 0
        %v7240 = vsel %vm593, %v7172, 0
        %v7243 = vsel %vm593, %v7174, 0
        %v7246 = vsel %vm593, %v7176, 0
        %v7249 = vsel %vm593, %v7178, 0
        %v7252 = vsel %vm593, %v7180, 0
        %v7255 = vsel %vm593, %v7182, 0
        %v7258 = vsel %vm593, %v7184, 0
        %v7261 = vsel %vm593, %v7186, 0
        %v7264 = vsel %vm593, %v7188, 0
        %v7267 = vsel %vm666, %v7193, 0
        %7269 = vmatprep.subr.bf16.mxu0 0
        %7270 = vmatpush1.bf16.msra.mxu0 %v7267
        %7271 = vmatprep.subr.bf16.mxu0 0
        %7272 = vmatpush1.bf16.msra.mxu0 0
        %7273 = vmatprep.subr.bf16.mxu0 0
        %7274 = vmatpush1.bf16.msra.mxu0 0
        %7275 = vmatprep.subr.bf16.mxu0 0
        %7276 = vmatpush1.bf16.msra.mxu0 0
        %7277 = vmatprep.subr.bf16.mxu0 0
        %7278 = vmatpush1.bf16.msra.mxu0 0
        %7279 = vmatprep.subr.bf16.mxu0 0
        %7280 = vmatpush1.bf16.msra.mxu0 0
        %7281 = vmatprep.subr.bf16.mxu0 0
        %7282 = vmatpush1.bf16.msra.mxu0 0
        %7283 = vmatprep.subr.bf16.mxu0 0
        %7284 = vmatpush1.bf16.msra.mxu0 0
        %7285 = vmatprep.subr.bf16.mxu0 0
        %7286 = vmatpush1.bf16.msra.mxu0 0
        %7287 = vmatprep.subr.bf16.mxu0 0
        %7288 = vmatpush1.bf16.msra.mxu0 0
        %7289 = vmatprep.subr.bf16.mxu0 0
        %7290 = vmatpush1.bf16.msra.mxu0 0
        %7291 = vmatprep.subr.bf16.mxu0 0
        %7292 = vmatpush1.bf16.msra.mxu0 0
        %7293 = vmatprep.subr.bf16.mxu0 0
        %7294 = vmatpush1.bf16.msra.mxu0 0
        %7295 = vmatprep.subr.bf16.mxu0 0
        %7296 = vmatpush1.bf16.msra.mxu0 0
        %7297 = vmatprep.subr.bf16.mxu0 0
        %7298 = vmatpush1.bf16.msra.mxu0 0
        %7299 = vmatprep.subr.bf16.mxu0 0
        %7300 = vmatpush1.bf16.msra.mxu0 0
        %7301 = vmatprep.mubr.bf16.mxu0 0
        %7302 = vmatmul.mubr.bf16.gmra.mrb[0].mxu0 %v7195
        %v7303 = vpop.f32.mrb[0].mxu0
        %v7304 = vadd.f32 0.0, %v7303
        %v7305 = vpop.f32.mrb[0].mxu0
        %v7306 = vpop.f32.mrb[0].mxu0
        %v7307 = vadd.f32 0.0, %v7306
        %v7308 = vpop.f32.mrb[0].mxu0
        %7309 = vmatprep.mubr.bf16.mxu0 0
        %7310 = vmatmul.mubr.bf16.gmra.mrb[0].mxu0 %v7198
        %v7311 = vpop.f32.mrb[0].mxu0
        %v7312 = vpop.f32.mrb[0].mxu0
        %v7313 = vpop.f32.mrb[0].mxu0
        %v7314 = vadd.f32 0.0, %v7313
        %v7315 = vpop.f32.mrb[0].mxu0
        %7316 = vmatprep.mubr.bf16.mxu0 0
        %7317 = vmatmul.mubr.bf16.gmra.mrb[0].mxu0 %v7201
        %v7318 = vpop.f32.mrb[0].mxu0
        %v7319 = vadd.f32 0.0, %v7318
        %v7320 = vpop.f32.mrb[0].mxu0
        %v7321 = vpop.f32.mrb[0].mxu0
        %v7322 = vpop.f32.mrb[0].mxu0
        %7323 = vmatprep.mubr.bf16.mxu0 0
        %7324 = vmatmul.mubr.bf16.gmra.mrb[0].mxu0 %v7204
        %v7325 = vpop.f32.mrb[0].mxu0
        %v7326 = vadd.f32 0.0, %v7325
        %v7327 = vpop.f32.mrb[0].mxu0
        %v7328 = vpop.f32.mrb[0].mxu0
        %v7329 = vadd.f32 0.0, %v7328
        %v7330 = vpop.f32.mrb[0].mxu0
        %7331 = vmatprep.mubr.bf16.mxu0 0
        %7332 = vmatmul.mubr.bf16.gmra.mrb[0].mxu0 %v7207
        %v7333 = vpop.f32.mrb[0].mxu0
        %v7334 = vpop.f32.mrb[0].mxu0
        %v7335 = vpop.f32.mrb[0].mxu0
        %v7336 = vadd.f32 0.0, %v7335
        %v7337 = vpop.f32.mrb[0].mxu0
        %7338 = vmatprep.mubr.bf16.mxu0 0
        %7339 = vmatmul.mubr.bf16.gmra.mrb[0].mxu0 %v7210
        %v7340 = vpop.f32.mrb[0].mxu0
        %v7341 = vadd.f32 0.0, %v7340
        %v7342 = vpop.f32.mrb[0].mxu0
        %v7343 = vpop.f32.mrb[0].mxu0
        %v7344 = vpop.f32.mrb[0].mxu0
        %7345 = vmatprep.mubr.bf16.mxu0 0
        %7346 = vmatmul.mubr.bf16.gmra.mrb[0].mxu0 %v7213
        %v7347 = vpop.f32.mrb[0].mxu0
        %v7348 = vadd.f32 0.0, %v7347
        %v7349 = vpop.f32.mrb[0].mxu0
        %v7350 = vpop.f32.mrb[0].mxu0
        %v7351 = vadd.f32 0.0, %v7350
        %v7352 = vpop.f32.mrb[0].mxu0
        %7353 = vmatprep.mubr.bf16.mxu0 0
        %7354 = vmatmul.mubr.bf16.gmra.mrb[0].mxu0 %v7216
        %v7355 = vpop.f32.mrb[0].mxu0
        %v7356 = vpop.f32.mrb[0].mxu0
        %v7357 = vpop.f32.mrb[0].mxu0
        %v7358 = vadd.f32 0.0, %v7357
        %v7359 = vpop.f32.mrb[0].mxu0
        %7360 = vmatprep.mubr.bf16.mxu0 0
        %7361 = vmatmul.mubr.bf16.gmra.mrb[0].mxu0 %v7219
        %v7362 = vpop.f32.mrb[0].mxu0
        %v7363 = vadd.f32 0.0, %v7362
        %v7364 = vpop.f32.mrb[0].mxu0
        %v7365 = vpop.f32.mrb[0].mxu0
        %v7366 = vpop.f32.mrb[0].mxu0
        %7367 = vmatprep.mubr.bf16.mxu0 0
        %7368 = vmatmul.mubr.bf16.gmra.mrb[0].mxu0 %v7222
        %v7369 = vpop.f32.mrb[0].mxu0
        %v7370 = vadd.f32 0.0, %v7369
        %v7371 = vpop.f32.mrb[0].mxu0
        %v7372 = vpop.f32.mrb[0].mxu0
        %v7373 = vadd.f32 0.0, %v7372
        %v7374 = vpop.f32.mrb[0].mxu0
        %7375 = vmatprep.mubr.bf16.mxu0 0
        %7376 = vmatmul.mubr.bf16.gmra.mrb[0].mxu0 %v7225
        %v7377 = vpop.f32.mrb[0].mxu0
        %v7378 = vpop.f32.mrb[0].mxu0
        %v7379 = vpop.f32.mrb[0].mxu0
        %v7380 = vadd.f32 0.0, %v7379
        %v7381 = vpop.f32.mrb[0].mxu0
        %7382 = vmatprep.mubr.bf16.mxu0 0
        %7383 = vmatmul.mubr.bf16.gmra.mrb[0].mxu0 %v7228
        %v7384 = vpop.f32.mrb[0].mxu0
        %v7385 = vadd.f32 0.0, %v7384
        %v7386 = vpop.f32.mrb[0].mxu0
        %v7387 = vpop.f32.mrb[0].mxu0
        %v7388 = vpop.f32.mrb[0].mxu0
        %7389 = vmatprep.mubr.bf16.mxu0 0
        %7390 = vmatmul.mubr.bf16.gmra.mrb[0].mxu0 %v7231
        %v7391 = vpop.f32.mrb[0].mxu0
        %v7392 = vadd.f32 0.0, %v7391
        %v7393 = vpop.f32.mrb[0].mxu0
        %v7394 = vpop.f32.mrb[0].mxu0
        %v7395 = vadd.f32 0.0, %v7394
        %v7396 = vpop.f32.mrb[0].mxu0
        %7397 = vmatprep.mubr.bf16.mxu0 0
        %7398 = vmatmul.mubr.bf16.gmra.mrb[0].mxu0 %v7234
        %v7399 = vpop.f32.mrb[0].mxu0
        %v7400 = vpop.f32.mrb[0].mxu0
        %v7401 = vpop.f32.mrb[0].mxu0
        %v7402 = vadd.f32 0.0, %v7401
        %v7403 = vpop.f32.mrb[0].mxu0
        %7404 = vmatprep.mubr.bf16.mxu0 0
        %7405 = vmatmul.mubr.bf16.gmra.mrb[0].mxu0 %v7237
        %v7406 = vpop.f32.mrb[0].mxu0
        %v7407 = vadd.f32 0.0, %v7406
        %v7408 = vpop.f32.mrb[0].mxu0
        %v7409 = vpop.f32.mrb[0].mxu0
        %v7410 = vpop.f32.mrb[0].mxu0
        %7411 = vmatprep.mubr.bf16.mxu0 0
        %7412 = vmatmul.mubr.bf16.gmra.mrb[0].mxu0 %v7240
        %v7413 = vpop.f32.mrb[0].mxu0
        %v7414 = vadd.f32 0.0, %v7413
        %v7415 = vpop.f32.mrb[0].mxu0
        %v7416 = vpop.f32.mrb[0].mxu0
        %v7417 = vadd.f32 0.0, %v7416
        %v7418 = vpop.f32.mrb[0].mxu0
        %7419 = vmatprep.mubr.bf16.mxu0 0
        %7420 = vmatmul.mubr.bf16.gmra.mrb[0].mxu0 %v7243
        %v7421 = vpop.f32.mrb[0].mxu0
        %v7422 = vpop.f32.mrb[0].mxu0
        %v7423 = vpop.f32.mrb[0].mxu0
        %v7424 = vadd.f32 0.0, %v7423
        %v7425 = vpop.f32.mrb[0].mxu0
        %7426 = vmatprep.mubr.bf16.mxu0 0
        %7427 = vmatmul.mubr.bf16.gmra.mrb[0].mxu0 %v7246
        %v7428 = vpop.f32.mrb[0].mxu0
        %v7429 = vadd.f32 0.0, %v7428
        %v7430 = vpop.f32.mrb[0].mxu0
        %v7431 = vpop.f32.mrb[0].mxu0
        %v7432 = vpop.f32.mrb[0].mxu0
        %7433 = vmatprep.mubr.bf16.mxu0 0
        %7434 = vmatmul.mubr.bf16.gmra.mrb[0].mxu0 %v7249
        %v7435 = vpop.f32.mrb[0].mxu0
        %v7436 = vadd.f32 0.0, %v7435
        %v7437 = vpop.f32.mrb[0].mxu0
        %v7438 = vpop.f32.mrb[0].mxu0
        %v7439 = vadd.f32 0.0, %v7438
        %v7440 = vpop.f32.mrb[0].mxu0
        %7441 = vmatprep.mubr.bf16.mxu0 0
        %7442 = vmatmul.mubr.bf16.gmra.mrb[0].mxu0 %v7252
        %v7443 = vpop.f32.mrb[0].mxu0
        %v7444 = vpop.f32.mrb[0].mxu0
        %v7445 = vpop.f32.mrb[0].mxu0
        %v7446 = vadd.f32 0.0, %v7445
        %v7447 = vpop.f32.mrb[0].mxu0
        %7448 = vmatprep.mubr.bf16.mxu0 0
        %7449 = vmatmul.mubr.bf16.gmra.mrb[0].mxu0 %v7255
        %v7450 = vpop.f32.mrb[0].mxu0
        %v7451 = vadd.f32 0.0, %v7450
        %v7452 = vpop.f32.mrb[0].mxu0
        %v7453 = vpop.f32.mrb[0].mxu0
        %v7454 = vpop.f32.mrb[0].mxu0
        %7455 = vmatprep.mubr.bf16.mxu0 0
        %7456 = vmatmul.mubr.bf16.gmra.mrb[0].mxu0 %v7258
        %v7457 = vpop.f32.mrb[0].mxu0
        %v7458 = vadd.f32 0.0, %v7457
        %v7459 = vpop.f32.mrb[0].mxu0
        %v7460 = vpop.f32.mrb[0].mxu0
        %v7461 = vadd.f32 0.0, %v7460
        %v7462 = vpop.f32.mrb[0].mxu0
        %7463 = vmatprep.mubr.bf16.mxu0 0
        %7464 = vmatmul.mubr.bf16.gmra.mrb[0].mxu0 %v7261
        %v7465 = vpop.f32.mrb[0].mxu0
        %v7466 = vpop.f32.mrb[0].mxu0
        %v7467 = vpop.f32.mrb[0].mxu0
        %v7468 = vadd.f32 0.0, %v7467
        %v7469 = vpop.f32.mrb[0].mxu0
        %7470 = vmatprep.mubr.bf16.mxu0 0
        %7471 = vmatmul.mubr.bf16.gmra.mrb[0].mxu0 %v7264
        %v7472 = vpop.f32.mrb[0].mxu0
        %v7473 = vadd.f32 0.0, %v7472
        %v7474 = vpop.f32.mrb[0].mxu0
        %v7475 = vpop.f32.mrb[0].mxu0
        %v7476 = vpop.f32.mrb[0].mxu0
        %7477 = vdwg.mxu0
        %v7478 = vadd.f32 %v7102, %v7304
        %v7479 = vadd.f32 %v7103, %v7307
        %v7480 = vadd.f32 %v7104, %v7314
        %v7481 = vadd.f32 %v7105, %v7319
        %v7482 = vadd.f32 %v7106, %v7326
        %v7483 = vadd.f32 %v7107, %v7329
        %v7484 = vadd.f32 %v7108, %v7336
        %v7485 = vadd.f32 %v7109, %v7341
        %v7486 = vadd.f32 %v7110, %v7348
        %v7487 = vadd.f32 %v7111, %v7351
        %v7488 = vadd.f32 %v7112, %v7358
        %v7489 = vadd.f32 %v7113, %v7363
        %v7490 = vadd.f32 %v7114, %v7370
        %v7491 = vadd.f32 %v7115, %v7373
        %v7492 = vadd.f32 %v7116, %v7380
        %v7493 = vadd.f32 %v7117, %v7385
        %v7494 = vadd.f32 %v7118, %v7392
        %v7495 = vadd.f32 %v7119, %v7395
        %v7496 = vadd.f32 %v7120, %v7402
        %v7497 = vadd.f32 %v7121, %v7407
        %v7498 = vadd.f32 %v7122, %v7414
        %v7499 = vadd.f32 %v7123, %v7417
        %v7500 = vadd.f32 %v7124, %v7424
        %v7501 = vadd.f32 %v7125, %v7429
        %v7502 = vadd.f32 %v7126, %v7436
        %v7503 = vadd.f32 %v7127, %v7439
        %v7504 = vadd.f32 %v7128, %v7446
        %v7505 = vadd.f32 %v7129, %v7451
        %v7506 = vadd.f32 %v7130, %v7458
        %v7507 = vadd.f32 %v7131, %v7461
        %v7508 = vadd.f32 %v7132, %v7468
        %v7509 = vadd.f32 %v7133, %v7473
        %v7510 = vld [vmem:[%s208 + $0xe4] sm:$0x3]
        %v7511 = vld [vmem:[%s212 + $0x58] sm:$0xc]
        %v7512 = vld [vmem:[%s212 + $0x5c] sm:$0xf]
        %v7514 = vunpack.c.l.b16 %v7510
        %v7515 = vpack.c.b16 %v7514, %v7514
        %v7517 = vshrl.u32 %v7139, 16
        %v7519 = vrot.slane %v7517, 1
        %v7520 = vshll.u32 %v7139, 16
        %v7522 = vrot.slane %v7520, 2
        %v7523 = vor.u32 %v7519, %v7522
        %v7524 = vrot.slane %v6628, 1
        %v7525 = vrot.slane %v6624, 2
        %v7526 = vor.u32 %v7524, %v7525
        %v7527 = vsel %vm1527, %v7523, %v7526
        %v7528 = vrot.slane %v6636, 1
        %v7529 = vrot.slane %v6632, 2
        %v7530 = vor.u32 %v7528, %v7529
        %v7531 = vsel %vm1527, %v7526, %v7530
        %v7532 = vrot.slane %v6644, 1
        %v7533 = vrot.slane %v6640, 2
        %v7534 = vor.u32 %v7532, %v7533
        %v7535 = vsel %vm1527, %v7530, %v7534
        %v7536 = vrot.slane %v6652, 1
        %v7537 = vrot.slane %v6648, 2
        %v7538 = vor.u32 %v7536, %v7537
        %v7539 = vsel %vm1527, %v7534, %v7538
        %v7540 = vrot.slane %v6660, 1
        %v7541 = vrot.slane %v6656, 2
        %v7542 = vor.u32 %v7540, %v7541
        %v7543 = vsel %vm1527, %v7538, %v7542
        %v7544 = vrot.slane %v6668, 1
        %v7545 = vrot.slane %v6664, 2
        %v7546 = vor.u32 %v7544, %v7545
        %v7547 = vsel %vm1527, %v7542, %v7546
        %v7548 = vrot.slane %v6676, 1
        %v7549 = vrot.slane %v6672, 2
        %v7550 = vor.u32 %v7548, %v7549
        %v7551 = vsel %vm1527, %v7546, %v7550
        %v7552 = vrot.slane %v6684, 1
        %v7553 = vrot.slane %v6680, 2
        %v7554 = vor.u32 %v7552, %v7553
        %v7555 = vsel %vm1527, %v7550, %v7554
        %v7556 = vrot.slane %v6692, 1
        %v7557 = vrot.slane %v6688, 2
        %v7558 = vor.u32 %v7556, %v7557
        %v7559 = vsel %vm1527, %v7554, %v7558
        %v7560 = vrot.slane %v6700, 1
        %v7561 = vrot.slane %v6696, 2
        %v7562 = vor.u32 %v7560, %v7561
        %v7563 = vsel %vm1527, %v7558, %v7562
        %v7564 = vrot.slane %v6708, 1
        %v7565 = vrot.slane %v6704, 2
        %v7566 = vor.u32 %v7564, %v7565
        %v7567 = vsel %vm1527, %v7562, %v7566
        %v7568 = vrot.slane %v6716, 1
        %v7569 = vrot.slane %v6712, 2
        %v7570 = vor.u32 %v7568, %v7569
        %v7571 = vsel %vm1527, %v7566, %v7570
        %v7572 = vrot.slane %v6724, 1
        %v7573 = vrot.slane %v6720, 2
        %v7574 = vor.u32 %v7572, %v7573
        %v7575 = vsel %vm1527, %v7570, %v7574
        %v7576 = vrot.slane %v6732, 1
        %v7577 = vrot.slane %v6728, 2
        %v7578 = vor.u32 %v7576, %v7577
        %v7579 = vsel %vm1527, %v7574, %v7578
        %v7580 = vrot.slane %v6740, 1
        %v7581 = vrot.slane %v6736, 2
        %v7582 = vor.u32 %v7580, %v7581
        %v7583 = vsel %vm1527, %v7578, %v7582
        %v7584 = vrot.slane %v6748, 1
        %v7585 = vrot.slane %v6744, 2
        %v7586 = vor.u32 %v7584, %v7585
        %v7587 = vsel %vm1527, %v7582, %v7586
        %v7588 = vrot.slane %v6756, 1
        %v7589 = vrot.slane %v6752, 2
        %v7590 = vor.u32 %v7588, %v7589
        %v7591 = vsel %vm1527, %v7586, %v7590
        %v7592 = vrot.slane %v6764, 1
        %v7593 = vrot.slane %v6760, 2
        %v7594 = vor.u32 %v7592, %v7593
        %v7595 = vsel %vm1527, %v7590, %v7594
        %v7596 = vrot.slane %v6772, 1
        %v7597 = vrot.slane %v6768, 2
        %v7598 = vor.u32 %v7596, %v7597
        %v7599 = vsel %vm1527, %v7594, %v7598
        %v7600 = vrot.slane %v6780, 1
        %v7601 = vrot.slane %v6776, 2
        %v7602 = vor.u32 %v7600, %v7601
        %v7603 = vsel %vm1527, %v7598, %v7602
        %v7604 = vrot.slane %v6788, 1
        %v7605 = vrot.slane %v6784, 2
        %v7606 = vor.u32 %v7604, %v7605
        %v7607 = vsel %vm1527, %v7602, %v7606
        %v7608 = vrot.slane %v6796, 1
        %v7609 = vrot.slane %v6792, 2
        %v7610 = vor.u32 %v7608, %v7609
        %v7611 = vsel %vm1527, %v7606, %v7610
        %v7612 = vrot.slane %v6804, 1
        %v7613 = vrot.slane %v6800, 2
        %v7614 = vor.u32 %v7612, %v7613
        %v7615 = vsel %vm1527, %v7610, %v7614
        %v7617 = vshrl.u32 %v7515, 16
        %v7619 = vrot.slane %v7617, 1
        %v7620 = vshll.u32 %v7515, 16
        %v7622 = vrot.slane %v7620, 2
        %v7623 = vor.u32 %v7619, %v7622
        %v7624 = vsel %vm1527, %v7614, %v7623
        %v7627 = vunpack.c.l.b16 %v7511
        %v7628 = vunpack.c.l.b16 %v7512
        %v7629 = vpack.c.b16 %v7628, %v7627
        %v7630 = vrot.slane %v7629, 2
        %v7632 = vsel %vm593, %v7527, 0
        %v7635 = vsel %vm593, %v7531, 0
        %v7638 = vsel %vm593, %v7535, 0
        %v7641 = vsel %vm593, %v7539, 0
        %v7644 = vsel %vm593, %v7543, 0
        %v7647 = vsel %vm593, %v7547, 0
        %v7650 = vsel %vm593, %v7551, 0
        %v7653 = vsel %vm593, %v7555, 0
        %v7656 = vsel %vm593, %v7559, 0
        %v7659 = vsel %vm593, %v7563, 0
        %v7662 = vsel %vm593, %v7567, 0
        %v7665 = vsel %vm593, %v7571, 0
        %v7668 = vsel %vm593, %v7575, 0
        %v7671 = vsel %vm593, %v7579, 0
        %v7674 = vsel %vm593, %v7583, 0
        %v7677 = vsel %vm593, %v7587, 0
        %v7680 = vsel %vm593, %v7591, 0
        %v7683 = vsel %vm593, %v7595, 0
        %v7686 = vsel %vm593, %v7599, 0
        %v7689 = vsel %vm593, %v7603, 0
        %v7692 = vsel %vm593, %v7607, 0
        %v7695 = vsel %vm593, %v7611, 0
        %v7698 = vsel %vm593, %v7615, 0
        %v7701 = vsel %vm593, %v7624, 0
        %v7704 = vsel %vm666, %v7630, 0
        %7706 = vmatprep.subr.bf16.mxu0 0
        %7707 = vmatpush1.bf16.msra.mxu0 %v7704
        %7708 = vmatprep.subr.bf16.mxu0 0
        %7709 = vmatpush1.bf16.msra.mxu0 0
        %7710 = vmatprep.subr.bf16.mxu0 0
        %7711 = vmatpush1.bf16.msra.mxu0 0
        %7712 = vmatprep.subr.bf16.mxu0 0
        %7713 = vmatpush1.bf16.msra.mxu0 0
        %7714 = vmatprep.subr.bf16.mxu0 0
        %7715 = vmatpush1.bf16.msra.mxu0 0
        %7716 = vmatprep.subr.bf16.mxu0 0
        %7717 = vmatpush1.bf16.msra.mxu0 0
        %7718 = vmatprep.subr.bf16.mxu0 0
        %7719 = vmatpush1.bf16.msra.mxu0 0
        %7720 = vmatprep.subr.bf16.mxu0 0
        %7721 = vmatpush1.bf16.msra.mxu0 0
        %7722 = vmatprep.subr.bf16.mxu0 0
        %7723 = vmatpush1.bf16.msra.mxu0 0
        %7724 = vmatprep.subr.bf16.mxu0 0
        %7725 = vmatpush1.bf16.msra.mxu0 0
        %7726 = vmatprep.subr.bf16.mxu0 0
        %7727 = vmatpush1.bf16.msra.mxu0 0
        %7728 = vmatprep.subr.bf16.mxu0 0
        %7729 = vmatpush1.bf16.msra.mxu0 0
        %7730 = vmatprep.subr.bf16.mxu0 0
        %7731 = vmatpush1.bf16.msra.mxu0 0
        %7732 = vmatprep.subr.bf16.mxu0 0
        %7733 = vmatpush1.bf16.msra.mxu0 0
        %7734 = vmatprep.subr.bf16.mxu0 0
        %7735 = vmatpush1.bf16.msra.mxu0 0
        %7736 = vmatprep.subr.bf16.mxu0 0
        %7737 = vmatpush1.bf16.msra.mxu0 0
        %7738 = vmatprep.mubr.bf16.mxu0 0
        %7739 = vmatmul.mubr.bf16.gmra.mrb[0].mxu0 %v7632
        %v7740 = vpop.f32.mrb[0].mxu0
        %v7741 = vadd.f32 0.0, %v7740
        %v7742 = vpop.f32.mrb[0].mxu0
        %v7743 = vpop.f32.mrb[0].mxu0
        %v7744 = vadd.f32 0.0, %v7743
        %v7745 = vpop.f32.mrb[0].mxu0
        %7746 = vmatprep.mubr.bf16.mxu0 0
        %7747 = vmatmul.mubr.bf16.gmra.mrb[0].mxu0 %v7635
        %v7748 = vpop.f32.mrb[0].mxu0
        %v7749 = vpop.f32.mrb[0].mxu0
        %v7750 = vpop.f32.mrb[0].mxu0
        %v7751 = vadd.f32 0.0, %v7750
        %v7752 = vpop.f32.mrb[0].mxu0
        %7753 = vmatprep.mubr.bf16.mxu0 0
        %7754 = vmatmul.mubr.bf16.gmra.mrb[0].mxu0 %v7638
        %v7755 = vpop.f32.mrb[0].mxu0
        %v7756 = vadd.f32 0.0, %v7755
        %v7757 = vpop.f32.mrb[0].mxu0
        %v7758 = vpop.f32.mrb[0].mxu0
        %v7759 = vpop.f32.mrb[0].mxu0
        %7760 = vmatprep.mubr.bf16.mxu0 0
        %7761 = vmatmul.mubr.bf16.gmra.mrb[0].mxu0 %v7641
        %v7762 = vpop.f32.mrb[0].mxu0
        %v7763 = vadd.f32 0.0, %v7762
        %v7764 = vpop.f32.mrb[0].mxu0
        %v7765 = vpop.f32.mrb[0].mxu0
        %v7766 = vadd.f32 0.0, %v7765
        %v7767 = vpop.f32.mrb[0].mxu0
        %7768 = vmatprep.mubr.bf16.mxu0 0
        %7769 = vmatmul.mubr.bf16.gmra.mrb[0].mxu0 %v7644
        %v7770 = vpop.f32.mrb[0].mxu0
        %v7771 = vpop.f32.mrb[0].mxu0
        %v7772 = vpop.f32.mrb[0].mxu0
        %v7773 = vadd.f32 0.0, %v7772
        %v7774 = vpop.f32.mrb[0].mxu0
        %7775 = vmatprep.mubr.bf16.mxu0 0
        %7776 = vmatmul.mubr.bf16.gmra.mrb[0].mxu0 %v7647
        %v7777 = vpop.f32.mrb[0].mxu0
        %v7778 = vadd.f32 0.0, %v7777
        %v7779 = vpop.f32.mrb[0].mxu0
        %v7780 = vpop.f32.mrb[0].mxu0
        %v7781 = vpop.f32.mrb[0].mxu0
        %7782 = vmatprep.mubr.bf16.mxu0 0
        %7783 = vmatmul.mubr.bf16.gmra.mrb[0].mxu0 %v7650
        %v7784 = vpop.f32.mrb[0].mxu0
        %v7785 = vadd.f32 0.0, %v7784
        %v7786 = vpop.f32.mrb[0].mxu0
        %v7787 = vpop.f32.mrb[0].mxu0
        %v7788 = vadd.f32 0.0, %v7787
        %v7789 = vpop.f32.mrb[0].mxu0
        %7790 = vmatprep.mubr.bf16.mxu0 0
        %7791 = vmatmul.mubr.bf16.gmra.mrb[0].mxu0 %v7653
        %v7792 = vpop.f32.mrb[0].mxu0
        %v7793 = vpop.f32.mrb[0].mxu0
        %v7794 = vpop.f32.mrb[0].mxu0
        %v7795 = vadd.f32 0.0, %v7794
        %v7796 = vpop.f32.mrb[0].mxu0
        %7797 = vmatprep.mubr.bf16.mxu0 0
        %7798 = vmatmul.mubr.bf16.gmra.mrb[0].mxu0 %v7656
        %v7799 = vpop.f32.mrb[0].mxu0
        %v7800 = vadd.f32 0.0, %v7799
        %v7801 = vpop.f32.mrb[0].mxu0
        %v7802 = vpop.f32.mrb[0].mxu0
        %v7803 = vpop.f32.mrb[0].mxu0
        %7804 = vmatprep.mubr.bf16.mxu0 0
        %7805 = vmatmul.mubr.bf16.gmra.mrb[0].mxu0 %v7659
        %v7806 = vpop.f32.mrb[0].mxu0
        %v7807 = vadd.f32 0.0, %v7806
        %v7808 = vpop.f32.mrb[0].mxu0
        %v7809 = vpop.f32.mrb[0].mxu0
        %v7810 = vadd.f32 0.0, %v7809
        %v7811 = vpop.f32.mrb[0].mxu0
        %7812 = vmatprep.mubr.bf16.mxu0 0
        %7813 = vmatmul.mubr.bf16.gmra.mrb[0].mxu0 %v7662
        %v7814 = vpop.f32.mrb[0].mxu0
        %v7815 = vpop.f32.mrb[0].mxu0
        %v7816 = vpop.f32.mrb[0].mxu0
        %v7817 = vadd.f32 0.0, %v7816
        %v7818 = vpop.f32.mrb[0].mxu0
        %7819 = vmatprep.mubr.bf16.mxu0 0
        %7820 = vmatmul.mubr.bf16.gmra.mrb[0].mxu0 %v7665
        %v7821 = vpop.f32.mrb[0].mxu0
        %v7822 = vadd.f32 0.0, %v7821
        %v7823 = vpop.f32.mrb[0].mxu0
        %v7824 = vpop.f32.mrb[0].mxu0
        %v7825 = vpop.f32.mrb[0].mxu0
        %7826 = vmatprep.mubr.bf16.mxu0 0
        %7827 = vmatmul.mubr.bf16.gmra.mrb[0].mxu0 %v7668
        %v7828 = vpop.f32.mrb[0].mxu0
        %v7829 = vadd.f32 0.0, %v7828
        %v7830 = vpop.f32.mrb[0].mxu0
        %v7831 = vpop.f32.mrb[0].mxu0
        %v7832 = vadd.f32 0.0, %v7831
        %v7833 = vpop.f32.mrb[0].mxu0
        %7834 = vmatprep.mubr.bf16.mxu0 0
        %7835 = vmatmul.mubr.bf16.gmra.mrb[0].mxu0 %v7671
        %v7836 = vpop.f32.mrb[0].mxu0
        %v7837 = vpop.f32.mrb[0].mxu0
        %v7838 = vpop.f32.mrb[0].mxu0
        %v7839 = vadd.f32 0.0, %v7838
        %v7840 = vpop.f32.mrb[0].mxu0
        %7841 = vmatprep.mubr.bf16.mxu0 0
        %7842 = vmatmul.mubr.bf16.gmra.mrb[0].mxu0 %v7674
        %v7843 = vpop.f32.mrb[0].mxu0
        %v7844 = vadd.f32 0.0, %v7843
        %v7845 = vpop.f32.mrb[0].mxu0
        %v7846 = vpop.f32.mrb[0].mxu0
        %v7847 = vpop.f32.mrb[0].mxu0
        %7848 = vmatprep.mubr.bf16.mxu0 0
        %7849 = vmatmul.mubr.bf16.gmra.mrb[0].mxu0 %v7677
        %v7850 = vpop.f32.mrb[0].mxu0
        %v7851 = vadd.f32 0.0, %v7850
        %v7852 = vpop.f32.mrb[0].mxu0
        %v7853 = vpop.f32.mrb[0].mxu0
        %v7854 = vadd.f32 0.0, %v7853
        %v7855 = vpop.f32.mrb[0].mxu0
        %7856 = vmatprep.mubr.bf16.mxu0 0
        %7857 = vmatmul.mubr.bf16.gmra.mrb[0].mxu0 %v7680
        %v7858 = vpop.f32.mrb[0].mxu0
        %v7859 = vpop.f32.mrb[0].mxu0
        %v7860 = vpop.f32.mrb[0].mxu0
        %v7861 = vadd.f32 0.0, %v7860
        %v7862 = vpop.f32.mrb[0].mxu0
        %7863 = vmatprep.mubr.bf16.mxu0 0
        %7864 = vmatmul.mubr.bf16.gmra.mrb[0].mxu0 %v7683
        %v7865 = vpop.f32.mrb[0].mxu0
        %v7866 = vadd.f32 0.0, %v7865
        %v7867 = vpop.f32.mrb[0].mxu0
        %v7868 = vpop.f32.mrb[0].mxu0
        %v7869 = vpop.f32.mrb[0].mxu0
        %7870 = vmatprep.mubr.bf16.mxu0 0
        %7871 = vmatmul.mubr.bf16.gmra.mrb[0].mxu0 %v7686
        %v7872 = vpop.f32.mrb[0].mxu0
        %v7873 = vadd.f32 0.0, %v7872
        %v7874 = vpop.f32.mrb[0].mxu0
        %v7875 = vpop.f32.mrb[0].mxu0
        %v7876 = vadd.f32 0.0, %v7875
        %v7877 = vpop.f32.mrb[0].mxu0
        %7878 = vmatprep.mubr.bf16.mxu0 0
        %7879 = vmatmul.mubr.bf16.gmra.mrb[0].mxu0 %v7689
        %v7880 = vpop.f32.mrb[0].mxu0
        %v7881 = vpop.f32.mrb[0].mxu0
        %v7882 = vpop.f32.mrb[0].mxu0
        %v7883 = vadd.f32 0.0, %v7882
        %v7884 = vpop.f32.mrb[0].mxu0
        %7885 = vmatprep.mubr.bf16.mxu0 0
        %7886 = vmatmul.mubr.bf16.gmra.mrb[0].mxu0 %v7692
        %v7887 = vpop.f32.mrb[0].mxu0
        %v7888 = vadd.f32 0.0, %v7887
        %v7889 = vpop.f32.mrb[0].mxu0
        %v7890 = vpop.f32.mrb[0].mxu0
        %v7891 = vpop.f32.mrb[0].mxu0
        %7892 = vmatprep.mubr.bf16.mxu0 0
        %7893 = vmatmul.mubr.bf16.gmra.mrb[0].mxu0 %v7695
        %v7894 = vpop.f32.mrb[0].mxu0
        %v7895 = vadd.f32 0.0, %v7894
        %v7896 = vpop.f32.mrb[0].mxu0
        %v7897 = vpop.f32.mrb[0].mxu0
        %v7898 = vadd.f32 0.0, %v7897
        %v7899 = vpop.f32.mrb[0].mxu0
        %7900 = vmatprep.mubr.bf16.mxu0 0
        %7901 = vmatmul.mubr.bf16.gmra.mrb[0].mxu0 %v7698
        %v7902 = vpop.f32.mrb[0].mxu0
        %v7903 = vpop.f32.mrb[0].mxu0
        %v7904 = vpop.f32.mrb[0].mxu0
        %v7905 = vadd.f32 0.0, %v7904
        %v7906 = vpop.f32.mrb[0].mxu0
        %7907 = vmatprep.mubr.bf16.mxu0 0
        %7908 = vmatmul.mubr.bf16.gmra.mrb[0].mxu0 %v7701
        %v7909 = vpop.f32.mrb[0].mxu0
        %v7910 = vadd.f32 0.0, %v7909
        %v7911 = vpop.f32.mrb[0].mxu0
        %v7912 = vpop.f32.mrb[0].mxu0
        %v7913 = vpop.f32.mrb[0].mxu0
        %7914 = vdwg.mxu0
        %v7915 = vadd.f32 %v7478, %v7741
        %v7916 = vadd.f32 %v7479, %v7744
        %v7917 = vadd.f32 %v7480, %v7751
        %v7918 = vadd.f32 %v7481, %v7756
        %v7919 = vadd.f32 %v7482, %v7763
        %v7920 = vadd.f32 %v7483, %v7766
        %v7921 = vadd.f32 %v7484, %v7773
        %v7922 = vadd.f32 %v7485, %v7778
        %v7923 = vadd.f32 %v7486, %v7785
        %v7924 = vadd.f32 %v7487, %v7788
        %v7925 = vadd.f32 %v7488, %v7795
        %v7926 = vadd.f32 %v7489, %v7800
        %v7927 = vadd.f32 %v7490, %v7807
        %v7928 = vadd.f32 %v7491, %v7810
        %v7929 = vadd.f32 %v7492, %v7817
        %v7930 = vadd.f32 %v7493, %v7822
        %v7931 = vadd.f32 %v7494, %v7829
        %v7932 = vadd.f32 %v7495, %v7832
        %v7933 = vadd.f32 %v7496, %v7839
        %v7934 = vadd.f32 %v7497, %v7844
        %v7935 = vadd.f32 %v7498, %v7851
        %v7936 = vadd.f32 %v7499, %v7854
        %v7937 = vadd.f32 %v7500, %v7861
        %v7938 = vadd.f32 %v7501, %v7866
        %v7939 = vadd.f32 %v7502, %v7873
        %v7940 = vadd.f32 %v7503, %v7876
        %v7941 = vadd.f32 %v7504, %v7883
        %v7942 = vadd.f32 %v7505, %v7888
        %v7943 = vadd.f32 %v7506, %v7895
        %v7944 = vadd.f32 %v7507, %v7898
        %v7945 = vadd.f32 %v7508, %v7905
        %v7946 = vadd.f32 %v7509, %v7910
        %v7947 = vpack.c.bf16 %v7916, %v7915
        %v7948 = vpack.c.bf16 %v7918, %v7917
        %v7949 = vpack.c.bf16 %v7920, %v7919
        %v7950 = vpack.c.bf16 %v7922, %v7921
        %v7951 = vpack.c.bf16 %v7924, %v7923
        %v7952 = vpack.c.bf16 %v7926, %v7925
        %v7953 = vpack.c.bf16 %v7928, %v7927
        %v7954 = vpack.c.bf16 %v7930, %v7929
        %v7955 = vpack.c.bf16 %v7932, %v7931
        %v7956 = vpack.c.bf16 %v7934, %v7933
        %v7957 = vpack.c.bf16 %v7936, %v7935
        %v7958 = vpack.c.bf16 %v7938, %v7937
        %v7959 = vpack.c.bf16 %v7940, %v7939
        %v7960 = vpack.c.bf16 %v7942, %v7941
        %v7961 = vpack.c.bf16 %v7944, %v7943
        %v7962 = vpack.c.bf16 %v7946, %v7945
        %v7979 = vunpack.c.l.b16 %v7947
        %v7980 = vunpack.c.h.b16 %v7947
        %v7981 = vunpack.c.l.b16 %v7948
        %v7982 = vunpack.c.h.b16 %v7948
        %v7983 = vunpack.c.l.b16 %v7949
        %v7984 = vunpack.c.h.b16 %v7949
        %v7985 = vunpack.c.l.b16 %v7950
        %v7986 = vunpack.c.h.b16 %v7950
        %v7987 = vunpack.c.l.b16 %v7951
        %v7988 = vunpack.c.h.b16 %v7951
        %v7989 = vunpack.c.l.b16 %v7952
        %v7990 = vunpack.c.h.b16 %v7952
        %v7991 = vunpack.c.l.b16 %v7953
        %v7992 = vunpack.c.h.b16 %v7953
        %v7993 = vunpack.c.l.b16 %v7954
        %v7994 = vunpack.c.h.b16 %v7954
        %v7995 = vunpack.c.l.b16 %v7955
        %v7996 = vunpack.c.h.b16 %v7955
        %v7997 = vunpack.c.l.b16 %v7956
        %v7998 = vunpack.c.h.b16 %v7956
        %v7999 = vunpack.c.l.b16 %v7957
        %v8000 = vunpack.c.h.b16 %v7957
        %v8001 = vunpack.c.l.b16 %v7958
        %v8002 = vunpack.c.h.b16 %v7958
        %v8003 = vunpack.c.l.b16 %v7959
        %v8004 = vunpack.c.h.b16 %v7959
        %v8005 = vunpack.c.l.b16 %v7960
        %v8006 = vunpack.c.h.b16 %v7960
        %v8007 = vunpack.c.l.b16 %v7961
        %v8008 = vunpack.c.h.b16 %v7961
        %v8009 = vunpack.c.l.b16 %v7962
        %v8010 = vunpack.c.h.b16 %v7962
        %v8011 = vpack.c.b16 %v7979, %v7979
        %v8012 = vpack.c.b16 %v7980, %v7980
        %v8013 = vpack.c.b16 %v7981, %v7981
        %v8014 = vpack.c.b16 %v7982, %v7982
        %v8015 = vpack.c.b16 %v7983, %v7983
        %v8016 = vpack.c.b16 %v7984, %v7984
        %v8017 = vpack.c.b16 %v7985, %v7985
        %v8018 = vpack.c.b16 %v7986, %v7986
        %v8019 = vpack.c.b16 %v7987, %v7987
        %v8020 = vpack.c.b16 %v7988, %v7988
        %v8021 = vpack.c.b16 %v7989, %v7989
        %v8022 = vpack.c.b16 %v7990, %v7990
        %v8023 = vpack.c.b16 %v7991, %v7991
        %v8024 = vpack.c.b16 %v7992, %v7992
        %v8025 = vpack.c.b16 %v7993, %v7993
        %v8026 = vpack.c.b16 %v7994, %v7994
        %v8027 = vpack.c.b16 %v7995, %v7995
        %v8028 = vpack.c.b16 %v7996, %v7996
        %v8029 = vpack.c.b16 %v7997, %v7997
        %v8030 = vpack.c.b16 %v7998, %v7998
        %v8031 = vpack.c.b16 %v7999, %v7999
        %v8032 = vpack.c.b16 %v8000, %v8000
        %v8033 = vpack.c.b16 %v8001, %v8001
        %v8034 = vpack.c.b16 %v8002, %v8002
        %v8035 = vpack.c.b16 %v8003, %v8003
        %v8036 = vpack.c.b16 %v8004, %v8004
        %v8037 = vpack.c.b16 %v8005, %v8005
        %v8038 = vpack.c.b16 %v8006, %v8006
        %v8039 = vpack.c.b16 %v8007, %v8007
        %v8040 = vpack.c.b16 %v8008, %v8008
        %v8041 = vpack.c.b16 %v8009, %v8009
        %v8042 = vpack.c.b16 %v8010, %v8010
        %vm8075 = vcmask 519168
        %8076 = vst.msk [vmem:[%s196] sm:$0xf] %vm8075, %v8011
        %8077 = vst.msk [vmem:[%s196 + $0x4] sm:$0xf] %vm8075, %v8012
        %8078 = vst.msk [vmem:[%s196 + $0x8] sm:$0xf] %vm8075, %v8013
        %8079 = vst.msk [vmem:[%s196 + $0xc] sm:$0xf] %vm8075, %v8014
        %8080 = vst.msk [vmem:[%s196 + $0x10] sm:$0xf] %vm8075, %v8015
        %8081 = vst.msk [vmem:[%s196 + $0x14] sm:$0xf] %vm8075, %v8016
        %8082 = vst.msk [vmem:[%s196 + $0x18] sm:$0xf] %vm8075, %v8017
        %8083 = vst.msk [vmem:[%s196 + $0x1c] sm:$0xf] %vm8075, %v8018
        %8084 = vst.msk [vmem:[%s196 + $0x20] sm:$0xf] %vm8075, %v8019
        %8085 = vst.msk [vmem:[%s196 + $0x24] sm:$0xf] %vm8075, %v8020
        %8086 = vst.msk [vmem:[%s196 + $0x28] sm:$0xf] %vm8075, %v8021
        %8087 = vst.msk [vmem:[%s196 + $0x2c] sm:$0xf] %vm8075, %v8022
        %8088 = vst.msk [vmem:[%s196 + $0x30] sm:$0xf] %vm8075, %v8023
        %8089 = vst.msk [vmem:[%s196 + $0x34] sm:$0xf] %vm8075, %v8024
        %8090 = vst.msk [vmem:[%s196 + $0x38] sm:$0xf] %vm8075, %v8025
        %8091 = vst.msk [vmem:[%s196 + $0x3c] sm:$0xf] %vm8075, %v8026
        %8092 = vst.msk [vmem:[%s196 + $0x40] sm:$0xf] %vm8075, %v8027
        %8093 = vst.msk [vmem:[%s196 + $0x44] sm:$0xf] %vm8075, %v8028
        %8094 = vst.msk [vmem:[%s196 + $0x48] sm:$0xf] %vm8075, %v8029
        %8095 = vst.msk [vmem:[%s196 + $0x4c] sm:$0xf] %vm8075, %v8030
        %8096 = vst.msk [vmem:[%s196 + $0x50] sm:$0xf] %vm8075, %v8031
        %8097 = vst.msk [vmem:[%s196 + $0x54] sm:$0xf] %vm8075, %v8032
        %8098 = vst.msk [vmem:[%s196 + $0x58] sm:$0xf] %vm8075, %v8033
        %8099 = vst.msk [vmem:[%s196 + $0x5c] sm:$0xf] %vm8075, %v8034
        %8100 = vst.msk [vmem:[%s196 + $0x60] sm:$0xf] %vm8075, %v8035
        %8101 = vst.msk [vmem:[%s196 + $0x64] sm:$0xf] %vm8075, %v8036
        %8102 = vst.msk [vmem:[%s196 + $0x68] sm:$0xf] %vm8075, %v8037
        %8103 = vst.msk [vmem:[%s196 + $0x6c] sm:$0xf] %vm8075, %v8038
        %8104 = vst.msk [vmem:[%s196 + $0x70] sm:$0xf] %vm8075, %v8039
        %8105 = vst.msk [vmem:[%s196 + $0x74] sm:$0xf] %vm8075, %v8040
        %8106 = vst.msk [vmem:[%s196 + $0x78] sm:$0xf] %vm8075, %v8041
        %8107 = vst.msk [vmem:[%s196 + $0x7c] sm:$0xf] %vm8075, %v8042
        %vm8108 = vcmask 523264
        %v8109 = vsel %vm8108, %v7915, 0.0
        %v8110 = vsel %vm8108, %v7917, 0.0
        %v8111 = vadd.f32 %v8109, %v8110
        %v8112 = vsel %vm8108, %v7919, 0.0
        %v8113 = vadd.f32 %v8111, %v8112
        %v8114 = vsel %vm8108, %v7921, 0.0
        %v8115 = vadd.f32 %v8113, %v8114
        %v8116 = vsel %vm8108, %v7923, 0.0
        %v8117 = vadd.f32 %v8115, %v8116
        %v8118 = vsel %vm8108, %v7925, 0.0
        %v8119 = vadd.f32 %v8117, %v8118
        %v8120 = vsel %vm8108, %v7927, 0.0
        %v8121 = vadd.f32 %v8119, %v8120
        %v8122 = vsel %vm8108, %v7929, 0.0
        %v8123 = vadd.f32 %v8121, %v8122
        %v8124 = vsel %vm8108, %v7931, 0.0
        %v8125 = vadd.f32 %v8123, %v8124
        %v8126 = vsel %vm8108, %v7933, 0.0
        %v8127 = vadd.f32 %v8125, %v8126
        %v8128 = vsel %vm8108, %v7935, 0.0
        %v8129 = vadd.f32 %v8127, %v8128
        %v8130 = vsel %vm8108, %v7937, 0.0
        %v8131 = vadd.f32 %v8129, %v8130
        %v8132 = vsel %vm8108, %v7939, 0.0
        %v8133 = vadd.f32 %v8131, %v8132
        %v8134 = vsel %vm8108, %v7941, 0.0
        %v8135 = vadd.f32 %v8133, %v8134
        %v8136 = vsel %vm8108, %v7943, 0.0
        %v8137 = vadd.f32 %v8135, %v8136
        %v8138 = vsel %vm8108, %v7945, 0.0
        %v8139 = vadd.f32 %v8137, %v8138
        %v8140 = vsel %vm8108, %v7916, 0.0
        %v8141 = vsel %vm8108, %v7918, 0.0
        %v8142 = vadd.f32 %v8140, %v8141
        %v8143 = vsel %vm8108, %v7920, 0.0
        %v8144 = vadd.f32 %v8142, %v8143
        %v8145 = vsel %vm8108, %v7922, 0.0
        %v8146 = vadd.f32 %v8144, %v8145
        %v8147 = vsel %vm8108, %v7924, 0.0
        %v8148 = vadd.f32 %v8146, %v8147
        %v8149 = vsel %vm8108, %v7926, 0.0
        %v8150 = vadd.f32 %v8148, %v8149
        %v8151 = vsel %vm8108, %v7928, 0.0
        %v8152 = vadd.f32 %v8150, %v8151
        %v8153 = vsel %vm8108, %v7930, 0.0
        %v8154 = vadd.f32 %v8152, %v8153
        %v8155 = vsel %vm8108, %v7932, 0.0
        %v8156 = vadd.f32 %v8154, %v8155
        %v8157 = vsel %vm8108, %v7934, 0.0
        %v8158 = vadd.f32 %v8156, %v8157
        %v8159 = vsel %vm8108, %v7936, 0.0
        %v8160 = vadd.f32 %v8158, %v8159
        %v8161 = vsel %vm8108, %v7938, 0.0
        %v8162 = vadd.f32 %v8160, %v8161
        %v8163 = vsel %vm8108, %v7940, 0.0
        %v8164 = vadd.f32 %v8162, %v8163
        %v8165 = vsel %vm8108, %v7942, 0.0
        %v8166 = vadd.f32 %v8164, %v8165
        %v8167 = vsel %vm8108, %v7944, 0.0
        %v8168 = vadd.f32 %v8166, %v8167
        %v8169 = vsel %vm8108, %v7946, 0.0
        %v8170 = vadd.f32 %v8168, %v8169
        %v8171 = vsel %vm8108, %v8139, 0.0
        %v8172 = vsel %vm8108, %v8170, 0.0
        %v8173 = vadd.f32 %v8171, %v8172
        %v8174 = vrot.slane %v8173, 4
        %v8175 = vadd.f32 %v8173, %v8174
        %v8176 = vrot.slane %v8175, 2
        %v8177 = vadd.f32 %v8175, %v8176
        %v8178 = vrot.slane %v8177, 1
        %v8179 = vadd.f32 %v8177, %v8178
        %v8180 = vmul.f32 %v7915, %v7915
        %v8181 = vmul.f32 %v7916, %v7916
        %v8182 = vmul.f32 %v7917, %v7917
        %v8183 = vmul.f32 %v7918, %v7918
        %v8184 = vmul.f32 %v7919, %v7919
        %v8185 = vmul.f32 %v7920, %v7920
        %v8186 = vmul.f32 %v7921, %v7921
        %v8187 = vmul.f32 %v7922, %v7922
        %v8188 = vmul.f32 %v7923, %v7923
        %v8189 = vmul.f32 %v7924, %v7924
        %v8190 = vmul.f32 %v7925, %v7925
        %v8191 = vmul.f32 %v7926, %v7926
        %v8192 = vmul.f32 %v7927, %v7927
        %v8193 = vmul.f32 %v7928, %v7928
        %v8194 = vmul.f32 %v7929, %v7929
        %v8195 = vmul.f32 %v7930, %v7930
        %v8196 = vmul.f32 %v7931, %v7931
        %v8197 = vmul.f32 %v7932, %v7932
        %v8198 = vmul.f32 %v7933, %v7933
        %v8199 = vmul.f32 %v7934, %v7934
        %v8200 = vmul.f32 %v7935, %v7935
        %v8201 = vmul.f32 %v7936, %v7936
        %v8202 = vmul.f32 %v7937, %v7937
        %v8203 = vmul.f32 %v7938, %v7938
        %v8204 = vmul.f32 %v7939, %v7939
        %v8205 = vmul.f32 %v7940, %v7940
        %v8206 = vmul.f32 %v7941, %v7941
        %v8207 = vmul.f32 %v7942, %v7942
        %v8208 = vmul.f32 %v7943, %v7943
        %v8209 = vmul.f32 %v7944, %v7944
        %v8210 = vmul.f32 %v7945, %v7945
        %v8211 = vmul.f32 %v7946, %v7946
        %v8212 = vsel %vm8108, %v8180, 0.0
        %v8213 = vsel %vm8108, %v8182, 0.0
        %v8214 = vadd.f32 %v8212, %v8213
        %v8215 = vsel %vm8108, %v8184, 0.0
        %v8216 = vadd.f32 %v8214, %v8215
        %v8217 = vsel %vm8108, %v8186, 0.0
        %v8218 = vadd.f32 %v8216, %v8217
        %v8219 = vsel %vm8108, %v8188, 0.0
        %v8220 = vadd.f32 %v8218, %v8219
        %v8221 = vsel %vm8108, %v8190, 0.0
        %v8222 = vadd.f32 %v8220, %v8221
        %v8223 = vsel %vm8108, %v8192, 0.0
        %v8224 = vadd.f32 %v8222, %v8223
        %v8225 = vsel %vm8108, %v8194, 0.0
        %v8226 = vadd.f32 %v8224, %v8225
        %v8227 = vsel %vm8108, %v8196, 0.0
        %v8228 = vadd.f32 %v8226, %v8227
        %v8229 = vsel %vm8108, %v8198, 0.0
        %v8230 = vadd.f32 %v8228, %v8229
        %v8231 = vsel %vm8108, %v8200, 0.0
        %v8232 = vadd.f32 %v8230, %v8231
        %v8233 = vsel %vm8108, %v8202, 0.0
        %v8234 = vadd.f32 %v8232, %v8233
        %v8235 = vsel %vm8108, %v8204, 0.0
        %v8236 = vadd.f32 %v8234, %v8235
        %v8237 = vsel %vm8108, %v8206, 0.0
        %v8238 = vadd.f32 %v8236, %v8237
        %v8239 = vsel %vm8108, %v8208, 0.0
        %v8240 = vadd.f32 %v8238, %v8239
        %v8241 = vsel %vm8108, %v8210, 0.0
        %v8242 = vadd.f32 %v8240, %v8241
        %v8243 = vsel %vm8108, %v8181, 0.0
        %v8244 = vsel %vm8108, %v8183, 0.0
        %v8245 = vadd.f32 %v8243, %v8244
        %v8246 = vsel %vm8108, %v8185, 0.0
        %v8247 = vadd.f32 %v8245, %v8246
        %v8248 = vsel %vm8108, %v8187, 0.0
        %v8249 = vadd.f32 %v8247, %v8248
        %v8250 = vsel %vm8108, %v8189, 0.0
        %v8251 = vadd.f32 %v8249, %v8250
        %v8252 = vsel %vm8108, %v8191, 0.0
        %v8253 = vadd.f32 %v8251, %v8252
        %v8254 = vsel %vm8108, %v8193, 0.0
        %v8255 = vadd.f32 %v8253, %v8254
        %v8256 = vsel %vm8108, %v8195, 0.0
        %v8257 = vadd.f32 %v8255, %v8256
        %v8258 = vsel %vm8108, %v8197, 0.0
        %v8259 = vadd.f32 %v8257, %v8258
        %v8260 = vsel %vm8108, %v8199, 0.0
        %v8261 = vadd.f32 %v8259, %v8260
        %v8262 = vsel %vm8108, %v8201, 0.0
        %v8263 = vadd.f32 %v8261, %v8262
        %v8264 = vsel %vm8108, %v8203, 0.0
        %v8265 = vadd.f32 %v8263, %v8264
        %v8266 = vsel %vm8108, %v8205, 0.0
        %v8267 = vadd.f32 %v8265, %v8266
        %v8268 = vsel %vm8108, %v8207, 0.0
        %v8269 = vadd.f32 %v8267, %v8268
        %v8270 = vsel %vm8108, %v8209, 0.0
        %v8271 = vadd.f32 %v8269, %v8270
        %v8272 = vsel %vm8108, %v8211, 0.0
        %v8273 = vadd.f32 %v8271, %v8272
        %v8274 = vsel %vm8108, %v8242, 0.0
        %v8275 = vsel %vm8108, %v8273, 0.0
        %v8276 = vadd.f32 %v8274, %v8275
        %v8277 = vrot.slane %v8276, 4
        %v8278 = vadd.f32 %v8276, %v8277
        %v8279 = vrot.slane %v8278, 2
        %v8280 = vadd.f32 %v8278, %v8279
        %v8281 = vrot.slane %v8280, 1
        %v8282 = vadd.f32 %v8280, %v8281
        %vm8283 = vcmask 1040384
        %v8284 = vsel %vm8283, %v8179, %v8282
        %vm8285 = vcmask 517120
        %8286 = vst.msk [vmem:[%s203] sm:$0x3] %vm8285, %v8284
        %s8287 = sand.u32 %s95, 1
        %s8288 = scalar_lea.sflag [#allocation3], %s8287
        %s8289 = sand.u32 %s95, 1
        %s8290 = smul.addr %s8289, 128
        %s8291 = scalar_lea.vmem [#allocation2], %s8290
        %s8292 = sand.u32 %s123, 1
        %s8293 = scalar_lea.sflag [#allocation5], %s8292
        %s8294 = sand.u32 %s123, 1
        %s8295 = smul.addr %s8294, 2
        %s8296 = scalar_lea.vmem [#allocation4], %s8295
        // Predicated region
        $region29: #{tpu_custom_call.1} parent=27 // pred_check
          %p8297 = pneg %p105
        $region30: #{tpu_custom_call.1} parent=27 // pred_check_branch
          %8299 = sbr.rel (%p8297) target = $region32
        $region31: #{tpu_custom_call.1} parent=27 // pred_region
          %s8301 = ssub.s32 2048, 2048
          %8302 = vsyncadd %s8288, %s8301
          %s8303 = smul.addr %s25, 32
          %s8304 = sadd.s32 %s26, %s8303
          %s8305 = smul.addr %s8304, 64
          %s8306 = scalar_lea.hbm %s2, %s8305
          %s8307 = sshll.u32 %s8291, 4
          %s8308 = int_to_ptr.vmem [resolvable:$true] %s8307
          %8313 = dma.vmem_to_hbm [thread:$0]  %s8308, 2048, %s8306, %s8288, 64, 64, 4
        $region32: #{tpu_custom_call.1} parent=27 // pred_fallthru
          _
        // Predicated region
        $region33: #{tpu_custom_call.1} parent=27 // pred_check
          %p8314 = pneg %p133
        $region34: #{tpu_custom_call.1} parent=27 // pred_check_branch
          %8316 = sbr.rel (%p8314) target = $region36
        $region35: #{tpu_custom_call.1} parent=27 // pred_region
          %s8318 = ssub.s32 32, 32
          %8319 = vsyncadd %s8293, %s8318
          %s8320 = sadd.s32 %s26, %s25
          %s8321 = smul.addr %s8320, 32
          %s8322 = scalar_lea.hbm %s3, %s8321
          %s8324 = sshll.u32 %s8296, 4
          %s8325 = int_to_ptr.vmem [resolvable:$true] %s8324
          %8327 = dma.vmem_to_hbm [thread:$0]  %s8325, 32, %s8322, %s8293
        $region36: #{tpu_custom_call.1} parent=27 // pred_fallthru
          _
      $region28: #{tpu_custom_call.1} parent=5 // pred_fallthru
        _
      %p8328 = scmp.le.s32.totalorder 2, %s16
      // Predicated region
      $region37: #{tpu_custom_call.1} parent=5 // pred_check
        %p8329 = pneg %p8328
      $region38: #{tpu_custom_call.1} parent=5 // pred_check_branch
        %8331 = sbr.rel (%p8329) target = $region40
      $region39: #{tpu_custom_call.1} parent=5 // pred_region
        %s8332 = ssub.s32 %s16, 2
        // Predicated region
        $region41: #{tpu_custom_call.1} parent=39 // pred_check
          %p8333 = pneg %p111
        $region42: #{tpu_custom_call.1} parent=39 // pred_check_branch
          %8335 = sbr.rel (%p8333) target = $region44
        $region43: #{tpu_custom_call.1} parent=39 // pred_region
          %s8336 = sand.u32 %s96, 1
          %s8337 = scalar_lea.sflag [#allocation3], %s8336
          %s8338 = sand.u32 %s96, 1
          %s8339 = smul.addr %s8338, 128
          %s8340 = scalar_lea.vmem [#allocation2], %s8339
          %8341 = dma.done %s8337, 2048
        $region44: #{tpu_custom_call.1} parent=39 // pred_fallthru
          _
        // Predicated region
        $region45: #{tpu_custom_call.1} parent=39 // pred_check
          %p8342 = pneg %p139
        $region46: #{tpu_custom_call.1} parent=39 // pred_check_branch
          %8344 = sbr.rel (%p8342) target = $region48
        $region47: #{tpu_custom_call.1} parent=39 // pred_region
          %s8345 = sand.u32 %s124, 1
          %s8346 = scalar_lea.sflag [#allocation5], %s8345
          %s8347 = sand.u32 %s124, 1
          %s8348 = smul.addr %s8347, 2
          %s8349 = scalar_lea.vmem [#allocation4], %s8348
          %8350 = dma.done %s8346, 32
        $region48: #{tpu_custom_call.1} parent=39 // pred_fallthru
          _
      $region40: #{tpu_custom_call.1} parent=5 // pred_fallthru
        _
    $region6: #{tpu_custom_call.1} parent=1 // loop_footer
      %s20 = sadd.s32 1, %s16
    $region7: #{tpu_custom_call.1} parent=1 // loop_footer_branch
      %15 = sbr.rel target = $region3
    $region8: #{tpu_custom_call.1} parent=1 // loop_exit
      _
    %8351 = vsyncpa [#allocation3], 1
    %s8352 = scalar_lea.sflag [#allocation3], 1
    %8353 = vsyncpa %s8352, 1
    %8354 = vsyncpa [#allocation5], 1
    %s8355 = scalar_lea.sflag [#allocation5], 1
    %8356 = vsyncpa %s8355, 1

</llo_original>
